<compile_context>
chip_gen: v7x
topology: tpu7x:2x2x1
jax: 0.10.0
libtpu: 0.0.40
codegen_flags: <defaults>
</compile_context>

<pallas_src>
import jax
import jax.numpy as jnp
from jax.experimental import pallas as pl
from jax.experimental.pallas import tpu as pltpu

# ----------------------------- configuration -----------------------------
B = 2              # batch (demo)
L = 512            # sequence length (demo)
D = 128            # encoder_embed_dim == embedding_dim
TL = 512           # sequence tile (multiple of 8; 512 amortizes step overhead)

V_TOK = 160        # token vocab            nn.Embedding(160, D)
NAF = 64           # num_atom_features      nn.Embedding(NAF, D)
V_CHAIN = 300      # chain vocab            nn.Embedding(300, D)
NATTR = 4          # node_attr feature cols; [:, :, 1:] is used
FM1 = NATTR - 1    # 3
NTS = 32           # psm_config.num_timesteps

# fused gather-table row layout (256-aligned segments):
#   [ token 0:256 | atom 256:384 | chain 384:768 | timestep 768:896 ]
TOK_OFF, TOK_W = 0, 256
ATOM_OFF, ATOM_W = 256, 128
CHAIN_OFF, CHAIN_W = 384, 384
TS_OFF, TS_W = 768, 128
K_TAB = TS_OFF + TS_W            # 896

NCOLS = 5 + FM1                  # packed int columns: tok, aa, chain, ts, clean, na1..3


# ------------------------------- kernel ----------------------------------
def _psm_seq_embed_kernel(
    is_per_ref,      # SMEM (B,) int32
    ints_ref,        # VMEM (1, TL, NCOLS) int32
    tab_ref,         # VMEM (K_TAB, 3*D) bf16   [hi | mid | lo] split table
    x_out_ref,       # (1, TL, D) f32
    te_out_ref,      # (1, TL, D) f32
):
    b = pl.program_id(0)
    f32 = jnp.float32
    bf16 = jnp.bfloat16
    tl = ints_ref.shape[1]
    d = x_out_ref.shape[2]

    ints = ints_ref[0]                 # (TL, NCOLS)
    tok = ints[:, 0:1]
    aa = ints[:, 1:2]
    chain = ints[:, 2:3]
    ts = ints[:, 3:4]
    clean = ints[:, 4:5]
    is_per = is_per_ref[b]             # scalar int32

    # masked token type + molecule mask (PSMSeqEmbedding semantics)
    mask_tok = jnp.where(aa != 0, jnp.int32(157), tok)                # (TL, 1)
    molecule_mask = (tok <= 129) & (tok > 1) & (is_per == 0)          # (TL, 1)

    # ---- narrow per-vocab one-hot / count operands (bf16 at the end) ----
    iota_tok = jax.lax.broadcasted_iota(jnp.int32, (tl, TOK_W), 1)
    oh_tok = (iota_tok == mask_tok).astype(bf16)                      # (TL, 256)

    iota_atom = jax.lax.broadcasted_iota(jnp.int32, (tl, ATOM_W), 1)
    # molecule_mask folded into the (TL,1) index (-1 never matches iota)
    na0 = jnp.where(molecule_mask, ints[:, 5:6], jnp.int32(-1))
    counts = (iota_atom == na0).astype(f32)
    for f in range(1, FM1):                                           # static unroll
        naf = jnp.where(molecule_mask, ints[:, 5 + f:6 + f], jnp.int32(-1))
        counts = counts + (iota_atom == naf).astype(f32)
    counts = counts.astype(bf16)                                      # (TL, 128)

    iota_chain = jax.lax.broadcasted_iota(jnp.int32, (tl, CHAIN_W), 1)
    oh_chain = (iota_chain == chain).astype(bf16)                     # (TL, 384)

    # clean mask folded into the timestep index before the compare
    ts_idx = jnp.where(clean != 0, jnp.int32(-1), ts)                 # (TL, 1)
    iota_ts = jax.lax.broadcasted_iota(jnp.int32, (tl, TS_W), 1)
    oh_ts = (iota_ts == ts_idx).astype(bf16)                          # (TL, 128)

    # ---- exact gather: bf16 dots against hi|mid|lo split table rows ----
    y = jnp.dot(oh_tok, tab_ref[TOK_OFF:TOK_OFF + TOK_W, :],
                preferred_element_type=f32)
    y = y + jnp.dot(counts, tab_ref[ATOM_OFF:ATOM_OFF + ATOM_W, :],
                    preferred_element_type=f32)
    y = y + jnp.dot(oh_chain, tab_ref[CHAIN_OFF:CHAIN_OFF + CHAIN_W, :],
                    preferred_element_type=f32)                       # (TL, 3D) f32
    x_out_ref[0] = y[:, 0:d] + y[:, d:2 * d] + y[:, 2 * d:3 * d]

    yt = jnp.dot(oh_ts, tab_ref[TS_OFF:TS_OFF + TS_W, :],
                 preferred_element_type=f32)                          # (TL, 3D) f32
    te_out_ref[0] = yt[:, 0:d] + yt[:, d:2 * d] + yt[:, 2 * d:3 * d]


# ------------------------------- wrapper ----------------------------------
@jax.jit
def psm_seq_embedding(batched_data, params, time_step, clean_mask, aa_mask):
    token_id = batched_data["token_id"].astype(jnp.int32)       # (B, L)
    chain_id = batched_data["chain_ids"].astype(jnp.int32)      # (B, L)
    is_periodic = batched_data["is_periodic"]                   # (B,) bool
    node_attr = batched_data["node_attr"].astype(jnp.int32)     # (B, L, NATTR)

    Bq, Lq = token_id.shape
    tl = min(TL, Lq)
    assert Lq % tl == 0, "demo assumes L is a multiple of the tile size"
    grid = (Bq, Lq // tl)

    # ---- wrapper-side table prep (tiny, finite index domains) ----
    tab = jnp.zeros((K_TAB, D), jnp.float32)
    tab = tab.at[TOK_OFF:TOK_OFF + V_TOK].set(params["embed_w"])
    tab = tab.at[ATOM_OFF:ATOM_OFF + NAF].set(params["atom_w"])
    tab = tab.at[CHAIN_OFF:CHAIN_OFF + V_CHAIN].set(params["chain_w"])
    # TimeStepEncoder has a finite input domain (NTS ids): precompute all rows.
    h = jnp.dot(params["ts_embed"], params["w1"]) + params["b1"]
    h = jax.nn.gelu(h, approximate=False)       # torch nn.GELU() default = exact erf
    ts_table = jnp.dot(h, params["w2"]) + params["b2"]               # (NTS, D)
    tab = tab.at[TS_OFF:TS_OFF + NTS].set(ts_table)

    # 3-way bf16 split: hi + mid + lo == tab (exact f32 reconstruction).
    hi = tab.astype(jnp.bfloat16)
    r1 = tab - hi.astype(jnp.float32)
    mid = r1.astype(jnp.bfloat16)
    lo = (r1 - mid.astype(jnp.float32)).astype(jnp.bfloat16)
    split_tab = jnp.concatenate([hi, mid, lo], axis=1)               # (K_TAB, 3D) bf16

    # ---- pack all per-token integers into one (B, L, NCOLS) array ----
    packed = jnp.concatenate(
        [token_id[..., None],
         aa_mask.astype(jnp.int32)[..., None],
         chain_id[..., None],
         time_step.astype(jnp.int32)[..., None],
         clean_mask.astype(jnp.int32)[..., None],
         node_attr[:, :, 1:]],
        axis=-1)                                                     # (B, L, 8)

    is_per_i32 = is_periodic.astype(jnp.int32)

    out_spec = pl.BlockSpec((1, tl, D), lambda b, l: (b, l, 0))

    x, time_embed = pl.pallas_call(
        _psm_seq_embed_kernel,
        out_shape=(
            jax.ShapeDtypeStruct((Bq, Lq, D), jnp.float32),
            jax.ShapeDtypeStruct((Bq, Lq, D), jnp.float32),
        ),
        grid=grid,
        in_specs=[
            pl.BlockSpec(memory_space=pltpu.MemorySpace.SMEM),        # is_periodic
            pl.BlockSpec((1, tl, NCOLS), lambda b, l: (b, l, 0)),     # packed ints
            pl.BlockSpec((K_TAB, 3 * D), lambda b, l: (0, 0)),        # split table
        ],
        out_specs=(out_spec, out_spec),
        compiler_params=pltpu.CompilerParams(
            dimension_semantics=("parallel", "parallel")),            # B stays parallel for v7x
    )(is_per_i32, packed, split_tab)

    padding_mask = token_id == 0      # trivial elementwise glue
    return x, padding_mask, time_embed, None, x


def init_params(key):
    ks = jax.random.split(key, 6)
    s = 0.02
    return {
        "embed_w": s * jax.random.normal(ks[0], (V_TOK, D), jnp.float32),
        "atom_w": s * jax.random.normal(ks[1], (NAF, D), jnp.float32),
        "chain_w": s * jax.random.normal(ks[2], (V_CHAIN, D), jnp.float32),
        "ts_embed": s * jax.random.normal(ks[3], (NTS, D), jnp.float32),
        "w1": s * jax.random.normal(ks[4], (D, D), jnp.float32),
        "b1": jnp.zeros((D,), jnp.float32),
        "w2": s * jax.random.normal(ks[5], (D, D), jnp.float32),
        "b2": jnp.zeros((D,), jnp.float32),
    }


def reference(batched_data, params, time_step, clean_mask, aa_mask):
    """Pure-JAX reference of the implemented PSMSeqEmbedding path."""
    token_id = batched_data["token_id"]
    chain_id = batched_data["chain_ids"]
    is_periodic = batched_data["is_periodic"]
    node_attr = batched_data["node_attr"]
    mask_tok = jnp.where(aa_mask, 157, token_id)
    x = params["embed_w"][mask_tok]
    molecule_mask = (token_id <= 129) & (token_id > 1) & (~is_periodic)[:, None]
    atom_emb = params["atom_w"][node_attr[:, :, 1:]].sum(axis=-2)
    atom_emb = jnp.where(molecule_mask[..., None], atom_emb, 0.0)
    x = x + atom_emb + params["chain_w"][chain_id]
    h = jnp.dot(params["ts_embed"], params["w1"]) + params["b1"]
    h = jax.nn.gelu(h, approximate=False)
    ts_tab = jnp.dot(h, params["w2"]) + params["b2"]
    te = ts_tab[time_step]
    te = jnp.where(clean_mask[..., None], 0.0, te)
    return x, te


if __name__ == "__main__":
    key = jax.random.PRNGKey(0)
    k_tok, k_chain, k_per, k_attr, k_ts, k_clean, k_aa, k_param = jax.random.split(key, 8)

    token_id = jax.random.randint(k_tok, (B, L), 0, V_TOK, dtype=jnp.int32)
    chain_ids = jax.random.randint(k_chain, (B, L), 0, V_CHAIN, dtype=jnp.int32)
    is_periodic = jax.random.bernoulli(k_per, 0.5, (B,))
    node_attr = jax.random.randint(k_attr, (B, L, NATTR), 0, NAF, dtype=jnp.int32)
    time_step = jax.random.randint(k_ts, (B, L), 0, NTS, dtype=jnp.int32)
    clean_mask = jax.random.bernoulli(k_clean, 0.3, (B, L))
    aa_mask = jax.random.bernoulli(k_aa, 0.2, (B, L))

    batched_data = {
        "token_id": token_id,
        "chain_ids": chain_ids,
        "is_periodic": is_periodic,
        "node_attr": node_attr,
    }
    params = init_params(k_param)

    x, padding_mask, time_embed, _, x2 = psm_seq_embedding(
        batched_data, params, time_step, clean_mask, aa_mask)
    jax.block_until_ready((x, padding_mask, time_embed, x2))

    assert x.shape == (B, L, D) and time_embed.shape == (B, L, D)
    assert padding_mask.shape == (B, L)

    x_ref, te_ref = reference(batched_data, params, time_step, clean_mask, aa_mask)
    assert jnp.allclose(x, x_ref, atol=1e-4, rtol=1e-4)
    assert jnp.allclose(time_embed, te_ref, atol=1e-4, rtol=1e-4)
    assert bool(jnp.all(padding_mask == (token_id == 0)))
    print("KERNEL_OK")
</pallas_src>

<mosaic_0001>
module attributes {stable_mosaic.version = 11 : i64} {
  func.func @_psm_seq_embed_kernel(%arg0: i32, %arg1: i32, %arg2: memref<2xi32, #tpu.memory_space<smem>>, %arg3: memref<1x512x8xi32, #tpu.memory_space<vmem>>, %arg4: memref<896x384xbf16, #tpu.memory_space<vmem>>, %arg5: memref<1x512x128xf32, #tpu.memory_space<vmem>>, %arg6: memref<1x512x128xf32, #tpu.memory_space<vmem>>) attributes {dimension_semantics = [#tpu.dimension_semantics<parallel>, #tpu.dimension_semantics<parallel>], iteration_bounds = array<i64: 2, 1>, scalar_prefetch = 0 : i64, scratch_operands = 0 : i64, tpu.core_type = #tpu.core_type<tc>, window_params = [{transform_indices = @transform_0, window_bounds = array<i64: 2>}, {transform_indices = @transform_1, window_bounds = array<i64: 1, 512, 8>}, {pipeline_mode = #tpu.pipeline_mode<synchronous>, transform_indices = @transform_2, window_bounds = array<i64: 896, 384>}, {transform_indices = @transform_3, window_bounds = array<i64: 1, 512, 128>}, {transform_indices = @transform_4, window_bounds = array<i64: 1, 512, 128>}]} {
    %c0 = arith.constant 0 : index
    %c0_0 = arith.constant 0 : index
    %c0_1 = arith.constant 0 : index
    %0 = vector.load %arg3[%c0, %c0_0, %c0_1] : memref<1x512x8xi32, #tpu.memory_space<vmem>>, vector<1x512x8xi32>
    %1 = vector.shape_cast %0 : vector<1x512x8xi32> to vector<512x8xi32>
    %2 = vector.extract_strided_slice %1 {offsets = [0, 0], sizes = [512, 1], strides = [1, 1]} : vector<512x8xi32> to vector<512x1xi32>
    %3 = vector.extract_strided_slice %1 {offsets = [0, 1], sizes = [512, 1], strides = [1, 1]} : vector<512x8xi32> to vector<512x1xi32>
    %4 = vector.extract_strided_slice %1 {offsets = [0, 2], sizes = [512, 1], strides = [1, 1]} : vector<512x8xi32> to vector<512x1xi32>
    %5 = vector.extract_strided_slice %1 {offsets = [0, 3], sizes = [512, 1], strides = [1, 1]} : vector<512x8xi32> to vector<512x1xi32>
    %6 = vector.extract_strided_slice %1 {offsets = [0, 4], sizes = [512, 1], strides = [1, 1]} : vector<512x8xi32> to vector<512x1xi32>
    %7 = arith.index_cast %arg0 : i32 to index
    %8 = memref.load %arg2[%7] : memref<2xi32, #tpu.memory_space<smem>>
    %c0_i32 = arith.constant 0 : i32
    %9 = vector.broadcast %c0_i32 : i32 to vector<512x1xi32>
    %10 = arith.cmpi ne, %3, %9 : vector<512x1xi32>
    %c157_i32 = arith.constant 157 : i32
    %11 = vector.broadcast %c157_i32 : i32 to vector<512x1xi32>
    %12 = arith.select %10, %11, %2 : vector<512x1xi1>, vector<512x1xi32>
    %c129_i32 = arith.constant 129 : i32
    %13 = vector.broadcast %c129_i32 : i32 to vector<512x1xi32>
    %14 = arith.cmpi sle, %2, %13 : vector<512x1xi32>
    %c1_i32 = arith.constant 1 : i32
    %15 = vector.broadcast %c1_i32 : i32 to vector<512x1xi32>
    %16 = arith.cmpi sgt, %2, %15 : vector<512x1xi32>
    %17 = arith.andi %14, %16 : vector<512x1xi1>
    %c0_i32_2 = arith.constant 0 : i32
    %18 = arith.cmpi eq, %8, %c0_i32_2 : i32
    %19 = vector.broadcast %18 : i1 to vector<512x1xi1>
    %20 = arith.andi %17, %19 : vector<512x1xi1>
    %21 = tpu.iota {dimensions = array<i32: 1>} : vector<512x256xi32>
    %22 = vector.broadcast %12 : vector<512x1xi32> to vector<512x256xi32>
    %23 = arith.cmpi eq, %21, %22 : vector<512x256xi32>
    %24 = arith.extui %23 : vector<512x256xi1> to vector<512x256xi32>
    %25 = arith.sitofp %24 : vector<512x256xi32> to vector<512x256xf32>
    %26 = arith.truncf %25 : vector<512x256xf32> to vector<512x256xbf16>
    %27 = tpu.iota {dimensions = array<i32: 1>} : vector<512x128xi32>
    %28 = vector.extract_strided_slice %1 {offsets = [0, 5], sizes = [512, 1], strides = [1, 1]} : vector<512x8xi32> to vector<512x1xi32>
    %c-1_i32 = arith.constant -1 : i32
    %29 = vector.broadcast %c-1_i32 : i32 to vector<512x1xi32>
    %30 = arith.select %20, %28, %29 : vector<512x1xi1>, vector<512x1xi32>
    %31 = vector.broadcast %30 : vector<512x1xi32> to vector<512x128xi32>
    %32 = arith.cmpi eq, %27, %31 : vector<512x128xi32>
    %33 = arith.extui %32 : vector<512x128xi1> to vector<512x128xi32>
    %34 = arith.sitofp %33 : vector<512x128xi32> to vector<512x128xf32>
    %35 = vector.extract_strided_slice %1 {offsets = [0, 6], sizes = [512, 1], strides = [1, 1]} : vector<512x8xi32> to vector<512x1xi32>
    %c-1_i32_3 = arith.constant -1 : i32
    %36 = vector.broadcast %c-1_i32_3 : i32 to vector<512x1xi32>
    %37 = arith.select %20, %35, %36 : vector<512x1xi1>, vector<512x1xi32>
    %38 = vector.broadcast %37 : vector<512x1xi32> to vector<512x128xi32>
    %39 = arith.cmpi eq, %27, %38 : vector<512x128xi32>
    %40 = arith.extui %39 : vector<512x128xi1> to vector<512x128xi32>
    %41 = arith.sitofp %40 : vector<512x128xi32> to vector<512x128xf32>
    %42 = arith.addf %34, %41 : vector<512x128xf32>
    %43 = vector.extract_strided_slice %1 {offsets = [0, 7], sizes = [512, 1], strides = [1, 1]} : vector<512x8xi32> to vector<512x1xi32>
    %c-1_i32_4 = arith.constant -1 : i32
    %44 = vector.broadcast %c-1_i32_4 : i32 to vector<512x1xi32>
    %45 = arith.select %20, %43, %44 : vector<512x1xi1>, vector<512x1xi32>
    %46 = vector.broadcast %45 : vector<512x1xi32> to vector<512x128xi32>
    %47 = arith.cmpi eq, %27, %46 : vector<512x128xi32>
    %48 = arith.extui %47 : vector<512x128xi1> to vector<512x128xi32>
    %49 = arith.sitofp %48 : vector<512x128xi32> to vector<512x128xf32>
    %50 = arith.addf %42, %49 : vector<512x128xf32>
    %51 = arith.truncf %50 : vector<512x128xf32> to vector<512x128xbf16>
    %52 = tpu.iota {dimensions = array<i32: 1>} : vector<512x384xi32>
    %53 = vector.broadcast %4 : vector<512x1xi32> to vector<512x384xi32>
    %54 = arith.cmpi eq, %52, %53 : vector<512x384xi32>
    %55 = arith.extui %54 : vector<512x384xi1> to vector<512x384xi32>
    %56 = arith.sitofp %55 : vector<512x384xi32> to vector<512x384xf32>
    %57 = arith.truncf %56 : vector<512x384xf32> to vector<512x384xbf16>
    %c0_i32_5 = arith.constant 0 : i32
    %58 = vector.broadcast %c0_i32_5 : i32 to vector<512x1xi32>
    %59 = arith.cmpi ne, %6, %58 : vector<512x1xi32>
    %c-1_i32_6 = arith.constant -1 : i32
    %60 = vector.broadcast %c-1_i32_6 : i32 to vector<512x1xi32>
    %61 = arith.select %59, %60, %5 : vector<512x1xi1>, vector<512x1xi32>
    %62 = tpu.iota {dimensions = array<i32: 1>} : vector<512x128xi32>
    %63 = vector.broadcast %61 : vector<512x1xi32> to vector<512x128xi32>
    %64 = arith.cmpi eq, %62, %63 : vector<512x128xi32>
    %65 = arith.extui %64 : vector<512x128xi1> to vector<512x128xi32>
    %66 = arith.sitofp %65 : vector<512x128xi32> to vector<512x128xf32>
    %67 = arith.truncf %66 : vector<512x128xf32> to vector<512x128xbf16>
    %c0_7 = arith.constant 0 : index
    %c0_8 = arith.constant 0 : index
    %68 = vector.load %arg4[%c0_7, %c0_8] : memref<896x384xbf16, #tpu.memory_space<vmem>>, vector<256x384xbf16>
    %cst = arith.constant dense<0.000000e+00> : vector<512x384xf32>
    %69 = tpu.matmul %26, %68, %cst {dimension_numbers = #tpu.dot_dimension_numbers<[1], [0], [0], [1], [0, 0, 1, 1], [], []>} : vector<512x256xbf16>, vector<256x384xbf16>, vector<512x384xf32> -> vector<512x384xf32>
    %c256 = arith.constant 256 : index
    %c0_9 = arith.constant 0 : index
    %70 = vector.load %arg4[%c256, %c0_9] : memref<896x384xbf16, #tpu.memory_space<vmem>>, vector<128x384xbf16>
    %cst_10 = arith.constant dense<0.000000e+00> : vector<512x384xf32>
    %71 = tpu.matmul %51, %70, %cst_10 {dimension_numbers = #tpu.dot_dimension_numbers<[1], [0], [0], [1], [0, 0, 1, 1], [], []>} : vector<512x128xbf16>, vector<128x384xbf16>, vector<512x384xf32> -> vector<512x384xf32>
    %72 = arith.addf %69, %71 : vector<512x384xf32>
    %c384 = arith.constant 384 : index
    %c0_11 = arith.constant 0 : index
    %73 = vector.load %arg4[%c384, %c0_11] : memref<896x384xbf16, #tpu.memory_space<vmem>>, vector<384x384xbf16>
    %cst_12 = arith.constant dense<0.000000e+00> : vector<512x384xf32>
    %74 = tpu.matmul %57, %73, %cst_12 {dimension_numbers = #tpu.dot_dimension_numbers<[1], [0], [0], [1], [0, 0, 1, 1], [], []>} : vector<512x384xbf16>, vector<384x384xbf16>, vector<512x384xf32> -> vector<512x384xf32>
    %75 = arith.addf %72, %74 : vector<512x384xf32>
    %76 = vector.extract_strided_slice %75 {offsets = [0, 0], sizes = [512, 128], strides = [1, 1]} : vector<512x384xf32> to vector<512x128xf32>
    %77 = vector.extract_strided_slice %75 {offsets = [0, 128], sizes = [512, 128], strides = [1, 1]} : vector<512x384xf32> to vector<512x128xf32>
    %78 = arith.addf %76, %77 : vector<512x128xf32>
    %79 = vector.extract_strided_slice %75 {offsets = [0, 256], sizes = [512, 128], strides = [1, 1]} : vector<512x384xf32> to vector<512x128xf32>
    %80 = arith.addf %78, %79 : vector<512x128xf32>
    %c0_13 = arith.constant 0 : index
    %c0_14 = arith.constant 0 : index
    %c0_15 = arith.constant 0 : index
    %81 = vector.load %arg5[%c0_13, %c0_14, %c0_15] : memref<1x512x128xf32, #tpu.memory_space<vmem>>, vector<1x512x128xf32>
    %82 = vector.shape_cast %81 : vector<1x512x128xf32> to vector<512x128xf32>
    %83 = vector.shape_cast %80 : vector<512x128xf32> to vector<1x512x128xf32>
    tpu.vector_store %arg5[%c0_13, %c0_14, %c0_15], %83 {strides = array<i32>} : memref<1x512x128xf32, #tpu.memory_space<vmem>>, vector<1x512x128xf32>,
    %c768 = arith.constant 768 : index
    %c0_16 = arith.constant 0 : index
    %84 = vector.load %arg4[%c768, %c0_16] : memref<896x384xbf16, #tpu.memory_space<vmem>>, vector<128x384xbf16>
    %cst_17 = arith.constant dense<0.000000e+00> : vector<512x384xf32>
    %85 = tpu.matmul %67, %84, %cst_17 {dimension_numbers = #tpu.dot_dimension_numbers<[1], [0], [0], [1], [0, 0, 1, 1], [], []>} : vector<512x128xbf16>, vector<128x384xbf16>, vector<512x384xf32> -> vector<512x384xf32>
    %86 = vector.extract_strided_slice %85 {offsets = [0, 0], sizes = [512, 128], strides = [1, 1]} : vector<512x384xf32> to vector<512x128xf32>
    %87 = vector.extract_strided_slice %85 {offsets = [0, 128], sizes = [512, 128], strides = [1, 1]} : vector<512x384xf32> to vector<512x128xf32>
    %88 = arith.addf %86, %87 : vector<512x128xf32>
    %89 = vector.extract_strided_slice %85 {offsets = [0, 256], sizes = [512, 128], strides = [1, 1]} : vector<512x384xf32> to vector<512x128xf32>
    %90 = arith.addf %88, %89 : vector<512x128xf32>
    %c0_18 = arith.constant 0 : index
    %c0_19 = arith.constant 0 : index
    %c0_20 = arith.constant 0 : index
    %91 = vector.load %arg6[%c0_18, %c0_19, %c0_20] : memref<1x512x128xf32, #tpu.memory_space<vmem>>, vector<1x512x128xf32>
    %92 = vector.shape_cast %91 : vector<1x512x128xf32> to vector<512x128xf32>
    %93 = vector.shape_cast %90 : vector<512x128xf32> to vector<1x512x128xf32>
    tpu.vector_store %arg6[%c0_18, %c0_19, %c0_20], %93 {strides = array<i32>} : memref<1x512x128xf32, #tpu.memory_space<vmem>>, vector<1x512x128xf32>,
    return
  }
  func.func @transform_0(%arg0: i32, %arg1: i32) -> i32 {
    %c0_i32 = arith.constant 0 : i32
    %c0_i32_0 = arith.constant 0 : i32
    return %c0_i32 : i32
  }
  func.func @transform_1(%arg0: i32, %arg1: i32) -> (i32, i32, i32) {
    %c0_i32 = arith.constant 0 : i32
    %c0_i32_0 = arith.constant 0 : i32
    return %arg0, %arg1, %c0_i32 : i32, i32, i32
  }
  func.func @transform_2(%arg0: i32, %arg1: i32) -> (i32, i32) {
    %c0_i32 = arith.constant 0 : i32
    %c0_i32_0 = arith.constant 0 : i32
    %c0_i32_1 = arith.constant 0 : i32
    return %c0_i32, %c0_i32_0 : i32, i32
  }
  func.func @transform_3(%arg0: i32, %arg1: i32) -> (i32, i32, i32) {
    %c0_i32 = arith.constant 0 : i32
    %c0_i32_0 = arith.constant 0 : i32
    return %arg0, %arg1, %c0_i32 : i32, i32, i32
  }
  func.func @transform_4(%arg0: i32, %arg1: i32) -> (i32, i32, i32) {
    %c0_i32 = arith.constant 0 : i32
    %c0_i32_0 = arith.constant 0 : i32
    return %arg0, %arg1, %c0_i32 : i32, i32, i32
  }
}

</mosaic_0001>

<llo_original>
// kernel: psm_seq_embedding.1
$region0: #{psm_seq_embedding.1}
  #allocation0 [shape = 'u32[]', space=smem, size = 0x4, offset = 0x4, fixed_abs, tag = 'smem constant byte address 0x4 - core index']
  #allocation1 [shape = 'u32[144,128]{1,0:T(1,128)}', space=vmem, size = 0x12000, scoped, tag = 'internal scratch']
  %s0 = inlined_call_operand.vmem [shape: s32[2], index: 0, kind: input, shape index: {}]
  %s1 = inlined_call_operand.vmem [shape: s32[2,512,8], index: 1, kind: input, shape index: {}]
  %s2 = inlined_call_operand.vmem [shape: bf16[896,384], index: 2, kind: input, shape index: {}]
  %s3 = inlined_call_operand.vmem [shape: f32[2,512,128], index: 3, kind: output, shape index: {0}]
  %s4 = inlined_call_operand.hbm [shape: f32[2,512,128], index: 4, kind: output, shape index: {1}]
  %5 = xla_tuple %s3, %s4
  %s6 = sld [smem:[#allocation0]]
  $region57: #{psm_seq_embedding.1} parent=0
    _
  %s8 = ssub.s32 1, %s6
  %s9 = scalar_select 0, %s8, %s6
  $region1: #{psm_seq_embedding.1} parent=0
    #allocation2 [shape = 'u8[512]{0}', space=smem, size = 0x200, scoped, tag = 'input window, operand 0, single buffered']
    #allocation3 [shape = 's32[2]{0}', space=sflag, size = 0x8, scoped, tag = 'scoped memory for psm_seq_embedding.1']
    #allocation4 [shape = 's32[2]{0}', space=sflag, size = 0x8, scoped, tag = 'scoped memory for psm_seq_embedding.1']
    #allocation5 [shape = 'u8[524288]{0}', space=vmem, size = 0x80000, scoped, tag = 'output window, operand 1']
    %10 = vsyncpa [#allocation4], 0
    %11 = vsyncpa [#allocation3], 0
    %s12 = scalar_lea.sflag [#allocation3], 1
    %13 = vsyncpa %s12, 0
    loop: start=0, step=1, limit=4
    $region2: #{psm_seq_embedding.1} parent=1 // loop_pre_header
      _
    $region3: #{psm_seq_embedding.1} parent=1 // loop_header
      %s15 = sphi 0, %s19
      %p16 = scmp.ge.s32.totalorder %s15, 4
      %s22 = sphi 0, %s34
      %s23 = sphi 0, %s30
      %s24 = sphi 0, %s22
      %s25 = sphi 0, %s23
      %s26 = sphi 0, %s24
      %s27 = sphi 0, %s25
      %s35 = sphi 0, %s35
      %s37 = sphi 0, %s35
      %s38 = sphi 0, %s37
      %s52 = sphi 0, %s38
      %s60 = sphi 0, %s62
      %s63 = sphi 0, %s60
      %s64 = sphi 0, %s63
      %s80 = sphi 0, %s64
      %s84 = sphi 0, %s84
      %s86 = sphi 0, %s84
      %s87 = sphi 0, %s86
      %s101 = sphi 0, %s87
      %s109 = sphi 0, %s111
      %s112 = sphi 0, %s109
      %s113 = sphi 0, %s112
      %s129 = sphi 0, %s113
      %s137 = sphi 0, %s139
      %s140 = sphi 0, %s137
      %s141 = sphi 0, %s140
      %s157 = sphi 0, %s141
    $region4: #{psm_seq_embedding.1} parent=1 // loop_header_branch
      %18 = sbr.rel (%p16) target = $region8
    $region5: #{psm_seq_embedding.1} parent=1 // loop_body
      %s20 = ssub.s32 %s15, 1
      %s21 = ssub.s32 %s15, 2
      %s28 = sadd.s32 1, %s23
      %p29 = scmp.ge.s32.totalorder %s28, 1
      %s30 = scalar_select %p29, 0, %s28
      %s31 = sadd.s32 1, %s22
      %s32 = scalar_select %p29, %s31, %s22
      %p33 = scmp.ge.s32.totalorder %s32, 2
      %s34 = scalar_select %p33, 0, %s32
      %s36 = sadd.s32 %s35, 1
      %p39 = scmp.eq.s32.totalorder %s15, 1
      %p40 = scmp.ne.s32.totalorder %s35, %s37
      %p41 = scmp.eq.s32.totalorder %s15, 0
      %p42 = por %p40, %p41
      %p43 = scmp.ne.s32.totalorder %s35, %s37
      %p44 = scmp.eq.s32.totalorder %s20, 1
      %p45 = por %p43, %p44
      %p46 = scmp.ne.s32.totalorder %s37, %s38
      %p47 = scmp.eq.s32.totalorder %s20, 0
      %p48 = por %p46, %p47
      %p49 = scmp.ne.s32.totalorder %s37, %s38
      %p50 = scmp.eq.s32.totalorder %s21, 1
      %p51 = por %p49, %p50
      %p53 = scmp.ne.s32.totalorder %s38, %s52
      %p54 = scmp.eq.s32.totalorder %s21, 0
      %p55 = por %p53, %p54
      %s56 = ssub.s32 %s22, %s34
      %s57 = ssub.s32 %s23, %s30
      %s58 = sor.u32 %s56, %s57
      %p59 = scmp.eq.s32.totalorder %s58, 0
      %s61 = sadd.s32 %s60, 1
      %s62 = scalar_select %p59, %s60, %s61
      %p65 = pneg %p59
      %p66 = scmp.eq.s32.totalorder %s15, 1
      %p67 = por %p65, %p66
      %p68 = scmp.ne.s32.totalorder %s60, %s63
      %p69 = scmp.eq.s32.totalorder %s15, 0
      %p70 = por %p68, %p69
      %p71 = scmp.ne.s32.totalorder %s60, %s63
      %p72 = scmp.eq.s32.totalorder %s20, 1
      %p73 = por %p71, %p72
      %p74 = scmp.ne.s32.totalorder %s63, %s64
      %p75 = scmp.eq.s32.totalorder %s20, 0
      %p76 = por %p74, %p75
      %p77 = scmp.ne.s32.totalorder %s63, %s64
      %p78 = scmp.eq.s32.totalorder %s21, 1
      %p79 = por %p77, %p78
      %p81 = scmp.ne.s32.totalorder %s64, %s80
      %p82 = scmp.eq.s32.totalorder %s21, 0
      %p83 = por %p81, %p82
      %s85 = sadd.s32 %s84, 1
      %p88 = scmp.eq.s32.totalorder %s15, 1
      %p89 = scmp.ne.s32.totalorder %s84, %s86
      %p90 = scmp.eq.s32.totalorder %s15, 0
      %p91 = por %p89, %p90
      %p92 = scmp.ne.s32.totalorder %s84, %s86
      %p93 = scmp.eq.s32.totalorder %s20, 1
      %p94 = por %p92, %p93
      %p95 = scmp.ne.s32.totalorder %s86, %s87
      %p96 = scmp.eq.s32.totalorder %s20, 0
      %p97 = por %p95, %p96
      %p98 = scmp.ne.s32.totalorder %s86, %s87
      %p99 = scmp.eq.s32.totalorder %s21, 1
      %p100 = por %p98, %p99
      %p102 = scmp.ne.s32.totalorder %s87, %s101
      %p103 = scmp.eq.s32.totalorder %s21, 0
      %p104 = por %p102, %p103
      %s105 = ssub.s32 %s22, %s34
      %s106 = ssub.s32 %s23, %s30
      %s107 = sor.u32 %s105, %s106
      %p108 = scmp.eq.s32.totalorder %s107, 0
      %s110 = sadd.s32 %s109, 1
      %s111 = scalar_select %p108, %s109, %s110
      %p114 = pneg %p108
      %p115 = scmp.eq.s32.totalorder %s15, 1
      %p116 = por %p114, %p115
      %p117 = scmp.ne.s32.totalorder %s109, %s112
      %p118 = scmp.eq.s32.totalorder %s15, 0
      %p119 = por %p117, %p118
      %p120 = scmp.ne.s32.totalorder %s109, %s112
      %p121 = scmp.eq.s32.totalorder %s20, 1
      %p122 = por %p120, %p121
      %p123 = scmp.ne.s32.totalorder %s112, %s113
      %p124 = scmp.eq.s32.totalorder %s20, 0
      %p125 = por %p123, %p124
      %p126 = scmp.ne.s32.totalorder %s112, %s113
      %p127 = scmp.eq.s32.totalorder %s21, 1
      %p128 = por %p126, %p127
      %p130 = scmp.ne.s32.totalorder %s113, %s129
      %p131 = scmp.eq.s32.totalorder %s21, 0
      %p132 = por %p130, %p131
      %s133 = ssub.s32 %s22, %s34
      %s134 = ssub.s32 %s23, %s30
      %s135 = sor.u32 %s133, %s134
      %p136 = scmp.eq.s32.totalorder %s135, 0
      %s138 = sadd.s32 %s137, 1
      %s139 = scalar_select %p136, %s137, %s138
      %p142 = pneg %p136
      %p143 = scmp.eq.s32.totalorder %s15, 1
      %p144 = por %p142, %p143
      %p145 = scmp.ne.s32.totalorder %s137, %s140
      %p146 = scmp.eq.s32.totalorder %s15, 0
      %p147 = por %p145, %p146
      %p148 = scmp.ne.s32.totalorder %s137, %s140
      %p149 = scmp.eq.s32.totalorder %s20, 1
      %p150 = por %p148, %p149
      %p151 = scmp.ne.s32.totalorder %s140, %s141
      %p152 = scmp.eq.s32.totalorder %s20, 0
      %p153 = por %p151, %p152
      %p154 = scmp.ne.s32.totalorder %s140, %s141
      %p155 = scmp.eq.s32.totalorder %s21, 1
      %p156 = por %p154, %p155
      %p158 = scmp.ne.s32.totalorder %s141, %s157
      %p159 = scmp.eq.s32.totalorder %s21, 0
      %p160 = por %p158, %p159
      %p161 = scmp.le.s32.totalorder 1, %s15
      %p162 = scmp.lt.s32.totalorder %s15, 3
      %p163 = pnand %p161, %p162
      %p164 = pneg %p163
      // Predicated region
      $region9: #{psm_seq_embedding.1} parent=5 // pred_check
        _
      $region10: #{psm_seq_embedding.1} parent=5 // pred_check_branch
        %166 = sbr.rel (%p163) target = $region12
      $region11: #{psm_seq_embedding.1} parent=5 // pred_region
        %s167 = ssub.s32 %s15, 1
        // Predicated region
        $region13: #{psm_seq_embedding.1} parent=11 // pred_check
          %p168 = pneg %p48
        $region14: #{psm_seq_embedding.1} parent=11 // pred_check_branch
          %170 = sbr.rel (%p168) target = $region16
        $region15: #{psm_seq_embedding.1} parent=11 // pred_region
          %s172 = ssub.s32 16, 16
          %173 = vsyncadd [#allocation4], %s172
          %s175 = sshll.u32 %s0, 4
          %s176 = int_to_ptr.vmem [resolvable:$true] %s175
          %178 = dma.vmem_to_smem %s176, 16, [#allocation2], [#allocation4]
        $region16: #{psm_seq_embedding.1} parent=11 // pred_fallthru
          _
        // Predicated region
        $region17: #{psm_seq_embedding.1} parent=11 // pred_check
          %p179 = pneg %p97
        $region18: #{psm_seq_embedding.1} parent=11 // pred_check_branch
          %181 = sbr.rel (%p179) target = $region20
        $region19: #{psm_seq_embedding.1} parent=11 // pred_region
          _
        $region20: #{psm_seq_embedding.1} parent=11 // pred_fallthru
          _
      $region12: #{psm_seq_embedding.1} parent=5 // pred_fallthru
        _
      %p182 = scmp.lt.s32.totalorder %s15, 2
      // Predicated region
      $region21: #{psm_seq_embedding.1} parent=5 // pred_check
        %p183 = pneg %p182
      $region22: #{psm_seq_embedding.1} parent=5 // pred_check_branch
        %185 = sbr.rel (%p183) target = $region24
      $region23: #{psm_seq_embedding.1} parent=5 // pred_region
        // Predicated region
        $region25: #{psm_seq_embedding.1} parent=23 // pred_check
          %p186 = pneg %p70
        $region26: #{psm_seq_embedding.1} parent=23 // pred_check_branch
          %188 = sbr.rel (%p186) target = $region28
        $region27: #{psm_seq_embedding.1} parent=23 // pred_region
          %s189 = smul.u32 64, %s23
          %p190 = scmp.lt.s32.totalorder %s22, 1
          %s191 = scalar_select %p190, %s22, 1
          %p192 = scmp.lt.s32.totalorder %s189, 63
          %s193 = scalar_select %p192, %s189, 63
          %s194 = smul.addr %s191, 64
          %s195 = sadd.s32 %s193, %s194
          %s196 = smul.addr %s195, 8
          %s197 = scalar_lea.vmem %s1, %s196
          %s198 = smul.u32 64, %s23
        $region28: #{psm_seq_embedding.1} parent=23 // pred_fallthru
          _
      $region24: #{psm_seq_embedding.1} parent=5 // pred_fallthru
        _
      %p199 = scmp.le.s32.totalorder 1, %s15
      %p200 = scmp.lt.s32.totalorder %s15, 3
      %p201 = pnand %p199, %p200
      %p202 = pneg %p201
      // Predicated region
      $region29: #{psm_seq_embedding.1} parent=5 // pred_check
        _
      $region30: #{psm_seq_embedding.1} parent=5 // pred_check_branch
        %204 = sbr.rel (%p201) target = $region32
      $region31: #{psm_seq_embedding.1} parent=5 // pred_region
        %s205 = ssub.s32 %s15, 1
        // Predicated region
        $region33: #{psm_seq_embedding.1} parent=31 // pred_check
          %p206 = pneg %p48
        $region34: #{psm_seq_embedding.1} parent=31 // pred_check_branch
          %208 = sbr.rel (%p206) target = $region36
        $region35: #{psm_seq_embedding.1} parent=31 // pred_region
          %209 = dma.done [#allocation4], 16
        $region36: #{psm_seq_embedding.1} parent=31 // pred_fallthru
          _
        %210 = sfence
        %p211 = pneg %p48
        %p212 = pneg %p45
        %s213 = smul.u32 64, %s25
        %p214 = scmp.lt.s32.totalorder %s24, 1
        %s215 = scalar_select %p214, %s24, 1
        %p216 = scmp.lt.s32.totalorder %s213, 63
        %s217 = scalar_select %p216, %s213, 63
        %s218 = smul.addr %s215, 64
        %s219 = sadd.s32 %s217, %s218
        %s220 = smul.addr %s219, 8
        %s221 = scalar_lea.vmem %s1, %s220
        %p222 = pneg %p76
        %p223 = pneg %p73
        %p224 = pneg %p97
        %p225 = pneg %p94
        %p226 = pneg %p125
        %p227 = pneg %p122
        %s228 = smul.u32 64, %s25
        %p229 = scmp.lt.s32.totalorder %s24, 1
        %s230 = scalar_select %p229, %s24, 1
        %p231 = scmp.lt.s32.totalorder %s228, 63
        %s232 = scalar_select %p231, %s228, 63
        %s233 = smul.addr %s230, 64
        %s234 = sadd.s32 %s232, %s233
        %s235 = smul.addr %s234, 8
        %s236 = scalar_lea.vmem %s3, %s235
        %p237 = pneg %p153
        %p238 = pneg %p150
        %s239 = sand.u32 %s140, 1
        %s240 = scalar_lea.sflag [#allocation3], %s239
        %s241 = sand.u32 %s140, 1
        %s242 = smul.addr %s241, 512
        %s243 = scalar_lea.vmem [#allocation5], %s242
        %s244 = smul.u32 64, %s25
        %p245 = scmp.lt.s32.totalorder %s24, 1
        %s246 = scalar_select %p245, %s24, 1
        %p247 = scmp.lt.s32.totalorder %s244, 63
        %s248 = scalar_select %p247, %s244, 63
        %s249 = smul.addr %s246, 64
        %s250 = sadd.s32 %s248, %s249
        %s251 = smul.addr %s250, 8
        %s252 = scalar_lea.vmem %s1, %s251
        %s253 = smul.u32 64, %s25
        %s254 = smul.u32 64, %s25
        %p255 = scmp.lt.s32.totalorder %s24, 1
        %s256 = scalar_select %p255, %s24, 1
        %p257 = scmp.lt.s32.totalorder %s254, 63
        %s258 = scalar_select %p257, %s254, 63
        %s259 = smul.addr %s256, 64
        %s260 = sadd.s32 %s258, %s259
        %s261 = smul.addr %s260, 8
        %s262 = scalar_lea.vmem %s3, %s261
        %s263 = smul.u32 64, %s25
        %s264 = smul.u32 64, %s25
        %v266 = vld [vmem:[%s252] sm:$0xff]
        %v267 = vld [vmem:[%s252 + $0x8] sm:$0xff]
        %v268 = vld [vmem:[%s252 + $0x10] sm:$0xff]
        %v269 = vld [vmem:[%s252 + $0x18] sm:$0xff]
        %v270 = vld [vmem:[%s252 + $0x20] sm:$0xff]
        %v271 = vld [vmem:[%s252 + $0x28] sm:$0xff]
        %v272 = vld [vmem:[%s252 + $0x30] sm:$0xff]
        %v273 = vld [vmem:[%s252 + $0x38] sm:$0xff]
        %v274 = vld [vmem:[%s252 + $0x40] sm:$0xff]
        %v275 = vld [vmem:[%s252 + $0x48] sm:$0xff]
        %v276 = vld [vmem:[%s252 + $0x50] sm:$0xff]
        %v277 = vld [vmem:[%s252 + $0x58] sm:$0xff]
        %v278 = vld [vmem:[%s252 + $0x60] sm:$0xff]
        %v279 = vld [vmem:[%s252 + $0x68] sm:$0xff]
        %v280 = vld [vmem:[%s252 + $0x70] sm:$0xff]
        %v281 = vld [vmem:[%s252 + $0x78] sm:$0xff]
        %v282 = vld [vmem:[%s252 + $0x80] sm:$0xff]
        %v283 = vld [vmem:[%s252 + $0x88] sm:$0xff]
        %v284 = vld [vmem:[%s252 + $0x90] sm:$0xff]
        %v285 = vld [vmem:[%s252 + $0x98] sm:$0xff]
        %v286 = vld [vmem:[%s252 + $0xa0] sm:$0xff]
        %v287 = vld [vmem:[%s252 + $0xa8] sm:$0xff]
        %v288 = vld [vmem:[%s252 + $0xb0] sm:$0xff]
        %v289 = vld [vmem:[%s252 + $0xb8] sm:$0xff]
        %v290 = vld [vmem:[%s252 + $0xc0] sm:$0xff]
        %v291 = vld [vmem:[%s252 + $0xc8] sm:$0xff]
        %v292 = vld [vmem:[%s252 + $0xd0] sm:$0xff]
        %v293 = vld [vmem:[%s252 + $0xd8] sm:$0xff]
        %v294 = vld [vmem:[%s252 + $0xe0] sm:$0xff]
        %v295 = vld [vmem:[%s252 + $0xe8] sm:$0xff]
        %v296 = vld [vmem:[%s252 + $0xf0] sm:$0xff]
        %v297 = vld [vmem:[%s252 + $0xf8] sm:$0xff]
        %v298 = vld [vmem:[%s252 + $0x100] sm:$0xff]
        %v299 = vld [vmem:[%s252 + $0x108] sm:$0xff]
        %v300 = vld [vmem:[%s252 + $0x110] sm:$0xff]
        %v301 = vld [vmem:[%s252 + $0x118] sm:$0xff]
        %v302 = vld [vmem:[%s252 + $0x120] sm:$0xff]
        %v303 = vld [vmem:[%s252 + $0x128] sm:$0xff]
        %v304 = vld [vmem:[%s252 + $0x130] sm:$0xff]
        %v305 = vld [vmem:[%s252 + $0x138] sm:$0xff]
        %v306 = vld [vmem:[%s252 + $0x140] sm:$0xff]
        %v307 = vld [vmem:[%s252 + $0x148] sm:$0xff]
        %v308 = vld [vmem:[%s252 + $0x150] sm:$0xff]
        %v309 = vld [vmem:[%s252 + $0x158] sm:$0xff]
        %v310 = vld [vmem:[%s252 + $0x160] sm:$0xff]
        %v311 = vld [vmem:[%s252 + $0x168] sm:$0xff]
        %v312 = vld [vmem:[%s252 + $0x170] sm:$0xff]
        %v313 = vld [vmem:[%s252 + $0x178] sm:$0xff]
        %v314 = vld [vmem:[%s252 + $0x180] sm:$0xff]
        %v315 = vld [vmem:[%s252 + $0x188] sm:$0xff]
        %v316 = vld [vmem:[%s252 + $0x190] sm:$0xff]
        %v317 = vld [vmem:[%s252 + $0x198] sm:$0xff]
        %v318 = vld [vmem:[%s252 + $0x1a0] sm:$0xff]
        %v319 = vld [vmem:[%s252 + $0x1a8] sm:$0xff]
        %v320 = vld [vmem:[%s252 + $0x1b0] sm:$0xff]
        %v321 = vld [vmem:[%s252 + $0x1b8] sm:$0xff]
        %v322 = vld [vmem:[%s252 + $0x1c0] sm:$0xff]
        %v323 = vld [vmem:[%s252 + $0x1c8] sm:$0xff]
        %v324 = vld [vmem:[%s252 + $0x1d0] sm:$0xff]
        %v325 = vld [vmem:[%s252 + $0x1d8] sm:$0xff]
        %v326 = vld [vmem:[%s252 + $0x1e0] sm:$0xff]
        %v327 = vld [vmem:[%s252 + $0x1e8] sm:$0xff]
        %v328 = vld [vmem:[%s252 + $0x1f0] sm:$0xff]
        %v329 = vld [vmem:[%s252 + $0x1f8] sm:$0xff]
        %s330 = sld [smem:[#allocation2 + %s24]]
        %vm331 = vcmp.ne.s32.totalorder %v266, 0
        %vm332 = vcmp.ne.s32.totalorder %v267, 0
        %vm333 = vcmp.ne.s32.totalorder %v268, 0
        %vm334 = vcmp.ne.s32.totalorder %v269, 0
        %vm335 = vcmp.ne.s32.totalorder %v270, 0
        %vm336 = vcmp.ne.s32.totalorder %v271, 0
        %vm337 = vcmp.ne.s32.totalorder %v272, 0
        %vm338 = vcmp.ne.s32.totalorder %v273, 0
        %vm339 = vcmp.ne.s32.totalorder %v274, 0
        %vm340 = vcmp.ne.s32.totalorder %v275, 0
        %vm341 = vcmp.ne.s32.totalorder %v276, 0
        %vm342 = vcmp.ne.s32.totalorder %v277, 0
        %vm343 = vcmp.ne.s32.totalorder %v278, 0
        %vm344 = vcmp.ne.s32.totalorder %v279, 0
        %vm345 = vcmp.ne.s32.totalorder %v280, 0
        %vm346 = vcmp.ne.s32.totalorder %v281, 0
        %vm347 = vcmp.ne.s32.totalorder %v282, 0
        %vm348 = vcmp.ne.s32.totalorder %v283, 0
        %vm349 = vcmp.ne.s32.totalorder %v284, 0
        %vm350 = vcmp.ne.s32.totalorder %v285, 0
        %vm351 = vcmp.ne.s32.totalorder %v286, 0
        %vm352 = vcmp.ne.s32.totalorder %v287, 0
        %vm353 = vcmp.ne.s32.totalorder %v288, 0
        %vm354 = vcmp.ne.s32.totalorder %v289, 0
        %vm355 = vcmp.ne.s32.totalorder %v290, 0
        %vm356 = vcmp.ne.s32.totalorder %v291, 0
        %vm357 = vcmp.ne.s32.totalorder %v292, 0
        %vm358 = vcmp.ne.s32.totalorder %v293, 0
        %vm359 = vcmp.ne.s32.totalorder %v294, 0
        %vm360 = vcmp.ne.s32.totalorder %v295, 0
        %vm361 = vcmp.ne.s32.totalorder %v296, 0
        %vm362 = vcmp.ne.s32.totalorder %v297, 0
        %vm363 = vcmp.ne.s32.totalorder %v298, 0
        %vm364 = vcmp.ne.s32.totalorder %v299, 0
        %vm365 = vcmp.ne.s32.totalorder %v300, 0
        %vm366 = vcmp.ne.s32.totalorder %v301, 0
        %vm367 = vcmp.ne.s32.totalorder %v302, 0
        %vm368 = vcmp.ne.s32.totalorder %v303, 0
        %vm369 = vcmp.ne.s32.totalorder %v304, 0
        %vm370 = vcmp.ne.s32.totalorder %v305, 0
        %vm371 = vcmp.ne.s32.totalorder %v306, 0
        %vm372 = vcmp.ne.s32.totalorder %v307, 0
        %vm373 = vcmp.ne.s32.totalorder %v308, 0
        %vm374 = vcmp.ne.s32.totalorder %v309, 0
        %vm375 = vcmp.ne.s32.totalorder %v310, 0
        %vm376 = vcmp.ne.s32.totalorder %v311, 0
        %vm377 = vcmp.ne.s32.totalorder %v312, 0
        %vm378 = vcmp.ne.s32.totalorder %v313, 0
        %vm379 = vcmp.ne.s32.totalorder %v314, 0
        %vm380 = vcmp.ne.s32.totalorder %v315, 0
        %vm381 = vcmp.ne.s32.totalorder %v316, 0
        %vm382 = vcmp.ne.s32.totalorder %v317, 0
        %vm383 = vcmp.ne.s32.totalorder %v318, 0
        %vm384 = vcmp.ne.s32.totalorder %v319, 0
        %vm385 = vcmp.ne.s32.totalorder %v320, 0
        %vm386 = vcmp.ne.s32.totalorder %v321, 0
        %vm387 = vcmp.ne.s32.totalorder %v322, 0
        %vm388 = vcmp.ne.s32.totalorder %v323, 0
        %vm389 = vcmp.ne.s32.totalorder %v324, 0
        %vm390 = vcmp.ne.s32.totalorder %v325, 0
        %vm391 = vcmp.ne.s32.totalorder %v326, 0
        %vm392 = vcmp.ne.s32.totalorder %v327, 0
        %vm393 = vcmp.ne.s32.totalorder %v328, 0
        %vm394 = vcmp.ne.s32.totalorder %v329, 0
        %395 = vrot.lane.b32.xlu0 %v266, 1
        %v396 = vpop.permute.xlu0 %395
        %397 = vrot.lane.b32.xlu0 %v267, 1
        %v398 = vpop.permute.xlu0 %397
        %399 = vrot.lane.b32.xlu0 %v268, 1
        %v400 = vpop.permute.xlu0 %399
        %401 = vrot.lane.b32.xlu0 %v269, 1
        %v402 = vpop.permute.xlu0 %401
        %403 = vrot.lane.b32.xlu0 %v270, 1
        %v404 = vpop.permute.xlu0 %403
        %405 = vrot.lane.b32.xlu0 %v271, 1
        %v406 = vpop.permute.xlu0 %405
        %407 = vrot.lane.b32.xlu0 %v272, 1
        %v408 = vpop.permute.xlu0 %407
        %409 = vrot.lane.b32.xlu0 %v273, 1
        %v410 = vpop.permute.xlu0 %409
        %411 = vrot.lane.b32.xlu0 %v274, 1
        %v412 = vpop.permute.xlu0 %411
        %413 = vrot.lane.b32.xlu0 %v275, 1
        %v414 = vpop.permute.xlu0 %413
        %415 = vrot.lane.b32.xlu0 %v276, 1
        %v416 = vpop.permute.xlu0 %415
        %417 = vrot.lane.b32.xlu0 %v277, 1
        %v418 = vpop.permute.xlu0 %417
        %419 = vrot.lane.b32.xlu0 %v278, 1
        %v420 = vpop.permute.xlu0 %419
        %421 = vrot.lane.b32.xlu0 %v279, 1
        %v422 = vpop.permute.xlu0 %421
        %423 = vrot.lane.b32.xlu0 %v280, 1
        %v424 = vpop.permute.xlu0 %423
        %425 = vrot.lane.b32.xlu0 %v281, 1
        %v426 = vpop.permute.xlu0 %425
        %427 = vrot.lane.b32.xlu0 %v282, 1
        %v428 = vpop.permute.xlu0 %427
        %429 = vrot.lane.b32.xlu0 %v283, 1
        %v430 = vpop.permute.xlu0 %429
        %431 = vrot.lane.b32.xlu0 %v284, 1
        %v432 = vpop.permute.xlu0 %431
        %433 = vrot.lane.b32.xlu0 %v285, 1
        %v434 = vpop.permute.xlu0 %433
        %435 = vrot.lane.b32.xlu0 %v286, 1
        %v436 = vpop.permute.xlu0 %435
        %437 = vrot.lane.b32.xlu0 %v287, 1
        %v438 = vpop.permute.xlu0 %437
        %439 = vrot.lane.b32.xlu0 %v288, 1
        %v440 = vpop.permute.xlu0 %439
        %441 = vrot.lane.b32.xlu0 %v289, 1
        %v442 = vpop.permute.xlu0 %441
        %443 = vrot.lane.b32.xlu0 %v290, 1
        %v444 = vpop.permute.xlu0 %443
        %445 = vrot.lane.b32.xlu0 %v291, 1
        %v446 = vpop.permute.xlu0 %445
        %447 = vrot.lane.b32.xlu0 %v292, 1
        %v448 = vpop.permute.xlu0 %447
        %449 = vrot.lane.b32.xlu0 %v293, 1
        %v450 = vpop.permute.xlu0 %449
        %451 = vrot.lane.b32.xlu0 %v294, 1
        %v452 = vpop.permute.xlu0 %451
        %453 = vrot.lane.b32.xlu0 %v295, 1
        %v454 = vpop.permute.xlu0 %453
        %455 = vrot.lane.b32.xlu0 %v296, 1
        %v456 = vpop.permute.xlu0 %455
        %457 = vrot.lane.b32.xlu0 %v297, 1
        %v458 = vpop.permute.xlu0 %457
        %459 = vrot.lane.b32.xlu0 %v298, 1
        %v460 = vpop.permute.xlu0 %459
        %461 = vrot.lane.b32.xlu0 %v299, 1
        %v462 = vpop.permute.xlu0 %461
        %463 = vrot.lane.b32.xlu0 %v300, 1
        %v464 = vpop.permute.xlu0 %463
        %465 = vrot.lane.b32.xlu0 %v301, 1
        %v466 = vpop.permute.xlu0 %465
        %467 = vrot.lane.b32.xlu0 %v302, 1
        %v468 = vpop.permute.xlu0 %467
        %469 = vrot.lane.b32.xlu0 %v303, 1
        %v470 = vpop.permute.xlu0 %469
        %471 = vrot.lane.b32.xlu0 %v304, 1
        %v472 = vpop.permute.xlu0 %471
        %473 = vrot.lane.b32.xlu0 %v305, 1
        %v474 = vpop.permute.xlu0 %473
        %475 = vrot.lane.b32.xlu0 %v306, 1
        %v476 = vpop.permute.xlu0 %475
        %477 = vrot.lane.b32.xlu0 %v307, 1
        %v478 = vpop.permute.xlu0 %477
        %479 = vrot.lane.b32.xlu0 %v308, 1
        %v480 = vpop.permute.xlu0 %479
        %481 = vrot.lane.b32.xlu0 %v309, 1
        %v482 = vpop.permute.xlu0 %481
        %483 = vrot.lane.b32.xlu0 %v310, 1
        %v484 = vpop.permute.xlu0 %483
        %485 = vrot.lane.b32.xlu0 %v311, 1
        %v486 = vpop.permute.xlu0 %485
        %487 = vrot.lane.b32.xlu0 %v312, 1
        %v488 = vpop.permute.xlu0 %487
        %489 = vrot.lane.b32.xlu0 %v313, 1
        %v490 = vpop.permute.xlu0 %489
        %491 = vrot.lane.b32.xlu0 %v314, 1
        %v492 = vpop.permute.xlu0 %491
        %493 = vrot.lane.b32.xlu0 %v315, 1
        %v494 = vpop.permute.xlu0 %493
        %495 = vrot.lane.b32.xlu0 %v316, 1
        %v496 = vpop.permute.xlu0 %495
        %497 = vrot.lane.b32.xlu0 %v317, 1
        %v498 = vpop.permute.xlu0 %497
        %499 = vrot.lane.b32.xlu0 %v318, 1
        %v500 = vpop.permute.xlu0 %499
        %501 = vrot.lane.b32.xlu0 %v319, 1
        %v502 = vpop.permute.xlu0 %501
        %503 = vrot.lane.b32.xlu0 %v320, 1
        %v504 = vpop.permute.xlu0 %503
        %505 = vrot.lane.b32.xlu0 %v321, 1
        %v506 = vpop.permute.xlu0 %505
        %507 = vrot.lane.b32.xlu0 %v322, 1
        %v508 = vpop.permute.xlu0 %507
        %509 = vrot.lane.b32.xlu0 %v323, 1
        %v510 = vpop.permute.xlu0 %509
        %511 = vrot.lane.b32.xlu0 %v324, 1
        %v512 = vpop.permute.xlu0 %511
        %513 = vrot.lane.b32.xlu0 %v325, 1
        %v514 = vpop.permute.xlu0 %513
        %515 = vrot.lane.b32.xlu0 %v326, 1
        %v516 = vpop.permute.xlu0 %515
        %517 = vrot.lane.b32.xlu0 %v327, 1
        %v518 = vpop.permute.xlu0 %517
        %519 = vrot.lane.b32.xlu0 %v328, 1
        %v520 = vpop.permute.xlu0 %519
        %521 = vrot.lane.b32.xlu0 %v329, 1
        %v522 = vpop.permute.xlu0 %521
        %v523 = vsel %vm331, 157, %v396
        %v524 = vsel %vm332, 157, %v398
        %v525 = vsel %vm333, 157, %v400
        %v526 = vsel %vm334, 157, %v402
        %v527 = vsel %vm335, 157, %v404
        %v528 = vsel %vm336, 157, %v406
        %v529 = vsel %vm337, 157, %v408
        %v530 = vsel %vm338, 157, %v410
        %v531 = vsel %vm339, 157, %v412
        %v532 = vsel %vm340, 157, %v414
        %v533 = vsel %vm341, 157, %v416
        %v534 = vsel %vm342, 157, %v418
        %v535 = vsel %vm343, 157, %v420
        %v536 = vsel %vm344, 157, %v422
        %v537 = vsel %vm345, 157, %v424
        %v538 = vsel %vm346, 157, %v426
        %v539 = vsel %vm347, 157, %v428
        %v540 = vsel %vm348, 157, %v430
        %v541 = vsel %vm349, 157, %v432
        %v542 = vsel %vm350, 157, %v434
        %v543 = vsel %vm351, 157, %v436
        %v544 = vsel %vm352, 157, %v438
        %v545 = vsel %vm353, 157, %v440
        %v546 = vsel %vm354, 157, %v442
        %v547 = vsel %vm355, 157, %v444
        %v548 = vsel %vm356, 157, %v446
        %v549 = vsel %vm357, 157, %v448
        %v550 = vsel %vm358, 157, %v450
        %v551 = vsel %vm359, 157, %v452
        %v552 = vsel %vm360, 157, %v454
        %v553 = vsel %vm361, 157, %v456
        %v554 = vsel %vm362, 157, %v458
        %v555 = vsel %vm363, 157, %v460
        %v556 = vsel %vm364, 157, %v462
        %v557 = vsel %vm365, 157, %v464
        %v558 = vsel %vm366, 157, %v466
        %v559 = vsel %vm367, 157, %v468
        %v560 = vsel %vm368, 157, %v470
        %v561 = vsel %vm369, 157, %v472
        %v562 = vsel %vm370, 157, %v474
        %v563 = vsel %vm371, 157, %v476
        %v564 = vsel %vm372, 157, %v478
        %v565 = vsel %vm373, 157, %v480
        %v566 = vsel %vm374, 157, %v482
        %v567 = vsel %vm375, 157, %v484
        %v568 = vsel %vm376, 157, %v486
        %v569 = vsel %vm377, 157, %v488
        %v570 = vsel %vm378, 157, %v490
        %v571 = vsel %vm379, 157, %v492
        %v572 = vsel %vm380, 157, %v494
        %v573 = vsel %vm381, 157, %v496
        %v574 = vsel %vm382, 157, %v498
        %v575 = vsel %vm383, 157, %v500
        %v576 = vsel %vm384, 157, %v502
        %v577 = vsel %vm385, 157, %v504
        %v578 = vsel %vm386, 157, %v506
        %v579 = vsel %vm387, 157, %v508
        %v580 = vsel %vm388, 157, %v510
        %v581 = vsel %vm389, 157, %v512
        %v582 = vsel %vm390, 157, %v514
        %v583 = vsel %vm391, 157, %v516
        %v584 = vsel %vm392, 157, %v518
        %v585 = vsel %vm393, 157, %v520
        %v586 = vsel %vm394, 157, %v522
        %vm587 = vcmp.le.s32.totalorder %v266, 129
        %vm588 = vcmp.le.s32.totalorder %v267, 129
        %vm589 = vcmp.le.s32.totalorder %v268, 129
        %vm590 = vcmp.le.s32.totalorder %v269, 129
        %vm591 = vcmp.le.s32.totalorder %v270, 129
        %vm592 = vcmp.le.s32.totalorder %v271, 129
        %vm593 = vcmp.le.s32.totalorder %v272, 129
        %vm594 = vcmp.le.s32.totalorder %v273, 129
        %vm595 = vcmp.le.s32.totalorder %v274, 129
        %vm596 = vcmp.le.s32.totalorder %v275, 129
        %vm597 = vcmp.le.s32.totalorder %v276, 129
        %vm598 = vcmp.le.s32.totalorder %v277, 129
        %vm599 = vcmp.le.s32.totalorder %v278, 129
        %vm600 = vcmp.le.s32.totalorder %v279, 129
        %vm601 = vcmp.le.s32.totalorder %v280, 129
        %vm602 = vcmp.le.s32.totalorder %v281, 129
        %vm603 = vcmp.le.s32.totalorder %v282, 129
        %vm604 = vcmp.le.s32.totalorder %v283, 129
        %vm605 = vcmp.le.s32.totalorder %v284, 129
        %vm606 = vcmp.le.s32.totalorder %v285, 129
        %vm607 = vcmp.le.s32.totalorder %v286, 129
        %vm608 = vcmp.le.s32.totalorder %v287, 129
        %vm609 = vcmp.le.s32.totalorder %v288, 129
        %vm610 = vcmp.le.s32.totalorder %v289, 129
        %vm611 = vcmp.le.s32.totalorder %v290, 129
        %vm612 = vcmp.le.s32.totalorder %v291, 129
        %vm613 = vcmp.le.s32.totalorder %v292, 129
        %vm614 = vcmp.le.s32.totalorder %v293, 129
        %vm615 = vcmp.le.s32.totalorder %v294, 129
        %vm616 = vcmp.le.s32.totalorder %v295, 129
        %vm617 = vcmp.le.s32.totalorder %v296, 129
        %vm618 = vcmp.le.s32.totalorder %v297, 129
        %vm619 = vcmp.le.s32.totalorder %v298, 129
        %vm620 = vcmp.le.s32.totalorder %v299, 129
        %vm621 = vcmp.le.s32.totalorder %v300, 129
        %vm622 = vcmp.le.s32.totalorder %v301, 129
        %vm623 = vcmp.le.s32.totalorder %v302, 129
        %vm624 = vcmp.le.s32.totalorder %v303, 129
        %vm625 = vcmp.le.s32.totalorder %v304, 129
        %vm626 = vcmp.le.s32.totalorder %v305, 129
        %vm627 = vcmp.le.s32.totalorder %v306, 129
        %vm628 = vcmp.le.s32.totalorder %v307, 129
        %vm629 = vcmp.le.s32.totalorder %v308, 129
        %vm630 = vcmp.le.s32.totalorder %v309, 129
        %vm631 = vcmp.le.s32.totalorder %v310, 129
        %vm632 = vcmp.le.s32.totalorder %v311, 129
        %vm633 = vcmp.le.s32.totalorder %v312, 129
        %vm634 = vcmp.le.s32.totalorder %v313, 129
        %vm635 = vcmp.le.s32.totalorder %v314, 129
        %vm636 = vcmp.le.s32.totalorder %v315, 129
        %vm637 = vcmp.le.s32.totalorder %v316, 129
        %vm638 = vcmp.le.s32.totalorder %v317, 129
        %vm639 = vcmp.le.s32.totalorder %v318, 129
        %vm640 = vcmp.le.s32.totalorder %v319, 129
        %vm641 = vcmp.le.s32.totalorder %v320, 129
        %vm642 = vcmp.le.s32.totalorder %v321, 129
        %vm643 = vcmp.le.s32.totalorder %v322, 129
        %vm644 = vcmp.le.s32.totalorder %v323, 129
        %vm645 = vcmp.le.s32.totalorder %v324, 129
        %vm646 = vcmp.le.s32.totalorder %v325, 129
        %vm647 = vcmp.le.s32.totalorder %v326, 129
        %vm648 = vcmp.le.s32.totalorder %v327, 129
        %vm649 = vcmp.le.s32.totalorder %v328, 129
        %vm650 = vcmp.le.s32.totalorder %v329, 129
        %vm651 = vcmp.gt.s32.totalorder %v266, 1
        %vm652 = vcmp.gt.s32.totalorder %v267, 1
        %vm653 = vcmp.gt.s32.totalorder %v268, 1
        %vm654 = vcmp.gt.s32.totalorder %v269, 1
        %vm655 = vcmp.gt.s32.totalorder %v270, 1
        %vm656 = vcmp.gt.s32.totalorder %v271, 1
        %vm657 = vcmp.gt.s32.totalorder %v272, 1
        %vm658 = vcmp.gt.s32.totalorder %v273, 1
        %vm659 = vcmp.gt.s32.totalorder %v274, 1
        %vm660 = vcmp.gt.s32.totalorder %v275, 1
        %vm661 = vcmp.gt.s32.totalorder %v276, 1
        %vm662 = vcmp.gt.s32.totalorder %v277, 1
        %vm663 = vcmp.gt.s32.totalorder %v278, 1
        %vm664 = vcmp.gt.s32.totalorder %v279, 1
        %vm665 = vcmp.gt.s32.totalorder %v280, 1
        %vm666 = vcmp.gt.s32.totalorder %v281, 1
        %vm667 = vcmp.gt.s32.totalorder %v282, 1
        %vm668 = vcmp.gt.s32.totalorder %v283, 1
        %vm669 = vcmp.gt.s32.totalorder %v284, 1
        %vm670 = vcmp.gt.s32.totalorder %v285, 1
        %vm671 = vcmp.gt.s32.totalorder %v286, 1
        %vm672 = vcmp.gt.s32.totalorder %v287, 1
        %vm673 = vcmp.gt.s32.totalorder %v288, 1
        %vm674 = vcmp.gt.s32.totalorder %v289, 1
        %vm675 = vcmp.gt.s32.totalorder %v290, 1
        %vm676 = vcmp.gt.s32.totalorder %v291, 1
        %vm677 = vcmp.gt.s32.totalorder %v292, 1
        %vm678 = vcmp.gt.s32.totalorder %v293, 1
        %vm679 = vcmp.gt.s32.totalorder %v294, 1
        %vm680 = vcmp.gt.s32.totalorder %v295, 1
        %vm681 = vcmp.gt.s32.totalorder %v296, 1
        %vm682 = vcmp.gt.s32.totalorder %v297, 1
        %vm683 = vcmp.gt.s32.totalorder %v298, 1
        %vm684 = vcmp.gt.s32.totalorder %v299, 1
        %vm685 = vcmp.gt.s32.totalorder %v300, 1
        %vm686 = vcmp.gt.s32.totalorder %v301, 1
        %vm687 = vcmp.gt.s32.totalorder %v302, 1
        %vm688 = vcmp.gt.s32.totalorder %v303, 1
        %vm689 = vcmp.gt.s32.totalorder %v304, 1
        %vm690 = vcmp.gt.s32.totalorder %v305, 1
        %vm691 = vcmp.gt.s32.totalorder %v306, 1
        %vm692 = vcmp.gt.s32.totalorder %v307, 1
        %vm693 = vcmp.gt.s32.totalorder %v308, 1
        %vm694 = vcmp.gt.s32.totalorder %v309, 1
        %vm695 = vcmp.gt.s32.totalorder %v310, 1
        %vm696 = vcmp.gt.s32.totalorder %v311, 1
        %vm697 = vcmp.gt.s32.totalorder %v312, 1
        %vm698 = vcmp.gt.s32.totalorder %v313, 1
        %vm699 = vcmp.gt.s32.totalorder %v314, 1
        %vm700 = vcmp.gt.s32.totalorder %v315, 1
        %vm701 = vcmp.gt.s32.totalorder %v316, 1
        %vm702 = vcmp.gt.s32.totalorder %v317, 1
        %vm703 = vcmp.gt.s32.totalorder %v318, 1
        %vm704 = vcmp.gt.s32.totalorder %v319, 1
        %vm705 = vcmp.gt.s32.totalorder %v320, 1
        %vm706 = vcmp.gt.s32.totalorder %v321, 1
        %vm707 = vcmp.gt.s32.totalorder %v322, 1
        %vm708 = vcmp.gt.s32.totalorder %v323, 1
        %vm709 = vcmp.gt.s32.totalorder %v324, 1
        %vm710 = vcmp.gt.s32.totalorder %v325, 1
        %vm711 = vcmp.gt.s32.totalorder %v326, 1
        %vm712 = vcmp.gt.s32.totalorder %v327, 1
        %vm713 = vcmp.gt.s32.totalorder %v328, 1
        %vm714 = vcmp.gt.s32.totalorder %v329, 1
        %vm715 = vmand %vm587, %vm651
        %vm716 = vmand %vm588, %vm652
        %vm717 = vmand %vm589, %vm653
        %vm718 = vmand %vm590, %vm654
        %vm719 = vmand %vm591, %vm655
        %vm720 = vmand %vm592, %vm656
        %vm721 = vmand %vm593, %vm657
        %vm722 = vmand %vm594, %vm658
        %vm723 = vmand %vm595, %vm659
        %vm724 = vmand %vm596, %vm660
        %vm725 = vmand %vm597, %vm661
        %vm726 = vmand %vm598, %vm662
        %vm727 = vmand %vm599, %vm663
        %vm728 = vmand %vm600, %vm664
        %vm729 = vmand %vm601, %vm665
        %vm730 = vmand %vm602, %vm666
        %vm731 = vmand %vm603, %vm667
        %vm732 = vmand %vm604, %vm668
        %vm733 = vmand %vm605, %vm669
        %vm734 = vmand %vm606, %vm670
        %vm735 = vmand %vm607, %vm671
        %vm736 = vmand %vm608, %vm672
        %vm737 = vmand %vm609, %vm673
        %vm738 = vmand %vm610, %vm674
        %vm739 = vmand %vm611, %vm675
        %vm740 = vmand %vm612, %vm676
        %vm741 = vmand %vm613, %vm677
        %vm742 = vmand %vm614, %vm678
        %vm743 = vmand %vm615, %vm679
        %vm744 = vmand %vm616, %vm680
        %vm745 = vmand %vm617, %vm681
        %vm746 = vmand %vm618, %vm682
        %vm747 = vmand %vm619, %vm683
        %vm748 = vmand %vm620, %vm684
        %vm749 = vmand %vm621, %vm685
        %vm750 = vmand %vm622, %vm686
        %vm751 = vmand %vm623, %vm687
        %vm752 = vmand %vm624, %vm688
        %vm753 = vmand %vm625, %vm689
        %vm754 = vmand %vm626, %vm690
        %vm755 = vmand %vm627, %vm691
        %vm756 = vmand %vm628, %vm692
        %vm757 = vmand %vm629, %vm693
        %vm758 = vmand %vm630, %vm694
        %vm759 = vmand %vm631, %vm695
        %vm760 = vmand %vm632, %vm696
        %vm761 = vmand %vm633, %vm697
        %vm762 = vmand %vm634, %vm698
        %vm763 = vmand %vm635, %vm699
        %vm764 = vmand %vm636, %vm700
        %vm765 = vmand %vm637, %vm701
        %vm766 = vmand %vm638, %vm702
        %vm767 = vmand %vm639, %vm703
        %vm768 = vmand %vm640, %vm704
        %vm769 = vmand %vm641, %vm705
        %vm770 = vmand %vm642, %vm706
        %vm771 = vmand %vm643, %vm707
        %vm772 = vmand %vm644, %vm708
        %vm773 = vmand %vm645, %vm709
        %vm774 = vmand %vm646, %vm710
        %vm775 = vmand %vm647, %vm711
        %vm776 = vmand %vm648, %vm712
        %vm777 = vmand %vm649, %vm713
        %vm778 = vmand %vm650, %vm714
        %p779 = scmp.eq.s32.totalorder %s330, 0
        %s780 = scalar_select %p779, 1, 0
        %v781 = vstv %s780
        %vm782 = vcmp.eq.s32.totalorder %v781, 1
        %vm783 = vmand %vm715, %vm782
        %vm784 = vmand %vm716, %vm782
        %vm785 = vmand %vm717, %vm782
        %vm786 = vmand %vm718, %vm782
        %vm787 = vmand %vm719, %vm782
        %vm788 = vmand %vm720, %vm782
        %vm789 = vmand %vm721, %vm782
        %vm790 = vmand %vm722, %vm782
        %vm791 = vmand %vm723, %vm782
        %vm792 = vmand %vm724, %vm782
        %vm793 = vmand %vm725, %vm782
        %vm794 = vmand %vm726, %vm782
        %vm795 = vmand %vm727, %vm782
        %vm796 = vmand %vm728, %vm782
        %vm797 = vmand %vm729, %vm782
        %vm798 = vmand %vm730, %vm782
        %vm799 = vmand %vm731, %vm782
        %vm800 = vmand %vm732, %vm782
        %vm801 = vmand %vm733, %vm782
        %vm802 = vmand %vm734, %vm782
        %vm803 = vmand %vm735, %vm782
        %vm804 = vmand %vm736, %vm782
        %vm805 = vmand %vm737, %vm782
        %vm806 = vmand %vm738, %vm782
        %vm807 = vmand %vm739, %vm782
        %vm808 = vmand %vm740, %vm782
        %vm809 = vmand %vm741, %vm782
        %vm810 = vmand %vm742, %vm782
        %vm811 = vmand %vm743, %vm782
        %vm812 = vmand %vm744, %vm782
        %vm813 = vmand %vm745, %vm782
        %vm814 = vmand %vm746, %vm782
        %vm815 = vmand %vm747, %vm782
        %vm816 = vmand %vm748, %vm782
        %vm817 = vmand %vm749, %vm782
        %vm818 = vmand %vm750, %vm782
        %vm819 = vmand %vm751, %vm782
        %vm820 = vmand %vm752, %vm782
        %vm821 = vmand %vm753, %vm782
        %vm822 = vmand %vm754, %vm782
        %vm823 = vmand %vm755, %vm782
        %vm824 = vmand %vm756, %vm782
        %vm825 = vmand %vm757, %vm782
        %vm826 = vmand %vm758, %vm782
        %vm827 = vmand %vm759, %vm782
        %vm828 = vmand %vm760, %vm782
        %vm829 = vmand %vm761, %vm782
        %vm830 = vmand %vm762, %vm782
        %vm831 = vmand %vm763, %vm782
        %vm832 = vmand %vm764, %vm782
        %vm833 = vmand %vm765, %vm782
        %vm834 = vmand %vm766, %vm782
        %vm835 = vmand %vm767, %vm782
        %vm836 = vmand %vm768, %vm782
        %vm837 = vmand %vm769, %vm782
        %vm838 = vmand %vm770, %vm782
        %vm839 = vmand %vm771, %vm782
        %vm840 = vmand %vm772, %vm782
        %vm841 = vmand %vm773, %vm782
        %vm842 = vmand %vm774, %vm782
        %vm843 = vmand %vm775, %vm782
        %vm844 = vmand %vm776, %vm782
        %vm845 = vmand %vm777, %vm782
        %vm846 = vmand %vm778, %vm782
        %v847 = vlaneseq
        %v848 = vand.u32 %v847, 127
        %v849 = vadd.s32 %v848, 128
        %850 = vset.pattern.permute.xlu0 1
        %851 = vperm.xlu0 %850, %v523
        %v852 = vpop.permute.xlu0 %851
        %853 = vset.pattern.permute.xlu0 1
        %854 = vperm.xlu0 %853, %v524
        %v855 = vpop.permute.xlu0 %854
        %856 = vset.pattern.permute.xlu0 1
        %857 = vperm.xlu0 %856, %v525
        %v858 = vpop.permute.xlu0 %857
        %859 = vset.pattern.permute.xlu0 1
        %860 = vperm.xlu0 %859, %v526
        %v861 = vpop.permute.xlu0 %860
        %862 = vset.pattern.permute.xlu0 1
        %863 = vperm.xlu0 %862, %v527
        %v864 = vpop.permute.xlu0 %863
        %865 = vset.pattern.permute.xlu0 1
        %866 = vperm.xlu0 %865, %v528
        %v867 = vpop.permute.xlu0 %866
        %868 = vset.pattern.permute.xlu0 1
        %869 = vperm.xlu0 %868, %v529
        %v870 = vpop.permute.xlu0 %869
        %871 = vset.pattern.permute.xlu0 1
        %872 = vperm.xlu0 %871, %v530
        %v873 = vpop.permute.xlu0 %872
        %874 = vset.pattern.permute.xlu0 1
        %875 = vperm.xlu0 %874, %v531
        %v876 = vpop.permute.xlu0 %875
        %877 = vset.pattern.permute.xlu0 1
        %878 = vperm.xlu0 %877, %v532
        %v879 = vpop.permute.xlu0 %878
        %880 = vset.pattern.permute.xlu0 1
        %881 = vperm.xlu0 %880, %v533
        %v882 = vpop.permute.xlu0 %881
        %883 = vset.pattern.permute.xlu0 1
        %884 = vperm.xlu0 %883, %v534
        %v885 = vpop.permute.xlu0 %884
        %886 = vset.pattern.permute.xlu0 1
        %887 = vperm.xlu0 %886, %v535
        %v888 = vpop.permute.xlu0 %887
        %889 = vset.pattern.permute.xlu0 1
        %890 = vperm.xlu0 %889, %v536
        %v891 = vpop.permute.xlu0 %890
        %892 = vset.pattern.permute.xlu0 1
        %893 = vperm.xlu0 %892, %v537
        %v894 = vpop.permute.xlu0 %893
        %895 = vset.pattern.permute.xlu0 1
        %896 = vperm.xlu0 %895, %v538
        %v897 = vpop.permute.xlu0 %896
        %898 = vset.pattern.permute.xlu0 1
        %899 = vperm.xlu0 %898, %v539
        %v900 = vpop.permute.xlu0 %899
        %901 = vset.pattern.permute.xlu0 1
        %902 = vperm.xlu0 %901, %v540
        %v903 = vpop.permute.xlu0 %902
        %904 = vset.pattern.permute.xlu0 1
        %905 = vperm.xlu0 %904, %v541
        %v906 = vpop.permute.xlu0 %905
        %907 = vset.pattern.permute.xlu0 1
        %908 = vperm.xlu0 %907, %v542
        %v909 = vpop.permute.xlu0 %908
        %910 = vset.pattern.permute.xlu0 1
        %911 = vperm.xlu0 %910, %v543
        %v912 = vpop.permute.xlu0 %911
        %913 = vset.pattern.permute.xlu0 1
        %914 = vperm.xlu0 %913, %v544
        %v915 = vpop.permute.xlu0 %914
        %916 = vset.pattern.permute.xlu0 1
        %917 = vperm.xlu0 %916, %v545
        %v918 = vpop.permute.xlu0 %917
        %919 = vset.pattern.permute.xlu0 1
        %920 = vperm.xlu0 %919, %v546
        %v921 = vpop.permute.xlu0 %920
        %922 = vset.pattern.permute.xlu0 1
        %923 = vperm.xlu0 %922, %v547
        %v924 = vpop.permute.xlu0 %923
        %925 = vset.pattern.permute.xlu0 1
        %926 = vperm.xlu0 %925, %v548
        %v927 = vpop.permute.xlu0 %926
        %928 = vset.pattern.permute.xlu0 1
        %929 = vperm.xlu0 %928, %v549
        %v930 = vpop.permute.xlu0 %929
        %931 = vset.pattern.permute.xlu0 1
        %932 = vperm.xlu0 %931, %v550
        %v933 = vpop.permute.xlu0 %932
        %934 = vset.pattern.permute.xlu0 1
        %935 = vperm.xlu0 %934, %v551
        %v936 = vpop.permute.xlu0 %935
        %937 = vset.pattern.permute.xlu0 1
        %938 = vperm.xlu0 %937, %v552
        %v939 = vpop.permute.xlu0 %938
        %940 = vset.pattern.permute.xlu0 1
        %941 = vperm.xlu0 %940, %v553
        %v942 = vpop.permute.xlu0 %941
        %943 = vset.pattern.permute.xlu0 1
        %944 = vperm.xlu0 %943, %v554
        %v945 = vpop.permute.xlu0 %944
        %946 = vset.pattern.permute.xlu0 1
        %947 = vperm.xlu0 %946, %v555
        %v948 = vpop.permute.xlu0 %947
        %949 = vset.pattern.permute.xlu0 1
        %950 = vperm.xlu0 %949, %v556
        %v951 = vpop.permute.xlu0 %950
        %952 = vset.pattern.permute.xlu0 1
        %953 = vperm.xlu0 %952, %v557
        %v954 = vpop.permute.xlu0 %953
        %955 = vset.pattern.permute.xlu0 1
        %956 = vperm.xlu0 %955, %v558
        %v957 = vpop.permute.xlu0 %956
        %958 = vset.pattern.permute.xlu0 1
        %959 = vperm.xlu0 %958, %v559
        %v960 = vpop.permute.xlu0 %959
        %961 = vset.pattern.permute.xlu0 1
        %962 = vperm.xlu0 %961, %v560
        %v963 = vpop.permute.xlu0 %962
        %964 = vset.pattern.permute.xlu0 1
        %965 = vperm.xlu0 %964, %v561
        %v966 = vpop.permute.xlu0 %965
        %967 = vset.pattern.permute.xlu0 1
        %968 = vperm.xlu0 %967, %v562
        %v969 = vpop.permute.xlu0 %968
        %970 = vset.pattern.permute.xlu0 1
        %971 = vperm.xlu0 %970, %v563
        %v972 = vpop.permute.xlu0 %971
        %973 = vset.pattern.permute.xlu0 1
        %974 = vperm.xlu0 %973, %v564
        %v975 = vpop.permute.xlu0 %974
        %976 = vset.pattern.permute.xlu0 1
        %977 = vperm.xlu0 %976, %v565
        %v978 = vpop.permute.xlu0 %977
        %979 = vset.pattern.permute.xlu0 1
        %980 = vperm.xlu0 %979, %v566
        %v981 = vpop.permute.xlu0 %980
        %982 = vset.pattern.permute.xlu0 1
        %983 = vperm.xlu0 %982, %v567
        %v984 = vpop.permute.xlu0 %983
        %985 = vset.pattern.permute.xlu0 1
        %986 = vperm.xlu0 %985, %v568
        %v987 = vpop.permute.xlu0 %986
        %988 = vset.pattern.permute.xlu0 1
        %989 = vperm.xlu0 %988, %v569
        %v990 = vpop.permute.xlu0 %989
        %991 = vset.pattern.permute.xlu0 1
        %992 = vperm.xlu0 %991, %v570
        %v993 = vpop.permute.xlu0 %992
        %994 = vset.pattern.permute.xlu0 1
        %995 = vperm.xlu0 %994, %v571
        %v996 = vpop.permute.xlu0 %995
        %997 = vset.pattern.permute.xlu0 1
        %998 = vperm.xlu0 %997, %v572
        %v999 = vpop.permute.xlu0 %998
        %1000 = vset.pattern.permute.xlu0 1
        %1001 = vperm.xlu0 %1000, %v573
        %v1002 = vpop.permute.xlu0 %1001
        %1003 = vset.pattern.permute.xlu0 1
        %1004 = vperm.xlu0 %1003, %v574
        %v1005 = vpop.permute.xlu0 %1004
        %1006 = vset.pattern.permute.xlu0 1
        %1007 = vperm.xlu0 %1006, %v575
        %v1008 = vpop.permute.xlu0 %1007
        %1009 = vset.pattern.permute.xlu0 1
        %1010 = vperm.xlu0 %1009, %v576
        %v1011 = vpop.permute.xlu0 %1010
        %1012 = vset.pattern.permute.xlu0 1
        %1013 = vperm.xlu0 %1012, %v577
        %v1014 = vpop.permute.xlu0 %1013
        %1015 = vset.pattern.permute.xlu0 1
        %1016 = vperm.xlu0 %1015, %v578
        %v1017 = vpop.permute.xlu0 %1016
        %1018 = vset.pattern.permute.xlu0 1
        %1019 = vperm.xlu0 %1018, %v579
        %v1020 = vpop.permute.xlu0 %1019
        %1021 = vset.pattern.permute.xlu0 1
        %1022 = vperm.xlu0 %1021, %v580
        %v1023 = vpop.permute.xlu0 %1022
        %1024 = vset.pattern.permute.xlu0 1
        %1025 = vperm.xlu0 %1024, %v581
        %v1026 = vpop.permute.xlu0 %1025
        %1027 = vset.pattern.permute.xlu0 1
        %1028 = vperm.xlu0 %1027, %v582
        %v1029 = vpop.permute.xlu0 %1028
        %1030 = vset.pattern.permute.xlu0 1
        %1031 = vperm.xlu0 %1030, %v583
        %v1032 = vpop.permute.xlu0 %1031
        %1033 = vset.pattern.permute.xlu0 1
        %1034 = vperm.xlu0 %1033, %v584
        %v1035 = vpop.permute.xlu0 %1034
        %1036 = vset.pattern.permute.xlu0 1
        %1037 = vperm.xlu0 %1036, %v585
        %v1038 = vpop.permute.xlu0 %1037
        %1039 = vset.pattern.permute.xlu0 1
        %1040 = vperm.xlu0 %1039, %v586
        %v1041 = vpop.permute.xlu0 %1040
        %vm1042 = vcmp.eq.s32.totalorder %v848, %v852
        %vm1043 = vcmp.eq.s32.totalorder %v849, %v852
        %vm1044 = vcmp.eq.s32.totalorder %v848, %v855
        %vm1045 = vcmp.eq.s32.totalorder %v849, %v855
        %vm1046 = vcmp.eq.s32.totalorder %v848, %v858
        %vm1047 = vcmp.eq.s32.totalorder %v849, %v858
        %vm1048 = vcmp.eq.s32.totalorder %v848, %v861
        %vm1049 = vcmp.eq.s32.totalorder %v849, %v861
        %vm1050 = vcmp.eq.s32.totalorder %v848, %v864
        %vm1051 = vcmp.eq.s32.totalorder %v849, %v864
        %vm1052 = vcmp.eq.s32.totalorder %v848, %v867
        %vm1053 = vcmp.eq.s32.totalorder %v849, %v867
        %vm1054 = vcmp.eq.s32.totalorder %v848, %v870
        %vm1055 = vcmp.eq.s32.totalorder %v849, %v870
        %vm1056 = vcmp.eq.s32.totalorder %v848, %v873
        %vm1057 = vcmp.eq.s32.totalorder %v849, %v873
        %vm1058 = vcmp.eq.s32.totalorder %v848, %v876
        %vm1059 = vcmp.eq.s32.totalorder %v849, %v876
        %vm1060 = vcmp.eq.s32.totalorder %v848, %v879
        %vm1061 = vcmp.eq.s32.totalorder %v849, %v879
        %vm1062 = vcmp.eq.s32.totalorder %v848, %v882
        %vm1063 = vcmp.eq.s32.totalorder %v849, %v882
        %vm1064 = vcmp.eq.s32.totalorder %v848, %v885
        %vm1065 = vcmp.eq.s32.totalorder %v849, %v885
        %vm1066 = vcmp.eq.s32.totalorder %v848, %v888
        %vm1067 = vcmp.eq.s32.totalorder %v849, %v888
        %vm1068 = vcmp.eq.s32.totalorder %v848, %v891
        %vm1069 = vcmp.eq.s32.totalorder %v849, %v891
        %vm1070 = vcmp.eq.s32.totalorder %v848, %v894
        %vm1071 = vcmp.eq.s32.totalorder %v849, %v894
        %vm1072 = vcmp.eq.s32.totalorder %v848, %v897
        %vm1073 = vcmp.eq.s32.totalorder %v849, %v897
        %vm1074 = vcmp.eq.s32.totalorder %v848, %v900
        %vm1075 = vcmp.eq.s32.totalorder %v849, %v900
        %vm1076 = vcmp.eq.s32.totalorder %v848, %v903
        %vm1077 = vcmp.eq.s32.totalorder %v849, %v903
        %vm1078 = vcmp.eq.s32.totalorder %v848, %v906
        %vm1079 = vcmp.eq.s32.totalorder %v849, %v906
        %vm1080 = vcmp.eq.s32.totalorder %v848, %v909
        %vm1081 = vcmp.eq.s32.totalorder %v849, %v909
        %vm1082 = vcmp.eq.s32.totalorder %v848, %v912
        %vm1083 = vcmp.eq.s32.totalorder %v849, %v912
        %vm1084 = vcmp.eq.s32.totalorder %v848, %v915
        %vm1085 = vcmp.eq.s32.totalorder %v849, %v915
        %vm1086 = vcmp.eq.s32.totalorder %v848, %v918
        %vm1087 = vcmp.eq.s32.totalorder %v849, %v918
        %vm1088 = vcmp.eq.s32.totalorder %v848, %v921
        %vm1089 = vcmp.eq.s32.totalorder %v849, %v921
        %vm1090 = vcmp.eq.s32.totalorder %v848, %v924
        %vm1091 = vcmp.eq.s32.totalorder %v849, %v924
        %vm1092 = vcmp.eq.s32.totalorder %v848, %v927
        %vm1093 = vcmp.eq.s32.totalorder %v849, %v927
        %vm1094 = vcmp.eq.s32.totalorder %v848, %v930
        %vm1095 = vcmp.eq.s32.totalorder %v849, %v930
        %vm1096 = vcmp.eq.s32.totalorder %v848, %v933
        %vm1097 = vcmp.eq.s32.totalorder %v849, %v933
        %vm1098 = vcmp.eq.s32.totalorder %v848, %v936
        %vm1099 = vcmp.eq.s32.totalorder %v849, %v936
        %vm1100 = vcmp.eq.s32.totalorder %v848, %v939
        %vm1101 = vcmp.eq.s32.totalorder %v849, %v939
        %vm1102 = vcmp.eq.s32.totalorder %v848, %v942
        %vm1103 = vcmp.eq.s32.totalorder %v849, %v942
        %vm1104 = vcmp.eq.s32.totalorder %v848, %v945
        %vm1105 = vcmp.eq.s32.totalorder %v849, %v945
        %vm1106 = vcmp.eq.s32.totalorder %v848, %v948
        %vm1107 = vcmp.eq.s32.totalorder %v849, %v948
        %vm1108 = vcmp.eq.s32.totalorder %v848, %v951
        %vm1109 = vcmp.eq.s32.totalorder %v849, %v951
        %vm1110 = vcmp.eq.s32.totalorder %v848, %v954
        %vm1111 = vcmp.eq.s32.totalorder %v849, %v954
        %vm1112 = vcmp.eq.s32.totalorder %v848, %v957
        %vm1113 = vcmp.eq.s32.totalorder %v849, %v957
        %vm1114 = vcmp.eq.s32.totalorder %v848, %v960
        %vm1115 = vcmp.eq.s32.totalorder %v849, %v960
        %vm1116 = vcmp.eq.s32.totalorder %v848, %v963
        %vm1117 = vcmp.eq.s32.totalorder %v849, %v963
        %vm1118 = vcmp.eq.s32.totalorder %v848, %v966
        %vm1119 = vcmp.eq.s32.totalorder %v849, %v966
        %vm1120 = vcmp.eq.s32.totalorder %v848, %v969
        %vm1121 = vcmp.eq.s32.totalorder %v849, %v969
        %vm1122 = vcmp.eq.s32.totalorder %v848, %v972
        %vm1123 = vcmp.eq.s32.totalorder %v849, %v972
        %vm1124 = vcmp.eq.s32.totalorder %v848, %v975
        %vm1125 = vcmp.eq.s32.totalorder %v849, %v975
        %vm1126 = vcmp.eq.s32.totalorder %v848, %v978
        %vm1127 = vcmp.eq.s32.totalorder %v849, %v978
        %vm1128 = vcmp.eq.s32.totalorder %v848, %v981
        %vm1129 = vcmp.eq.s32.totalorder %v849, %v981
        %vm1130 = vcmp.eq.s32.totalorder %v848, %v984
        %vm1131 = vcmp.eq.s32.totalorder %v849, %v984
        %vm1132 = vcmp.eq.s32.totalorder %v848, %v987
        %vm1133 = vcmp.eq.s32.totalorder %v849, %v987
        %vm1134 = vcmp.eq.s32.totalorder %v848, %v990
        %vm1135 = vcmp.eq.s32.totalorder %v849, %v990
        %vm1136 = vcmp.eq.s32.totalorder %v848, %v993
        %vm1137 = vcmp.eq.s32.totalorder %v849, %v993
        %vm1138 = vcmp.eq.s32.totalorder %v848, %v996
        %vm1139 = vcmp.eq.s32.totalorder %v849, %v996
        %vm1140 = vcmp.eq.s32.totalorder %v848, %v999
        %vm1141 = vcmp.eq.s32.totalorder %v849, %v999
        %vm1142 = vcmp.eq.s32.totalorder %v848, %v1002
        %vm1143 = vcmp.eq.s32.totalorder %v849, %v1002
        %vm1144 = vcmp.eq.s32.totalorder %v848, %v1005
        %vm1145 = vcmp.eq.s32.totalorder %v849, %v1005
        %vm1146 = vcmp.eq.s32.totalorder %v848, %v1008
        %vm1147 = vcmp.eq.s32.totalorder %v849, %v1008
        %vm1148 = vcmp.eq.s32.totalorder %v848, %v1011
        %vm1149 = vcmp.eq.s32.totalorder %v849, %v1011
        %vm1150 = vcmp.eq.s32.totalorder %v848, %v1014
        %vm1151 = vcmp.eq.s32.totalorder %v849, %v1014
        %vm1152 = vcmp.eq.s32.totalorder %v848, %v1017
        %vm1153 = vcmp.eq.s32.totalorder %v849, %v1017
        %vm1154 = vcmp.eq.s32.totalorder %v848, %v1020
        %vm1155 = vcmp.eq.s32.totalorder %v849, %v1020
        %vm1156 = vcmp.eq.s32.totalorder %v848, %v1023
        %vm1157 = vcmp.eq.s32.totalorder %v849, %v1023
        %vm1158 = vcmp.eq.s32.totalorder %v848, %v1026
        %vm1159 = vcmp.eq.s32.totalorder %v849, %v1026
        %vm1160 = vcmp.eq.s32.totalorder %v848, %v1029
        %vm1161 = vcmp.eq.s32.totalorder %v849, %v1029
        %vm1162 = vcmp.eq.s32.totalorder %v848, %v1032
        %vm1163 = vcmp.eq.s32.totalorder %v849, %v1032
        %vm1164 = vcmp.eq.s32.totalorder %v848, %v1035
        %vm1165 = vcmp.eq.s32.totalorder %v849, %v1035
        %vm1166 = vcmp.eq.s32.totalorder %v848, %v1038
        %vm1167 = vcmp.eq.s32.totalorder %v849, %v1038
        %vm1168 = vcmp.eq.s32.totalorder %v848, %v1041
        %vm1169 = vcmp.eq.s32.totalorder %v849, %v1041
        %v1170 = vsel %vm1042, 1, 0
        %v1171 = vsel %vm1043, 1, 0
        %v1172 = vsel %vm1044, 1, 0
        %v1173 = vsel %vm1045, 1, 0
        %v1174 = vsel %vm1046, 1, 0
        %v1175 = vsel %vm1047, 1, 0
        %v1176 = vsel %vm1048, 1, 0
        %v1177 = vsel %vm1049, 1, 0
        %v1178 = vsel %vm1050, 1, 0
        %v1179 = vsel %vm1051, 1, 0
        %v1180 = vsel %vm1052, 1, 0
        %v1181 = vsel %vm1053, 1, 0
        %v1182 = vsel %vm1054, 1, 0
        %v1183 = vsel %vm1055, 1, 0
        %v1184 = vsel %vm1056, 1, 0
        %v1185 = vsel %vm1057, 1, 0
        %v1186 = vsel %vm1058, 1, 0
        %v1187 = vsel %vm1059, 1, 0
        %v1188 = vsel %vm1060, 1, 0
        %v1189 = vsel %vm1061, 1, 0
        %v1190 = vsel %vm1062, 1, 0
        %v1191 = vsel %vm1063, 1, 0
        %v1192 = vsel %vm1064, 1, 0
        %v1193 = vsel %vm1065, 1, 0
        %v1194 = vsel %vm1066, 1, 0
        %v1195 = vsel %vm1067, 1, 0
        %v1196 = vsel %vm1068, 1, 0
        %v1197 = vsel %vm1069, 1, 0
        %v1198 = vsel %vm1070, 1, 0
        %v1199 = vsel %vm1071, 1, 0
        %v1200 = vsel %vm1072, 1, 0
        %v1201 = vsel %vm1073, 1, 0
        %v1202 = vsel %vm1074, 1, 0
        %v1203 = vsel %vm1075, 1, 0
        %v1204 = vsel %vm1076, 1, 0
        %v1205 = vsel %vm1077, 1, 0
        %v1206 = vsel %vm1078, 1, 0
        %v1207 = vsel %vm1079, 1, 0
        %v1208 = vsel %vm1080, 1, 0
        %v1209 = vsel %vm1081, 1, 0
        %v1210 = vsel %vm1082, 1, 0
        %v1211 = vsel %vm1083, 1, 0
        %v1212 = vsel %vm1084, 1, 0
        %v1213 = vsel %vm1085, 1, 0
        %v1214 = vsel %vm1086, 1, 0
        %v1215 = vsel %vm1087, 1, 0
        %v1216 = vsel %vm1088, 1, 0
        %v1217 = vsel %vm1089, 1, 0
        %v1218 = vsel %vm1090, 1, 0
        %v1219 = vsel %vm1091, 1, 0
        %v1220 = vsel %vm1092, 1, 0
        %v1221 = vsel %vm1093, 1, 0
        %v1222 = vsel %vm1094, 1, 0
        %v1223 = vsel %vm1095, 1, 0
        %v1224 = vsel %vm1096, 1, 0
        %v1225 = vsel %vm1097, 1, 0
        %v1226 = vsel %vm1098, 1, 0
        %v1227 = vsel %vm1099, 1, 0
        %v1228 = vsel %vm1100, 1, 0
        %v1229 = vsel %vm1101, 1, 0
        %v1230 = vsel %vm1102, 1, 0
        %v1231 = vsel %vm1103, 1, 0
        %v1232 = vsel %vm1104, 1, 0
        %v1233 = vsel %vm1105, 1, 0
        %v1234 = vsel %vm1106, 1, 0
        %v1235 = vsel %vm1107, 1, 0
        %v1236 = vsel %vm1108, 1, 0
        %v1237 = vsel %vm1109, 1, 0
        %v1238 = vsel %vm1110, 1, 0
        %v1239 = vsel %vm1111, 1, 0
        %v1240 = vsel %vm1112, 1, 0
        %v1241 = vsel %vm1113, 1, 0
        %v1242 = vsel %vm1114, 1, 0
        %v1243 = vsel %vm1115, 1, 0
        %v1244 = vsel %vm1116, 1, 0
        %v1245 = vsel %vm1117, 1, 0
        %v1246 = vsel %vm1118, 1, 0
        %v1247 = vsel %vm1119, 1, 0
        %v1248 = vsel %vm1120, 1, 0
        %v1249 = vsel %vm1121, 1, 0
        %v1250 = vsel %vm1122, 1, 0
        %v1251 = vsel %vm1123, 1, 0
        %v1252 = vsel %vm1124, 1, 0
        %v1253 = vsel %vm1125, 1, 0
        %v1254 = vsel %vm1126, 1, 0
        %v1255 = vsel %vm1127, 1, 0
        %v1256 = vsel %vm1128, 1, 0
        %v1257 = vsel %vm1129, 1, 0
        %v1258 = vsel %vm1130, 1, 0
        %v1259 = vsel %vm1131, 1, 0
        %v1260 = vsel %vm1132, 1, 0
        %v1261 = vsel %vm1133, 1, 0
        %v1262 = vsel %vm1134, 1, 0
        %v1263 = vsel %vm1135, 1, 0
        %v1264 = vsel %vm1136, 1, 0
        %v1265 = vsel %vm1137, 1, 0
        %v1266 = vsel %vm1138, 1, 0
        %v1267 = vsel %vm1139, 1, 0
        %v1268 = vsel %vm1140, 1, 0
        %v1269 = vsel %vm1141, 1, 0
        %v1270 = vsel %vm1142, 1, 0
        %v1271 = vsel %vm1143, 1, 0
        %v1272 = vsel %vm1144, 1, 0
        %v1273 = vsel %vm1145, 1, 0
        %v1274 = vsel %vm1146, 1, 0
        %v1275 = vsel %vm1147, 1, 0
        %v1276 = vsel %vm1148, 1, 0
        %v1277 = vsel %vm1149, 1, 0
        %v1278 = vsel %vm1150, 1, 0
        %v1279 = vsel %vm1151, 1, 0
        %v1280 = vsel %vm1152, 1, 0
        %v1281 = vsel %vm1153, 1, 0
        %v1282 = vsel %vm1154, 1, 0
        %v1283 = vsel %vm1155, 1, 0
        %v1284 = vsel %vm1156, 1, 0
        %v1285 = vsel %vm1157, 1, 0
        %v1286 = vsel %vm1158, 1, 0
        %v1287 = vsel %vm1159, 1, 0
        %v1288 = vsel %vm1160, 1, 0
        %v1289 = vsel %vm1161, 1, 0
        %v1290 = vsel %vm1162, 1, 0
        %v1291 = vsel %vm1163, 1, 0
        %v1292 = vsel %vm1164, 1, 0
        %v1293 = vsel %vm1165, 1, 0
        %v1294 = vsel %vm1166, 1, 0
        %v1295 = vsel %vm1167, 1, 0
        %v1296 = vsel %vm1168, 1, 0
        %v1297 = vsel %vm1169, 1, 0
        %v1298 = vcvt.s32.f32 %v1170
        %v1299 = vcvt.s32.f32 %v1171
        %v1300 = vcvt.s32.f32 %v1172
        %v1301 = vcvt.s32.f32 %v1173
        %v1302 = vcvt.s32.f32 %v1174
        %v1303 = vcvt.s32.f32 %v1175
        %v1304 = vcvt.s32.f32 %v1176
        %v1305 = vcvt.s32.f32 %v1177
        %v1306 = vcvt.s32.f32 %v1178
        %v1307 = vcvt.s32.f32 %v1179
        %v1308 = vcvt.s32.f32 %v1180
        %v1309 = vcvt.s32.f32 %v1181
        %v1310 = vcvt.s32.f32 %v1182
        %v1311 = vcvt.s32.f32 %v1183
        %v1312 = vcvt.s32.f32 %v1184
        %v1313 = vcvt.s32.f32 %v1185
        %v1314 = vcvt.s32.f32 %v1186
        %v1315 = vcvt.s32.f32 %v1187
        %v1316 = vcvt.s32.f32 %v1188
        %v1317 = vcvt.s32.f32 %v1189
        %v1318 = vcvt.s32.f32 %v1190
        %v1319 = vcvt.s32.f32 %v1191
        %v1320 = vcvt.s32.f32 %v1192
        %v1321 = vcvt.s32.f32 %v1193
        %v1322 = vcvt.s32.f32 %v1194
        %v1323 = vcvt.s32.f32 %v1195
        %v1324 = vcvt.s32.f32 %v1196
        %v1325 = vcvt.s32.f32 %v1197
        %v1326 = vcvt.s32.f32 %v1198
        %v1327 = vcvt.s32.f32 %v1199
        %v1328 = vcvt.s32.f32 %v1200
        %v1329 = vcvt.s32.f32 %v1201
        %v1330 = vcvt.s32.f32 %v1202
        %v1331 = vcvt.s32.f32 %v1203
        %v1332 = vcvt.s32.f32 %v1204
        %v1333 = vcvt.s32.f32 %v1205
        %v1334 = vcvt.s32.f32 %v1206
        %v1335 = vcvt.s32.f32 %v1207
        %v1336 = vcvt.s32.f32 %v1208
        %v1337 = vcvt.s32.f32 %v1209
        %v1338 = vcvt.s32.f32 %v1210
        %v1339 = vcvt.s32.f32 %v1211
        %v1340 = vcvt.s32.f32 %v1212
        %v1341 = vcvt.s32.f32 %v1213
        %v1342 = vcvt.s32.f32 %v1214
        %v1343 = vcvt.s32.f32 %v1215
        %v1344 = vcvt.s32.f32 %v1216
        %v1345 = vcvt.s32.f32 %v1217
        %v1346 = vcvt.s32.f32 %v1218
        %v1347 = vcvt.s32.f32 %v1219
        %v1348 = vcvt.s32.f32 %v1220
        %v1349 = vcvt.s32.f32 %v1221
        %v1350 = vcvt.s32.f32 %v1222
        %v1351 = vcvt.s32.f32 %v1223
        %v1352 = vcvt.s32.f32 %v1224
        %v1353 = vcvt.s32.f32 %v1225
        %v1354 = vcvt.s32.f32 %v1226
        %v1355 = vcvt.s32.f32 %v1227
        %v1356 = vcvt.s32.f32 %v1228
        %v1357 = vcvt.s32.f32 %v1229
        %v1358 = vcvt.s32.f32 %v1230
        %v1359 = vcvt.s32.f32 %v1231
        %v1360 = vcvt.s32.f32 %v1232
        %v1361 = vcvt.s32.f32 %v1233
        %v1362 = vcvt.s32.f32 %v1234
        %v1363 = vcvt.s32.f32 %v1235
        %v1364 = vcvt.s32.f32 %v1236
        %v1365 = vcvt.s32.f32 %v1237
        %v1366 = vcvt.s32.f32 %v1238
        %v1367 = vcvt.s32.f32 %v1239
        %v1368 = vcvt.s32.f32 %v1240
        %v1369 = vcvt.s32.f32 %v1241
        %v1370 = vcvt.s32.f32 %v1242
        %v1371 = vcvt.s32.f32 %v1243
        %v1372 = vcvt.s32.f32 %v1244
        %v1373 = vcvt.s32.f32 %v1245
        %v1374 = vcvt.s32.f32 %v1246
        %v1375 = vcvt.s32.f32 %v1247
        %v1376 = vcvt.s32.f32 %v1248
        %v1377 = vcvt.s32.f32 %v1249
        %v1378 = vcvt.s32.f32 %v1250
        %v1379 = vcvt.s32.f32 %v1251
        %v1380 = vcvt.s32.f32 %v1252
        %v1381 = vcvt.s32.f32 %v1253
        %v1382 = vcvt.s32.f32 %v1254
        %v1383 = vcvt.s32.f32 %v1255
        %v1384 = vcvt.s32.f32 %v1256
        %v1385 = vcvt.s32.f32 %v1257
        %v1386 = vcvt.s32.f32 %v1258
        %v1387 = vcvt.s32.f32 %v1259
        %v1388 = vcvt.s32.f32 %v1260
        %v1389 = vcvt.s32.f32 %v1261
        %v1390 = vcvt.s32.f32 %v1262
        %v1391 = vcvt.s32.f32 %v1263
        %v1392 = vcvt.s32.f32 %v1264
        %v1393 = vcvt.s32.f32 %v1265
        %v1394 = vcvt.s32.f32 %v1266
        %v1395 = vcvt.s32.f32 %v1267
        %v1396 = vcvt.s32.f32 %v1268
        %v1397 = vcvt.s32.f32 %v1269
        %v1398 = vcvt.s32.f32 %v1270
        %v1399 = vcvt.s32.f32 %v1271
        %v1400 = vcvt.s32.f32 %v1272
        %v1401 = vcvt.s32.f32 %v1273
        %v1402 = vcvt.s32.f32 %v1274
        %v1403 = vcvt.s32.f32 %v1275
        %v1404 = vcvt.s32.f32 %v1276
        %v1405 = vcvt.s32.f32 %v1277
        %v1406 = vcvt.s32.f32 %v1278
        %v1407 = vcvt.s32.f32 %v1279
        %v1408 = vcvt.s32.f32 %v1280
        %v1409 = vcvt.s32.f32 %v1281
        %v1410 = vcvt.s32.f32 %v1282
        %v1411 = vcvt.s32.f32 %v1283
        %v1412 = vcvt.s32.f32 %v1284
        %v1413 = vcvt.s32.f32 %v1285
        %v1414 = vcvt.s32.f32 %v1286
        %v1415 = vcvt.s32.f32 %v1287
        %v1416 = vcvt.s32.f32 %v1288
        %v1417 = vcvt.s32.f32 %v1289
        %v1418 = vcvt.s32.f32 %v1290
        %v1419 = vcvt.s32.f32 %v1291
        %v1420 = vcvt.s32.f32 %v1292
        %v1421 = vcvt.s32.f32 %v1293
        %v1422 = vcvt.s32.f32 %v1294
        %v1423 = vcvt.s32.f32 %v1295
        %v1424 = vcvt.s32.f32 %v1296
        %v1425 = vcvt.s32.f32 %v1297
        %v1426 = vpack.c.bf16 %v1300, %v1298
        %v1427 = vpack.c.bf16 %v1301, %v1299
        %v1428 = vpack.c.bf16 %v1304, %v1302
        %v1429 = vpack.c.bf16 %v1305, %v1303
        %v1430 = vpack.c.bf16 %v1308, %v1306
        %v1431 = vpack.c.bf16 %v1309, %v1307
        %v1432 = vpack.c.bf16 %v1312, %v1310
        %v1433 = vpack.c.bf16 %v1313, %v1311
        %v1434 = vpack.c.bf16 %v1316, %v1314
        %v1435 = vpack.c.bf16 %v1317, %v1315
        %v1436 = vpack.c.bf16 %v1320, %v1318
        %v1437 = vpack.c.bf16 %v1321, %v1319
        %v1438 = vpack.c.bf16 %v1324, %v1322
        %v1439 = vpack.c.bf16 %v1325, %v1323
        %v1440 = vpack.c.bf16 %v1328, %v1326
        %v1441 = vpack.c.bf16 %v1329, %v1327
        %v1442 = vpack.c.bf16 %v1332, %v1330
        %v1443 = vpack.c.bf16 %v1333, %v1331
        %v1444 = vpack.c.bf16 %v1336, %v1334
        %v1445 = vpack.c.bf16 %v1337, %v1335
        %v1446 = vpack.c.bf16 %v1340, %v1338
        %v1447 = vpack.c.bf16 %v1341, %v1339
        %v1448 = vpack.c.bf16 %v1344, %v1342
        %v1449 = vpack.c.bf16 %v1345, %v1343
        %v1450 = vpack.c.bf16 %v1348, %v1346
        %v1451 = vpack.c.bf16 %v1349, %v1347
        %v1452 = vpack.c.bf16 %v1352, %v1350
        %v1453 = vpack.c.bf16 %v1353, %v1351
        %v1454 = vpack.c.bf16 %v1356, %v1354
        %v1455 = vpack.c.bf16 %v1357, %v1355
        %v1456 = vpack.c.bf16 %v1360, %v1358
        %v1457 = vpack.c.bf16 %v1361, %v1359
        %v1458 = vpack.c.bf16 %v1364, %v1362
        %v1459 = vpack.c.bf16 %v1365, %v1363
        %v1460 = vpack.c.bf16 %v1368, %v1366
        %v1461 = vpack.c.bf16 %v1369, %v1367
        %v1462 = vpack.c.bf16 %v1372, %v1370
        %v1463 = vpack.c.bf16 %v1373, %v1371
        %v1464 = vpack.c.bf16 %v1376, %v1374
        %v1465 = vpack.c.bf16 %v1377, %v1375
        %v1466 = vpack.c.bf16 %v1380, %v1378
        %v1467 = vpack.c.bf16 %v1381, %v1379
        %v1468 = vpack.c.bf16 %v1384, %v1382
        %v1469 = vpack.c.bf16 %v1385, %v1383
        %v1470 = vpack.c.bf16 %v1388, %v1386
        %v1471 = vpack.c.bf16 %v1389, %v1387
        %v1472 = vpack.c.bf16 %v1392, %v1390
        %v1473 = vpack.c.bf16 %v1393, %v1391
        %v1474 = vpack.c.bf16 %v1396, %v1394
        %v1475 = vpack.c.bf16 %v1397, %v1395
        %v1476 = vpack.c.bf16 %v1400, %v1398
        %v1477 = vpack.c.bf16 %v1401, %v1399
        %v1478 = vpack.c.bf16 %v1404, %v1402
        %v1479 = vpack.c.bf16 %v1405, %v1403
        %v1480 = vpack.c.bf16 %v1408, %v1406
        %v1481 = vpack.c.bf16 %v1409, %v1407
        %v1482 = vpack.c.bf16 %v1412, %v1410
        %v1483 = vpack.c.bf16 %v1413, %v1411
        %v1484 = vpack.c.bf16 %v1416, %v1414
        %v1485 = vpack.c.bf16 %v1417, %v1415
        %v1486 = vpack.c.bf16 %v1420, %v1418
        %v1487 = vpack.c.bf16 %v1421, %v1419
        %v1488 = vpack.c.bf16 %v1424, %v1422
        %v1489 = vpack.c.bf16 %v1425, %v1423
        %1490 = vrot.lane.b32.xlu0 %v266, 123
        %v1491 = vpop.permute.xlu0 %1490
        %1492 = vrot.lane.b32.xlu0 %v267, 123
        %v1493 = vpop.permute.xlu0 %1492
        %1494 = vrot.lane.b32.xlu0 %v268, 123
        %v1495 = vpop.permute.xlu0 %1494
        %1496 = vrot.lane.b32.xlu0 %v269, 123
        %v1497 = vpop.permute.xlu0 %1496
        %1498 = vrot.lane.b32.xlu0 %v270, 123
        %v1499 = vpop.permute.xlu0 %1498
        %1500 = vrot.lane.b32.xlu0 %v271, 123
        %v1501 = vpop.permute.xlu0 %1500
        %1502 = vrot.lane.b32.xlu0 %v272, 123
        %v1503 = vpop.permute.xlu0 %1502
        %1504 = vrot.lane.b32.xlu0 %v273, 123
        %v1505 = vpop.permute.xlu0 %1504
        %1506 = vrot.lane.b32.xlu0 %v274, 123
        %v1507 = vpop.permute.xlu0 %1506
        %1508 = vrot.lane.b32.xlu0 %v275, 123
        %v1509 = vpop.permute.xlu0 %1508
        %1510 = vrot.lane.b32.xlu0 %v276, 123
        %v1511 = vpop.permute.xlu0 %1510
        %1512 = vrot.lane.b32.xlu0 %v277, 123
        %v1513 = vpop.permute.xlu0 %1512
        %1514 = vrot.lane.b32.xlu0 %v278, 123
        %v1515 = vpop.permute.xlu0 %1514
        %1516 = vrot.lane.b32.xlu0 %v279, 123
        %v1517 = vpop.permute.xlu0 %1516
        %1518 = vrot.lane.b32.xlu0 %v280, 123
        %v1519 = vpop.permute.xlu0 %1518
        %1520 = vrot.lane.b32.xlu0 %v281, 123
        %v1521 = vpop.permute.xlu0 %1520
        %1522 = vrot.lane.b32.xlu0 %v282, 123
        %v1523 = vpop.permute.xlu0 %1522
        %1524 = vrot.lane.b32.xlu0 %v283, 123
        %v1525 = vpop.permute.xlu0 %1524
        %1526 = vrot.lane.b32.xlu0 %v284, 123
        %v1527 = vpop.permute.xlu0 %1526
        %1528 = vrot.lane.b32.xlu0 %v285, 123
        %v1529 = vpop.permute.xlu0 %1528
        %1530 = vrot.lane.b32.xlu0 %v286, 123
        %v1531 = vpop.permute.xlu0 %1530
        %1532 = vrot.lane.b32.xlu0 %v287, 123
        %v1533 = vpop.permute.xlu0 %1532
        %1534 = vrot.lane.b32.xlu0 %v288, 123
        %v1535 = vpop.permute.xlu0 %1534
        %1536 = vrot.lane.b32.xlu0 %v289, 123
        %v1537 = vpop.permute.xlu0 %1536
        %1538 = vrot.lane.b32.xlu0 %v290, 123
        %v1539 = vpop.permute.xlu0 %1538
        %1540 = vrot.lane.b32.xlu0 %v291, 123
        %v1541 = vpop.permute.xlu0 %1540
        %1542 = vrot.lane.b32.xlu0 %v292, 123
        %v1543 = vpop.permute.xlu0 %1542
        %1544 = vrot.lane.b32.xlu0 %v293, 123
        %v1545 = vpop.permute.xlu0 %1544
        %1546 = vrot.lane.b32.xlu0 %v294, 123
        %v1547 = vpop.permute.xlu0 %1546
        %1548 = vrot.lane.b32.xlu0 %v295, 123
        %v1549 = vpop.permute.xlu0 %1548
        %1550 = vrot.lane.b32.xlu0 %v296, 123
        %v1551 = vpop.permute.xlu0 %1550
        %1552 = vrot.lane.b32.xlu0 %v297, 123
        %v1553 = vpop.permute.xlu0 %1552
        %1554 = vrot.lane.b32.xlu0 %v298, 123
        %v1555 = vpop.permute.xlu0 %1554
        %1556 = vrot.lane.b32.xlu0 %v299, 123
        %v1557 = vpop.permute.xlu0 %1556
        %1558 = vrot.lane.b32.xlu0 %v300, 123
        %v1559 = vpop.permute.xlu0 %1558
        %1560 = vrot.lane.b32.xlu0 %v301, 123
        %v1561 = vpop.permute.xlu0 %1560
        %1562 = vrot.lane.b32.xlu0 %v302, 123
        %v1563 = vpop.permute.xlu0 %1562
        %1564 = vrot.lane.b32.xlu0 %v303, 123
        %v1565 = vpop.permute.xlu0 %1564
        %1566 = vrot.lane.b32.xlu0 %v304, 123
        %v1567 = vpop.permute.xlu0 %1566
        %1568 = vrot.lane.b32.xlu0 %v305, 123
        %v1569 = vpop.permute.xlu0 %1568
        %1570 = vrot.lane.b32.xlu0 %v306, 123
        %v1571 = vpop.permute.xlu0 %1570
        %1572 = vrot.lane.b32.xlu0 %v307, 123
        %v1573 = vpop.permute.xlu0 %1572
        %1574 = vrot.lane.b32.xlu0 %v308, 123
        %v1575 = vpop.permute.xlu0 %1574
        %1576 = vrot.lane.b32.xlu0 %v309, 123
        %v1577 = vpop.permute.xlu0 %1576
        %1578 = vrot.lane.b32.xlu0 %v310, 123
        %v1579 = vpop.permute.xlu0 %1578
        %1580 = vrot.lane.b32.xlu0 %v311, 123
        %v1581 = vpop.permute.xlu0 %1580
        %1582 = vrot.lane.b32.xlu0 %v312, 123
        %v1583 = vpop.permute.xlu0 %1582
        %1584 = vrot.lane.b32.xlu0 %v313, 123
        %v1585 = vpop.permute.xlu0 %1584
        %1586 = vrot.lane.b32.xlu0 %v314, 123
        %v1587 = vpop.permute.xlu0 %1586
        %1588 = vrot.lane.b32.xlu0 %v315, 123
        %v1589 = vpop.permute.xlu0 %1588
        %1590 = vrot.lane.b32.xlu0 %v316, 123
        %v1591 = vpop.permute.xlu0 %1590
        %1592 = vrot.lane.b32.xlu0 %v317, 123
        %v1593 = vpop.permute.xlu0 %1592
        %1594 = vrot.lane.b32.xlu0 %v318, 123
        %v1595 = vpop.permute.xlu0 %1594
        %1596 = vrot.lane.b32.xlu0 %v319, 123
        %v1597 = vpop.permute.xlu0 %1596
        %1598 = vrot.lane.b32.xlu0 %v320, 123
        %v1599 = vpop.permute.xlu0 %1598
        %1600 = vrot.lane.b32.xlu0 %v321, 123
        %v1601 = vpop.permute.xlu0 %1600
        %1602 = vrot.lane.b32.xlu0 %v322, 123
        %v1603 = vpop.permute.xlu0 %1602
        %1604 = vrot.lane.b32.xlu0 %v323, 123
        %v1605 = vpop.permute.xlu0 %1604
        %1606 = vrot.lane.b32.xlu0 %v324, 123
        %v1607 = vpop.permute.xlu0 %1606
        %1608 = vrot.lane.b32.xlu0 %v325, 123
        %v1609 = vpop.permute.xlu0 %1608
        %1610 = vrot.lane.b32.xlu0 %v326, 123
        %v1611 = vpop.permute.xlu0 %1610
        %1612 = vrot.lane.b32.xlu0 %v327, 123
        %v1613 = vpop.permute.xlu0 %1612
        %1614 = vrot.lane.b32.xlu0 %v328, 123
        %v1615 = vpop.permute.xlu0 %1614
        %1616 = vrot.lane.b32.xlu0 %v329, 123
        %v1617 = vpop.permute.xlu0 %1616
        %v1618 = vsel %vm783, %v1491, 4294967295
        %v1619 = vsel %vm784, %v1493, 4294967295
        %v1620 = vsel %vm785, %v1495, 4294967295
        %v1621 = vsel %vm786, %v1497, 4294967295
        %v1622 = vsel %vm787, %v1499, 4294967295
        %v1623 = vsel %vm788, %v1501, 4294967295
        %v1624 = vsel %vm789, %v1503, 4294967295
        %v1625 = vsel %vm790, %v1505, 4294967295
        %v1626 = vsel %vm791, %v1507, 4294967295
        %v1627 = vsel %vm792, %v1509, 4294967295
        %v1628 = vsel %vm793, %v1511, 4294967295
        %v1629 = vsel %vm794, %v1513, 4294967295
        %v1630 = vsel %vm795, %v1515, 4294967295
        %v1631 = vsel %vm796, %v1517, 4294967295
        %v1632 = vsel %vm797, %v1519, 4294967295
        %v1633 = vsel %vm798, %v1521, 4294967295
        %v1634 = vsel %vm799, %v1523, 4294967295
        %v1635 = vsel %vm800, %v1525, 4294967295
        %v1636 = vsel %vm801, %v1527, 4294967295
        %v1637 = vsel %vm802, %v1529, 4294967295
        %v1638 = vsel %vm803, %v1531, 4294967295
        %v1639 = vsel %vm804, %v1533, 4294967295
        %v1640 = vsel %vm805, %v1535, 4294967295
        %v1641 = vsel %vm806, %v1537, 4294967295
        %v1642 = vsel %vm807, %v1539, 4294967295
        %v1643 = vsel %vm808, %v1541, 4294967295
        %v1644 = vsel %vm809, %v1543, 4294967295
        %v1645 = vsel %vm810, %v1545, 4294967295
        %v1646 = vsel %vm811, %v1547, 4294967295
        %v1647 = vsel %vm812, %v1549, 4294967295
        %v1648 = vsel %vm813, %v1551, 4294967295
        %v1649 = vsel %vm814, %v1553, 4294967295
        %v1650 = vsel %vm815, %v1555, 4294967295
        %v1651 = vsel %vm816, %v1557, 4294967295
        %v1652 = vsel %vm817, %v1559, 4294967295
        %v1653 = vsel %vm818, %v1561, 4294967295
        %v1654 = vsel %vm819, %v1563, 4294967295
        %v1655 = vsel %vm820, %v1565, 4294967295
        %v1656 = vsel %vm821, %v1567, 4294967295
        %v1657 = vsel %vm822, %v1569, 4294967295
        %v1658 = vsel %vm823, %v1571, 4294967295
        %v1659 = vsel %vm824, %v1573, 4294967295
        %v1660 = vsel %vm825, %v1575, 4294967295
        %v1661 = vsel %vm826, %v1577, 4294967295
        %v1662 = vsel %vm827, %v1579, 4294967295
        %v1663 = vsel %vm828, %v1581, 4294967295
        %v1664 = vsel %vm829, %v1583, 4294967295
        %v1665 = vsel %vm830, %v1585, 4294967295
        %v1666 = vsel %vm831, %v1587, 4294967295
        %v1667 = vsel %vm832, %v1589, 4294967295
        %v1668 = vsel %vm833, %v1591, 4294967295
        %v1669 = vsel %vm834, %v1593, 4294967295
        %v1670 = vsel %vm835, %v1595, 4294967295
        %v1671 = vsel %vm836, %v1597, 4294967295
        %v1672 = vsel %vm837, %v1599, 4294967295
        %v1673 = vsel %vm838, %v1601, 4294967295
        %v1674 = vsel %vm839, %v1603, 4294967295
        %v1675 = vsel %vm840, %v1605, 4294967295
        %v1676 = vsel %vm841, %v1607, 4294967295
        %v1677 = vsel %vm842, %v1609, 4294967295
        %v1678 = vsel %vm843, %v1611, 4294967295
        %v1679 = vsel %vm844, %v1613, 4294967295
        %v1680 = vsel %vm845, %v1615, 4294967295
        %v1681 = vsel %vm846, %v1617, 4294967295
        %1682 = vset.pattern.permute.xlu0 0
        %1683 = vperm.xlu0 %1682, %v1618
        %v1684 = vpop.permute.xlu0 %1683
        %1685 = vset.pattern.permute.xlu0 0
        %1686 = vperm.xlu0 %1685, %v1619
        %v1687 = vpop.permute.xlu0 %1686
        %1688 = vset.pattern.permute.xlu0 0
        %1689 = vperm.xlu0 %1688, %v1620
        %v1690 = vpop.permute.xlu0 %1689
        %1691 = vset.pattern.permute.xlu0 0
        %1692 = vperm.xlu0 %1691, %v1621
        %v1693 = vpop.permute.xlu0 %1692
        %1694 = vset.pattern.permute.xlu0 0
        %1695 = vperm.xlu0 %1694, %v1622
        %v1696 = vpop.permute.xlu0 %1695
        %1697 = vset.pattern.permute.xlu0 0
        %1698 = vperm.xlu0 %1697, %v1623
        %v1699 = vpop.permute.xlu0 %1698
        %1700 = vset.pattern.permute.xlu0 0
        %1701 = vperm.xlu0 %1700, %v1624
        %v1702 = vpop.permute.xlu0 %1701
        %1703 = vset.pattern.permute.xlu0 0
        %1704 = vperm.xlu0 %1703, %v1625
        %v1705 = vpop.permute.xlu0 %1704
        %1706 = vset.pattern.permute.xlu0 0
        %1707 = vperm.xlu0 %1706, %v1626
        %v1708 = vpop.permute.xlu0 %1707
        %1709 = vset.pattern.permute.xlu0 0
        %1710 = vperm.xlu0 %1709, %v1627
        %v1711 = vpop.permute.xlu0 %1710
        %1712 = vset.pattern.permute.xlu0 0
        %1713 = vperm.xlu0 %1712, %v1628
        %v1714 = vpop.permute.xlu0 %1713
        %1715 = vset.pattern.permute.xlu0 0
        %1716 = vperm.xlu0 %1715, %v1629
        %v1717 = vpop.permute.xlu0 %1716
        %1718 = vset.pattern.permute.xlu0 0
        %1719 = vperm.xlu0 %1718, %v1630
        %v1720 = vpop.permute.xlu0 %1719
        %1721 = vset.pattern.permute.xlu0 0
        %1722 = vperm.xlu0 %1721, %v1631
        %v1723 = vpop.permute.xlu0 %1722
        %1724 = vset.pattern.permute.xlu0 0
        %1725 = vperm.xlu0 %1724, %v1632
        %v1726 = vpop.permute.xlu0 %1725
        %1727 = vset.pattern.permute.xlu0 0
        %1728 = vperm.xlu0 %1727, %v1633
        %v1729 = vpop.permute.xlu0 %1728
        %1730 = vset.pattern.permute.xlu0 0
        %1731 = vperm.xlu0 %1730, %v1634
        %v1732 = vpop.permute.xlu0 %1731
        %1733 = vset.pattern.permute.xlu0 0
        %1734 = vperm.xlu0 %1733, %v1635
        %v1735 = vpop.permute.xlu0 %1734
        %1736 = vset.pattern.permute.xlu0 0
        %1737 = vperm.xlu0 %1736, %v1636
        %v1738 = vpop.permute.xlu0 %1737
        %1739 = vset.pattern.permute.xlu0 0
        %1740 = vperm.xlu0 %1739, %v1637
        %v1741 = vpop.permute.xlu0 %1740
        %1742 = vset.pattern.permute.xlu0 0
        %1743 = vperm.xlu0 %1742, %v1638
        %v1744 = vpop.permute.xlu0 %1743
        %1745 = vset.pattern.permute.xlu0 0
        %1746 = vperm.xlu0 %1745, %v1639
        %v1747 = vpop.permute.xlu0 %1746
        %1748 = vset.pattern.permute.xlu0 0
        %1749 = vperm.xlu0 %1748, %v1640
        %v1750 = vpop.permute.xlu0 %1749
        %1751 = vset.pattern.permute.xlu0 0
        %1752 = vperm.xlu0 %1751, %v1641
        %v1753 = vpop.permute.xlu0 %1752
        %1754 = vset.pattern.permute.xlu0 0
        %1755 = vperm.xlu0 %1754, %v1642
        %v1756 = vpop.permute.xlu0 %1755
        %1757 = vset.pattern.permute.xlu0 0
        %1758 = vperm.xlu0 %1757, %v1643
        %v1759 = vpop.permute.xlu0 %1758
        %1760 = vset.pattern.permute.xlu0 0
        %1761 = vperm.xlu0 %1760, %v1644
        %v1762 = vpop.permute.xlu0 %1761
        %1763 = vset.pattern.permute.xlu0 0
        %1764 = vperm.xlu0 %1763, %v1645
        %v1765 = vpop.permute.xlu0 %1764
        %1766 = vset.pattern.permute.xlu0 0
        %1767 = vperm.xlu0 %1766, %v1646
        %v1768 = vpop.permute.xlu0 %1767
        %1769 = vset.pattern.permute.xlu0 0
        %1770 = vperm.xlu0 %1769, %v1647
        %v1771 = vpop.permute.xlu0 %1770
        %1772 = vset.pattern.permute.xlu0 0
        %1773 = vperm.xlu0 %1772, %v1648
        %v1774 = vpop.permute.xlu0 %1773
        %1775 = vset.pattern.permute.xlu0 0
        %1776 = vperm.xlu0 %1775, %v1649
        %v1777 = vpop.permute.xlu0 %1776
        %1778 = vset.pattern.permute.xlu0 0
        %1779 = vperm.xlu0 %1778, %v1650
        %v1780 = vpop.permute.xlu0 %1779
        %1781 = vset.pattern.permute.xlu0 0
        %1782 = vperm.xlu0 %1781, %v1651
        %v1783 = vpop.permute.xlu0 %1782
        %1784 = vset.pattern.permute.xlu0 0
        %1785 = vperm.xlu0 %1784, %v1652
        %v1786 = vpop.permute.xlu0 %1785
        %1787 = vset.pattern.permute.xlu0 0
        %1788 = vperm.xlu0 %1787, %v1653
        %v1789 = vpop.permute.xlu0 %1788
        %1790 = vset.pattern.permute.xlu0 0
        %1791 = vperm.xlu0 %1790, %v1654
        %v1792 = vpop.permute.xlu0 %1791
        %1793 = vset.pattern.permute.xlu0 0
        %1794 = vperm.xlu0 %1793, %v1655
        %v1795 = vpop.permute.xlu0 %1794
        %1796 = vset.pattern.permute.xlu0 0
        %1797 = vperm.xlu0 %1796, %v1656
        %v1798 = vpop.permute.xlu0 %1797
        %1799 = vset.pattern.permute.xlu0 0
        %1800 = vperm.xlu0 %1799, %v1657
        %v1801 = vpop.permute.xlu0 %1800
        %1802 = vset.pattern.permute.xlu0 0
        %1803 = vperm.xlu0 %1802, %v1658
        %v1804 = vpop.permute.xlu0 %1803
        %1805 = vset.pattern.permute.xlu0 0
        %1806 = vperm.xlu0 %1805, %v1659
        %v1807 = vpop.permute.xlu0 %1806
        %1808 = vset.pattern.permute.xlu0 0
        %1809 = vperm.xlu0 %1808, %v1660
        %v1810 = vpop.permute.xlu0 %1809
        %1811 = vset.pattern.permute.xlu0 0
        %1812 = vperm.xlu0 %1811, %v1661
        %v1813 = vpop.permute.xlu0 %1812
        %1814 = vset.pattern.permute.xlu0 0
        %1815 = vperm.xlu0 %1814, %v1662
        %v1816 = vpop.permute.xlu0 %1815
        %1817 = vset.pattern.permute.xlu0 0
        %1818 = vperm.xlu0 %1817, %v1663
        %v1819 = vpop.permute.xlu0 %1818
        %1820 = vset.pattern.permute.xlu0 0
        %1821 = vperm.xlu0 %1820, %v1664
        %v1822 = vpop.permute.xlu0 %1821
        %1823 = vset.pattern.permute.xlu0 0
        %1824 = vperm.xlu0 %1823, %v1665
        %v1825 = vpop.permute.xlu0 %1824
        %1826 = vset.pattern.permute.xlu0 0
        %1827 = vperm.xlu0 %1826, %v1666
        %v1828 = vpop.permute.xlu0 %1827
        %1829 = vset.pattern.permute.xlu0 0
        %1830 = vperm.xlu0 %1829, %v1667
        %v1831 = vpop.permute.xlu0 %1830
        %1832 = vset.pattern.permute.xlu0 0
        %1833 = vperm.xlu0 %1832, %v1668
        %v1834 = vpop.permute.xlu0 %1833
        %1835 = vset.pattern.permute.xlu0 0
        %1836 = vperm.xlu0 %1835, %v1669
        %v1837 = vpop.permute.xlu0 %1836
        %1838 = vset.pattern.permute.xlu0 0
        %1839 = vperm.xlu0 %1838, %v1670
        %v1840 = vpop.permute.xlu0 %1839
        %1841 = vset.pattern.permute.xlu0 0
        %1842 = vperm.xlu0 %1841, %v1671
        %v1843 = vpop.permute.xlu0 %1842
        %1844 = vset.pattern.permute.xlu0 0
        %1845 = vperm.xlu0 %1844, %v1672
        %v1846 = vpop.permute.xlu0 %1845
        %1847 = vset.pattern.permute.xlu0 0
        %1848 = vperm.xlu0 %1847, %v1673
        %v1849 = vpop.permute.xlu0 %1848
        %1850 = vset.pattern.permute.xlu0 0
        %1851 = vperm.xlu0 %1850, %v1674
        %v1852 = vpop.permute.xlu0 %1851
        %1853 = vset.pattern.permute.xlu0 0
        %1854 = vperm.xlu0 %1853, %v1675
        %v1855 = vpop.permute.xlu0 %1854
        %1856 = vset.pattern.permute.xlu0 0
        %1857 = vperm.xlu0 %1856, %v1676
        %v1858 = vpop.permute.xlu0 %1857
        %1859 = vset.pattern.permute.xlu0 0
        %1860 = vperm.xlu0 %1859, %v1677
        %v1861 = vpop.permute.xlu0 %1860
        %1862 = vset.pattern.permute.xlu0 0
        %1863 = vperm.xlu0 %1862, %v1678
        %v1864 = vpop.permute.xlu0 %1863
        %1865 = vset.pattern.permute.xlu0 0
        %1866 = vperm.xlu0 %1865, %v1679
        %v1867 = vpop.permute.xlu0 %1866
        %1868 = vset.pattern.permute.xlu0 0
        %1869 = vperm.xlu0 %1868, %v1680
        %v1870 = vpop.permute.xlu0 %1869
        %1871 = vset.pattern.permute.xlu0 0
        %1872 = vperm.xlu0 %1871, %v1681
        %v1873 = vpop.permute.xlu0 %1872
        %vm1874 = vcmp.eq.s32.totalorder %v848, %v1684
        %vm1875 = vcmp.eq.s32.totalorder %v848, %v1687
        %vm1876 = vcmp.eq.s32.totalorder %v848, %v1690
        %vm1877 = vcmp.eq.s32.totalorder %v848, %v1693
        %vm1878 = vcmp.eq.s32.totalorder %v848, %v1696
        %vm1879 = vcmp.eq.s32.totalorder %v848, %v1699
        %vm1880 = vcmp.eq.s32.totalorder %v848, %v1702
        %vm1881 = vcmp.eq.s32.totalorder %v848, %v1705
        %vm1882 = vcmp.eq.s32.totalorder %v848, %v1708
        %vm1883 = vcmp.eq.s32.totalorder %v848, %v1711
        %vm1884 = vcmp.eq.s32.totalorder %v848, %v1714
        %vm1885 = vcmp.eq.s32.totalorder %v848, %v1717
        %vm1886 = vcmp.eq.s32.totalorder %v848, %v1720
        %vm1887 = vcmp.eq.s32.totalorder %v848, %v1723
        %vm1888 = vcmp.eq.s32.totalorder %v848, %v1726
        %vm1889 = vcmp.eq.s32.totalorder %v848, %v1729
        %vm1890 = vcmp.eq.s32.totalorder %v848, %v1732
        %vm1891 = vcmp.eq.s32.totalorder %v848, %v1735
        %vm1892 = vcmp.eq.s32.totalorder %v848, %v1738
        %vm1893 = vcmp.eq.s32.totalorder %v848, %v1741
        %vm1894 = vcmp.eq.s32.totalorder %v848, %v1744
        %vm1895 = vcmp.eq.s32.totalorder %v848, %v1747
        %vm1896 = vcmp.eq.s32.totalorder %v848, %v1750
        %vm1897 = vcmp.eq.s32.totalorder %v848, %v1753
        %vm1898 = vcmp.eq.s32.totalorder %v848, %v1756
        %vm1899 = vcmp.eq.s32.totalorder %v848, %v1759
        %vm1900 = vcmp.eq.s32.totalorder %v848, %v1762
        %vm1901 = vcmp.eq.s32.totalorder %v848, %v1765
        %vm1902 = vcmp.eq.s32.totalorder %v848, %v1768
        %vm1903 = vcmp.eq.s32.totalorder %v848, %v1771
        %vm1904 = vcmp.eq.s32.totalorder %v848, %v1774
        %vm1905 = vcmp.eq.s32.totalorder %v848, %v1777
        %vm1906 = vcmp.eq.s32.totalorder %v848, %v1780
        %vm1907 = vcmp.eq.s32.totalorder %v848, %v1783
        %vm1908 = vcmp.eq.s32.totalorder %v848, %v1786
        %vm1909 = vcmp.eq.s32.totalorder %v848, %v1789
        %vm1910 = vcmp.eq.s32.totalorder %v848, %v1792
        %vm1911 = vcmp.eq.s32.totalorder %v848, %v1795
        %vm1912 = vcmp.eq.s32.totalorder %v848, %v1798
        %vm1913 = vcmp.eq.s32.totalorder %v848, %v1801
        %vm1914 = vcmp.eq.s32.totalorder %v848, %v1804
        %vm1915 = vcmp.eq.s32.totalorder %v848, %v1807
        %vm1916 = vcmp.eq.s32.totalorder %v848, %v1810
        %vm1917 = vcmp.eq.s32.totalorder %v848, %v1813
        %vm1918 = vcmp.eq.s32.totalorder %v848, %v1816
        %vm1919 = vcmp.eq.s32.totalorder %v848, %v1819
        %vm1920 = vcmp.eq.s32.totalorder %v848, %v1822
        %vm1921 = vcmp.eq.s32.totalorder %v848, %v1825
        %vm1922 = vcmp.eq.s32.totalorder %v848, %v1828
        %vm1923 = vcmp.eq.s32.totalorder %v848, %v1831
        %vm1924 = vcmp.eq.s32.totalorder %v848, %v1834
        %vm1925 = vcmp.eq.s32.totalorder %v848, %v1837
        %vm1926 = vcmp.eq.s32.totalorder %v848, %v1840
        %vm1927 = vcmp.eq.s32.totalorder %v848, %v1843
        %vm1928 = vcmp.eq.s32.totalorder %v848, %v1846
        %vm1929 = vcmp.eq.s32.totalorder %v848, %v1849
        %vm1930 = vcmp.eq.s32.totalorder %v848, %v1852
        %vm1931 = vcmp.eq.s32.totalorder %v848, %v1855
        %vm1932 = vcmp.eq.s32.totalorder %v848, %v1858
        %vm1933 = vcmp.eq.s32.totalorder %v848, %v1861
        %vm1934 = vcmp.eq.s32.totalorder %v848, %v1864
        %vm1935 = vcmp.eq.s32.totalorder %v848, %v1867
        %vm1936 = vcmp.eq.s32.totalorder %v848, %v1870
        %vm1937 = vcmp.eq.s32.totalorder %v848, %v1873
        %v1938 = vsel %vm1874, 1, 0
        %v1939 = vsel %vm1875, 1, 0
        %v1940 = vsel %vm1876, 1, 0
        %v1941 = vsel %vm1877, 1, 0
        %v1942 = vsel %vm1878, 1, 0
        %v1943 = vsel %vm1879, 1, 0
        %v1944 = vsel %vm1880, 1, 0
        %v1945 = vsel %vm1881, 1, 0
        %v1946 = vsel %vm1882, 1, 0
        %v1947 = vsel %vm1883, 1, 0
        %v1948 = vsel %vm1884, 1, 0
        %v1949 = vsel %vm1885, 1, 0
        %v1950 = vsel %vm1886, 1, 0
        %v1951 = vsel %vm1887, 1, 0
        %v1952 = vsel %vm1888, 1, 0
        %v1953 = vsel %vm1889, 1, 0
        %v1954 = vsel %vm1890, 1, 0
        %v1955 = vsel %vm1891, 1, 0
        %v1956 = vsel %vm1892, 1, 0
        %v1957 = vsel %vm1893, 1, 0
        %v1958 = vsel %vm1894, 1, 0
        %v1959 = vsel %vm1895, 1, 0
        %v1960 = vsel %vm1896, 1, 0
        %v1961 = vsel %vm1897, 1, 0
        %v1962 = vsel %vm1898, 1, 0
        %v1963 = vsel %vm1899, 1, 0
        %v1964 = vsel %vm1900, 1, 0
        %v1965 = vsel %vm1901, 1, 0
        %v1966 = vsel %vm1902, 1, 0
        %v1967 = vsel %vm1903, 1, 0
        %v1968 = vsel %vm1904, 1, 0
        %v1969 = vsel %vm1905, 1, 0
        %v1970 = vsel %vm1906, 1, 0
        %v1971 = vsel %vm1907, 1, 0
        %v1972 = vsel %vm1908, 1, 0
        %v1973 = vsel %vm1909, 1, 0
        %v1974 = vsel %vm1910, 1, 0
        %v1975 = vsel %vm1911, 1, 0
        %v1976 = vsel %vm1912, 1, 0
        %v1977 = vsel %vm1913, 1, 0
        %v1978 = vsel %vm1914, 1, 0
        %v1979 = vsel %vm1915, 1, 0
        %v1980 = vsel %vm1916, 1, 0
        %v1981 = vsel %vm1917, 1, 0
        %v1982 = vsel %vm1918, 1, 0
        %v1983 = vsel %vm1919, 1, 0
        %v1984 = vsel %vm1920, 1, 0
        %v1985 = vsel %vm1921, 1, 0
        %v1986 = vsel %vm1922, 1, 0
        %v1987 = vsel %vm1923, 1, 0
        %v1988 = vsel %vm1924, 1, 0
        %v1989 = vsel %vm1925, 1, 0
        %v1990 = vsel %vm1926, 1, 0
        %v1991 = vsel %vm1927, 1, 0
        %v1992 = vsel %vm1928, 1, 0
        %v1993 = vsel %vm1929, 1, 0
        %v1994 = vsel %vm1930, 1, 0
        %v1995 = vsel %vm1931, 1, 0
        %v1996 = vsel %vm1932, 1, 0
        %v1997 = vsel %vm1933, 1, 0
        %v1998 = vsel %vm1934, 1, 0
        %v1999 = vsel %vm1935, 1, 0
        %v2000 = vsel %vm1936, 1, 0
        %v2001 = vsel %vm1937, 1, 0
        %v2002 = vcvt.s32.f32 %v1938
        %v2003 = vcvt.s32.f32 %v1939
        %v2004 = vcvt.s32.f32 %v1940
        %v2005 = vcvt.s32.f32 %v1941
        %v2006 = vcvt.s32.f32 %v1942
        %v2007 = vcvt.s32.f32 %v1943
        %v2008 = vcvt.s32.f32 %v1944
        %v2009 = vcvt.s32.f32 %v1945
        %v2010 = vcvt.s32.f32 %v1946
        %v2011 = vcvt.s32.f32 %v1947
        %v2012 = vcvt.s32.f32 %v1948
        %v2013 = vcvt.s32.f32 %v1949
        %v2014 = vcvt.s32.f32 %v1950
        %v2015 = vcvt.s32.f32 %v1951
        %v2016 = vcvt.s32.f32 %v1952
        %v2017 = vcvt.s32.f32 %v1953
        %v2018 = vcvt.s32.f32 %v1954
        %v2019 = vcvt.s32.f32 %v1955
        %v2020 = vcvt.s32.f32 %v1956
        %v2021 = vcvt.s32.f32 %v1957
        %v2022 = vcvt.s32.f32 %v1958
        %v2023 = vcvt.s32.f32 %v1959
        %v2024 = vcvt.s32.f32 %v1960
        %v2025 = vcvt.s32.f32 %v1961
        %v2026 = vcvt.s32.f32 %v1962
        %v2027 = vcvt.s32.f32 %v1963
        %v2028 = vcvt.s32.f32 %v1964
        %v2029 = vcvt.s32.f32 %v1965
        %v2030 = vcvt.s32.f32 %v1966
        %v2031 = vcvt.s32.f32 %v1967
        %v2032 = vcvt.s32.f32 %v1968
        %v2033 = vcvt.s32.f32 %v1969
        %v2034 = vcvt.s32.f32 %v1970
        %v2035 = vcvt.s32.f32 %v1971
        %v2036 = vcvt.s32.f32 %v1972
        %v2037 = vcvt.s32.f32 %v1973
        %v2038 = vcvt.s32.f32 %v1974
        %v2039 = vcvt.s32.f32 %v1975
        %v2040 = vcvt.s32.f32 %v1976
        %v2041 = vcvt.s32.f32 %v1977
        %v2042 = vcvt.s32.f32 %v1978
        %v2043 = vcvt.s32.f32 %v1979
        %v2044 = vcvt.s32.f32 %v1980
        %v2045 = vcvt.s32.f32 %v1981
        %v2046 = vcvt.s32.f32 %v1982
        %v2047 = vcvt.s32.f32 %v1983
        %v2048 = vcvt.s32.f32 %v1984
        %v2049 = vcvt.s32.f32 %v1985
        %v2050 = vcvt.s32.f32 %v1986
        %v2051 = vcvt.s32.f32 %v1987
        %v2052 = vcvt.s32.f32 %v1988
        %v2053 = vcvt.s32.f32 %v1989
        %v2054 = vcvt.s32.f32 %v1990
        %v2055 = vcvt.s32.f32 %v1991
        %v2056 = vcvt.s32.f32 %v1992
        %v2057 = vcvt.s32.f32 %v1993
        %v2058 = vcvt.s32.f32 %v1994
        %v2059 = vcvt.s32.f32 %v1995
        %v2060 = vcvt.s32.f32 %v1996
        %v2061 = vcvt.s32.f32 %v1997
        %v2062 = vcvt.s32.f32 %v1998
        %v2063 = vcvt.s32.f32 %v1999
        %v2064 = vcvt.s32.f32 %v2000
        %v2065 = vcvt.s32.f32 %v2001
        %2066 = vrot.lane.b32.xlu0 %v266, 122
        %v2067 = vpop.permute.xlu0 %2066
        %2068 = vrot.lane.b32.xlu0 %v267, 122
        %v2069 = vpop.permute.xlu0 %2068
        %2070 = vrot.lane.b32.xlu0 %v268, 122
        %v2071 = vpop.permute.xlu0 %2070
        %2072 = vrot.lane.b32.xlu0 %v269, 122
        %v2073 = vpop.permute.xlu0 %2072
        %2074 = vrot.lane.b32.xlu0 %v270, 122
        %v2075 = vpop.permute.xlu0 %2074
        %2076 = vrot.lane.b32.xlu0 %v271, 122
        %v2077 = vpop.permute.xlu0 %2076
        %2078 = vrot.lane.b32.xlu0 %v272, 122
        %v2079 = vpop.permute.xlu0 %2078
        %2080 = vrot.lane.b32.xlu0 %v273, 122
        %v2081 = vpop.permute.xlu0 %2080
        %2082 = vrot.lane.b32.xlu0 %v274, 122
        %v2083 = vpop.permute.xlu0 %2082
        %2084 = vrot.lane.b32.xlu0 %v275, 122
        %v2085 = vpop.permute.xlu0 %2084
        %2086 = vrot.lane.b32.xlu0 %v276, 122
        %v2087 = vpop.permute.xlu0 %2086
        %2088 = vrot.lane.b32.xlu0 %v277, 122
        %v2089 = vpop.permute.xlu0 %2088
        %2090 = vrot.lane.b32.xlu0 %v278, 122
        %v2091 = vpop.permute.xlu0 %2090
        %2092 = vrot.lane.b32.xlu0 %v279, 122
        %v2093 = vpop.permute.xlu0 %2092
        %2094 = vrot.lane.b32.xlu0 %v280, 122
        %v2095 = vpop.permute.xlu0 %2094
        %2096 = vrot.lane.b32.xlu0 %v281, 122
        %v2097 = vpop.permute.xlu0 %2096
        %2098 = vrot.lane.b32.xlu0 %v282, 122
        %v2099 = vpop.permute.xlu0 %2098
        %2100 = vrot.lane.b32.xlu0 %v283, 122
        %v2101 = vpop.permute.xlu0 %2100
        %2102 = vrot.lane.b32.xlu0 %v284, 122
        %v2103 = vpop.permute.xlu0 %2102
        %2104 = vrot.lane.b32.xlu0 %v285, 122
        %v2105 = vpop.permute.xlu0 %2104
        %2106 = vrot.lane.b32.xlu0 %v286, 122
        %v2107 = vpop.permute.xlu0 %2106
        %2108 = vrot.lane.b32.xlu0 %v287, 122
        %v2109 = vpop.permute.xlu0 %2108
        %2110 = vrot.lane.b32.xlu0 %v288, 122
        %v2111 = vpop.permute.xlu0 %2110
        %2112 = vrot.lane.b32.xlu0 %v289, 122
        %v2113 = vpop.permute.xlu0 %2112
        %2114 = vrot.lane.b32.xlu0 %v290, 122
        %v2115 = vpop.permute.xlu0 %2114
        %2116 = vrot.lane.b32.xlu0 %v291, 122
        %v2117 = vpop.permute.xlu0 %2116
        %2118 = vrot.lane.b32.xlu0 %v292, 122
        %v2119 = vpop.permute.xlu0 %2118
        %2120 = vrot.lane.b32.xlu0 %v293, 122
        %v2121 = vpop.permute.xlu0 %2120
        %2122 = vrot.lane.b32.xlu0 %v294, 122
        %v2123 = vpop.permute.xlu0 %2122
        %2124 = vrot.lane.b32.xlu0 %v295, 122
        %v2125 = vpop.permute.xlu0 %2124
        %2126 = vrot.lane.b32.xlu0 %v296, 122
        %v2127 = vpop.permute.xlu0 %2126
        %2128 = vrot.lane.b32.xlu0 %v297, 122
        %v2129 = vpop.permute.xlu0 %2128
        %2130 = vrot.lane.b32.xlu0 %v298, 122
        %v2131 = vpop.permute.xlu0 %2130
        %2132 = vrot.lane.b32.xlu0 %v299, 122
        %v2133 = vpop.permute.xlu0 %2132
        %2134 = vrot.lane.b32.xlu0 %v300, 122
        %v2135 = vpop.permute.xlu0 %2134
        %2136 = vrot.lane.b32.xlu0 %v301, 122
        %v2137 = vpop.permute.xlu0 %2136
        %2138 = vrot.lane.b32.xlu0 %v302, 122
        %v2139 = vpop.permute.xlu0 %2138
        %2140 = vrot.lane.b32.xlu0 %v303, 122
        %v2141 = vpop.permute.xlu0 %2140
        %2142 = vrot.lane.b32.xlu0 %v304, 122
        %v2143 = vpop.permute.xlu0 %2142
        %2144 = vrot.lane.b32.xlu0 %v305, 122
        %v2145 = vpop.permute.xlu0 %2144
        %2146 = vrot.lane.b32.xlu0 %v306, 122
        %v2147 = vpop.permute.xlu0 %2146
        %2148 = vrot.lane.b32.xlu0 %v307, 122
        %v2149 = vpop.permute.xlu0 %2148
        %2150 = vrot.lane.b32.xlu0 %v308, 122
        %v2151 = vpop.permute.xlu0 %2150
        %2152 = vrot.lane.b32.xlu0 %v309, 122
        %v2153 = vpop.permute.xlu0 %2152
        %2154 = vrot.lane.b32.xlu0 %v310, 122
        %v2155 = vpop.permute.xlu0 %2154
        %2156 = vrot.lane.b32.xlu0 %v311, 122
        %v2157 = vpop.permute.xlu0 %2156
        %2158 = vrot.lane.b32.xlu0 %v312, 122
        %v2159 = vpop.permute.xlu0 %2158
        %2160 = vrot.lane.b32.xlu0 %v313, 122
        %v2161 = vpop.permute.xlu0 %2160
        %2162 = vrot.lane.b32.xlu0 %v314, 122
        %v2163 = vpop.permute.xlu0 %2162
        %2164 = vrot.lane.b32.xlu0 %v315, 122
        %v2165 = vpop.permute.xlu0 %2164
        %2166 = vrot.lane.b32.xlu0 %v316, 122
        %v2167 = vpop.permute.xlu0 %2166
        %2168 = vrot.lane.b32.xlu0 %v317, 122
        %v2169 = vpop.permute.xlu0 %2168
        %2170 = vrot.lane.b32.xlu0 %v318, 122
        %v2171 = vpop.permute.xlu0 %2170
        %2172 = vrot.lane.b32.xlu0 %v319, 122
        %v2173 = vpop.permute.xlu0 %2172
        %2174 = vrot.lane.b32.xlu0 %v320, 122
        %v2175 = vpop.permute.xlu0 %2174
        %2176 = vrot.lane.b32.xlu0 %v321, 122
        %v2177 = vpop.permute.xlu0 %2176
        %2178 = vrot.lane.b32.xlu0 %v322, 122
        %v2179 = vpop.permute.xlu0 %2178
        %2180 = vrot.lane.b32.xlu0 %v323, 122
        %v2181 = vpop.permute.xlu0 %2180
        %2182 = vrot.lane.b32.xlu0 %v324, 122
        %v2183 = vpop.permute.xlu0 %2182
        %2184 = vrot.lane.b32.xlu0 %v325, 122
        %v2185 = vpop.permute.xlu0 %2184
        %2186 = vrot.lane.b32.xlu0 %v326, 122
        %v2187 = vpop.permute.xlu0 %2186
        %2188 = vrot.lane.b32.xlu0 %v327, 122
        %v2189 = vpop.permute.xlu0 %2188
        %2190 = vrot.lane.b32.xlu0 %v328, 122
        %v2191 = vpop.permute.xlu0 %2190
        %2192 = vrot.lane.b32.xlu0 %v329, 122
        %v2193 = vpop.permute.xlu0 %2192
        %v2194 = vsel %vm783, %v2067, 4294967295
        %v2195 = vsel %vm784, %v2069, 4294967295
        %v2196 = vsel %vm785, %v2071, 4294967295
        %v2197 = vsel %vm786, %v2073, 4294967295
        %v2198 = vsel %vm787, %v2075, 4294967295
        %v2199 = vsel %vm788, %v2077, 4294967295
        %v2200 = vsel %vm789, %v2079, 4294967295
        %v2201 = vsel %vm790, %v2081, 4294967295
        %v2202 = vsel %vm791, %v2083, 4294967295
        %v2203 = vsel %vm792, %v2085, 4294967295
        %v2204 = vsel %vm793, %v2087, 4294967295
        %v2205 = vsel %vm794, %v2089, 4294967295
        %v2206 = vsel %vm795, %v2091, 4294967295
        %v2207 = vsel %vm796, %v2093, 4294967295
        %v2208 = vsel %vm797, %v2095, 4294967295
        %v2209 = vsel %vm798, %v2097, 4294967295
        %v2210 = vsel %vm799, %v2099, 4294967295
        %v2211 = vsel %vm800, %v2101, 4294967295
        %v2212 = vsel %vm801, %v2103, 4294967295
        %v2213 = vsel %vm802, %v2105, 4294967295
        %v2214 = vsel %vm803, %v2107, 4294967295
        %v2215 = vsel %vm804, %v2109, 4294967295
        %v2216 = vsel %vm805, %v2111, 4294967295
        %v2217 = vsel %vm806, %v2113, 4294967295
        %v2218 = vsel %vm807, %v2115, 4294967295
        %v2219 = vsel %vm808, %v2117, 4294967295
        %v2220 = vsel %vm809, %v2119, 4294967295
        %v2221 = vsel %vm810, %v2121, 4294967295
        %v2222 = vsel %vm811, %v2123, 4294967295
        %v2223 = vsel %vm812, %v2125, 4294967295
        %v2224 = vsel %vm813, %v2127, 4294967295
        %v2225 = vsel %vm814, %v2129, 4294967295
        %v2226 = vsel %vm815, %v2131, 4294967295
        %v2227 = vsel %vm816, %v2133, 4294967295
        %v2228 = vsel %vm817, %v2135, 4294967295
        %v2229 = vsel %vm818, %v2137, 4294967295
        %v2230 = vsel %vm819, %v2139, 4294967295
        %v2231 = vsel %vm820, %v2141, 4294967295
        %v2232 = vsel %vm821, %v2143, 4294967295
        %v2233 = vsel %vm822, %v2145, 4294967295
        %v2234 = vsel %vm823, %v2147, 4294967295
        %v2235 = vsel %vm824, %v2149, 4294967295
        %v2236 = vsel %vm825, %v2151, 4294967295
        %v2237 = vsel %vm826, %v2153, 4294967295
        %v2238 = vsel %vm827, %v2155, 4294967295
        %v2239 = vsel %vm828, %v2157, 4294967295
        %v2240 = vsel %vm829, %v2159, 4294967295
        %v2241 = vsel %vm830, %v2161, 4294967295
        %v2242 = vsel %vm831, %v2163, 4294967295
        %v2243 = vsel %vm832, %v2165, 4294967295
        %v2244 = vsel %vm833, %v2167, 4294967295
        %v2245 = vsel %vm834, %v2169, 4294967295
        %v2246 = vsel %vm835, %v2171, 4294967295
        %v2247 = vsel %vm836, %v2173, 4294967295
        %v2248 = vsel %vm837, %v2175, 4294967295
        %v2249 = vsel %vm838, %v2177, 4294967295
        %v2250 = vsel %vm839, %v2179, 4294967295
        %v2251 = vsel %vm840, %v2181, 4294967295
        %v2252 = vsel %vm841, %v2183, 4294967295
        %v2253 = vsel %vm842, %v2185, 4294967295
        %v2254 = vsel %vm843, %v2187, 4294967295
        %v2255 = vsel %vm844, %v2189, 4294967295
        %v2256 = vsel %vm845, %v2191, 4294967295
        %v2257 = vsel %vm846, %v2193, 4294967295
        %2258 = vset.pattern.permute.xlu0 0
        %2259 = vperm.xlu0 %2258, %v2194
        %v2260 = vpop.permute.xlu0 %2259
        %2261 = vset.pattern.permute.xlu0 0
        %2262 = vperm.xlu0 %2261, %v2195
        %v2263 = vpop.permute.xlu0 %2262
        %2264 = vset.pattern.permute.xlu0 0
        %2265 = vperm.xlu0 %2264, %v2196
        %v2266 = vpop.permute.xlu0 %2265
        %2267 = vset.pattern.permute.xlu0 0
        %2268 = vperm.xlu0 %2267, %v2197
        %v2269 = vpop.permute.xlu0 %2268
        %2270 = vset.pattern.permute.xlu0 0
        %2271 = vperm.xlu0 %2270, %v2198
        %v2272 = vpop.permute.xlu0 %2271
        %2273 = vset.pattern.permute.xlu0 0
        %2274 = vperm.xlu0 %2273, %v2199
        %v2275 = vpop.permute.xlu0 %2274
        %2276 = vset.pattern.permute.xlu0 0
        %2277 = vperm.xlu0 %2276, %v2200
        %v2278 = vpop.permute.xlu0 %2277
        %2279 = vset.pattern.permute.xlu0 0
        %2280 = vperm.xlu0 %2279, %v2201
        %v2281 = vpop.permute.xlu0 %2280
        %2282 = vset.pattern.permute.xlu0 0
        %2283 = vperm.xlu0 %2282, %v2202
        %v2284 = vpop.permute.xlu0 %2283
        %2285 = vset.pattern.permute.xlu0 0
        %2286 = vperm.xlu0 %2285, %v2203
        %v2287 = vpop.permute.xlu0 %2286
        %2288 = vset.pattern.permute.xlu0 0
        %2289 = vperm.xlu0 %2288, %v2204
        %v2290 = vpop.permute.xlu0 %2289
        %2291 = vset.pattern.permute.xlu0 0
        %2292 = vperm.xlu0 %2291, %v2205
        %v2293 = vpop.permute.xlu0 %2292
        %2294 = vset.pattern.permute.xlu0 0
        %2295 = vperm.xlu0 %2294, %v2206
        %v2296 = vpop.permute.xlu0 %2295
        %2297 = vset.pattern.permute.xlu0 0
        %2298 = vperm.xlu0 %2297, %v2207
        %v2299 = vpop.permute.xlu0 %2298
        %2300 = vset.pattern.permute.xlu0 0
        %2301 = vperm.xlu0 %2300, %v2208
        %v2302 = vpop.permute.xlu0 %2301
        %2303 = vset.pattern.permute.xlu0 0
        %2304 = vperm.xlu0 %2303, %v2209
        %v2305 = vpop.permute.xlu0 %2304
        %2306 = vset.pattern.permute.xlu0 0
        %2307 = vperm.xlu0 %2306, %v2210
        %v2308 = vpop.permute.xlu0 %2307
        %2309 = vset.pattern.permute.xlu0 0
        %2310 = vperm.xlu0 %2309, %v2211
        %v2311 = vpop.permute.xlu0 %2310
        %2312 = vset.pattern.permute.xlu0 0
        %2313 = vperm.xlu0 %2312, %v2212
        %v2314 = vpop.permute.xlu0 %2313
        %2315 = vset.pattern.permute.xlu0 0
        %2316 = vperm.xlu0 %2315, %v2213
        %v2317 = vpop.permute.xlu0 %2316
        %2318 = vset.pattern.permute.xlu0 0
        %2319 = vperm.xlu0 %2318, %v2214
        %v2320 = vpop.permute.xlu0 %2319
        %2321 = vset.pattern.permute.xlu0 0
        %2322 = vperm.xlu0 %2321, %v2215
        %v2323 = vpop.permute.xlu0 %2322
        %2324 = vset.pattern.permute.xlu0 0
        %2325 = vperm.xlu0 %2324, %v2216
        %v2326 = vpop.permute.xlu0 %2325
        %2327 = vset.pattern.permute.xlu0 0
        %2328 = vperm.xlu0 %2327, %v2217
        %v2329 = vpop.permute.xlu0 %2328
        %2330 = vset.pattern.permute.xlu0 0
        %2331 = vperm.xlu0 %2330, %v2218
        %v2332 = vpop.permute.xlu0 %2331
        %2333 = vset.pattern.permute.xlu0 0
        %2334 = vperm.xlu0 %2333, %v2219
        %v2335 = vpop.permute.xlu0 %2334
        %2336 = vset.pattern.permute.xlu0 0
        %2337 = vperm.xlu0 %2336, %v2220
        %v2338 = vpop.permute.xlu0 %2337
        %2339 = vset.pattern.permute.xlu0 0
        %2340 = vperm.xlu0 %2339, %v2221
        %v2341 = vpop.permute.xlu0 %2340
        %2342 = vset.pattern.permute.xlu0 0
        %2343 = vperm.xlu0 %2342, %v2222
        %v2344 = vpop.permute.xlu0 %2343
        %2345 = vset.pattern.permute.xlu0 0
        %2346 = vperm.xlu0 %2345, %v2223
        %v2347 = vpop.permute.xlu0 %2346
        %2348 = vset.pattern.permute.xlu0 0
        %2349 = vperm.xlu0 %2348, %v2224
        %v2350 = vpop.permute.xlu0 %2349
        %2351 = vset.pattern.permute.xlu0 0
        %2352 = vperm.xlu0 %2351, %v2225
        %v2353 = vpop.permute.xlu0 %2352
        %2354 = vset.pattern.permute.xlu0 0
        %2355 = vperm.xlu0 %2354, %v2226
        %v2356 = vpop.permute.xlu0 %2355
        %2357 = vset.pattern.permute.xlu0 0
        %2358 = vperm.xlu0 %2357, %v2227
        %v2359 = vpop.permute.xlu0 %2358
        %2360 = vset.pattern.permute.xlu0 0
        %2361 = vperm.xlu0 %2360, %v2228
        %v2362 = vpop.permute.xlu0 %2361
        %2363 = vset.pattern.permute.xlu0 0
        %2364 = vperm.xlu0 %2363, %v2229
        %v2365 = vpop.permute.xlu0 %2364
        %2366 = vset.pattern.permute.xlu0 0
        %2367 = vperm.xlu0 %2366, %v2230
        %v2368 = vpop.permute.xlu0 %2367
        %2369 = vset.pattern.permute.xlu0 0
        %2370 = vperm.xlu0 %2369, %v2231
        %v2371 = vpop.permute.xlu0 %2370
        %2372 = vset.pattern.permute.xlu0 0
        %2373 = vperm.xlu0 %2372, %v2232
        %v2374 = vpop.permute.xlu0 %2373
        %2375 = vset.pattern.permute.xlu0 0
        %2376 = vperm.xlu0 %2375, %v2233
        %v2377 = vpop.permute.xlu0 %2376
        %2378 = vset.pattern.permute.xlu0 0
        %2379 = vperm.xlu0 %2378, %v2234
        %v2380 = vpop.permute.xlu0 %2379
        %2381 = vset.pattern.permute.xlu0 0
        %2382 = vperm.xlu0 %2381, %v2235
        %v2383 = vpop.permute.xlu0 %2382
        %2384 = vset.pattern.permute.xlu0 0
        %2385 = vperm.xlu0 %2384, %v2236
        %v2386 = vpop.permute.xlu0 %2385
        %2387 = vset.pattern.permute.xlu0 0
        %2388 = vperm.xlu0 %2387, %v2237
        %v2389 = vpop.permute.xlu0 %2388
        %2390 = vset.pattern.permute.xlu0 0
        %2391 = vperm.xlu0 %2390, %v2238
        %v2392 = vpop.permute.xlu0 %2391
        %2393 = vset.pattern.permute.xlu0 0
        %2394 = vperm.xlu0 %2393, %v2239
        %v2395 = vpop.permute.xlu0 %2394
        %2396 = vset.pattern.permute.xlu0 0
        %2397 = vperm.xlu0 %2396, %v2240
        %v2398 = vpop.permute.xlu0 %2397
        %2399 = vset.pattern.permute.xlu0 0
        %2400 = vperm.xlu0 %2399, %v2241
        %v2401 = vpop.permute.xlu0 %2400
        %2402 = vset.pattern.permute.xlu0 0
        %2403 = vperm.xlu0 %2402, %v2242
        %v2404 = vpop.permute.xlu0 %2403
        %2405 = vset.pattern.permute.xlu0 0
        %2406 = vperm.xlu0 %2405, %v2243
        %v2407 = vpop.permute.xlu0 %2406
        %2408 = vset.pattern.permute.xlu0 0
        %2409 = vperm.xlu0 %2408, %v2244
        %v2410 = vpop.permute.xlu0 %2409
        %2411 = vset.pattern.permute.xlu0 0
        %2412 = vperm.xlu0 %2411, %v2245
        %v2413 = vpop.permute.xlu0 %2412
        %2414 = vset.pattern.permute.xlu0 0
        %2415 = vperm.xlu0 %2414, %v2246
        %v2416 = vpop.permute.xlu0 %2415
        %2417 = vset.pattern.permute.xlu0 0
        %2418 = vperm.xlu0 %2417, %v2247
        %v2419 = vpop.permute.xlu0 %2418
        %2420 = vset.pattern.permute.xlu0 0
        %2421 = vperm.xlu0 %2420, %v2248
        %v2422 = vpop.permute.xlu0 %2421
        %2423 = vset.pattern.permute.xlu0 0
        %2424 = vperm.xlu0 %2423, %v2249
        %v2425 = vpop.permute.xlu0 %2424
        %2426 = vset.pattern.permute.xlu0 0
        %2427 = vperm.xlu0 %2426, %v2250
        %v2428 = vpop.permute.xlu0 %2427
        %2429 = vset.pattern.permute.xlu0 0
        %2430 = vperm.xlu0 %2429, %v2251
        %v2431 = vpop.permute.xlu0 %2430
        %2432 = vset.pattern.permute.xlu0 0
        %2433 = vperm.xlu0 %2432, %v2252
        %v2434 = vpop.permute.xlu0 %2433
        %2435 = vset.pattern.permute.xlu0 0
        %2436 = vperm.xlu0 %2435, %v2253
        %v2437 = vpop.permute.xlu0 %2436
        %2438 = vset.pattern.permute.xlu0 0
        %2439 = vperm.xlu0 %2438, %v2254
        %v2440 = vpop.permute.xlu0 %2439
        %2441 = vset.pattern.permute.xlu0 0
        %2442 = vperm.xlu0 %2441, %v2255
        %v2443 = vpop.permute.xlu0 %2442
        %2444 = vset.pattern.permute.xlu0 0
        %2445 = vperm.xlu0 %2444, %v2256
        %v2446 = vpop.permute.xlu0 %2445
        %2447 = vset.pattern.permute.xlu0 0
        %2448 = vperm.xlu0 %2447, %v2257
        %v2449 = vpop.permute.xlu0 %2448
        %vm2450 = vcmp.eq.s32.totalorder %v848, %v2260
        %vm2451 = vcmp.eq.s32.totalorder %v848, %v2263
        %vm2452 = vcmp.eq.s32.totalorder %v848, %v2266
        %vm2453 = vcmp.eq.s32.totalorder %v848, %v2269
        %vm2454 = vcmp.eq.s32.totalorder %v848, %v2272
        %vm2455 = vcmp.eq.s32.totalorder %v848, %v2275
        %vm2456 = vcmp.eq.s32.totalorder %v848, %v2278
        %vm2457 = vcmp.eq.s32.totalorder %v848, %v2281
        %vm2458 = vcmp.eq.s32.totalorder %v848, %v2284
        %vm2459 = vcmp.eq.s32.totalorder %v848, %v2287
        %vm2460 = vcmp.eq.s32.totalorder %v848, %v2290
        %vm2461 = vcmp.eq.s32.totalorder %v848, %v2293
        %vm2462 = vcmp.eq.s32.totalorder %v848, %v2296
        %vm2463 = vcmp.eq.s32.totalorder %v848, %v2299
        %vm2464 = vcmp.eq.s32.totalorder %v848, %v2302
        %vm2465 = vcmp.eq.s32.totalorder %v848, %v2305
        %vm2466 = vcmp.eq.s32.totalorder %v848, %v2308
        %vm2467 = vcmp.eq.s32.totalorder %v848, %v2311
        %vm2468 = vcmp.eq.s32.totalorder %v848, %v2314
        %vm2469 = vcmp.eq.s32.totalorder %v848, %v2317
        %vm2470 = vcmp.eq.s32.totalorder %v848, %v2320
        %vm2471 = vcmp.eq.s32.totalorder %v848, %v2323
        %vm2472 = vcmp.eq.s32.totalorder %v848, %v2326
        %vm2473 = vcmp.eq.s32.totalorder %v848, %v2329
        %vm2474 = vcmp.eq.s32.totalorder %v848, %v2332
        %vm2475 = vcmp.eq.s32.totalorder %v848, %v2335
        %vm2476 = vcmp.eq.s32.totalorder %v848, %v2338
        %vm2477 = vcmp.eq.s32.totalorder %v848, %v2341
        %vm2478 = vcmp.eq.s32.totalorder %v848, %v2344
        %vm2479 = vcmp.eq.s32.totalorder %v848, %v2347
        %vm2480 = vcmp.eq.s32.totalorder %v848, %v2350
        %vm2481 = vcmp.eq.s32.totalorder %v848, %v2353
        %vm2482 = vcmp.eq.s32.totalorder %v848, %v2356
        %vm2483 = vcmp.eq.s32.totalorder %v848, %v2359
        %vm2484 = vcmp.eq.s32.totalorder %v848, %v2362
        %vm2485 = vcmp.eq.s32.totalorder %v848, %v2365
        %vm2486 = vcmp.eq.s32.totalorder %v848, %v2368
        %vm2487 = vcmp.eq.s32.totalorder %v848, %v2371
        %vm2488 = vcmp.eq.s32.totalorder %v848, %v2374
        %vm2489 = vcmp.eq.s32.totalorder %v848, %v2377
        %vm2490 = vcmp.eq.s32.totalorder %v848, %v2380
        %vm2491 = vcmp.eq.s32.totalorder %v848, %v2383
        %vm2492 = vcmp.eq.s32.totalorder %v848, %v2386
        %vm2493 = vcmp.eq.s32.totalorder %v848, %v2389
        %vm2494 = vcmp.eq.s32.totalorder %v848, %v2392
        %vm2495 = vcmp.eq.s32.totalorder %v848, %v2395
        %vm2496 = vcmp.eq.s32.totalorder %v848, %v2398
        %vm2497 = vcmp.eq.s32.totalorder %v848, %v2401
        %vm2498 = vcmp.eq.s32.totalorder %v848, %v2404
        %vm2499 = vcmp.eq.s32.totalorder %v848, %v2407
        %vm2500 = vcmp.eq.s32.totalorder %v848, %v2410
        %vm2501 = vcmp.eq.s32.totalorder %v848, %v2413
        %vm2502 = vcmp.eq.s32.totalorder %v848, %v2416
        %vm2503 = vcmp.eq.s32.totalorder %v848, %v2419
        %vm2504 = vcmp.eq.s32.totalorder %v848, %v2422
        %vm2505 = vcmp.eq.s32.totalorder %v848, %v2425
        %vm2506 = vcmp.eq.s32.totalorder %v848, %v2428
        %vm2507 = vcmp.eq.s32.totalorder %v848, %v2431
        %vm2508 = vcmp.eq.s32.totalorder %v848, %v2434
        %vm2509 = vcmp.eq.s32.totalorder %v848, %v2437
        %vm2510 = vcmp.eq.s32.totalorder %v848, %v2440
        %vm2511 = vcmp.eq.s32.totalorder %v848, %v2443
        %vm2512 = vcmp.eq.s32.totalorder %v848, %v2446
        %vm2513 = vcmp.eq.s32.totalorder %v848, %v2449
        %v2514 = vsel %vm2450, 1, 0
        %v2515 = vsel %vm2451, 1, 0
        %v2516 = vsel %vm2452, 1, 0
        %v2517 = vsel %vm2453, 1, 0
        %v2518 = vsel %vm2454, 1, 0
        %v2519 = vsel %vm2455, 1, 0
        %v2520 = vsel %vm2456, 1, 0
        %v2521 = vsel %vm2457, 1, 0
        %v2522 = vsel %vm2458, 1, 0
        %v2523 = vsel %vm2459, 1, 0
        %v2524 = vsel %vm2460, 1, 0
        %v2525 = vsel %vm2461, 1, 0
        %v2526 = vsel %vm2462, 1, 0
        %v2527 = vsel %vm2463, 1, 0
        %v2528 = vsel %vm2464, 1, 0
        %v2529 = vsel %vm2465, 1, 0
        %v2530 = vsel %vm2466, 1, 0
        %v2531 = vsel %vm2467, 1, 0
        %v2532 = vsel %vm2468, 1, 0
        %v2533 = vsel %vm2469, 1, 0
        %v2534 = vsel %vm2470, 1, 0
        %v2535 = vsel %vm2471, 1, 0
        %v2536 = vsel %vm2472, 1, 0
        %v2537 = vsel %vm2473, 1, 0
        %v2538 = vsel %vm2474, 1, 0
        %v2539 = vsel %vm2475, 1, 0
        %v2540 = vsel %vm2476, 1, 0
        %v2541 = vsel %vm2477, 1, 0
        %v2542 = vsel %vm2478, 1, 0
        %v2543 = vsel %vm2479, 1, 0
        %v2544 = vsel %vm2480, 1, 0
        %v2545 = vsel %vm2481, 1, 0
        %v2546 = vsel %vm2482, 1, 0
        %v2547 = vsel %vm2483, 1, 0
        %v2548 = vsel %vm2484, 1, 0
        %v2549 = vsel %vm2485, 1, 0
        %v2550 = vsel %vm2486, 1, 0
        %v2551 = vsel %vm2487, 1, 0
        %v2552 = vsel %vm2488, 1, 0
        %v2553 = vsel %vm2489, 1, 0
        %v2554 = vsel %vm2490, 1, 0
        %v2555 = vsel %vm2491, 1, 0
        %v2556 = vsel %vm2492, 1, 0
        %v2557 = vsel %vm2493, 1, 0
        %v2558 = vsel %vm2494, 1, 0
        %v2559 = vsel %vm2495, 1, 0
        %v2560 = vsel %vm2496, 1, 0
        %v2561 = vsel %vm2497, 1, 0
        %v2562 = vsel %vm2498, 1, 0
        %v2563 = vsel %vm2499, 1, 0
        %v2564 = vsel %vm2500, 1, 0
        %v2565 = vsel %vm2501, 1, 0
        %v2566 = vsel %vm2502, 1, 0
        %v2567 = vsel %vm2503, 1, 0
        %v2568 = vsel %vm2504, 1, 0
        %v2569 = vsel %vm2505, 1, 0
        %v2570 = vsel %vm2506, 1, 0
        %v2571 = vsel %vm2507, 1, 0
        %v2572 = vsel %vm2508, 1, 0
        %v2573 = vsel %vm2509, 1, 0
        %v2574 = vsel %vm2510, 1, 0
        %v2575 = vsel %vm2511, 1, 0
        %v2576 = vsel %vm2512, 1, 0
        %v2577 = vsel %vm2513, 1, 0
        %v2578 = vcvt.s32.f32 %v2514
        %v2579 = vcvt.s32.f32 %v2515
        %v2580 = vcvt.s32.f32 %v2516
        %v2581 = vcvt.s32.f32 %v2517
        %v2582 = vcvt.s32.f32 %v2518
        %v2583 = vcvt.s32.f32 %v2519
        %v2584 = vcvt.s32.f32 %v2520
        %v2585 = vcvt.s32.f32 %v2521
        %v2586 = vcvt.s32.f32 %v2522
        %v2587 = vcvt.s32.f32 %v2523
        %v2588 = vcvt.s32.f32 %v2524
        %v2589 = vcvt.s32.f32 %v2525
        %v2590 = vcvt.s32.f32 %v2526
        %v2591 = vcvt.s32.f32 %v2527
        %v2592 = vcvt.s32.f32 %v2528
        %v2593 = vcvt.s32.f32 %v2529
        %v2594 = vcvt.s32.f32 %v2530
        %v2595 = vcvt.s32.f32 %v2531
        %v2596 = vcvt.s32.f32 %v2532
        %v2597 = vcvt.s32.f32 %v2533
        %v2598 = vcvt.s32.f32 %v2534
        %v2599 = vcvt.s32.f32 %v2535
        %v2600 = vcvt.s32.f32 %v2536
        %v2601 = vcvt.s32.f32 %v2537
        %v2602 = vcvt.s32.f32 %v2538
        %v2603 = vcvt.s32.f32 %v2539
        %v2604 = vcvt.s32.f32 %v2540
        %v2605 = vcvt.s32.f32 %v2541
        %v2606 = vcvt.s32.f32 %v2542
        %v2607 = vcvt.s32.f32 %v2543
        %v2608 = vcvt.s32.f32 %v2544
        %v2609 = vcvt.s32.f32 %v2545
        %v2610 = vcvt.s32.f32 %v2546
        %v2611 = vcvt.s32.f32 %v2547
        %v2612 = vcvt.s32.f32 %v2548
        %v2613 = vcvt.s32.f32 %v2549
        %v2614 = vcvt.s32.f32 %v2550
        %v2615 = vcvt.s32.f32 %v2551
        %v2616 = vcvt.s32.f32 %v2552
        %v2617 = vcvt.s32.f32 %v2553
        %v2618 = vcvt.s32.f32 %v2554
        %v2619 = vcvt.s32.f32 %v2555
        %v2620 = vcvt.s32.f32 %v2556
        %v2621 = vcvt.s32.f32 %v2557
        %v2622 = vcvt.s32.f32 %v2558
        %v2623 = vcvt.s32.f32 %v2559
        %v2624 = vcvt.s32.f32 %v2560
        %v2625 = vcvt.s32.f32 %v2561
        %v2626 = vcvt.s32.f32 %v2562
        %v2627 = vcvt.s32.f32 %v2563
        %v2628 = vcvt.s32.f32 %v2564
        %v2629 = vcvt.s32.f32 %v2565
        %v2630 = vcvt.s32.f32 %v2566
        %v2631 = vcvt.s32.f32 %v2567
        %v2632 = vcvt.s32.f32 %v2568
        %v2633 = vcvt.s32.f32 %v2569
        %v2634 = vcvt.s32.f32 %v2570
        %v2635 = vcvt.s32.f32 %v2571
        %v2636 = vcvt.s32.f32 %v2572
        %v2637 = vcvt.s32.f32 %v2573
        %v2638 = vcvt.s32.f32 %v2574
        %v2639 = vcvt.s32.f32 %v2575
        %v2640 = vcvt.s32.f32 %v2576
        %v2641 = vcvt.s32.f32 %v2577
        %v2642 = vadd.f32 %v2002, %v2578
        %v2643 = vadd.f32 %v2003, %v2579
        %v2644 = vadd.f32 %v2004, %v2580
        %v2645 = vadd.f32 %v2005, %v2581
        %v2646 = vadd.f32 %v2006, %v2582
        %v2647 = vadd.f32 %v2007, %v2583
        %v2648 = vadd.f32 %v2008, %v2584
        %v2649 = vadd.f32 %v2009, %v2585
        %v2650 = vadd.f32 %v2010, %v2586
        %v2651 = vadd.f32 %v2011, %v2587
        %v2652 = vadd.f32 %v2012, %v2588
        %v2653 = vadd.f32 %v2013, %v2589
        %v2654 = vadd.f32 %v2014, %v2590
        %v2655 = vadd.f32 %v2015, %v2591
        %v2656 = vadd.f32 %v2016, %v2592
        %v2657 = vadd.f32 %v2017, %v2593
        %v2658 = vadd.f32 %v2018, %v2594
        %v2659 = vadd.f32 %v2019, %v2595
        %v2660 = vadd.f32 %v2020, %v2596
        %v2661 = vadd.f32 %v2021, %v2597
        %v2662 = vadd.f32 %v2022, %v2598
        %v2663 = vadd.f32 %v2023, %v2599
        %v2664 = vadd.f32 %v2024, %v2600
        %v2665 = vadd.f32 %v2025, %v2601
        %v2666 = vadd.f32 %v2026, %v2602
        %v2667 = vadd.f32 %v2027, %v2603
        %v2668 = vadd.f32 %v2028, %v2604
        %v2669 = vadd.f32 %v2029, %v2605
        %v2670 = vadd.f32 %v2030, %v2606
        %v2671 = vadd.f32 %v2031, %v2607
        %v2672 = vadd.f32 %v2032, %v2608
        %v2673 = vadd.f32 %v2033, %v2609
        %v2674 = vadd.f32 %v2034, %v2610
        %v2675 = vadd.f32 %v2035, %v2611
        %v2676 = vadd.f32 %v2036, %v2612
        %v2677 = vadd.f32 %v2037, %v2613
        %v2678 = vadd.f32 %v2038, %v2614
        %v2679 = vadd.f32 %v2039, %v2615
        %v2680 = vadd.f32 %v2040, %v2616
        %v2681 = vadd.f32 %v2041, %v2617
        %v2682 = vadd.f32 %v2042, %v2618
        %v2683 = vadd.f32 %v2043, %v2619
        %v2684 = vadd.f32 %v2044, %v2620
        %v2685 = vadd.f32 %v2045, %v2621
        %v2686 = vadd.f32 %v2046, %v2622
        %v2687 = vadd.f32 %v2047, %v2623
        %v2688 = vadd.f32 %v2048, %v2624
        %v2689 = vadd.f32 %v2049, %v2625
        %v2690 = vadd.f32 %v2050, %v2626
        %v2691 = vadd.f32 %v2051, %v2627
        %v2692 = vadd.f32 %v2052, %v2628
        %v2693 = vadd.f32 %v2053, %v2629
        %v2694 = vadd.f32 %v2054, %v2630
        %v2695 = vadd.f32 %v2055, %v2631
        %v2696 = vadd.f32 %v2056, %v2632
        %v2697 = vadd.f32 %v2057, %v2633
        %v2698 = vadd.f32 %v2058, %v2634
        %v2699 = vadd.f32 %v2059, %v2635
        %v2700 = vadd.f32 %v2060, %v2636
        %v2701 = vadd.f32 %v2061, %v2637
        %v2702 = vadd.f32 %v2062, %v2638
        %v2703 = vadd.f32 %v2063, %v2639
        %v2704 = vadd.f32 %v2064, %v2640
        %v2705 = vadd.f32 %v2065, %v2641
        %2706 = vrot.lane.b32.xlu0 %v266, 121
        %v2707 = vpop.permute.xlu0 %2706
        %2708 = vrot.lane.b32.xlu0 %v267, 121
        %v2709 = vpop.permute.xlu0 %2708
        %2710 = vrot.lane.b32.xlu0 %v268, 121
        %v2711 = vpop.permute.xlu0 %2710
        %2712 = vrot.lane.b32.xlu0 %v269, 121
        %v2713 = vpop.permute.xlu0 %2712
        %2714 = vrot.lane.b32.xlu0 %v270, 121
        %v2715 = vpop.permute.xlu0 %2714
        %2716 = vrot.lane.b32.xlu0 %v271, 121
        %v2717 = vpop.permute.xlu0 %2716
        %2718 = vrot.lane.b32.xlu0 %v272, 121
        %v2719 = vpop.permute.xlu0 %2718
        %2720 = vrot.lane.b32.xlu0 %v273, 121
        %v2721 = vpop.permute.xlu0 %2720
        %2722 = vrot.lane.b32.xlu0 %v274, 121
        %v2723 = vpop.permute.xlu0 %2722
        %2724 = vrot.lane.b32.xlu0 %v275, 121
        %v2725 = vpop.permute.xlu0 %2724
        %2726 = vrot.lane.b32.xlu0 %v276, 121
        %v2727 = vpop.permute.xlu0 %2726
        %2728 = vrot.lane.b32.xlu0 %v277, 121
        %v2729 = vpop.permute.xlu0 %2728
        %2730 = vrot.lane.b32.xlu0 %v278, 121
        %v2731 = vpop.permute.xlu0 %2730
        %2732 = vrot.lane.b32.xlu0 %v279, 121
        %v2733 = vpop.permute.xlu0 %2732
        %2734 = vrot.lane.b32.xlu0 %v280, 121
        %v2735 = vpop.permute.xlu0 %2734
        %2736 = vrot.lane.b32.xlu0 %v281, 121
        %v2737 = vpop.permute.xlu0 %2736
        %2738 = vrot.lane.b32.xlu0 %v282, 121
        %v2739 = vpop.permute.xlu0 %2738
        %2740 = vrot.lane.b32.xlu0 %v283, 121
        %v2741 = vpop.permute.xlu0 %2740
        %2742 = vrot.lane.b32.xlu0 %v284, 121
        %v2743 = vpop.permute.xlu0 %2742
        %2744 = vrot.lane.b32.xlu0 %v285, 121
        %v2745 = vpop.permute.xlu0 %2744
        %2746 = vrot.lane.b32.xlu0 %v286, 121
        %v2747 = vpop.permute.xlu0 %2746
        %2748 = vrot.lane.b32.xlu0 %v287, 121
        %v2749 = vpop.permute.xlu0 %2748
        %2750 = vrot.lane.b32.xlu0 %v288, 121
        %v2751 = vpop.permute.xlu0 %2750
        %2752 = vrot.lane.b32.xlu0 %v289, 121
        %v2753 = vpop.permute.xlu0 %2752
        %2754 = vrot.lane.b32.xlu0 %v290, 121
        %v2755 = vpop.permute.xlu0 %2754
        %2756 = vrot.lane.b32.xlu0 %v291, 121
        %v2757 = vpop.permute.xlu0 %2756
        %2758 = vrot.lane.b32.xlu0 %v292, 121
        %v2759 = vpop.permute.xlu0 %2758
        %2760 = vrot.lane.b32.xlu0 %v293, 121
        %v2761 = vpop.permute.xlu0 %2760
        %2762 = vrot.lane.b32.xlu0 %v294, 121
        %v2763 = vpop.permute.xlu0 %2762
        %2764 = vrot.lane.b32.xlu0 %v295, 121
        %v2765 = vpop.permute.xlu0 %2764
        %2766 = vrot.lane.b32.xlu0 %v296, 121
        %v2767 = vpop.permute.xlu0 %2766
        %2768 = vrot.lane.b32.xlu0 %v297, 121
        %v2769 = vpop.permute.xlu0 %2768
        %2770 = vrot.lane.b32.xlu0 %v298, 121
        %v2771 = vpop.permute.xlu0 %2770
        %2772 = vrot.lane.b32.xlu0 %v299, 121
        %v2773 = vpop.permute.xlu0 %2772
        %2774 = vrot.lane.b32.xlu0 %v300, 121
        %v2775 = vpop.permute.xlu0 %2774
        %2776 = vrot.lane.b32.xlu0 %v301, 121
        %v2777 = vpop.permute.xlu0 %2776
        %2778 = vrot.lane.b32.xlu0 %v302, 121
        %v2779 = vpop.permute.xlu0 %2778
        %2780 = vrot.lane.b32.xlu0 %v303, 121
        %v2781 = vpop.permute.xlu0 %2780
        %2782 = vrot.lane.b32.xlu0 %v304, 121
        %v2783 = vpop.permute.xlu0 %2782
        %2784 = vrot.lane.b32.xlu0 %v305, 121
        %v2785 = vpop.permute.xlu0 %2784
        %2786 = vrot.lane.b32.xlu0 %v306, 121
        %v2787 = vpop.permute.xlu0 %2786
        %2788 = vrot.lane.b32.xlu0 %v307, 121
        %v2789 = vpop.permute.xlu0 %2788
        %2790 = vrot.lane.b32.xlu0 %v308, 121
        %v2791 = vpop.permute.xlu0 %2790
        %2792 = vrot.lane.b32.xlu0 %v309, 121
        %v2793 = vpop.permute.xlu0 %2792
        %2794 = vrot.lane.b32.xlu0 %v310, 121
        %v2795 = vpop.permute.xlu0 %2794
        %2796 = vrot.lane.b32.xlu0 %v311, 121
        %v2797 = vpop.permute.xlu0 %2796
        %2798 = vrot.lane.b32.xlu0 %v312, 121
        %v2799 = vpop.permute.xlu0 %2798
        %2800 = vrot.lane.b32.xlu0 %v313, 121
        %v2801 = vpop.permute.xlu0 %2800
        %2802 = vrot.lane.b32.xlu0 %v314, 121
        %v2803 = vpop.permute.xlu0 %2802
        %2804 = vrot.lane.b32.xlu0 %v315, 121
        %v2805 = vpop.permute.xlu0 %2804
        %2806 = vrot.lane.b32.xlu0 %v316, 121
        %v2807 = vpop.permute.xlu0 %2806
        %2808 = vrot.lane.b32.xlu0 %v317, 121
        %v2809 = vpop.permute.xlu0 %2808
        %2810 = vrot.lane.b32.xlu0 %v318, 121
        %v2811 = vpop.permute.xlu0 %2810
        %2812 = vrot.lane.b32.xlu0 %v319, 121
        %v2813 = vpop.permute.xlu0 %2812
        %2814 = vrot.lane.b32.xlu0 %v320, 121
        %v2815 = vpop.permute.xlu0 %2814
        %2816 = vrot.lane.b32.xlu0 %v321, 121
        %v2817 = vpop.permute.xlu0 %2816
        %2818 = vrot.lane.b32.xlu0 %v322, 121
        %v2819 = vpop.permute.xlu0 %2818
        %2820 = vrot.lane.b32.xlu0 %v323, 121
        %v2821 = vpop.permute.xlu0 %2820
        %2822 = vrot.lane.b32.xlu0 %v324, 121
        %v2823 = vpop.permute.xlu0 %2822
        %2824 = vrot.lane.b32.xlu0 %v325, 121
        %v2825 = vpop.permute.xlu0 %2824
        %2826 = vrot.lane.b32.xlu0 %v326, 121
        %v2827 = vpop.permute.xlu0 %2826
        %2828 = vrot.lane.b32.xlu0 %v327, 121
        %v2829 = vpop.permute.xlu0 %2828
        %2830 = vrot.lane.b32.xlu0 %v328, 121
        %v2831 = vpop.permute.xlu0 %2830
        %2832 = vrot.lane.b32.xlu0 %v329, 121
        %v2833 = vpop.permute.xlu0 %2832
        %v2834 = vsel %vm783, %v2707, 4294967295
        %v2835 = vsel %vm784, %v2709, 4294967295
        %v2836 = vsel %vm785, %v2711, 4294967295
        %v2837 = vsel %vm786, %v2713, 4294967295
        %v2838 = vsel %vm787, %v2715, 4294967295
        %v2839 = vsel %vm788, %v2717, 4294967295
        %v2840 = vsel %vm789, %v2719, 4294967295
        %v2841 = vsel %vm790, %v2721, 4294967295
        %v2842 = vsel %vm791, %v2723, 4294967295
        %v2843 = vsel %vm792, %v2725, 4294967295
        %v2844 = vsel %vm793, %v2727, 4294967295
        %v2845 = vsel %vm794, %v2729, 4294967295
        %v2846 = vsel %vm795, %v2731, 4294967295
        %v2847 = vsel %vm796, %v2733, 4294967295
        %v2848 = vsel %vm797, %v2735, 4294967295
        %v2849 = vsel %vm798, %v2737, 4294967295
        %v2850 = vsel %vm799, %v2739, 4294967295
        %v2851 = vsel %vm800, %v2741, 4294967295
        %v2852 = vsel %vm801, %v2743, 4294967295
        %v2853 = vsel %vm802, %v2745, 4294967295
        %v2854 = vsel %vm803, %v2747, 4294967295
        %v2855 = vsel %vm804, %v2749, 4294967295
        %v2856 = vsel %vm805, %v2751, 4294967295
        %v2857 = vsel %vm806, %v2753, 4294967295
        %v2858 = vsel %vm807, %v2755, 4294967295
        %v2859 = vsel %vm808, %v2757, 4294967295
        %v2860 = vsel %vm809, %v2759, 4294967295
        %v2861 = vsel %vm810, %v2761, 4294967295
        %v2862 = vsel %vm811, %v2763, 4294967295
        %v2863 = vsel %vm812, %v2765, 4294967295
        %v2864 = vsel %vm813, %v2767, 4294967295
        %v2865 = vsel %vm814, %v2769, 4294967295
        %v2866 = vsel %vm815, %v2771, 4294967295
        %v2867 = vsel %vm816, %v2773, 4294967295
        %v2868 = vsel %vm817, %v2775, 4294967295
        %v2869 = vsel %vm818, %v2777, 4294967295
        %v2870 = vsel %vm819, %v2779, 4294967295
        %v2871 = vsel %vm820, %v2781, 4294967295
        %v2872 = vsel %vm821, %v2783, 4294967295
        %v2873 = vsel %vm822, %v2785, 4294967295
        %v2874 = vsel %vm823, %v2787, 4294967295
        %v2875 = vsel %vm824, %v2789, 4294967295
        %v2876 = vsel %vm825, %v2791, 4294967295
        %v2877 = vsel %vm826, %v2793, 4294967295
        %v2878 = vsel %vm827, %v2795, 4294967295
        %v2879 = vsel %vm828, %v2797, 4294967295
        %v2880 = vsel %vm829, %v2799, 4294967295
        %v2881 = vsel %vm830, %v2801, 4294967295
        %v2882 = vsel %vm831, %v2803, 4294967295
        %v2883 = vsel %vm832, %v2805, 4294967295
        %v2884 = vsel %vm833, %v2807, 4294967295
        %v2885 = vsel %vm834, %v2809, 4294967295
        %v2886 = vsel %vm835, %v2811, 4294967295
        %v2887 = vsel %vm836, %v2813, 4294967295
        %v2888 = vsel %vm837, %v2815, 4294967295
        %v2889 = vsel %vm838, %v2817, 4294967295
        %v2890 = vsel %vm839, %v2819, 4294967295
        %v2891 = vsel %vm840, %v2821, 4294967295
        %v2892 = vsel %vm841, %v2823, 4294967295
        %v2893 = vsel %vm842, %v2825, 4294967295
        %v2894 = vsel %vm843, %v2827, 4294967295
        %v2895 = vsel %vm844, %v2829, 4294967295
        %v2896 = vsel %vm845, %v2831, 4294967295
        %v2897 = vsel %vm846, %v2833, 4294967295
        %2898 = vset.pattern.permute.xlu0 0
        %2899 = vperm.xlu0 %2898, %v2834
        %v2900 = vpop.permute.xlu0 %2899
        %2901 = vset.pattern.permute.xlu0 0
        %2902 = vperm.xlu0 %2901, %v2835
        %v2903 = vpop.permute.xlu0 %2902
        %2904 = vset.pattern.permute.xlu0 0
        %2905 = vperm.xlu0 %2904, %v2836
        %v2906 = vpop.permute.xlu0 %2905
        %2907 = vset.pattern.permute.xlu0 0
        %2908 = vperm.xlu0 %2907, %v2837
        %v2909 = vpop.permute.xlu0 %2908
        %2910 = vset.pattern.permute.xlu0 0
        %2911 = vperm.xlu0 %2910, %v2838
        %v2912 = vpop.permute.xlu0 %2911
        %2913 = vset.pattern.permute.xlu0 0
        %2914 = vperm.xlu0 %2913, %v2839
        %v2915 = vpop.permute.xlu0 %2914
        %2916 = vset.pattern.permute.xlu0 0
        %2917 = vperm.xlu0 %2916, %v2840
        %v2918 = vpop.permute.xlu0 %2917
        %2919 = vset.pattern.permute.xlu0 0
        %2920 = vperm.xlu0 %2919, %v2841
        %v2921 = vpop.permute.xlu0 %2920
        %2922 = vset.pattern.permute.xlu0 0
        %2923 = vperm.xlu0 %2922, %v2842
        %v2924 = vpop.permute.xlu0 %2923
        %2925 = vset.pattern.permute.xlu0 0
        %2926 = vperm.xlu0 %2925, %v2843
        %v2927 = vpop.permute.xlu0 %2926
        %2928 = vset.pattern.permute.xlu0 0
        %2929 = vperm.xlu0 %2928, %v2844
        %v2930 = vpop.permute.xlu0 %2929
        %2931 = vset.pattern.permute.xlu0 0
        %2932 = vperm.xlu0 %2931, %v2845
        %v2933 = vpop.permute.xlu0 %2932
        %2934 = vset.pattern.permute.xlu0 0
        %2935 = vperm.xlu0 %2934, %v2846
        %v2936 = vpop.permute.xlu0 %2935
        %2937 = vset.pattern.permute.xlu0 0
        %2938 = vperm.xlu0 %2937, %v2847
        %v2939 = vpop.permute.xlu0 %2938
        %2940 = vset.pattern.permute.xlu0 0
        %2941 = vperm.xlu0 %2940, %v2848
        %v2942 = vpop.permute.xlu0 %2941
        %2943 = vset.pattern.permute.xlu0 0
        %2944 = vperm.xlu0 %2943, %v2849
        %v2945 = vpop.permute.xlu0 %2944
        %2946 = vset.pattern.permute.xlu0 0
        %2947 = vperm.xlu0 %2946, %v2850
        %v2948 = vpop.permute.xlu0 %2947
        %2949 = vset.pattern.permute.xlu0 0
        %2950 = vperm.xlu0 %2949, %v2851
        %v2951 = vpop.permute.xlu0 %2950
        %2952 = vset.pattern.permute.xlu0 0
        %2953 = vperm.xlu0 %2952, %v2852
        %v2954 = vpop.permute.xlu0 %2953
        %2955 = vset.pattern.permute.xlu0 0
        %2956 = vperm.xlu0 %2955, %v2853
        %v2957 = vpop.permute.xlu0 %2956
        %2958 = vset.pattern.permute.xlu0 0
        %2959 = vperm.xlu0 %2958, %v2854
        %v2960 = vpop.permute.xlu0 %2959
        %2961 = vset.pattern.permute.xlu0 0
        %2962 = vperm.xlu0 %2961, %v2855
        %v2963 = vpop.permute.xlu0 %2962
        %2964 = vset.pattern.permute.xlu0 0
        %2965 = vperm.xlu0 %2964, %v2856
        %v2966 = vpop.permute.xlu0 %2965
        %2967 = vset.pattern.permute.xlu0 0
        %2968 = vperm.xlu0 %2967, %v2857
        %v2969 = vpop.permute.xlu0 %2968
        %2970 = vset.pattern.permute.xlu0 0
        %2971 = vperm.xlu0 %2970, %v2858
        %v2972 = vpop.permute.xlu0 %2971
        %2973 = vset.pattern.permute.xlu0 0
        %2974 = vperm.xlu0 %2973, %v2859
        %v2975 = vpop.permute.xlu0 %2974
        %2976 = vset.pattern.permute.xlu0 0
        %2977 = vperm.xlu0 %2976, %v2860
        %v2978 = vpop.permute.xlu0 %2977
        %2979 = vset.pattern.permute.xlu0 0
        %2980 = vperm.xlu0 %2979, %v2861
        %v2981 = vpop.permute.xlu0 %2980
        %2982 = vset.pattern.permute.xlu0 0
        %2983 = vperm.xlu0 %2982, %v2862
        %v2984 = vpop.permute.xlu0 %2983
        %2985 = vset.pattern.permute.xlu0 0
        %2986 = vperm.xlu0 %2985, %v2863
        %v2987 = vpop.permute.xlu0 %2986
        %2988 = vset.pattern.permute.xlu0 0
        %2989 = vperm.xlu0 %2988, %v2864
        %v2990 = vpop.permute.xlu0 %2989
        %2991 = vset.pattern.permute.xlu0 0
        %2992 = vperm.xlu0 %2991, %v2865
        %v2993 = vpop.permute.xlu0 %2992
        %2994 = vset.pattern.permute.xlu0 0
        %2995 = vperm.xlu0 %2994, %v2866
        %v2996 = vpop.permute.xlu0 %2995
        %2997 = vset.pattern.permute.xlu0 0
        %2998 = vperm.xlu0 %2997, %v2867
        %v2999 = vpop.permute.xlu0 %2998
        %3000 = vset.pattern.permute.xlu0 0
        %3001 = vperm.xlu0 %3000, %v2868
        %v3002 = vpop.permute.xlu0 %3001
        %3003 = vset.pattern.permute.xlu0 0
        %3004 = vperm.xlu0 %3003, %v2869
        %v3005 = vpop.permute.xlu0 %3004
        %3006 = vset.pattern.permute.xlu0 0
        %3007 = vperm.xlu0 %3006, %v2870
        %v3008 = vpop.permute.xlu0 %3007
        %3009 = vset.pattern.permute.xlu0 0
        %3010 = vperm.xlu0 %3009, %v2871
        %v3011 = vpop.permute.xlu0 %3010
        %3012 = vset.pattern.permute.xlu0 0
        %3013 = vperm.xlu0 %3012, %v2872
        %v3014 = vpop.permute.xlu0 %3013
        %3015 = vset.pattern.permute.xlu0 0
        %3016 = vperm.xlu0 %3015, %v2873
        %v3017 = vpop.permute.xlu0 %3016
        %3018 = vset.pattern.permute.xlu0 0
        %3019 = vperm.xlu0 %3018, %v2874
        %v3020 = vpop.permute.xlu0 %3019
        %3021 = vset.pattern.permute.xlu0 0
        %3022 = vperm.xlu0 %3021, %v2875
        %v3023 = vpop.permute.xlu0 %3022
        %3024 = vset.pattern.permute.xlu0 0
        %3025 = vperm.xlu0 %3024, %v2876
        %v3026 = vpop.permute.xlu0 %3025
        %3027 = vset.pattern.permute.xlu0 0
        %3028 = vperm.xlu0 %3027, %v2877
        %v3029 = vpop.permute.xlu0 %3028
        %3030 = vset.pattern.permute.xlu0 0
        %3031 = vperm.xlu0 %3030, %v2878
        %v3032 = vpop.permute.xlu0 %3031
        %3033 = vset.pattern.permute.xlu0 0
        %3034 = vperm.xlu0 %3033, %v2879
        %v3035 = vpop.permute.xlu0 %3034
        %3036 = vset.pattern.permute.xlu0 0
        %3037 = vperm.xlu0 %3036, %v2880
        %v3038 = vpop.permute.xlu0 %3037
        %3039 = vset.pattern.permute.xlu0 0
        %3040 = vperm.xlu0 %3039, %v2881
        %v3041 = vpop.permute.xlu0 %3040
        %3042 = vset.pattern.permute.xlu0 0
        %3043 = vperm.xlu0 %3042, %v2882
        %v3044 = vpop.permute.xlu0 %3043
        %3045 = vset.pattern.permute.xlu0 0
        %3046 = vperm.xlu0 %3045, %v2883
        %v3047 = vpop.permute.xlu0 %3046
        %3048 = vset.pattern.permute.xlu0 0
        %3049 = vperm.xlu0 %3048, %v2884
        %v3050 = vpop.permute.xlu0 %3049
        %3051 = vset.pattern.permute.xlu0 0
        %3052 = vperm.xlu0 %3051, %v2885
        %v3053 = vpop.permute.xlu0 %3052
        %3054 = vset.pattern.permute.xlu0 0
        %3055 = vperm.xlu0 %3054, %v2886
        %v3056 = vpop.permute.xlu0 %3055
        %3057 = vset.pattern.permute.xlu0 0
        %3058 = vperm.xlu0 %3057, %v2887
        %v3059 = vpop.permute.xlu0 %3058
        %3060 = vset.pattern.permute.xlu0 0
        %3061 = vperm.xlu0 %3060, %v2888
        %v3062 = vpop.permute.xlu0 %3061
        %3063 = vset.pattern.permute.xlu0 0
        %3064 = vperm.xlu0 %3063, %v2889
        %v3065 = vpop.permute.xlu0 %3064
        %3066 = vset.pattern.permute.xlu0 0
        %3067 = vperm.xlu0 %3066, %v2890
        %v3068 = vpop.permute.xlu0 %3067
        %3069 = vset.pattern.permute.xlu0 0
        %3070 = vperm.xlu0 %3069, %v2891
        %v3071 = vpop.permute.xlu0 %3070
        %3072 = vset.pattern.permute.xlu0 0
        %3073 = vperm.xlu0 %3072, %v2892
        %v3074 = vpop.permute.xlu0 %3073
        %3075 = vset.pattern.permute.xlu0 0
        %3076 = vperm.xlu0 %3075, %v2893
        %v3077 = vpop.permute.xlu0 %3076
        %3078 = vset.pattern.permute.xlu0 0
        %3079 = vperm.xlu0 %3078, %v2894
        %v3080 = vpop.permute.xlu0 %3079
        %3081 = vset.pattern.permute.xlu0 0
        %3082 = vperm.xlu0 %3081, %v2895
        %v3083 = vpop.permute.xlu0 %3082
        %3084 = vset.pattern.permute.xlu0 0
        %3085 = vperm.xlu0 %3084, %v2896
        %v3086 = vpop.permute.xlu0 %3085
        %3087 = vset.pattern.permute.xlu0 0
        %3088 = vperm.xlu0 %3087, %v2897
        %v3089 = vpop.permute.xlu0 %3088
        %vm3090 = vcmp.eq.s32.totalorder %v848, %v2900
        %vm3091 = vcmp.eq.s32.totalorder %v848, %v2903
        %vm3092 = vcmp.eq.s32.totalorder %v848, %v2906
        %vm3093 = vcmp.eq.s32.totalorder %v848, %v2909
        %vm3094 = vcmp.eq.s32.totalorder %v848, %v2912
        %vm3095 = vcmp.eq.s32.totalorder %v848, %v2915
        %vm3096 = vcmp.eq.s32.totalorder %v848, %v2918
        %vm3097 = vcmp.eq.s32.totalorder %v848, %v2921
        %vm3098 = vcmp.eq.s32.totalorder %v848, %v2924
        %vm3099 = vcmp.eq.s32.totalorder %v848, %v2927
        %vm3100 = vcmp.eq.s32.totalorder %v848, %v2930
        %vm3101 = vcmp.eq.s32.totalorder %v848, %v2933
        %vm3102 = vcmp.eq.s32.totalorder %v848, %v2936
        %vm3103 = vcmp.eq.s32.totalorder %v848, %v2939
        %vm3104 = vcmp.eq.s32.totalorder %v848, %v2942
        %vm3105 = vcmp.eq.s32.totalorder %v848, %v2945
        %vm3106 = vcmp.eq.s32.totalorder %v848, %v2948
        %vm3107 = vcmp.eq.s32.totalorder %v848, %v2951
        %vm3108 = vcmp.eq.s32.totalorder %v848, %v2954
        %vm3109 = vcmp.eq.s32.totalorder %v848, %v2957
        %vm3110 = vcmp.eq.s32.totalorder %v848, %v2960
        %vm3111 = vcmp.eq.s32.totalorder %v848, %v2963
        %vm3112 = vcmp.eq.s32.totalorder %v848, %v2966
        %vm3113 = vcmp.eq.s32.totalorder %v848, %v2969
        %vm3114 = vcmp.eq.s32.totalorder %v848, %v2972
        %vm3115 = vcmp.eq.s32.totalorder %v848, %v2975
        %vm3116 = vcmp.eq.s32.totalorder %v848, %v2978
        %vm3117 = vcmp.eq.s32.totalorder %v848, %v2981
        %vm3118 = vcmp.eq.s32.totalorder %v848, %v2984
        %vm3119 = vcmp.eq.s32.totalorder %v848, %v2987
        %vm3120 = vcmp.eq.s32.totalorder %v848, %v2990
        %vm3121 = vcmp.eq.s32.totalorder %v848, %v2993
        %vm3122 = vcmp.eq.s32.totalorder %v848, %v2996
        %vm3123 = vcmp.eq.s32.totalorder %v848, %v2999
        %vm3124 = vcmp.eq.s32.totalorder %v848, %v3002
        %vm3125 = vcmp.eq.s32.totalorder %v848, %v3005
        %vm3126 = vcmp.eq.s32.totalorder %v848, %v3008
        %vm3127 = vcmp.eq.s32.totalorder %v848, %v3011
        %vm3128 = vcmp.eq.s32.totalorder %v848, %v3014
        %vm3129 = vcmp.eq.s32.totalorder %v848, %v3017
        %vm3130 = vcmp.eq.s32.totalorder %v848, %v3020
        %vm3131 = vcmp.eq.s32.totalorder %v848, %v3023
        %vm3132 = vcmp.eq.s32.totalorder %v848, %v3026
        %vm3133 = vcmp.eq.s32.totalorder %v848, %v3029
        %vm3134 = vcmp.eq.s32.totalorder %v848, %v3032
        %vm3135 = vcmp.eq.s32.totalorder %v848, %v3035
        %vm3136 = vcmp.eq.s32.totalorder %v848, %v3038
        %vm3137 = vcmp.eq.s32.totalorder %v848, %v3041
        %vm3138 = vcmp.eq.s32.totalorder %v848, %v3044
        %vm3139 = vcmp.eq.s32.totalorder %v848, %v3047
        %vm3140 = vcmp.eq.s32.totalorder %v848, %v3050
        %vm3141 = vcmp.eq.s32.totalorder %v848, %v3053
        %vm3142 = vcmp.eq.s32.totalorder %v848, %v3056
        %vm3143 = vcmp.eq.s32.totalorder %v848, %v3059
        %vm3144 = vcmp.eq.s32.totalorder %v848, %v3062
        %vm3145 = vcmp.eq.s32.totalorder %v848, %v3065
        %vm3146 = vcmp.eq.s32.totalorder %v848, %v3068
        %vm3147 = vcmp.eq.s32.totalorder %v848, %v3071
        %vm3148 = vcmp.eq.s32.totalorder %v848, %v3074
        %vm3149 = vcmp.eq.s32.totalorder %v848, %v3077
        %vm3150 = vcmp.eq.s32.totalorder %v848, %v3080
        %vm3151 = vcmp.eq.s32.totalorder %v848, %v3083
        %vm3152 = vcmp.eq.s32.totalorder %v848, %v3086
        %vm3153 = vcmp.eq.s32.totalorder %v848, %v3089
        %v3154 = vsel %vm3090, 1, 0
        %v3155 = vsel %vm3091, 1, 0
        %v3156 = vsel %vm3092, 1, 0
        %v3157 = vsel %vm3093, 1, 0
        %v3158 = vsel %vm3094, 1, 0
        %v3159 = vsel %vm3095, 1, 0
        %v3160 = vsel %vm3096, 1, 0
        %v3161 = vsel %vm3097, 1, 0
        %v3162 = vsel %vm3098, 1, 0
        %v3163 = vsel %vm3099, 1, 0
        %v3164 = vsel %vm3100, 1, 0
        %v3165 = vsel %vm3101, 1, 0
        %v3166 = vsel %vm3102, 1, 0
        %v3167 = vsel %vm3103, 1, 0
        %v3168 = vsel %vm3104, 1, 0
        %v3169 = vsel %vm3105, 1, 0
        %v3170 = vsel %vm3106, 1, 0
        %v3171 = vsel %vm3107, 1, 0
        %v3172 = vsel %vm3108, 1, 0
        %v3173 = vsel %vm3109, 1, 0
        %v3174 = vsel %vm3110, 1, 0
        %v3175 = vsel %vm3111, 1, 0
        %v3176 = vsel %vm3112, 1, 0
        %v3177 = vsel %vm3113, 1, 0
        %v3178 = vsel %vm3114, 1, 0
        %v3179 = vsel %vm3115, 1, 0
        %v3180 = vsel %vm3116, 1, 0
        %v3181 = vsel %vm3117, 1, 0
        %v3182 = vsel %vm3118, 1, 0
        %v3183 = vsel %vm3119, 1, 0
        %v3184 = vsel %vm3120, 1, 0
        %v3185 = vsel %vm3121, 1, 0
        %v3186 = vsel %vm3122, 1, 0
        %v3187 = vsel %vm3123, 1, 0
        %v3188 = vsel %vm3124, 1, 0
        %v3189 = vsel %vm3125, 1, 0
        %v3190 = vsel %vm3126, 1, 0
        %v3191 = vsel %vm3127, 1, 0
        %v3192 = vsel %vm3128, 1, 0
        %v3193 = vsel %vm3129, 1, 0
        %v3194 = vsel %vm3130, 1, 0
        %v3195 = vsel %vm3131, 1, 0
        %v3196 = vsel %vm3132, 1, 0
        %v3197 = vsel %vm3133, 1, 0
        %v3198 = vsel %vm3134, 1, 0
        %v3199 = vsel %vm3135, 1, 0
        %v3200 = vsel %vm3136, 1, 0
        %v3201 = vsel %vm3137, 1, 0
        %v3202 = vsel %vm3138, 1, 0
        %v3203 = vsel %vm3139, 1, 0
        %v3204 = vsel %vm3140, 1, 0
        %v3205 = vsel %vm3141, 1, 0
        %v3206 = vsel %vm3142, 1, 0
        %v3207 = vsel %vm3143, 1, 0
        %v3208 = vsel %vm3144, 1, 0
        %v3209 = vsel %vm3145, 1, 0
        %v3210 = vsel %vm3146, 1, 0
        %v3211 = vsel %vm3147, 1, 0
        %v3212 = vsel %vm3148, 1, 0
        %v3213 = vsel %vm3149, 1, 0
        %v3214 = vsel %vm3150, 1, 0
        %v3215 = vsel %vm3151, 1, 0
        %v3216 = vsel %vm3152, 1, 0
        %v3217 = vsel %vm3153, 1, 0
        %v3218 = vcvt.s32.f32 %v3154
        %v3219 = vcvt.s32.f32 %v3155
        %v3220 = vcvt.s32.f32 %v3156
        %v3221 = vcvt.s32.f32 %v3157
        %v3222 = vcvt.s32.f32 %v3158
        %v3223 = vcvt.s32.f32 %v3159
        %v3224 = vcvt.s32.f32 %v3160
        %v3225 = vcvt.s32.f32 %v3161
        %v3226 = vcvt.s32.f32 %v3162
        %v3227 = vcvt.s32.f32 %v3163
        %v3228 = vcvt.s32.f32 %v3164
        %v3229 = vcvt.s32.f32 %v3165
        %v3230 = vcvt.s32.f32 %v3166
        %v3231 = vcvt.s32.f32 %v3167
        %v3232 = vcvt.s32.f32 %v3168
        %v3233 = vcvt.s32.f32 %v3169
        %v3234 = vcvt.s32.f32 %v3170
        %v3235 = vcvt.s32.f32 %v3171
        %v3236 = vcvt.s32.f32 %v3172
        %v3237 = vcvt.s32.f32 %v3173
        %v3238 = vcvt.s32.f32 %v3174
        %v3239 = vcvt.s32.f32 %v3175
        %v3240 = vcvt.s32.f32 %v3176
        %v3241 = vcvt.s32.f32 %v3177
        %v3242 = vcvt.s32.f32 %v3178
        %v3243 = vcvt.s32.f32 %v3179
        %v3244 = vcvt.s32.f32 %v3180
        %v3245 = vcvt.s32.f32 %v3181
        %v3246 = vcvt.s32.f32 %v3182
        %v3247 = vcvt.s32.f32 %v3183
        %v3248 = vcvt.s32.f32 %v3184
        %v3249 = vcvt.s32.f32 %v3185
        %v3250 = vcvt.s32.f32 %v3186
        %v3251 = vcvt.s32.f32 %v3187
        %v3252 = vcvt.s32.f32 %v3188
        %v3253 = vcvt.s32.f32 %v3189
        %v3254 = vcvt.s32.f32 %v3190
        %v3255 = vcvt.s32.f32 %v3191
        %v3256 = vcvt.s32.f32 %v3192
        %v3257 = vcvt.s32.f32 %v3193
        %v3258 = vcvt.s32.f32 %v3194
        %v3259 = vcvt.s32.f32 %v3195
        %v3260 = vcvt.s32.f32 %v3196
        %v3261 = vcvt.s32.f32 %v3197
        %v3262 = vcvt.s32.f32 %v3198
        %v3263 = vcvt.s32.f32 %v3199
        %v3264 = vcvt.s32.f32 %v3200
        %v3265 = vcvt.s32.f32 %v3201
        %v3266 = vcvt.s32.f32 %v3202
        %v3267 = vcvt.s32.f32 %v3203
        %v3268 = vcvt.s32.f32 %v3204
        %v3269 = vcvt.s32.f32 %v3205
        %v3270 = vcvt.s32.f32 %v3206
        %v3271 = vcvt.s32.f32 %v3207
        %v3272 = vcvt.s32.f32 %v3208
        %v3273 = vcvt.s32.f32 %v3209
        %v3274 = vcvt.s32.f32 %v3210
        %v3275 = vcvt.s32.f32 %v3211
        %v3276 = vcvt.s32.f32 %v3212
        %v3277 = vcvt.s32.f32 %v3213
        %v3278 = vcvt.s32.f32 %v3214
        %v3279 = vcvt.s32.f32 %v3215
        %v3280 = vcvt.s32.f32 %v3216
        %v3281 = vcvt.s32.f32 %v3217
        %v3282 = vadd.f32 %v2642, %v3218
        %v3283 = vadd.f32 %v2643, %v3219
        %v3284 = vadd.f32 %v2644, %v3220
        %v3285 = vadd.f32 %v2645, %v3221
        %v3286 = vadd.f32 %v2646, %v3222
        %v3287 = vadd.f32 %v2647, %v3223
        %v3288 = vadd.f32 %v2648, %v3224
        %v3289 = vadd.f32 %v2649, %v3225
        %v3290 = vadd.f32 %v2650, %v3226
        %v3291 = vadd.f32 %v2651, %v3227
        %v3292 = vadd.f32 %v2652, %v3228
        %v3293 = vadd.f32 %v2653, %v3229
        %v3294 = vadd.f32 %v2654, %v3230
        %v3295 = vadd.f32 %v2655, %v3231
        %v3296 = vadd.f32 %v2656, %v3232
        %v3297 = vadd.f32 %v2657, %v3233
        %v3298 = vadd.f32 %v2658, %v3234
        %v3299 = vadd.f32 %v2659, %v3235
        %v3300 = vadd.f32 %v2660, %v3236
        %v3301 = vadd.f32 %v2661, %v3237
        %v3302 = vadd.f32 %v2662, %v3238
        %v3303 = vadd.f32 %v2663, %v3239
        %v3304 = vadd.f32 %v2664, %v3240
        %v3305 = vadd.f32 %v2665, %v3241
        %v3306 = vadd.f32 %v2666, %v3242
        %v3307 = vadd.f32 %v2667, %v3243
        %v3308 = vadd.f32 %v2668, %v3244
        %v3309 = vadd.f32 %v2669, %v3245
        %v3310 = vadd.f32 %v2670, %v3246
        %v3311 = vadd.f32 %v2671, %v3247
        %v3312 = vadd.f32 %v2672, %v3248
        %v3313 = vadd.f32 %v2673, %v3249
        %v3314 = vadd.f32 %v2674, %v3250
        %v3315 = vadd.f32 %v2675, %v3251
        %v3316 = vadd.f32 %v2676, %v3252
        %v3317 = vadd.f32 %v2677, %v3253
        %v3318 = vadd.f32 %v2678, %v3254
        %v3319 = vadd.f32 %v2679, %v3255
        %v3320 = vadd.f32 %v2680, %v3256
        %v3321 = vadd.f32 %v2681, %v3257
        %v3322 = vadd.f32 %v2682, %v3258
        %v3323 = vadd.f32 %v2683, %v3259
        %v3324 = vadd.f32 %v2684, %v3260
        %v3325 = vadd.f32 %v2685, %v3261
        %v3326 = vadd.f32 %v2686, %v3262
        %v3327 = vadd.f32 %v2687, %v3263
        %v3328 = vadd.f32 %v2688, %v3264
        %v3329 = vadd.f32 %v2689, %v3265
        %v3330 = vadd.f32 %v2690, %v3266
        %v3331 = vadd.f32 %v2691, %v3267
        %v3332 = vadd.f32 %v2692, %v3268
        %v3333 = vadd.f32 %v2693, %v3269
        %v3334 = vadd.f32 %v2694, %v3270
        %v3335 = vadd.f32 %v2695, %v3271
        %v3336 = vadd.f32 %v2696, %v3272
        %v3337 = vadd.f32 %v2697, %v3273
        %v3338 = vadd.f32 %v2698, %v3274
        %v3339 = vadd.f32 %v2699, %v3275
        %v3340 = vadd.f32 %v2700, %v3276
        %v3341 = vadd.f32 %v2701, %v3277
        %v3342 = vadd.f32 %v2702, %v3278
        %v3343 = vadd.f32 %v2703, %v3279
        %v3344 = vadd.f32 %v2704, %v3280
        %v3345 = vadd.f32 %v2705, %v3281
        %v3346 = vpack.c.bf16 %v3283, %v3282
        %v3347 = vpack.c.bf16 %v3285, %v3284
        %v3348 = vpack.c.bf16 %v3287, %v3286
        %v3349 = vpack.c.bf16 %v3289, %v3288
        %v3350 = vpack.c.bf16 %v3291, %v3290
        %v3351 = vpack.c.bf16 %v3293, %v3292
        %v3352 = vpack.c.bf16 %v3295, %v3294
        %v3353 = vpack.c.bf16 %v3297, %v3296
        %v3354 = vpack.c.bf16 %v3299, %v3298
        %v3355 = vpack.c.bf16 %v3301, %v3300
        %v3356 = vpack.c.bf16 %v3303, %v3302
        %v3357 = vpack.c.bf16 %v3305, %v3304
        %v3358 = vpack.c.bf16 %v3307, %v3306
        %v3359 = vpack.c.bf16 %v3309, %v3308
        %v3360 = vpack.c.bf16 %v3311, %v3310
        %v3361 = vpack.c.bf16 %v3313, %v3312
        %v3362 = vpack.c.bf16 %v3315, %v3314
        %v3363 = vpack.c.bf16 %v3317, %v3316
        %v3364 = vpack.c.bf16 %v3319, %v3318
        %v3365 = vpack.c.bf16 %v3321, %v3320
        %v3366 = vpack.c.bf16 %v3323, %v3322
        %v3367 = vpack.c.bf16 %v3325, %v3324
        %v3368 = vpack.c.bf16 %v3327, %v3326
        %v3369 = vpack.c.bf16 %v3329, %v3328
        %v3370 = vpack.c.bf16 %v3331, %v3330
        %v3371 = vpack.c.bf16 %v3333, %v3332
        %v3372 = vpack.c.bf16 %v3335, %v3334
        %v3373 = vpack.c.bf16 %v3337, %v3336
        %v3374 = vpack.c.bf16 %v3339, %v3338
        %v3375 = vpack.c.bf16 %v3341, %v3340
        %v3376 = vpack.c.bf16 %v3343, %v3342
        %v3377 = vpack.c.bf16 %v3345, %v3344
        %v3378 = vadd.s32 %v848, 256
        %3379 = vset.pattern.permute.xlu0 2
        %3380 = vperm.xlu0 %3379, %v266
        %v3381 = vpop.permute.xlu0 %3380
        %3382 = vset.pattern.permute.xlu0 2
        %3383 = vperm.xlu0 %3382, %v267
        %v3384 = vpop.permute.xlu0 %3383
        %3385 = vset.pattern.permute.xlu0 2
        %3386 = vperm.xlu0 %3385, %v268
        %v3387 = vpop.permute.xlu0 %3386
        %3388 = vset.pattern.permute.xlu0 2
        %3389 = vperm.xlu0 %3388, %v269
        %v3390 = vpop.permute.xlu0 %3389
        %3391 = vset.pattern.permute.xlu0 2
        %3392 = vperm.xlu0 %3391, %v270
        %v3393 = vpop.permute.xlu0 %3392
        %3394 = vset.pattern.permute.xlu0 2
        %3395 = vperm.xlu0 %3394, %v271
        %v3396 = vpop.permute.xlu0 %3395
        %3397 = vset.pattern.permute.xlu0 2
        %3398 = vperm.xlu0 %3397, %v272
        %v3399 = vpop.permute.xlu0 %3398
        %3400 = vset.pattern.permute.xlu0 2
        %3401 = vperm.xlu0 %3400, %v273
        %v3402 = vpop.permute.xlu0 %3401
        %3403 = vset.pattern.permute.xlu0 2
        %3404 = vperm.xlu0 %3403, %v274
        %v3405 = vpop.permute.xlu0 %3404
        %3406 = vset.pattern.permute.xlu0 2
        %3407 = vperm.xlu0 %3406, %v275
        %v3408 = vpop.permute.xlu0 %3407
        %3409 = vset.pattern.permute.xlu0 2
        %3410 = vperm.xlu0 %3409, %v276
        %v3411 = vpop.permute.xlu0 %3410
        %3412 = vset.pattern.permute.xlu0 2
        %3413 = vperm.xlu0 %3412, %v277
        %v3414 = vpop.permute.xlu0 %3413
        %3415 = vset.pattern.permute.xlu0 2
        %3416 = vperm.xlu0 %3415, %v278
        %v3417 = vpop.permute.xlu0 %3416
        %3418 = vset.pattern.permute.xlu0 2
        %3419 = vperm.xlu0 %3418, %v279
        %v3420 = vpop.permute.xlu0 %3419
        %3421 = vset.pattern.permute.xlu0 2
        %3422 = vperm.xlu0 %3421, %v280
        %v3423 = vpop.permute.xlu0 %3422
        %3424 = vset.pattern.permute.xlu0 2
        %3425 = vperm.xlu0 %3424, %v281
        %v3426 = vpop.permute.xlu0 %3425
        %3427 = vset.pattern.permute.xlu0 2
        %3428 = vperm.xlu0 %3427, %v282
        %v3429 = vpop.permute.xlu0 %3428
        %3430 = vset.pattern.permute.xlu0 2
        %3431 = vperm.xlu0 %3430, %v283
        %v3432 = vpop.permute.xlu0 %3431
        %3433 = vset.pattern.permute.xlu0 2
        %3434 = vperm.xlu0 %3433, %v284
        %v3435 = vpop.permute.xlu0 %3434
        %3436 = vset.pattern.permute.xlu0 2
        %3437 = vperm.xlu0 %3436, %v285
        %v3438 = vpop.permute.xlu0 %3437
        %3439 = vset.pattern.permute.xlu0 2
        %3440 = vperm.xlu0 %3439, %v286
        %v3441 = vpop.permute.xlu0 %3440
        %3442 = vset.pattern.permute.xlu0 2
        %3443 = vperm.xlu0 %3442, %v287
        %v3444 = vpop.permute.xlu0 %3443
        %3445 = vset.pattern.permute.xlu0 2
        %3446 = vperm.xlu0 %3445, %v288
        %v3447 = vpop.permute.xlu0 %3446
        %3448 = vset.pattern.permute.xlu0 2
        %3449 = vperm.xlu0 %3448, %v289
        %v3450 = vpop.permute.xlu0 %3449
        %3451 = vset.pattern.permute.xlu0 2
        %3452 = vperm.xlu0 %3451, %v290
        %v3453 = vpop.permute.xlu0 %3452
        %3454 = vset.pattern.permute.xlu0 2
        %3455 = vperm.xlu0 %3454, %v291
        %v3456 = vpop.permute.xlu0 %3455
        %3457 = vset.pattern.permute.xlu0 2
        %3458 = vperm.xlu0 %3457, %v292
        %v3459 = vpop.permute.xlu0 %3458
        %3460 = vset.pattern.permute.xlu0 2
        %3461 = vperm.xlu0 %3460, %v293
        %v3462 = vpop.permute.xlu0 %3461
        %3463 = vset.pattern.permute.xlu0 2
        %3464 = vperm.xlu0 %3463, %v294
        %v3465 = vpop.permute.xlu0 %3464
        %3466 = vset.pattern.permute.xlu0 2
        %3467 = vperm.xlu0 %3466, %v295
        %v3468 = vpop.permute.xlu0 %3467
        %3469 = vset.pattern.permute.xlu0 2
        %3470 = vperm.xlu0 %3469, %v296
        %v3471 = vpop.permute.xlu0 %3470
        %3472 = vset.pattern.permute.xlu0 2
        %3473 = vperm.xlu0 %3472, %v297
        %v3474 = vpop.permute.xlu0 %3473
        %3475 = vset.pattern.permute.xlu0 2
        %3476 = vperm.xlu0 %3475, %v298
        %v3477 = vpop.permute.xlu0 %3476
        %3478 = vset.pattern.permute.xlu0 2
        %3479 = vperm.xlu0 %3478, %v299
        %v3480 = vpop.permute.xlu0 %3479
        %3481 = vset.pattern.permute.xlu0 2
        %3482 = vperm.xlu0 %3481, %v300
        %v3483 = vpop.permute.xlu0 %3482
        %3484 = vset.pattern.permute.xlu0 2
        %3485 = vperm.xlu0 %3484, %v301
        %v3486 = vpop.permute.xlu0 %3485
        %3487 = vset.pattern.permute.xlu0 2
        %3488 = vperm.xlu0 %3487, %v302
        %v3489 = vpop.permute.xlu0 %3488
        %3490 = vset.pattern.permute.xlu0 2
        %3491 = vperm.xlu0 %3490, %v303
        %v3492 = vpop.permute.xlu0 %3491
        %3493 = vset.pattern.permute.xlu0 2
        %3494 = vperm.xlu0 %3493, %v304
        %v3495 = vpop.permute.xlu0 %3494
        %3496 = vset.pattern.permute.xlu0 2
        %3497 = vperm.xlu0 %3496, %v305
        %v3498 = vpop.permute.xlu0 %3497
        %3499 = vset.pattern.permute.xlu0 2
        %3500 = vperm.xlu0 %3499, %v306
        %v3501 = vpop.permute.xlu0 %3500
        %3502 = vset.pattern.permute.xlu0 2
        %3503 = vperm.xlu0 %3502, %v307
        %v3504 = vpop.permute.xlu0 %3503
        %3505 = vset.pattern.permute.xlu0 2
        %3506 = vperm.xlu0 %3505, %v308
        %v3507 = vpop.permute.xlu0 %3506
        %3508 = vset.pattern.permute.xlu0 2
        %3509 = vperm.xlu0 %3508, %v309
        %v3510 = vpop.permute.xlu0 %3509
        %3511 = vset.pattern.permute.xlu0 2
        %3512 = vperm.xlu0 %3511, %v310
        %v3513 = vpop.permute.xlu0 %3512
        %3514 = vset.pattern.permute.xlu0 2
        %3515 = vperm.xlu0 %3514, %v311
        %v3516 = vpop.permute.xlu0 %3515
        %3517 = vset.pattern.permute.xlu0 2
        %3518 = vperm.xlu0 %3517, %v312
        %v3519 = vpop.permute.xlu0 %3518
        %3520 = vset.pattern.permute.xlu0 2
        %3521 = vperm.xlu0 %3520, %v313
        %v3522 = vpop.permute.xlu0 %3521
        %3523 = vset.pattern.permute.xlu0 2
        %3524 = vperm.xlu0 %3523, %v314
        %v3525 = vpop.permute.xlu0 %3524
        %3526 = vset.pattern.permute.xlu0 2
        %3527 = vperm.xlu0 %3526, %v315
        %v3528 = vpop.permute.xlu0 %3527
        %3529 = vset.pattern.permute.xlu0 2
        %3530 = vperm.xlu0 %3529, %v316
        %v3531 = vpop.permute.xlu0 %3530
        %3532 = vset.pattern.permute.xlu0 2
        %3533 = vperm.xlu0 %3532, %v317
        %v3534 = vpop.permute.xlu0 %3533
        %3535 = vset.pattern.permute.xlu0 2
        %3536 = vperm.xlu0 %3535, %v318
        %v3537 = vpop.permute.xlu0 %3536
        %3538 = vset.pattern.permute.xlu0 2
        %3539 = vperm.xlu0 %3538, %v319
        %v3540 = vpop.permute.xlu0 %3539
        %3541 = vset.pattern.permute.xlu0 2
        %3542 = vperm.xlu0 %3541, %v320
        %v3543 = vpop.permute.xlu0 %3542
        %3544 = vset.pattern.permute.xlu0 2
        %3545 = vperm.xlu0 %3544, %v321
        %v3546 = vpop.permute.xlu0 %3545
        %3547 = vset.pattern.permute.xlu0 2
        %3548 = vperm.xlu0 %3547, %v322
        %v3549 = vpop.permute.xlu0 %3548
        %3550 = vset.pattern.permute.xlu0 2
        %3551 = vperm.xlu0 %3550, %v323
        %v3552 = vpop.permute.xlu0 %3551
        %3553 = vset.pattern.permute.xlu0 2
        %3554 = vperm.xlu0 %3553, %v324
        %v3555 = vpop.permute.xlu0 %3554
        %3556 = vset.pattern.permute.xlu0 2
        %3557 = vperm.xlu0 %3556, %v325
        %v3558 = vpop.permute.xlu0 %3557
        %3559 = vset.pattern.permute.xlu0 2
        %3560 = vperm.xlu0 %3559, %v326
        %v3561 = vpop.permute.xlu0 %3560
        %3562 = vset.pattern.permute.xlu0 2
        %3563 = vperm.xlu0 %3562, %v327
        %v3564 = vpop.permute.xlu0 %3563
        %3565 = vset.pattern.permute.xlu0 2
        %3566 = vperm.xlu0 %3565, %v328
        %v3567 = vpop.permute.xlu0 %3566
        %3568 = vset.pattern.permute.xlu0 2
        %3569 = vperm.xlu0 %3568, %v329
        %v3570 = vpop.permute.xlu0 %3569
        %vm3571 = vcmp.eq.s32.totalorder %v848, %v3381
        %vm3572 = vcmp.eq.s32.totalorder %v849, %v3381
        %vm3573 = vcmp.eq.s32.totalorder %v3378, %v3381
        %vm3574 = vcmp.eq.s32.totalorder %v848, %v3384
        %vm3575 = vcmp.eq.s32.totalorder %v849, %v3384
        %vm3576 = vcmp.eq.s32.totalorder %v3378, %v3384
        %vm3577 = vcmp.eq.s32.totalorder %v848, %v3387
        %vm3578 = vcmp.eq.s32.totalorder %v849, %v3387
        %vm3579 = vcmp.eq.s32.totalorder %v3378, %v3387
        %vm3580 = vcmp.eq.s32.totalorder %v848, %v3390
        %vm3581 = vcmp.eq.s32.totalorder %v849, %v3390
        %vm3582 = vcmp.eq.s32.totalorder %v3378, %v3390
        %vm3583 = vcmp.eq.s32.totalorder %v848, %v3393
        %vm3584 = vcmp.eq.s32.totalorder %v849, %v3393
        %vm3585 = vcmp.eq.s32.totalorder %v3378, %v3393
        %vm3586 = vcmp.eq.s32.totalorder %v848, %v3396
        %vm3587 = vcmp.eq.s32.totalorder %v849, %v3396
        %vm3588 = vcmp.eq.s32.totalorder %v3378, %v3396
        %vm3589 = vcmp.eq.s32.totalorder %v848, %v3399
        %vm3590 = vcmp.eq.s32.totalorder %v849, %v3399
        %vm3591 = vcmp.eq.s32.totalorder %v3378, %v3399
        %vm3592 = vcmp.eq.s32.totalorder %v848, %v3402
        %vm3593 = vcmp.eq.s32.totalorder %v849, %v3402
        %vm3594 = vcmp.eq.s32.totalorder %v3378, %v3402
        %vm3595 = vcmp.eq.s32.totalorder %v848, %v3405
        %vm3596 = vcmp.eq.s32.totalorder %v849, %v3405
        %vm3597 = vcmp.eq.s32.totalorder %v3378, %v3405
        %vm3598 = vcmp.eq.s32.totalorder %v848, %v3408
        %vm3599 = vcmp.eq.s32.totalorder %v849, %v3408
        %vm3600 = vcmp.eq.s32.totalorder %v3378, %v3408
        %vm3601 = vcmp.eq.s32.totalorder %v848, %v3411
        %vm3602 = vcmp.eq.s32.totalorder %v849, %v3411
        %vm3603 = vcmp.eq.s32.totalorder %v3378, %v3411
        %vm3604 = vcmp.eq.s32.totalorder %v848, %v3414
        %vm3605 = vcmp.eq.s32.totalorder %v849, %v3414
        %vm3606 = vcmp.eq.s32.totalorder %v3378, %v3414
        %vm3607 = vcmp.eq.s32.totalorder %v848, %v3417
        %vm3608 = vcmp.eq.s32.totalorder %v849, %v3417
        %vm3609 = vcmp.eq.s32.totalorder %v3378, %v3417
        %vm3610 = vcmp.eq.s32.totalorder %v848, %v3420
        %vm3611 = vcmp.eq.s32.totalorder %v849, %v3420
        %vm3612 = vcmp.eq.s32.totalorder %v3378, %v3420
        %vm3613 = vcmp.eq.s32.totalorder %v848, %v3423
        %vm3614 = vcmp.eq.s32.totalorder %v849, %v3423
        %vm3615 = vcmp.eq.s32.totalorder %v3378, %v3423
        %vm3616 = vcmp.eq.s32.totalorder %v848, %v3426
        %vm3617 = vcmp.eq.s32.totalorder %v849, %v3426
        %vm3618 = vcmp.eq.s32.totalorder %v3378, %v3426
        %vm3619 = vcmp.eq.s32.totalorder %v848, %v3429
        %vm3620 = vcmp.eq.s32.totalorder %v849, %v3429
        %vm3621 = vcmp.eq.s32.totalorder %v3378, %v3429
        %vm3622 = vcmp.eq.s32.totalorder %v848, %v3432
        %vm3623 = vcmp.eq.s32.totalorder %v849, %v3432
        %vm3624 = vcmp.eq.s32.totalorder %v3378, %v3432
        %vm3625 = vcmp.eq.s32.totalorder %v848, %v3435
        %vm3626 = vcmp.eq.s32.totalorder %v849, %v3435
        %vm3627 = vcmp.eq.s32.totalorder %v3378, %v3435
        %vm3628 = vcmp.eq.s32.totalorder %v848, %v3438
        %vm3629 = vcmp.eq.s32.totalorder %v849, %v3438
        %vm3630 = vcmp.eq.s32.totalorder %v3378, %v3438
        %vm3631 = vcmp.eq.s32.totalorder %v848, %v3441
        %vm3632 = vcmp.eq.s32.totalorder %v849, %v3441
        %vm3633 = vcmp.eq.s32.totalorder %v3378, %v3441
        %vm3634 = vcmp.eq.s32.totalorder %v848, %v3444
        %vm3635 = vcmp.eq.s32.totalorder %v849, %v3444
        %vm3636 = vcmp.eq.s32.totalorder %v3378, %v3444
        %vm3637 = vcmp.eq.s32.totalorder %v848, %v3447
        %vm3638 = vcmp.eq.s32.totalorder %v849, %v3447
        %vm3639 = vcmp.eq.s32.totalorder %v3378, %v3447
        %vm3640 = vcmp.eq.s32.totalorder %v848, %v3450
        %vm3641 = vcmp.eq.s32.totalorder %v849, %v3450
        %vm3642 = vcmp.eq.s32.totalorder %v3378, %v3450
        %vm3643 = vcmp.eq.s32.totalorder %v848, %v3453
        %vm3644 = vcmp.eq.s32.totalorder %v849, %v3453
        %vm3645 = vcmp.eq.s32.totalorder %v3378, %v3453
        %vm3646 = vcmp.eq.s32.totalorder %v848, %v3456
        %vm3647 = vcmp.eq.s32.totalorder %v849, %v3456
        %vm3648 = vcmp.eq.s32.totalorder %v3378, %v3456
        %vm3649 = vcmp.eq.s32.totalorder %v848, %v3459
        %vm3650 = vcmp.eq.s32.totalorder %v849, %v3459
        %vm3651 = vcmp.eq.s32.totalorder %v3378, %v3459
        %vm3652 = vcmp.eq.s32.totalorder %v848, %v3462
        %vm3653 = vcmp.eq.s32.totalorder %v849, %v3462
        %vm3654 = vcmp.eq.s32.totalorder %v3378, %v3462
        %vm3655 = vcmp.eq.s32.totalorder %v848, %v3465
        %vm3656 = vcmp.eq.s32.totalorder %v849, %v3465
        %vm3657 = vcmp.eq.s32.totalorder %v3378, %v3465
        %vm3658 = vcmp.eq.s32.totalorder %v848, %v3468
        %vm3659 = vcmp.eq.s32.totalorder %v849, %v3468
        %vm3660 = vcmp.eq.s32.totalorder %v3378, %v3468
        %vm3661 = vcmp.eq.s32.totalorder %v848, %v3471
        %vm3662 = vcmp.eq.s32.totalorder %v849, %v3471
        %vm3663 = vcmp.eq.s32.totalorder %v3378, %v3471
        %vm3664 = vcmp.eq.s32.totalorder %v848, %v3474
        %vm3665 = vcmp.eq.s32.totalorder %v849, %v3474
        %vm3666 = vcmp.eq.s32.totalorder %v3378, %v3474
        %vm3667 = vcmp.eq.s32.totalorder %v848, %v3477
        %vm3668 = vcmp.eq.s32.totalorder %v849, %v3477
        %vm3669 = vcmp.eq.s32.totalorder %v3378, %v3477
        %vm3670 = vcmp.eq.s32.totalorder %v848, %v3480
        %vm3671 = vcmp.eq.s32.totalorder %v849, %v3480
        %vm3672 = vcmp.eq.s32.totalorder %v3378, %v3480
        %vm3673 = vcmp.eq.s32.totalorder %v848, %v3483
        %vm3674 = vcmp.eq.s32.totalorder %v849, %v3483
        %vm3675 = vcmp.eq.s32.totalorder %v3378, %v3483
        %vm3676 = vcmp.eq.s32.totalorder %v848, %v3486
        %vm3677 = vcmp.eq.s32.totalorder %v849, %v3486
        %vm3678 = vcmp.eq.s32.totalorder %v3378, %v3486
        %vm3679 = vcmp.eq.s32.totalorder %v848, %v3489
        %vm3680 = vcmp.eq.s32.totalorder %v849, %v3489
        %vm3681 = vcmp.eq.s32.totalorder %v3378, %v3489
        %vm3682 = vcmp.eq.s32.totalorder %v848, %v3492
        %vm3683 = vcmp.eq.s32.totalorder %v849, %v3492
        %vm3684 = vcmp.eq.s32.totalorder %v3378, %v3492
        %vm3685 = vcmp.eq.s32.totalorder %v848, %v3495
        %vm3686 = vcmp.eq.s32.totalorder %v849, %v3495
        %vm3687 = vcmp.eq.s32.totalorder %v3378, %v3495
        %vm3688 = vcmp.eq.s32.totalorder %v848, %v3498
        %vm3689 = vcmp.eq.s32.totalorder %v849, %v3498
        %vm3690 = vcmp.eq.s32.totalorder %v3378, %v3498
        %vm3691 = vcmp.eq.s32.totalorder %v848, %v3501
        %vm3692 = vcmp.eq.s32.totalorder %v849, %v3501
        %vm3693 = vcmp.eq.s32.totalorder %v3378, %v3501
        %vm3694 = vcmp.eq.s32.totalorder %v848, %v3504
        %vm3695 = vcmp.eq.s32.totalorder %v849, %v3504
        %vm3696 = vcmp.eq.s32.totalorder %v3378, %v3504
        %vm3697 = vcmp.eq.s32.totalorder %v848, %v3507
        %vm3698 = vcmp.eq.s32.totalorder %v849, %v3507
        %vm3699 = vcmp.eq.s32.totalorder %v3378, %v3507
        %vm3700 = vcmp.eq.s32.totalorder %v848, %v3510
        %vm3701 = vcmp.eq.s32.totalorder %v849, %v3510
        %vm3702 = vcmp.eq.s32.totalorder %v3378, %v3510
        %vm3703 = vcmp.eq.s32.totalorder %v848, %v3513
        %vm3704 = vcmp.eq.s32.totalorder %v849, %v3513
        %vm3705 = vcmp.eq.s32.totalorder %v3378, %v3513
        %vm3706 = vcmp.eq.s32.totalorder %v848, %v3516
        %vm3707 = vcmp.eq.s32.totalorder %v849, %v3516
        %vm3708 = vcmp.eq.s32.totalorder %v3378, %v3516
        %vm3709 = vcmp.eq.s32.totalorder %v848, %v3519
        %vm3710 = vcmp.eq.s32.totalorder %v849, %v3519
        %vm3711 = vcmp.eq.s32.totalorder %v3378, %v3519
        %vm3712 = vcmp.eq.s32.totalorder %v848, %v3522
        %vm3713 = vcmp.eq.s32.totalorder %v849, %v3522
        %vm3714 = vcmp.eq.s32.totalorder %v3378, %v3522
        %vm3715 = vcmp.eq.s32.totalorder %v848, %v3525
        %vm3716 = vcmp.eq.s32.totalorder %v849, %v3525
        %vm3717 = vcmp.eq.s32.totalorder %v3378, %v3525
        %vm3718 = vcmp.eq.s32.totalorder %v848, %v3528
        %vm3719 = vcmp.eq.s32.totalorder %v849, %v3528
        %vm3720 = vcmp.eq.s32.totalorder %v3378, %v3528
        %vm3721 = vcmp.eq.s32.totalorder %v848, %v3531
        %vm3722 = vcmp.eq.s32.totalorder %v849, %v3531
        %vm3723 = vcmp.eq.s32.totalorder %v3378, %v3531
        %vm3724 = vcmp.eq.s32.totalorder %v848, %v3534
        %vm3725 = vcmp.eq.s32.totalorder %v849, %v3534
        %vm3726 = vcmp.eq.s32.totalorder %v3378, %v3534
        %vm3727 = vcmp.eq.s32.totalorder %v848, %v3537
        %vm3728 = vcmp.eq.s32.totalorder %v849, %v3537
        %vm3729 = vcmp.eq.s32.totalorder %v3378, %v3537
        %vm3730 = vcmp.eq.s32.totalorder %v848, %v3540
        %vm3731 = vcmp.eq.s32.totalorder %v849, %v3540
        %vm3732 = vcmp.eq.s32.totalorder %v3378, %v3540
        %vm3733 = vcmp.eq.s32.totalorder %v848, %v3543
        %vm3734 = vcmp.eq.s32.totalorder %v849, %v3543
        %vm3735 = vcmp.eq.s32.totalorder %v3378, %v3543
        %vm3736 = vcmp.eq.s32.totalorder %v848, %v3546
        %vm3737 = vcmp.eq.s32.totalorder %v849, %v3546
        %vm3738 = vcmp.eq.s32.totalorder %v3378, %v3546
        %vm3739 = vcmp.eq.s32.totalorder %v848, %v3549
        %vm3740 = vcmp.eq.s32.totalorder %v849, %v3549
        %vm3741 = vcmp.eq.s32.totalorder %v3378, %v3549
        %vm3742 = vcmp.eq.s32.totalorder %v848, %v3552
        %vm3743 = vcmp.eq.s32.totalorder %v849, %v3552
        %vm3744 = vcmp.eq.s32.totalorder %v3378, %v3552
        %vm3745 = vcmp.eq.s32.totalorder %v848, %v3555
        %vm3746 = vcmp.eq.s32.totalorder %v849, %v3555
        %vm3747 = vcmp.eq.s32.totalorder %v3378, %v3555
        %vm3748 = vcmp.eq.s32.totalorder %v848, %v3558
        %vm3749 = vcmp.eq.s32.totalorder %v849, %v3558
        %vm3750 = vcmp.eq.s32.totalorder %v3378, %v3558
        %vm3751 = vcmp.eq.s32.totalorder %v848, %v3561
        %vm3752 = vcmp.eq.s32.totalorder %v849, %v3561
        %vm3753 = vcmp.eq.s32.totalorder %v3378, %v3561
        %vm3754 = vcmp.eq.s32.totalorder %v848, %v3564
        %vm3755 = vcmp.eq.s32.totalorder %v849, %v3564
        %vm3756 = vcmp.eq.s32.totalorder %v3378, %v3564
        %vm3757 = vcmp.eq.s32.totalorder %v848, %v3567
        %vm3758 = vcmp.eq.s32.totalorder %v849, %v3567
        %vm3759 = vcmp.eq.s32.totalorder %v3378, %v3567
        %vm3760 = vcmp.eq.s32.totalorder %v848, %v3570
        %vm3761 = vcmp.eq.s32.totalorder %v849, %v3570
        %vm3762 = vcmp.eq.s32.totalorder %v3378, %v3570
        %v3763 = vsel %vm3571, 1, 0
        %v3764 = vsel %vm3572, 1, 0
        %v3765 = vsel %vm3573, 1, 0
        %v3766 = vsel %vm3574, 1, 0
        %v3767 = vsel %vm3575, 1, 0
        %v3768 = vsel %vm3576, 1, 0
        %v3769 = vsel %vm3577, 1, 0
        %v3770 = vsel %vm3578, 1, 0
        %v3771 = vsel %vm3579, 1, 0
        %v3772 = vsel %vm3580, 1, 0
        %v3773 = vsel %vm3581, 1, 0
        %v3774 = vsel %vm3582, 1, 0
        %v3775 = vsel %vm3583, 1, 0
        %v3776 = vsel %vm3584, 1, 0
        %v3777 = vsel %vm3585, 1, 0
        %v3778 = vsel %vm3586, 1, 0
        %v3779 = vsel %vm3587, 1, 0
        %v3780 = vsel %vm3588, 1, 0
        %v3781 = vsel %vm3589, 1, 0
        %v3782 = vsel %vm3590, 1, 0
        %v3783 = vsel %vm3591, 1, 0
        %v3784 = vsel %vm3592, 1, 0
        %v3785 = vsel %vm3593, 1, 0
        %v3786 = vsel %vm3594, 1, 0
        %v3787 = vsel %vm3595, 1, 0
        %v3788 = vsel %vm3596, 1, 0
        %v3789 = vsel %vm3597, 1, 0
        %v3790 = vsel %vm3598, 1, 0
        %v3791 = vsel %vm3599, 1, 0
        %v3792 = vsel %vm3600, 1, 0
        %v3793 = vsel %vm3601, 1, 0
        %v3794 = vsel %vm3602, 1, 0
        %v3795 = vsel %vm3603, 1, 0
        %v3796 = vsel %vm3604, 1, 0
        %v3797 = vsel %vm3605, 1, 0
        %v3798 = vsel %vm3606, 1, 0
        %v3799 = vsel %vm3607, 1, 0
        %v3800 = vsel %vm3608, 1, 0
        %v3801 = vsel %vm3609, 1, 0
        %v3802 = vsel %vm3610, 1, 0
        %v3803 = vsel %vm3611, 1, 0
        %v3804 = vsel %vm3612, 1, 0
        %v3805 = vsel %vm3613, 1, 0
        %v3806 = vsel %vm3614, 1, 0
        %v3807 = vsel %vm3615, 1, 0
        %v3808 = vsel %vm3616, 1, 0
        %v3809 = vsel %vm3617, 1, 0
        %v3810 = vsel %vm3618, 1, 0
        %v3811 = vsel %vm3619, 1, 0
        %v3812 = vsel %vm3620, 1, 0
        %v3813 = vsel %vm3621, 1, 0
        %v3814 = vsel %vm3622, 1, 0
        %v3815 = vsel %vm3623, 1, 0
        %v3816 = vsel %vm3624, 1, 0
        %v3817 = vsel %vm3625, 1, 0
        %v3818 = vsel %vm3626, 1, 0
        %v3819 = vsel %vm3627, 1, 0
        %v3820 = vsel %vm3628, 1, 0
        %v3821 = vsel %vm3629, 1, 0
        %v3822 = vsel %vm3630, 1, 0
        %v3823 = vsel %vm3631, 1, 0
        %v3824 = vsel %vm3632, 1, 0
        %v3825 = vsel %vm3633, 1, 0
        %v3826 = vsel %vm3634, 1, 0
        %v3827 = vsel %vm3635, 1, 0
        %v3828 = vsel %vm3636, 1, 0
        %v3829 = vsel %vm3637, 1, 0
        %v3830 = vsel %vm3638, 1, 0
        %v3831 = vsel %vm3639, 1, 0
        %v3832 = vsel %vm3640, 1, 0
        %v3833 = vsel %vm3641, 1, 0
        %v3834 = vsel %vm3642, 1, 0
        %v3835 = vsel %vm3643, 1, 0
        %v3836 = vsel %vm3644, 1, 0
        %v3837 = vsel %vm3645, 1, 0
        %v3838 = vsel %vm3646, 1, 0
        %v3839 = vsel %vm3647, 1, 0
        %v3840 = vsel %vm3648, 1, 0
        %v3841 = vsel %vm3649, 1, 0
        %v3842 = vsel %vm3650, 1, 0
        %v3843 = vsel %vm3651, 1, 0
        %v3844 = vsel %vm3652, 1, 0
        %v3845 = vsel %vm3653, 1, 0
        %v3846 = vsel %vm3654, 1, 0
        %v3847 = vsel %vm3655, 1, 0
        %v3848 = vsel %vm3656, 1, 0
        %v3849 = vsel %vm3657, 1, 0
        %v3850 = vsel %vm3658, 1, 0
        %v3851 = vsel %vm3659, 1, 0
        %v3852 = vsel %vm3660, 1, 0
        %v3853 = vsel %vm3661, 1, 0
        %v3854 = vsel %vm3662, 1, 0
        %v3855 = vsel %vm3663, 1, 0
        %v3856 = vsel %vm3664, 1, 0
        %v3857 = vsel %vm3665, 1, 0
        %v3858 = vsel %vm3666, 1, 0
        %v3859 = vsel %vm3667, 1, 0
        %v3860 = vsel %vm3668, 1, 0
        %v3861 = vsel %vm3669, 1, 0
        %v3862 = vsel %vm3670, 1, 0
        %v3863 = vsel %vm3671, 1, 0
        %v3864 = vsel %vm3672, 1, 0
        %v3865 = vsel %vm3673, 1, 0
        %v3866 = vsel %vm3674, 1, 0
        %v3867 = vsel %vm3675, 1, 0
        %v3868 = vsel %vm3676, 1, 0
        %v3869 = vsel %vm3677, 1, 0
        %v3870 = vsel %vm3678, 1, 0
        %v3871 = vsel %vm3679, 1, 0
        %v3872 = vsel %vm3680, 1, 0
        %v3873 = vsel %vm3681, 1, 0
        %v3874 = vsel %vm3682, 1, 0
        %v3875 = vsel %vm3683, 1, 0
        %v3876 = vsel %vm3684, 1, 0
        %v3877 = vsel %vm3685, 1, 0
        %v3878 = vsel %vm3686, 1, 0
        %v3879 = vsel %vm3687, 1, 0
        %v3880 = vsel %vm3688, 1, 0
        %v3881 = vsel %vm3689, 1, 0
        %v3882 = vsel %vm3690, 1, 0
        %v3883 = vsel %vm3691, 1, 0
        %v3884 = vsel %vm3692, 1, 0
        %v3885 = vsel %vm3693, 1, 0
        %v3886 = vsel %vm3694, 1, 0
        %v3887 = vsel %vm3695, 1, 0
        %v3888 = vsel %vm3696, 1, 0
        %v3889 = vsel %vm3697, 1, 0
        %v3890 = vsel %vm3698, 1, 0
        %v3891 = vsel %vm3699, 1, 0
        %v3892 = vsel %vm3700, 1, 0
        %v3893 = vsel %vm3701, 1, 0
        %v3894 = vsel %vm3702, 1, 0
        %v3895 = vsel %vm3703, 1, 0
        %v3896 = vsel %vm3704, 1, 0
        %v3897 = vsel %vm3705, 1, 0
        %v3898 = vsel %vm3706, 1, 0
        %v3899 = vsel %vm3707, 1, 0
        %v3900 = vsel %vm3708, 1, 0
        %v3901 = vsel %vm3709, 1, 0
        %v3902 = vsel %vm3710, 1, 0
        %v3903 = vsel %vm3711, 1, 0
        %v3904 = vsel %vm3712, 1, 0
        %v3905 = vsel %vm3713, 1, 0
        %v3906 = vsel %vm3714, 1, 0
        %v3907 = vsel %vm3715, 1, 0
        %v3908 = vsel %vm3716, 1, 0
        %v3909 = vsel %vm3717, 1, 0
        %v3910 = vsel %vm3718, 1, 0
        %v3911 = vsel %vm3719, 1, 0
        %v3912 = vsel %vm3720, 1, 0
        %v3913 = vsel %vm3721, 1, 0
        %v3914 = vsel %vm3722, 1, 0
        %v3915 = vsel %vm3723, 1, 0
        %v3916 = vsel %vm3724, 1, 0
        %v3917 = vsel %vm3725, 1, 0
        %v3918 = vsel %vm3726, 1, 0
        %v3919 = vsel %vm3727, 1, 0
        %v3920 = vsel %vm3728, 1, 0
        %v3921 = vsel %vm3729, 1, 0
        %v3922 = vsel %vm3730, 1, 0
        %v3923 = vsel %vm3731, 1, 0
        %v3924 = vsel %vm3732, 1, 0
        %v3925 = vsel %vm3733, 1, 0
        %v3926 = vsel %vm3734, 1, 0
        %v3927 = vsel %vm3735, 1, 0
        %v3928 = vsel %vm3736, 1, 0
        %v3929 = vsel %vm3737, 1, 0
        %v3930 = vsel %vm3738, 1, 0
        %v3931 = vsel %vm3739, 1, 0
        %v3932 = vsel %vm3740, 1, 0
        %v3933 = vsel %vm3741, 1, 0
        %v3934 = vsel %vm3742, 1, 0
        %v3935 = vsel %vm3743, 1, 0
        %v3936 = vsel %vm3744, 1, 0
        %v3937 = vsel %vm3745, 1, 0
        %v3938 = vsel %vm3746, 1, 0
        %v3939 = vsel %vm3747, 1, 0
        %v3940 = vsel %vm3748, 1, 0
        %v3941 = vsel %vm3749, 1, 0
        %v3942 = vsel %vm3750, 1, 0
        %v3943 = vsel %vm3751, 1, 0
        %v3944 = vsel %vm3752, 1, 0
        %v3945 = vsel %vm3753, 1, 0
        %v3946 = vsel %vm3754, 1, 0
        %v3947 = vsel %vm3755, 1, 0
        %v3948 = vsel %vm3756, 1, 0
        %v3949 = vsel %vm3757, 1, 0
        %v3950 = vsel %vm3758, 1, 0
        %v3951 = vsel %vm3759, 1, 0
        %v3952 = vsel %vm3760, 1, 0
        %v3953 = vsel %vm3761, 1, 0
        %v3954 = vsel %vm3762, 1, 0
        %v3955 = vcvt.s32.f32 %v3763
        %v3956 = vcvt.s32.f32 %v3764
        %v3957 = vcvt.s32.f32 %v3765
        %v3958 = vcvt.s32.f32 %v3766
        %v3959 = vcvt.s32.f32 %v3767
        %v3960 = vcvt.s32.f32 %v3768
        %v3961 = vcvt.s32.f32 %v3769
        %v3962 = vcvt.s32.f32 %v3770
        %v3963 = vcvt.s32.f32 %v3771
        %v3964 = vcvt.s32.f32 %v3772
        %v3965 = vcvt.s32.f32 %v3773
        %v3966 = vcvt.s32.f32 %v3774
        %v3967 = vcvt.s32.f32 %v3775
        %v3968 = vcvt.s32.f32 %v3776
        %v3969 = vcvt.s32.f32 %v3777
        %v3970 = vcvt.s32.f32 %v3778
        %v3971 = vcvt.s32.f32 %v3779
        %v3972 = vcvt.s32.f32 %v3780
        %v3973 = vcvt.s32.f32 %v3781
        %v3974 = vcvt.s32.f32 %v3782
        %v3975 = vcvt.s32.f32 %v3783
        %v3976 = vcvt.s32.f32 %v3784
        %v3977 = vcvt.s32.f32 %v3785
        %v3978 = vcvt.s32.f32 %v3786
        %v3979 = vcvt.s32.f32 %v3787
        %v3980 = vcvt.s32.f32 %v3788
        %v3981 = vcvt.s32.f32 %v3789
        %v3982 = vcvt.s32.f32 %v3790
        %v3983 = vcvt.s32.f32 %v3791
        %v3984 = vcvt.s32.f32 %v3792
        %v3985 = vcvt.s32.f32 %v3793
        %v3986 = vcvt.s32.f32 %v3794
        %v3987 = vcvt.s32.f32 %v3795
        %v3988 = vcvt.s32.f32 %v3796
        %v3989 = vcvt.s32.f32 %v3797
        %v3990 = vcvt.s32.f32 %v3798
        %v3991 = vcvt.s32.f32 %v3799
        %v3992 = vcvt.s32.f32 %v3800
        %v3993 = vcvt.s32.f32 %v3801
        %v3994 = vcvt.s32.f32 %v3802
        %v3995 = vcvt.s32.f32 %v3803
        %v3996 = vcvt.s32.f32 %v3804
        %v3997 = vcvt.s32.f32 %v3805
        %v3998 = vcvt.s32.f32 %v3806
        %v3999 = vcvt.s32.f32 %v3807
        %v4000 = vcvt.s32.f32 %v3808
        %v4001 = vcvt.s32.f32 %v3809
        %v4002 = vcvt.s32.f32 %v3810
        %v4003 = vcvt.s32.f32 %v3811
        %v4004 = vcvt.s32.f32 %v3812
        %v4005 = vcvt.s32.f32 %v3813
        %v4006 = vcvt.s32.f32 %v3814
        %v4007 = vcvt.s32.f32 %v3815
        %v4008 = vcvt.s32.f32 %v3816
        %v4009 = vcvt.s32.f32 %v3817
        %v4010 = vcvt.s32.f32 %v3818
        %v4011 = vcvt.s32.f32 %v3819
        %v4012 = vcvt.s32.f32 %v3820
        %v4013 = vcvt.s32.f32 %v3821
        %v4014 = vcvt.s32.f32 %v3822
        %v4015 = vcvt.s32.f32 %v3823
        %v4016 = vcvt.s32.f32 %v3824
        %v4017 = vcvt.s32.f32 %v3825
        %v4018 = vcvt.s32.f32 %v3826
        %v4019 = vcvt.s32.f32 %v3827
        %v4020 = vcvt.s32.f32 %v3828
        %v4021 = vcvt.s32.f32 %v3829
        %v4022 = vcvt.s32.f32 %v3830
        %v4023 = vcvt.s32.f32 %v3831
        %v4024 = vcvt.s32.f32 %v3832
        %v4025 = vcvt.s32.f32 %v3833
        %v4026 = vcvt.s32.f32 %v3834
        %v4027 = vcvt.s32.f32 %v3835
        %v4028 = vcvt.s32.f32 %v3836
        %v4029 = vcvt.s32.f32 %v3837
        %v4030 = vcvt.s32.f32 %v3838
        %v4031 = vcvt.s32.f32 %v3839
        %v4032 = vcvt.s32.f32 %v3840
        %v4033 = vcvt.s32.f32 %v3841
        %v4034 = vcvt.s32.f32 %v3842
        %v4035 = vcvt.s32.f32 %v3843
        %v4036 = vcvt.s32.f32 %v3844
        %v4037 = vcvt.s32.f32 %v3845
        %v4038 = vcvt.s32.f32 %v3846
        %v4039 = vcvt.s32.f32 %v3847
        %v4040 = vcvt.s32.f32 %v3848
        %v4041 = vcvt.s32.f32 %v3849
        %v4042 = vcvt.s32.f32 %v3850
        %v4043 = vcvt.s32.f32 %v3851
        %v4044 = vcvt.s32.f32 %v3852
        %v4045 = vcvt.s32.f32 %v3853
        %v4046 = vcvt.s32.f32 %v3854
        %v4047 = vcvt.s32.f32 %v3855
        %v4048 = vcvt.s32.f32 %v3856
        %v4049 = vcvt.s32.f32 %v3857
        %v4050 = vcvt.s32.f32 %v3858
        %v4051 = vcvt.s32.f32 %v3859
        %v4052 = vcvt.s32.f32 %v3860
        %v4053 = vcvt.s32.f32 %v3861
        %v4054 = vcvt.s32.f32 %v3862
        %v4055 = vcvt.s32.f32 %v3863
        %v4056 = vcvt.s32.f32 %v3864
        %v4057 = vcvt.s32.f32 %v3865
        %v4058 = vcvt.s32.f32 %v3866
        %v4059 = vcvt.s32.f32 %v3867
        %v4060 = vcvt.s32.f32 %v3868
        %v4061 = vcvt.s32.f32 %v3869
        %v4062 = vcvt.s32.f32 %v3870
        %v4063 = vcvt.s32.f32 %v3871
        %v4064 = vcvt.s32.f32 %v3872
        %v4065 = vcvt.s32.f32 %v3873
        %v4066 = vcvt.s32.f32 %v3874
        %v4067 = vcvt.s32.f32 %v3875
        %v4068 = vcvt.s32.f32 %v3876
        %v4069 = vcvt.s32.f32 %v3877
        %v4070 = vcvt.s32.f32 %v3878
        %v4071 = vcvt.s32.f32 %v3879
        %v4072 = vcvt.s32.f32 %v3880
        %v4073 = vcvt.s32.f32 %v3881
        %v4074 = vcvt.s32.f32 %v3882
        %v4075 = vcvt.s32.f32 %v3883
        %v4076 = vcvt.s32.f32 %v3884
        %v4077 = vcvt.s32.f32 %v3885
        %v4078 = vcvt.s32.f32 %v3886
        %v4079 = vcvt.s32.f32 %v3887
        %v4080 = vcvt.s32.f32 %v3888
        %v4081 = vcvt.s32.f32 %v3889
        %v4082 = vcvt.s32.f32 %v3890
        %v4083 = vcvt.s32.f32 %v3891
        %v4084 = vcvt.s32.f32 %v3892
        %v4085 = vcvt.s32.f32 %v3893
        %v4086 = vcvt.s32.f32 %v3894
        %v4087 = vcvt.s32.f32 %v3895
        %v4088 = vcvt.s32.f32 %v3896
        %v4089 = vcvt.s32.f32 %v3897
        %v4090 = vcvt.s32.f32 %v3898
        %v4091 = vcvt.s32.f32 %v3899
        %v4092 = vcvt.s32.f32 %v3900
        %v4093 = vcvt.s32.f32 %v3901
        %v4094 = vcvt.s32.f32 %v3902
        %v4095 = vcvt.s32.f32 %v3903
        %v4096 = vcvt.s32.f32 %v3904
        %v4097 = vcvt.s32.f32 %v3905
        %v4098 = vcvt.s32.f32 %v3906
        %v4099 = vcvt.s32.f32 %v3907
        %v4100 = vcvt.s32.f32 %v3908
        %v4101 = vcvt.s32.f32 %v3909
        %v4102 = vcvt.s32.f32 %v3910
        %v4103 = vcvt.s32.f32 %v3911
        %v4104 = vcvt.s32.f32 %v3912
        %v4105 = vcvt.s32.f32 %v3913
        %v4106 = vcvt.s32.f32 %v3914
        %v4107 = vcvt.s32.f32 %v3915
        %v4108 = vcvt.s32.f32 %v3916
        %v4109 = vcvt.s32.f32 %v3917
        %v4110 = vcvt.s32.f32 %v3918
        %v4111 = vcvt.s32.f32 %v3919
        %v4112 = vcvt.s32.f32 %v3920
        %v4113 = vcvt.s32.f32 %v3921
        %v4114 = vcvt.s32.f32 %v3922
        %v4115 = vcvt.s32.f32 %v3923
        %v4116 = vcvt.s32.f32 %v3924
        %v4117 = vcvt.s32.f32 %v3925
        %v4118 = vcvt.s32.f32 %v3926
        %v4119 = vcvt.s32.f32 %v3927
        %v4120 = vcvt.s32.f32 %v3928
        %v4121 = vcvt.s32.f32 %v3929
        %v4122 = vcvt.s32.f32 %v3930
        %v4123 = vcvt.s32.f32 %v3931
        %v4124 = vcvt.s32.f32 %v3932
        %v4125 = vcvt.s32.f32 %v3933
        %v4126 = vcvt.s32.f32 %v3934
        %v4127 = vcvt.s32.f32 %v3935
        %v4128 = vcvt.s32.f32 %v3936
        %v4129 = vcvt.s32.f32 %v3937
        %v4130 = vcvt.s32.f32 %v3938
        %v4131 = vcvt.s32.f32 %v3939
        %v4132 = vcvt.s32.f32 %v3940
        %v4133 = vcvt.s32.f32 %v3941
        %v4134 = vcvt.s32.f32 %v3942
        %v4135 = vcvt.s32.f32 %v3943
        %v4136 = vcvt.s32.f32 %v3944
        %v4137 = vcvt.s32.f32 %v3945
        %v4138 = vcvt.s32.f32 %v3946
        %v4139 = vcvt.s32.f32 %v3947
        %v4140 = vcvt.s32.f32 %v3948
        %v4141 = vcvt.s32.f32 %v3949
        %v4142 = vcvt.s32.f32 %v3950
        %v4143 = vcvt.s32.f32 %v3951
        %v4144 = vcvt.s32.f32 %v3952
        %v4145 = vcvt.s32.f32 %v3953
        %v4146 = vcvt.s32.f32 %v3954
        %v4147 = vpack.c.bf16 %v3958, %v3955
        %v4148 = vpack.c.bf16 %v3959, %v3956
        %v4149 = vpack.c.bf16 %v3960, %v3957
        %v4150 = vpack.c.bf16 %v3964, %v3961
        %v4151 = vpack.c.bf16 %v3965, %v3962
        %v4152 = vpack.c.bf16 %v3966, %v3963
        %v4153 = vpack.c.bf16 %v3970, %v3967
        %v4154 = vpack.c.bf16 %v3971, %v3968
        %v4155 = vpack.c.bf16 %v3972, %v3969
        %v4156 = vpack.c.bf16 %v3976, %v3973
        %v4157 = vpack.c.bf16 %v3977, %v3974
        %v4158 = vpack.c.bf16 %v3978, %v3975
        %v4159 = vpack.c.bf16 %v3982, %v3979
        %v4160 = vpack.c.bf16 %v3983, %v3980
        %v4161 = vpack.c.bf16 %v3984, %v3981
        %v4162 = vpack.c.bf16 %v3988, %v3985
        %v4163 = vpack.c.bf16 %v3989, %v3986
        %v4164 = vpack.c.bf16 %v3990, %v3987
        %v4165 = vpack.c.bf16 %v3994, %v3991
        %v4166 = vpack.c.bf16 %v3995, %v3992
        %v4167 = vpack.c.bf16 %v3996, %v3993
        %v4168 = vpack.c.bf16 %v4000, %v3997
        %v4169 = vpack.c.bf16 %v4001, %v3998
        %v4170 = vpack.c.bf16 %v4002, %v3999
        %v4171 = vpack.c.bf16 %v4006, %v4003
        %v4172 = vpack.c.bf16 %v4007, %v4004
        %v4173 = vpack.c.bf16 %v4008, %v4005
        %v4174 = vpack.c.bf16 %v4012, %v4009
        %v4175 = vpack.c.bf16 %v4013, %v4010
        %v4176 = vpack.c.bf16 %v4014, %v4011
        %v4177 = vpack.c.bf16 %v4018, %v4015
        %v4178 = vpack.c.bf16 %v4019, %v4016
        %v4179 = vpack.c.bf16 %v4020, %v4017
        %v4180 = vpack.c.bf16 %v4024, %v4021
        %v4181 = vpack.c.bf16 %v4025, %v4022
        %v4182 = vpack.c.bf16 %v4026, %v4023
        %v4183 = vpack.c.bf16 %v4030, %v4027
        %v4184 = vpack.c.bf16 %v4031, %v4028
        %v4185 = vpack.c.bf16 %v4032, %v4029
        %v4186 = vpack.c.bf16 %v4036, %v4033
        %v4187 = vpack.c.bf16 %v4037, %v4034
        %v4188 = vpack.c.bf16 %v4038, %v4035
        %v4189 = vpack.c.bf16 %v4042, %v4039
        %v4190 = vpack.c.bf16 %v4043, %v4040
        %v4191 = vpack.c.bf16 %v4044, %v4041
        %v4192 = vpack.c.bf16 %v4048, %v4045
        %v4193 = vpack.c.bf16 %v4049, %v4046
        %v4194 = vpack.c.bf16 %v4050, %v4047
        %v4195 = vpack.c.bf16 %v4054, %v4051
        %v4196 = vpack.c.bf16 %v4055, %v4052
        %v4197 = vpack.c.bf16 %v4056, %v4053
        %v4198 = vpack.c.bf16 %v4060, %v4057
        %v4199 = vpack.c.bf16 %v4061, %v4058
        %v4200 = vpack.c.bf16 %v4062, %v4059
        %v4201 = vpack.c.bf16 %v4066, %v4063
        %v4202 = vpack.c.bf16 %v4067, %v4064
        %v4203 = vpack.c.bf16 %v4068, %v4065
        %v4204 = vpack.c.bf16 %v4072, %v4069
        %v4205 = vpack.c.bf16 %v4073, %v4070
        %v4206 = vpack.c.bf16 %v4074, %v4071
        %v4207 = vpack.c.bf16 %v4078, %v4075
        %v4208 = vpack.c.bf16 %v4079, %v4076
        %v4209 = vpack.c.bf16 %v4080, %v4077
        %v4210 = vpack.c.bf16 %v4084, %v4081
        %v4211 = vpack.c.bf16 %v4085, %v4082
        %v4212 = vpack.c.bf16 %v4086, %v4083
        %v4213 = vpack.c.bf16 %v4090, %v4087
        %v4214 = vpack.c.bf16 %v4091, %v4088
        %v4215 = vpack.c.bf16 %v4092, %v4089
        %v4216 = vpack.c.bf16 %v4096, %v4093
        %v4217 = vpack.c.bf16 %v4097, %v4094
        %v4218 = vpack.c.bf16 %v4098, %v4095
        %v4219 = vpack.c.bf16 %v4102, %v4099
        %v4220 = vpack.c.bf16 %v4103, %v4100
        %v4221 = vpack.c.bf16 %v4104, %v4101
        %v4222 = vpack.c.bf16 %v4108, %v4105
        %v4223 = vpack.c.bf16 %v4109, %v4106
        %v4224 = vpack.c.bf16 %v4110, %v4107
        %v4225 = vpack.c.bf16 %v4114, %v4111
        %v4226 = vpack.c.bf16 %v4115, %v4112
        %v4227 = vpack.c.bf16 %v4116, %v4113
        %v4228 = vpack.c.bf16 %v4120, %v4117
        %v4229 = vpack.c.bf16 %v4121, %v4118
        %v4230 = vpack.c.bf16 %v4122, %v4119
        %v4231 = vpack.c.bf16 %v4126, %v4123
        %v4232 = vpack.c.bf16 %v4127, %v4124
        %v4233 = vpack.c.bf16 %v4128, %v4125
        %v4234 = vpack.c.bf16 %v4132, %v4129
        %v4235 = vpack.c.bf16 %v4133, %v4130
        %v4236 = vpack.c.bf16 %v4134, %v4131
        %v4237 = vpack.c.bf16 %v4138, %v4135
        %v4238 = vpack.c.bf16 %v4139, %v4136
        %v4239 = vpack.c.bf16 %v4140, %v4137
        %v4240 = vpack.c.bf16 %v4144, %v4141
        %v4241 = vpack.c.bf16 %v4145, %v4142
        %v4242 = vpack.c.bf16 %v4146, %v4143
        %v4243 = vsel %vm331, 4294967295, %v396
        %v4244 = vsel %vm332, 4294967295, %v398
        %v4245 = vsel %vm333, 4294967295, %v400
        %v4246 = vsel %vm334, 4294967295, %v402
        %v4247 = vsel %vm335, 4294967295, %v404
        %v4248 = vsel %vm336, 4294967295, %v406
        %v4249 = vsel %vm337, 4294967295, %v408
        %v4250 = vsel %vm338, 4294967295, %v410
        %v4251 = vsel %vm339, 4294967295, %v412
        %v4252 = vsel %vm340, 4294967295, %v414
        %v4253 = vsel %vm341, 4294967295, %v416
        %v4254 = vsel %vm342, 4294967295, %v418
        %v4255 = vsel %vm343, 4294967295, %v420
        %v4256 = vsel %vm344, 4294967295, %v422
        %v4257 = vsel %vm345, 4294967295, %v424
        %v4258 = vsel %vm346, 4294967295, %v426
        %v4259 = vsel %vm347, 4294967295, %v428
        %v4260 = vsel %vm348, 4294967295, %v430
        %v4261 = vsel %vm349, 4294967295, %v432
        %v4262 = vsel %vm350, 4294967295, %v434
        %v4263 = vsel %vm351, 4294967295, %v436
        %v4264 = vsel %vm352, 4294967295, %v438
        %v4265 = vsel %vm353, 4294967295, %v440
        %v4266 = vsel %vm354, 4294967295, %v442
        %v4267 = vsel %vm355, 4294967295, %v444
        %v4268 = vsel %vm356, 4294967295, %v446
        %v4269 = vsel %vm357, 4294967295, %v448
        %v4270 = vsel %vm358, 4294967295, %v450
        %v4271 = vsel %vm359, 4294967295, %v452
        %v4272 = vsel %vm360, 4294967295, %v454
        %v4273 = vsel %vm361, 4294967295, %v456
        %v4274 = vsel %vm362, 4294967295, %v458
        %v4275 = vsel %vm363, 4294967295, %v460
        %v4276 = vsel %vm364, 4294967295, %v462
        %v4277 = vsel %vm365, 4294967295, %v464
        %v4278 = vsel %vm366, 4294967295, %v466
        %v4279 = vsel %vm367, 4294967295, %v468
        %v4280 = vsel %vm368, 4294967295, %v470
        %v4281 = vsel %vm369, 4294967295, %v472
        %v4282 = vsel %vm370, 4294967295, %v474
        %v4283 = vsel %vm371, 4294967295, %v476
        %v4284 = vsel %vm372, 4294967295, %v478
        %v4285 = vsel %vm373, 4294967295, %v480
        %v4286 = vsel %vm374, 4294967295, %v482
        %v4287 = vsel %vm375, 4294967295, %v484
        %v4288 = vsel %vm376, 4294967295, %v486
        %v4289 = vsel %vm377, 4294967295, %v488
        %v4290 = vsel %vm378, 4294967295, %v490
        %v4291 = vsel %vm379, 4294967295, %v492
        %v4292 = vsel %vm380, 4294967295, %v494
        %v4293 = vsel %vm381, 4294967295, %v496
        %v4294 = vsel %vm382, 4294967295, %v498
        %v4295 = vsel %vm383, 4294967295, %v500
        %v4296 = vsel %vm384, 4294967295, %v502
        %v4297 = vsel %vm385, 4294967295, %v504
        %v4298 = vsel %vm386, 4294967295, %v506
        %v4299 = vsel %vm387, 4294967295, %v508
        %v4300 = vsel %vm388, 4294967295, %v510
        %v4301 = vsel %vm389, 4294967295, %v512
        %v4302 = vsel %vm390, 4294967295, %v514
        %v4303 = vsel %vm391, 4294967295, %v516
        %v4304 = vsel %vm392, 4294967295, %v518
        %v4305 = vsel %vm393, 4294967295, %v520
        %v4306 = vsel %vm394, 4294967295, %v522
        %4307 = vset.pattern.permute.xlu0 4
        %4308 = vperm.xlu0 %4307, %v4243
        %v4309 = vpop.permute.xlu0 %4308
        %4310 = vset.pattern.permute.xlu0 4
        %4311 = vperm.xlu0 %4310, %v4244
        %v4312 = vpop.permute.xlu0 %4311
        %4313 = vset.pattern.permute.xlu0 4
        %4314 = vperm.xlu0 %4313, %v4245
        %v4315 = vpop.permute.xlu0 %4314
        %4316 = vset.pattern.permute.xlu0 4
        %4317 = vperm.xlu0 %4316, %v4246
        %v4318 = vpop.permute.xlu0 %4317
        %4319 = vset.pattern.permute.xlu0 4
        %4320 = vperm.xlu0 %4319, %v4247
        %v4321 = vpop.permute.xlu0 %4320
        %4322 = vset.pattern.permute.xlu0 4
        %4323 = vperm.xlu0 %4322, %v4248
        %v4324 = vpop.permute.xlu0 %4323
        %4325 = vset.pattern.permute.xlu0 4
        %4326 = vperm.xlu0 %4325, %v4249
        %v4327 = vpop.permute.xlu0 %4326
        %4328 = vset.pattern.permute.xlu0 4
        %4329 = vperm.xlu0 %4328, %v4250
        %v4330 = vpop.permute.xlu0 %4329
        %4331 = vset.pattern.permute.xlu0 4
        %4332 = vperm.xlu0 %4331, %v4251
        %v4333 = vpop.permute.xlu0 %4332
        %4334 = vset.pattern.permute.xlu0 4
        %4335 = vperm.xlu0 %4334, %v4252
        %v4336 = vpop.permute.xlu0 %4335
        %4337 = vset.pattern.permute.xlu0 4
        %4338 = vperm.xlu0 %4337, %v4253
        %v4339 = vpop.permute.xlu0 %4338
        %4340 = vset.pattern.permute.xlu0 4
        %4341 = vperm.xlu0 %4340, %v4254
        %v4342 = vpop.permute.xlu0 %4341
        %4343 = vset.pattern.permute.xlu0 4
        %4344 = vperm.xlu0 %4343, %v4255
        %v4345 = vpop.permute.xlu0 %4344
        %4346 = vset.pattern.permute.xlu0 4
        %4347 = vperm.xlu0 %4346, %v4256
        %v4348 = vpop.permute.xlu0 %4347
        %4349 = vset.pattern.permute.xlu0 4
        %4350 = vperm.xlu0 %4349, %v4257
        %v4351 = vpop.permute.xlu0 %4350
        %4352 = vset.pattern.permute.xlu0 4
        %4353 = vperm.xlu0 %4352, %v4258
        %v4354 = vpop.permute.xlu0 %4353
        %4355 = vset.pattern.permute.xlu0 4
        %4356 = vperm.xlu0 %4355, %v4259
        %v4357 = vpop.permute.xlu0 %4356
        %4358 = vset.pattern.permute.xlu0 4
        %4359 = vperm.xlu0 %4358, %v4260
        %v4360 = vpop.permute.xlu0 %4359
        %4361 = vset.pattern.permute.xlu0 4
        %4362 = vperm.xlu0 %4361, %v4261
        %v4363 = vpop.permute.xlu0 %4362
        %4364 = vset.pattern.permute.xlu0 4
        %4365 = vperm.xlu0 %4364, %v4262
        %v4366 = vpop.permute.xlu0 %4365
        %4367 = vset.pattern.permute.xlu0 4
        %4368 = vperm.xlu0 %4367, %v4263
        %v4369 = vpop.permute.xlu0 %4368
        %4370 = vset.pattern.permute.xlu0 4
        %4371 = vperm.xlu0 %4370, %v4264
        %v4372 = vpop.permute.xlu0 %4371
        %4373 = vset.pattern.permute.xlu0 4
        %4374 = vperm.xlu0 %4373, %v4265
        %v4375 = vpop.permute.xlu0 %4374
        %4376 = vset.pattern.permute.xlu0 4
        %4377 = vperm.xlu0 %4376, %v4266
        %v4378 = vpop.permute.xlu0 %4377
        %4379 = vset.pattern.permute.xlu0 4
        %4380 = vperm.xlu0 %4379, %v4267
        %v4381 = vpop.permute.xlu0 %4380
        %4382 = vset.pattern.permute.xlu0 4
        %4383 = vperm.xlu0 %4382, %v4268
        %v4384 = vpop.permute.xlu0 %4383
        %4385 = vset.pattern.permute.xlu0 4
        %4386 = vperm.xlu0 %4385, %v4269
        %v4387 = vpop.permute.xlu0 %4386
        %4388 = vset.pattern.permute.xlu0 4
        %4389 = vperm.xlu0 %4388, %v4270
        %v4390 = vpop.permute.xlu0 %4389
        %4391 = vset.pattern.permute.xlu0 4
        %4392 = vperm.xlu0 %4391, %v4271
        %v4393 = vpop.permute.xlu0 %4392
        %4394 = vset.pattern.permute.xlu0 4
        %4395 = vperm.xlu0 %4394, %v4272
        %v4396 = vpop.permute.xlu0 %4395
        %4397 = vset.pattern.permute.xlu0 4
        %4398 = vperm.xlu0 %4397, %v4273
        %v4399 = vpop.permute.xlu0 %4398
        %4400 = vset.pattern.permute.xlu0 4
        %4401 = vperm.xlu0 %4400, %v4274
        %v4402 = vpop.permute.xlu0 %4401
        %4403 = vset.pattern.permute.xlu0 4
        %4404 = vperm.xlu0 %4403, %v4275
        %v4405 = vpop.permute.xlu0 %4404
        %4406 = vset.pattern.permute.xlu0 4
        %4407 = vperm.xlu0 %4406, %v4276
        %v4408 = vpop.permute.xlu0 %4407
        %4409 = vset.pattern.permute.xlu0 4
        %4410 = vperm.xlu0 %4409, %v4277
        %v4411 = vpop.permute.xlu0 %4410
        %4412 = vset.pattern.permute.xlu0 4
        %4413 = vperm.xlu0 %4412, %v4278
        %v4414 = vpop.permute.xlu0 %4413
        %4415 = vset.pattern.permute.xlu0 4
        %4416 = vperm.xlu0 %4415, %v4279
        %v4417 = vpop.permute.xlu0 %4416
        %4418 = vset.pattern.permute.xlu0 4
        %4419 = vperm.xlu0 %4418, %v4280
        %v4420 = vpop.permute.xlu0 %4419
        %4421 = vset.pattern.permute.xlu0 4
        %4422 = vperm.xlu0 %4421, %v4281
        %v4423 = vpop.permute.xlu0 %4422
        %4424 = vset.pattern.permute.xlu0 4
        %4425 = vperm.xlu0 %4424, %v4282
        %v4426 = vpop.permute.xlu0 %4425
        %4427 = vset.pattern.permute.xlu0 4
        %4428 = vperm.xlu0 %4427, %v4283
        %v4429 = vpop.permute.xlu0 %4428
        %4430 = vset.pattern.permute.xlu0 4
        %4431 = vperm.xlu0 %4430, %v4284
        %v4432 = vpop.permute.xlu0 %4431
        %4433 = vset.pattern.permute.xlu0 4
        %4434 = vperm.xlu0 %4433, %v4285
        %v4435 = vpop.permute.xlu0 %4434
        %4436 = vset.pattern.permute.xlu0 4
        %4437 = vperm.xlu0 %4436, %v4286
        %v4438 = vpop.permute.xlu0 %4437
        %4439 = vset.pattern.permute.xlu0 4
        %4440 = vperm.xlu0 %4439, %v4287
        %v4441 = vpop.permute.xlu0 %4440
        %4442 = vset.pattern.permute.xlu0 4
        %4443 = vperm.xlu0 %4442, %v4288
        %v4444 = vpop.permute.xlu0 %4443
        %4445 = vset.pattern.permute.xlu0 4
        %4446 = vperm.xlu0 %4445, %v4289
        %v4447 = vpop.permute.xlu0 %4446
        %4448 = vset.pattern.permute.xlu0 4
        %4449 = vperm.xlu0 %4448, %v4290
        %v4450 = vpop.permute.xlu0 %4449
        %4451 = vset.pattern.permute.xlu0 4
        %4452 = vperm.xlu0 %4451, %v4291
        %v4453 = vpop.permute.xlu0 %4452
        %4454 = vset.pattern.permute.xlu0 4
        %4455 = vperm.xlu0 %4454, %v4292
        %v4456 = vpop.permute.xlu0 %4455
        %4457 = vset.pattern.permute.xlu0 4
        %4458 = vperm.xlu0 %4457, %v4293
        %v4459 = vpop.permute.xlu0 %4458
        %4460 = vset.pattern.permute.xlu0 4
        %4461 = vperm.xlu0 %4460, %v4294
        %v4462 = vpop.permute.xlu0 %4461
        %4463 = vset.pattern.permute.xlu0 4
        %4464 = vperm.xlu0 %4463, %v4295
        %v4465 = vpop.permute.xlu0 %4464
        %4466 = vset.pattern.permute.xlu0 4
        %4467 = vperm.xlu0 %4466, %v4296
        %v4468 = vpop.permute.xlu0 %4467
        %4469 = vset.pattern.permute.xlu0 4
        %4470 = vperm.xlu0 %4469, %v4297
        %v4471 = vpop.permute.xlu0 %4470
        %4472 = vset.pattern.permute.xlu0 4
        %4473 = vperm.xlu0 %4472, %v4298
        %v4474 = vpop.permute.xlu0 %4473
        %4475 = vset.pattern.permute.xlu0 4
        %4476 = vperm.xlu0 %4475, %v4299
        %v4477 = vpop.permute.xlu0 %4476
        %4478 = vset.pattern.permute.xlu0 4
        %4479 = vperm.xlu0 %4478, %v4300
        %v4480 = vpop.permute.xlu0 %4479
        %4481 = vset.pattern.permute.xlu0 4
        %4482 = vperm.xlu0 %4481, %v4301
        %v4483 = vpop.permute.xlu0 %4482
        %4484 = vset.pattern.permute.xlu0 4
        %4485 = vperm.xlu0 %4484, %v4302
        %v4486 = vpop.permute.xlu0 %4485
        %4487 = vset.pattern.permute.xlu0 4
        %4488 = vperm.xlu0 %4487, %v4303
        %v4489 = vpop.permute.xlu0 %4488
        %4490 = vset.pattern.permute.xlu0 4
        %4491 = vperm.xlu0 %4490, %v4304
        %v4492 = vpop.permute.xlu0 %4491
        %4493 = vset.pattern.permute.xlu0 4
        %4494 = vperm.xlu0 %4493, %v4305
        %v4495 = vpop.permute.xlu0 %4494
        %4496 = vset.pattern.permute.xlu0 4
        %4497 = vperm.xlu0 %4496, %v4306
        %v4498 = vpop.permute.xlu0 %4497
        %vm4499 = vcmp.eq.s32.totalorder %v848, %v4309
        %vm4500 = vcmp.eq.s32.totalorder %v848, %v4312
        %vm4501 = vcmp.eq.s32.totalorder %v848, %v4315
        %vm4502 = vcmp.eq.s32.totalorder %v848, %v4318
        %vm4503 = vcmp.eq.s32.totalorder %v848, %v4321
        %vm4504 = vcmp.eq.s32.totalorder %v848, %v4324
        %vm4505 = vcmp.eq.s32.totalorder %v848, %v4327
        %vm4506 = vcmp.eq.s32.totalorder %v848, %v4330
        %vm4507 = vcmp.eq.s32.totalorder %v848, %v4333
        %vm4508 = vcmp.eq.s32.totalorder %v848, %v4336
        %vm4509 = vcmp.eq.s32.totalorder %v848, %v4339
        %vm4510 = vcmp.eq.s32.totalorder %v848, %v4342
        %vm4511 = vcmp.eq.s32.totalorder %v848, %v4345
        %vm4512 = vcmp.eq.s32.totalorder %v848, %v4348
        %vm4513 = vcmp.eq.s32.totalorder %v848, %v4351
        %vm4514 = vcmp.eq.s32.totalorder %v848, %v4354
        %vm4515 = vcmp.eq.s32.totalorder %v848, %v4357
        %vm4516 = vcmp.eq.s32.totalorder %v848, %v4360
        %vm4517 = vcmp.eq.s32.totalorder %v848, %v4363
        %vm4518 = vcmp.eq.s32.totalorder %v848, %v4366
        %vm4519 = vcmp.eq.s32.totalorder %v848, %v4369
        %vm4520 = vcmp.eq.s32.totalorder %v848, %v4372
        %vm4521 = vcmp.eq.s32.totalorder %v848, %v4375
        %vm4522 = vcmp.eq.s32.totalorder %v848, %v4378
        %vm4523 = vcmp.eq.s32.totalorder %v848, %v4381
        %vm4524 = vcmp.eq.s32.totalorder %v848, %v4384
        %vm4525 = vcmp.eq.s32.totalorder %v848, %v4387
        %vm4526 = vcmp.eq.s32.totalorder %v848, %v4390
        %vm4527 = vcmp.eq.s32.totalorder %v848, %v4393
        %vm4528 = vcmp.eq.s32.totalorder %v848, %v4396
        %vm4529 = vcmp.eq.s32.totalorder %v848, %v4399
        %vm4530 = vcmp.eq.s32.totalorder %v848, %v4402
        %vm4531 = vcmp.eq.s32.totalorder %v848, %v4405
        %vm4532 = vcmp.eq.s32.totalorder %v848, %v4408
        %vm4533 = vcmp.eq.s32.totalorder %v848, %v4411
        %vm4534 = vcmp.eq.s32.totalorder %v848, %v4414
        %vm4535 = vcmp.eq.s32.totalorder %v848, %v4417
        %vm4536 = vcmp.eq.s32.totalorder %v848, %v4420
        %vm4537 = vcmp.eq.s32.totalorder %v848, %v4423
        %vm4538 = vcmp.eq.s32.totalorder %v848, %v4426
        %vm4539 = vcmp.eq.s32.totalorder %v848, %v4429
        %vm4540 = vcmp.eq.s32.totalorder %v848, %v4432
        %vm4541 = vcmp.eq.s32.totalorder %v848, %v4435
        %vm4542 = vcmp.eq.s32.totalorder %v848, %v4438
        %vm4543 = vcmp.eq.s32.totalorder %v848, %v4441
        %vm4544 = vcmp.eq.s32.totalorder %v848, %v4444
        %vm4545 = vcmp.eq.s32.totalorder %v848, %v4447
        %vm4546 = vcmp.eq.s32.totalorder %v848, %v4450
        %vm4547 = vcmp.eq.s32.totalorder %v848, %v4453
        %vm4548 = vcmp.eq.s32.totalorder %v848, %v4456
        %vm4549 = vcmp.eq.s32.totalorder %v848, %v4459
        %vm4550 = vcmp.eq.s32.totalorder %v848, %v4462
        %vm4551 = vcmp.eq.s32.totalorder %v848, %v4465
        %vm4552 = vcmp.eq.s32.totalorder %v848, %v4468
        %vm4553 = vcmp.eq.s32.totalorder %v848, %v4471
        %vm4554 = vcmp.eq.s32.totalorder %v848, %v4474
        %vm4555 = vcmp.eq.s32.totalorder %v848, %v4477
        %vm4556 = vcmp.eq.s32.totalorder %v848, %v4480
        %vm4557 = vcmp.eq.s32.totalorder %v848, %v4483
        %vm4558 = vcmp.eq.s32.totalorder %v848, %v4486
        %vm4559 = vcmp.eq.s32.totalorder %v848, %v4489
        %vm4560 = vcmp.eq.s32.totalorder %v848, %v4492
        %vm4561 = vcmp.eq.s32.totalorder %v848, %v4495
        %vm4562 = vcmp.eq.s32.totalorder %v848, %v4498
        %v4563 = vsel %vm4499, 1, 0
        %v4564 = vsel %vm4500, 1, 0
        %v4565 = vsel %vm4501, 1, 0
        %v4566 = vsel %vm4502, 1, 0
        %v4567 = vsel %vm4503, 1, 0
        %v4568 = vsel %vm4504, 1, 0
        %v4569 = vsel %vm4505, 1, 0
        %v4570 = vsel %vm4506, 1, 0
        %v4571 = vsel %vm4507, 1, 0
        %v4572 = vsel %vm4508, 1, 0
        %v4573 = vsel %vm4509, 1, 0
        %v4574 = vsel %vm4510, 1, 0
        %v4575 = vsel %vm4511, 1, 0
        %v4576 = vsel %vm4512, 1, 0
        %v4577 = vsel %vm4513, 1, 0
        %v4578 = vsel %vm4514, 1, 0
        %v4579 = vsel %vm4515, 1, 0
        %v4580 = vsel %vm4516, 1, 0
        %v4581 = vsel %vm4517, 1, 0
        %v4582 = vsel %vm4518, 1, 0
        %v4583 = vsel %vm4519, 1, 0
        %v4584 = vsel %vm4520, 1, 0
        %v4585 = vsel %vm4521, 1, 0
        %v4586 = vsel %vm4522, 1, 0
        %v4587 = vsel %vm4523, 1, 0
        %v4588 = vsel %vm4524, 1, 0
        %v4589 = vsel %vm4525, 1, 0
        %v4590 = vsel %vm4526, 1, 0
        %v4591 = vsel %vm4527, 1, 0
        %v4592 = vsel %vm4528, 1, 0
        %v4593 = vsel %vm4529, 1, 0
        %v4594 = vsel %vm4530, 1, 0
        %v4595 = vsel %vm4531, 1, 0
        %v4596 = vsel %vm4532, 1, 0
        %v4597 = vsel %vm4533, 1, 0
        %v4598 = vsel %vm4534, 1, 0
        %v4599 = vsel %vm4535, 1, 0
        %v4600 = vsel %vm4536, 1, 0
        %v4601 = vsel %vm4537, 1, 0
        %v4602 = vsel %vm4538, 1, 0
        %v4603 = vsel %vm4539, 1, 0
        %v4604 = vsel %vm4540, 1, 0
        %v4605 = vsel %vm4541, 1, 0
        %v4606 = vsel %vm4542, 1, 0
        %v4607 = vsel %vm4543, 1, 0
        %v4608 = vsel %vm4544, 1, 0
        %v4609 = vsel %vm4545, 1, 0
        %v4610 = vsel %vm4546, 1, 0
        %v4611 = vsel %vm4547, 1, 0
        %v4612 = vsel %vm4548, 1, 0
        %v4613 = vsel %vm4549, 1, 0
        %v4614 = vsel %vm4550, 1, 0
        %v4615 = vsel %vm4551, 1, 0
        %v4616 = vsel %vm4552, 1, 0
        %v4617 = vsel %vm4553, 1, 0
        %v4618 = vsel %vm4554, 1, 0
        %v4619 = vsel %vm4555, 1, 0
        %v4620 = vsel %vm4556, 1, 0
        %v4621 = vsel %vm4557, 1, 0
        %v4622 = vsel %vm4558, 1, 0
        %v4623 = vsel %vm4559, 1, 0
        %v4624 = vsel %vm4560, 1, 0
        %v4625 = vsel %vm4561, 1, 0
        %v4626 = vsel %vm4562, 1, 0
        %v4627 = vcvt.s32.f32 %v4563
        %v4628 = vcvt.s32.f32 %v4564
        %v4629 = vcvt.s32.f32 %v4565
        %v4630 = vcvt.s32.f32 %v4566
        %v4631 = vcvt.s32.f32 %v4567
        %v4632 = vcvt.s32.f32 %v4568
        %v4633 = vcvt.s32.f32 %v4569
        %v4634 = vcvt.s32.f32 %v4570
        %v4635 = vcvt.s32.f32 %v4571
        %v4636 = vcvt.s32.f32 %v4572
        %v4637 = vcvt.s32.f32 %v4573
        %v4638 = vcvt.s32.f32 %v4574
        %v4639 = vcvt.s32.f32 %v4575
        %v4640 = vcvt.s32.f32 %v4576
        %v4641 = vcvt.s32.f32 %v4577
        %v4642 = vcvt.s32.f32 %v4578
        %v4643 = vcvt.s32.f32 %v4579
        %v4644 = vcvt.s32.f32 %v4580
        %v4645 = vcvt.s32.f32 %v4581
        %v4646 = vcvt.s32.f32 %v4582
        %v4647 = vcvt.s32.f32 %v4583
        %v4648 = vcvt.s32.f32 %v4584
        %v4649 = vcvt.s32.f32 %v4585
        %v4650 = vcvt.s32.f32 %v4586
        %v4651 = vcvt.s32.f32 %v4587
        %v4652 = vcvt.s32.f32 %v4588
        %v4653 = vcvt.s32.f32 %v4589
        %v4654 = vcvt.s32.f32 %v4590
        %v4655 = vcvt.s32.f32 %v4591
        %v4656 = vcvt.s32.f32 %v4592
        %v4657 = vcvt.s32.f32 %v4593
        %v4658 = vcvt.s32.f32 %v4594
        %v4659 = vcvt.s32.f32 %v4595
        %v4660 = vcvt.s32.f32 %v4596
        %v4661 = vcvt.s32.f32 %v4597
        %v4662 = vcvt.s32.f32 %v4598
        %v4663 = vcvt.s32.f32 %v4599
        %v4664 = vcvt.s32.f32 %v4600
        %v4665 = vcvt.s32.f32 %v4601
        %v4666 = vcvt.s32.f32 %v4602
        %v4667 = vcvt.s32.f32 %v4603
        %v4668 = vcvt.s32.f32 %v4604
        %v4669 = vcvt.s32.f32 %v4605
        %v4670 = vcvt.s32.f32 %v4606
        %v4671 = vcvt.s32.f32 %v4607
        %v4672 = vcvt.s32.f32 %v4608
        %v4673 = vcvt.s32.f32 %v4609
        %v4674 = vcvt.s32.f32 %v4610
        %v4675 = vcvt.s32.f32 %v4611
        %v4676 = vcvt.s32.f32 %v4612
        %v4677 = vcvt.s32.f32 %v4613
        %v4678 = vcvt.s32.f32 %v4614
        %v4679 = vcvt.s32.f32 %v4615
        %v4680 = vcvt.s32.f32 %v4616
        %v4681 = vcvt.s32.f32 %v4617
        %v4682 = vcvt.s32.f32 %v4618
        %v4683 = vcvt.s32.f32 %v4619
        %v4684 = vcvt.s32.f32 %v4620
        %v4685 = vcvt.s32.f32 %v4621
        %v4686 = vcvt.s32.f32 %v4622
        %v4687 = vcvt.s32.f32 %v4623
        %v4688 = vcvt.s32.f32 %v4624
        %v4689 = vcvt.s32.f32 %v4625
        %v4690 = vcvt.s32.f32 %v4626
        %v4691 = vpack.c.bf16 %v4628, %v4627
        %v4692 = vpack.c.bf16 %v4630, %v4629
        %v4693 = vpack.c.bf16 %v4632, %v4631
        %v4694 = vpack.c.bf16 %v4634, %v4633
        %v4695 = vpack.c.bf16 %v4636, %v4635
        %v4696 = vpack.c.bf16 %v4638, %v4637
        %v4697 = vpack.c.bf16 %v4640, %v4639
        %v4698 = vpack.c.bf16 %v4642, %v4641
        %v4699 = vpack.c.bf16 %v4644, %v4643
        %v4700 = vpack.c.bf16 %v4646, %v4645
        %v4701 = vpack.c.bf16 %v4648, %v4647
        %v4702 = vpack.c.bf16 %v4650, %v4649
        %v4703 = vpack.c.bf16 %v4652, %v4651
        %v4704 = vpack.c.bf16 %v4654, %v4653
        %v4705 = vpack.c.bf16 %v4656, %v4655
        %v4706 = vpack.c.bf16 %v4658, %v4657
        %v4707 = vpack.c.bf16 %v4660, %v4659
        %v4708 = vpack.c.bf16 %v4662, %v4661
        %v4709 = vpack.c.bf16 %v4664, %v4663
        %v4710 = vpack.c.bf16 %v4666, %v4665
        %v4711 = vpack.c.bf16 %v4668, %v4667
        %v4712 = vpack.c.bf16 %v4670, %v4669
        %v4713 = vpack.c.bf16 %v4672, %v4671
        %v4714 = vpack.c.bf16 %v4674, %v4673
        %v4715 = vpack.c.bf16 %v4676, %v4675
        %v4716 = vpack.c.bf16 %v4678, %v4677
        %v4717 = vpack.c.bf16 %v4680, %v4679
        %v4718 = vpack.c.bf16 %v4682, %v4681
        %v4719 = vpack.c.bf16 %v4684, %v4683
        %v4720 = vpack.c.bf16 %v4686, %v4685
        %v4721 = vpack.c.bf16 %v4688, %v4687
        %v4722 = vpack.c.bf16 %v4690, %v4689
        %v4723 = vld [vmem:[%s2] sm:$0xff]
        %v4724 = vld [vmem:[%s2 + $0x8] sm:$0xf]
        %v4725 = vld [vmem:[%s2 + $0xc] sm:$0xff]
        %v4726 = vld [vmem:[%s2 + $0x14] sm:$0xf]
        %v4727 = vld [vmem:[%s2 + $0x18] sm:$0xff]
        %v4728 = vld [vmem:[%s2 + $0x20] sm:$0xf]
        %v4729 = vld [vmem:[%s2 + $0x24] sm:$0xff]
        %v4730 = vld [vmem:[%s2 + $0x2c] sm:$0xf]
        %v4731 = vld [vmem:[%s2 + $0x30] sm:$0xff]
        %v4732 = vld [vmem:[%s2 + $0x38] sm:$0xf]
        %v4733 = vld [vmem:[%s2 + $0x3c] sm:$0xff]
        %v4734 = vld [vmem:[%s2 + $0x44] sm:$0xf]
        %v4735 = vld [vmem:[%s2 + $0x48] sm:$0xff]
        %v4736 = vld [vmem:[%s2 + $0x50] sm:$0xf]
        %v4737 = vld [vmem:[%s2 + $0x54] sm:$0xff]
        %v4738 = vld [vmem:[%s2 + $0x5c] sm:$0xf]
        %v4739 = vld [vmem:[%s2 + $0x60] sm:$0xff]
        %v4740 = vld [vmem:[%s2 + $0x68] sm:$0xf]
        %v4741 = vld [vmem:[%s2 + $0x6c] sm:$0xff]
        %v4742 = vld [vmem:[%s2 + $0x74] sm:$0xf]
        %v4743 = vld [vmem:[%s2 + $0x78] sm:$0xff]
        %v4744 = vld [vmem:[%s2 + $0x80] sm:$0xf]
        %v4745 = vld [vmem:[%s2 + $0x84] sm:$0xff]
        %v4746 = vld [vmem:[%s2 + $0x8c] sm:$0xf]
        %v4747 = vld [vmem:[%s2 + $0x90] sm:$0xff]
        %v4748 = vld [vmem:[%s2 + $0x98] sm:$0xf]
        %v4749 = vld [vmem:[%s2 + $0x9c] sm:$0xff]
        %v4750 = vld [vmem:[%s2 + $0xa4] sm:$0xf]
        %v4751 = vld [vmem:[%s2 + $0xa8] sm:$0xff]
        %v4752 = vld [vmem:[%s2 + $0xb0] sm:$0xf]
        %v4753 = vld [vmem:[%s2 + $0xb4] sm:$0xff]
        %v4754 = vld [vmem:[%s2 + $0xbc] sm:$0xf]
        %v4755 = vld [vmem:[%s2 + $0xc0] sm:$0xff]
        %v4756 = vld [vmem:[%s2 + $0xc8] sm:$0xf]
        %v4757 = vld [vmem:[%s2 + $0xcc] sm:$0xff]
        %v4758 = vld [vmem:[%s2 + $0xd4] sm:$0xf]
        %v4759 = vld [vmem:[%s2 + $0xd8] sm:$0xff]
        %v4760 = vld [vmem:[%s2 + $0xe0] sm:$0xf]
        %v4761 = vld [vmem:[%s2 + $0xe4] sm:$0xff]
        %v4762 = vld [vmem:[%s2 + $0xec] sm:$0xf]
        %v4763 = vld [vmem:[%s2 + $0xf0] sm:$0xff]
        %v4764 = vld [vmem:[%s2 + $0xf8] sm:$0xf]
        %v4765 = vld [vmem:[%s2 + $0xfc] sm:$0xff]
        %v4766 = vld [vmem:[%s2 + $0x104] sm:$0xf]
        %v4767 = vld [vmem:[%s2 + $0x108] sm:$0xff]
        %v4768 = vld [vmem:[%s2 + $0x110] sm:$0xf]
        %v4769 = vld [vmem:[%s2 + $0x114] sm:$0xff]
        %v4770 = vld [vmem:[%s2 + $0x11c] sm:$0xf]
        %v4771 = vld [vmem:[%s2 + $0x120] sm:$0xff]
        %v4772 = vld [vmem:[%s2 + $0x128] sm:$0xf]
        %v4773 = vld [vmem:[%s2 + $0x12c] sm:$0xff]
        %v4774 = vld [vmem:[%s2 + $0x134] sm:$0xf]
        %v4775 = vld [vmem:[%s2 + $0x138] sm:$0xff]
        %v4776 = vld [vmem:[%s2 + $0x140] sm:$0xf]
        %v4777 = vld [vmem:[%s2 + $0x144] sm:$0xff]
        %v4778 = vld [vmem:[%s2 + $0x14c] sm:$0xf]
        %v4779 = vld [vmem:[%s2 + $0x150] sm:$0xff]
        %v4780 = vld [vmem:[%s2 + $0x158] sm:$0xf]
        %v4781 = vld [vmem:[%s2 + $0x15c] sm:$0xff]
        %v4782 = vld [vmem:[%s2 + $0x164] sm:$0xf]
        %v4783 = vld [vmem:[%s2 + $0x168] sm:$0xff]
        %v4784 = vld [vmem:[%s2 + $0x170] sm:$0xf]
        %v4785 = vld [vmem:[%s2 + $0x174] sm:$0xff]
        %v4786 = vld [vmem:[%s2 + $0x17c] sm:$0xf]
        %v4787 = vld [vmem:[%s2 + $0x180] sm:$0xff]
        %v4788 = vld [vmem:[%s2 + $0x188] sm:$0xf]
        %v4789 = vld [vmem:[%s2 + $0x18c] sm:$0xff]
        %v4790 = vld [vmem:[%s2 + $0x194] sm:$0xf]
        %v4791 = vld [vmem:[%s2 + $0x198] sm:$0xff]
        %v4792 = vld [vmem:[%s2 + $0x1a0] sm:$0xf]
        %v4793 = vld [vmem:[%s2 + $0x1a4] sm:$0xff]
        %v4794 = vld [vmem:[%s2 + $0x1ac] sm:$0xf]
        %v4795 = vld [vmem:[%s2 + $0x1b0] sm:$0xff]
        %v4796 = vld [vmem:[%s2 + $0x1b8] sm:$0xf]
        %v4797 = vld [vmem:[%s2 + $0x1bc] sm:$0xff]
        %v4798 = vld [vmem:[%s2 + $0x1c4] sm:$0xf]
        %v4799 = vld [vmem:[%s2 + $0x1c8] sm:$0xff]
        %v4800 = vld [vmem:[%s2 + $0x1d0] sm:$0xf]
        %v4801 = vld [vmem:[%s2 + $0x1d4] sm:$0xff]
        %v4802 = vld [vmem:[%s2 + $0x1dc] sm:$0xf]
        %v4803 = vld [vmem:[%s2 + $0x1e0] sm:$0xff]
        %v4804 = vld [vmem:[%s2 + $0x1e8] sm:$0xf]
        %v4805 = vld [vmem:[%s2 + $0x1ec] sm:$0xff]
        %v4806 = vld [vmem:[%s2 + $0x1f4] sm:$0xf]
        %v4807 = vld [vmem:[%s2 + $0x1f8] sm:$0xff]
        %v4808 = vld [vmem:[%s2 + $0x200] sm:$0xf]
        %v4809 = vld [vmem:[%s2 + $0x204] sm:$0xff]
        %v4810 = vld [vmem:[%s2 + $0x20c] sm:$0xf]
        %v4811 = vld [vmem:[%s2 + $0x210] sm:$0xff]
        %v4812 = vld [vmem:[%s2 + $0x218] sm:$0xf]
        %v4813 = vld [vmem:[%s2 + $0x21c] sm:$0xff]
        %v4814 = vld [vmem:[%s2 + $0x224] sm:$0xf]
        %v4815 = vld [vmem:[%s2 + $0x228] sm:$0xff]
        %v4816 = vld [vmem:[%s2 + $0x230] sm:$0xf]
        %v4817 = vld [vmem:[%s2 + $0x234] sm:$0xff]
        %v4818 = vld [vmem:[%s2 + $0x23c] sm:$0xf]
        %v4851 = vunpack.c.l.b16 %v4787
        %v4852 = vunpack.c.h.b16 %v4787
        %v4853 = vunpack.c.l.b16 %v4788
        %v4854 = vunpack.c.l.b16 %v4789
        %v4855 = vunpack.c.h.b16 %v4789
        %v4856 = vunpack.c.l.b16 %v4790
        %v4857 = vunpack.c.l.b16 %v4791
        %v4858 = vunpack.c.h.b16 %v4791
        %v4859 = vunpack.c.l.b16 %v4792
        %v4860 = vunpack.c.l.b16 %v4793
        %v4861 = vunpack.c.h.b16 %v4793
        %v4862 = vunpack.c.l.b16 %v4794
        %v4863 = vunpack.c.l.b16 %v4795
        %v4864 = vunpack.c.h.b16 %v4795
        %v4865 = vunpack.c.l.b16 %v4796
        %v4866 = vunpack.c.l.b16 %v4797
        %v4867 = vunpack.c.h.b16 %v4797
        %v4868 = vunpack.c.l.b16 %v4798
        %v4869 = vunpack.c.l.b16 %v4799
        %v4870 = vunpack.c.h.b16 %v4799
        %v4871 = vunpack.c.l.b16 %v4800
        %v4872 = vunpack.c.l.b16 %v4801
        %v4873 = vunpack.c.h.b16 %v4801
        %v4874 = vunpack.c.l.b16 %v4802
        %v4875 = vunpack.c.l.b16 %v4803
        %v4876 = vunpack.c.h.b16 %v4803
        %v4877 = vunpack.c.l.b16 %v4804
        %v4878 = vunpack.c.l.b16 %v4805
        %v4879 = vunpack.c.h.b16 %v4805
        %v4880 = vunpack.c.l.b16 %v4806
        %v4881 = vunpack.c.l.b16 %v4807
        %v4882 = vunpack.c.h.b16 %v4807
        %v4883 = vunpack.c.l.b16 %v4808
        %v4884 = vunpack.c.l.b16 %v4809
        %v4885 = vunpack.c.h.b16 %v4809
        %v4886 = vunpack.c.l.b16 %v4810
        %v4887 = vunpack.c.l.b16 %v4811
        %v4888 = vunpack.c.h.b16 %v4811
        %v4889 = vunpack.c.l.b16 %v4812
        %v4890 = vunpack.c.l.b16 %v4813
        %v4891 = vunpack.c.h.b16 %v4813
        %v4892 = vunpack.c.l.b16 %v4814
        %v4893 = vunpack.c.l.b16 %v4815
        %v4894 = vunpack.c.h.b16 %v4815
        %v4895 = vunpack.c.l.b16 %v4816
        %v4896 = vunpack.c.l.b16 %v4817
        %v4897 = vunpack.c.h.b16 %v4817
        %v4898 = vunpack.c.l.b16 %v4818
        %v4899 = vpack.c.b16 %v4854, %v4851
        %v4900 = vpack.c.b16 %v4855, %v4852
        %v4901 = vpack.c.b16 %v4856, %v4853
        %v4902 = vpack.c.b16 %v4860, %v4857
        %v4903 = vpack.c.b16 %v4861, %v4858
        %v4904 = vpack.c.b16 %v4862, %v4859
        %v4905 = vpack.c.b16 %v4866, %v4863
        %v4906 = vpack.c.b16 %v4867, %v4864
        %v4907 = vpack.c.b16 %v4868, %v4865
        %v4908 = vpack.c.b16 %v4872, %v4869
        %v4909 = vpack.c.b16 %v4873, %v4870
        %v4910 = vpack.c.b16 %v4874, %v4871
        %v4911 = vpack.c.b16 %v4878, %v4875
        %v4912 = vpack.c.b16 %v4879, %v4876
        %v4913 = vpack.c.b16 %v4880, %v4877
        %v4914 = vpack.c.b16 %v4884, %v4881
        %v4915 = vpack.c.b16 %v4885, %v4882
        %v4916 = vpack.c.b16 %v4886, %v4883
        %v4917 = vpack.c.b16 %v4890, %v4887
        %v4918 = vpack.c.b16 %v4891, %v4888
        %v4919 = vpack.c.b16 %v4892, %v4889
        %v4920 = vpack.c.b16 %v4896, %v4893
        %v4921 = vpack.c.b16 %v4897, %v4894
        %v4922 = vpack.c.b16 %v4898, %v4895
        %4947 = vmatprep.subr.bf16.mxu0 %v4900
        %4948 = vmatpush1.bf16.msra.mxu0 %v4899
        %4949 = vmatprep.subr.bf16.mxu0 %v4903
        %4950 = vmatpush1.bf16.msra.mxu0 %v4902
        %4951 = vmatprep.subr.bf16.mxu0 %v4906
        %4952 = vmatpush1.bf16.msra.mxu0 %v4905
        %4953 = vmatprep.subr.bf16.mxu0 %v4909
        %4954 = vmatpush1.bf16.msra.mxu0 %v4908
        %4955 = vmatprep.subr.bf16.mxu0 %v4912
        %4956 = vmatpush1.bf16.msra.mxu0 %v4911
        %4957 = vmatprep.subr.bf16.mxu0 %v4915
        %4958 = vmatpush1.bf16.msra.mxu0 %v4914
        %4959 = vmatprep.subr.bf16.mxu0 %v4918
        %4960 = vmatpush1.bf16.msra.mxu0 %v4917
        %4961 = vmatprep.subr.bf16.mxu0 %v4921
        %4962 = vmatpush1.bf16.msra.mxu0 %v4920
        %4963 = vmatprep.subr.bf16.mxu0 0
        %4964 = vmatpush1.bf16.msra.mxu0 0
        %4965 = vmatprep.subr.bf16.mxu0 0
        %4966 = vmatpush1.bf16.msra.mxu0 0
        %4967 = vmatprep.subr.bf16.mxu0 0
        %4968 = vmatpush1.bf16.msra.mxu0 0
        %4969 = vmatprep.subr.bf16.mxu0 0
        %4970 = vmatpush1.bf16.msra.mxu0 0
        %4971 = vmatprep.subr.bf16.mxu0 0
        %4972 = vmatpush1.bf16.msra.mxu0 0
        %4973 = vmatprep.subr.bf16.mxu0 0
        %4974 = vmatpush1.bf16.msra.mxu0 0
        %4975 = vmatprep.subr.bf16.mxu0 0
        %4976 = vmatpush1.bf16.msra.mxu0 0
        %4977 = vmatprep.subr.bf16.mxu0 0
        %4978 = vmatpush1.bf16.msra.mxu0 0
        %4979 = vmatprep.mubr.bf16.mxu0 0
        %4980 = vmatmul.mubr.bf16.gmra.mrb[0].mxu0 %v3346
        %v4981 = vpop.f32.mrb[0].mxu0
        %v4982 = vadd.f32 0.0, %v4981
        %v4983 = vpop.f32.mrb[0].mxu0
        %v4984 = vadd.f32 0.0, %v4983
        %v4985 = vpop.f32.mrb[0].mxu0
        %v4986 = vadd.f32 0.0, %v4985
        %v4987 = vpop.f32.mrb[0].mxu0
        %v4988 = vadd.f32 0.0, %v4987
        %4989 = vmatprep.mubr.bf16.mxu0 0
        %4990 = vmatmul.mubr.bf16.gmra.mrb[0].mxu0 %v3347
        %v4991 = vpop.f32.mrb[0].mxu0
        %v4992 = vadd.f32 0.0, %v4991
        %v4993 = vpop.f32.mrb[0].mxu0
        %v4994 = vadd.f32 0.0, %v4993
        %v4995 = vpop.f32.mrb[0].mxu0
        %v4996 = vadd.f32 0.0, %v4995
        %v4997 = vpop.f32.mrb[0].mxu0
        %v4998 = vadd.f32 0.0, %v4997
        %4999 = vmatprep.mubr.bf16.mxu0 0
        %5000 = vmatmul.mubr.bf16.gmra.mrb[0].mxu0 %v3348
        %v5001 = vpop.f32.mrb[0].mxu0
        %v5002 = vadd.f32 0.0, %v5001
        %v5003 = vpop.f32.mrb[0].mxu0
        %v5004 = vadd.f32 0.0, %v5003
        %v5005 = vpop.f32.mrb[0].mxu0
        %v5006 = vadd.f32 0.0, %v5005
        %v5007 = vpop.f32.mrb[0].mxu0
        %v5008 = vadd.f32 0.0, %v5007
        %5009 = vmatprep.mubr.bf16.mxu0 0
        %5010 = vmatmul.mubr.bf16.gmra.mrb[0].mxu0 %v3349
        %v5011 = vpop.f32.mrb[0].mxu0
        %v5012 = vadd.f32 0.0, %v5011
        %v5013 = vpop.f32.mrb[0].mxu0
        %v5014 = vadd.f32 0.0, %v5013
        %v5015 = vpop.f32.mrb[0].mxu0
        %v5016 = vadd.f32 0.0, %v5015
        %v5017 = vpop.f32.mrb[0].mxu0
        %v5018 = vadd.f32 0.0, %v5017
        %5019 = vmatprep.mubr.bf16.mxu0 0
        %5020 = vmatmul.mubr.bf16.gmra.mrb[0].mxu0 %v3350
        %v5021 = vpop.f32.mrb[0].mxu0
        %v5022 = vadd.f32 0.0, %v5021
        %v5023 = vpop.f32.mrb[0].mxu0
        %v5024 = vadd.f32 0.0, %v5023
        %v5025 = vpop.f32.mrb[0].mxu0
        %v5026 = vadd.f32 0.0, %v5025
        %v5027 = vpop.f32.mrb[0].mxu0
        %v5028 = vadd.f32 0.0, %v5027
        %5029 = vmatprep.mubr.bf16.mxu0 0
        %5030 = vmatmul.mubr.bf16.gmra.mrb[0].mxu0 %v3351
        %v5031 = vpop.f32.mrb[0].mxu0
        %v5032 = vadd.f32 0.0, %v5031
        %v5033 = vpop.f32.mrb[0].mxu0
        %v5034 = vadd.f32 0.0, %v5033
        %v5035 = vpop.f32.mrb[0].mxu0
        %v5036 = vadd.f32 0.0, %v5035
        %v5037 = vpop.f32.mrb[0].mxu0
        %v5038 = vadd.f32 0.0, %v5037
        %5039 = vmatprep.mubr.bf16.mxu0 0
        %5040 = vmatmul.mubr.bf16.gmra.mrb[0].mxu0 %v3352
        %v5041 = vpop.f32.mrb[0].mxu0
        %v5042 = vadd.f32 0.0, %v5041
        %v5043 = vpop.f32.mrb[0].mxu0
        %v5044 = vadd.f32 0.0, %v5043
        %v5045 = vpop.f32.mrb[0].mxu0
        %v5046 = vadd.f32 0.0, %v5045
        %v5047 = vpop.f32.mrb[0].mxu0
        %v5048 = vadd.f32 0.0, %v5047
        %5049 = vmatprep.mubr.bf16.mxu0 0
        %5050 = vmatmul.mubr.bf16.gmra.mrb[0].mxu0 %v3353
        %v5051 = vpop.f32.mrb[0].mxu0
        %v5052 = vadd.f32 0.0, %v5051
        %v5053 = vpop.f32.mrb[0].mxu0
        %v5054 = vadd.f32 0.0, %v5053
        %v5055 = vpop.f32.mrb[0].mxu0
        %v5056 = vadd.f32 0.0, %v5055
        %v5057 = vpop.f32.mrb[0].mxu0
        %v5058 = vadd.f32 0.0, %v5057
        %5059 = vmatprep.mubr.bf16.mxu0 0
        %5060 = vmatmul.mubr.bf16.gmra.mrb[0].mxu0 %v3354
        %v5061 = vpop.f32.mrb[0].mxu0
        %v5062 = vadd.f32 0.0, %v5061
        %v5063 = vpop.f32.mrb[0].mxu0
        %v5064 = vadd.f32 0.0, %v5063
        %v5065 = vpop.f32.mrb[0].mxu0
        %v5066 = vadd.f32 0.0, %v5065
        %v5067 = vpop.f32.mrb[0].mxu0
        %v5068 = vadd.f32 0.0, %v5067
        %5069 = vmatprep.mubr.bf16.mxu0 0
        %5070 = vmatmul.mubr.bf16.gmra.mrb[0].mxu0 %v3355
        %v5071 = vpop.f32.mrb[0].mxu0
        %v5072 = vadd.f32 0.0, %v5071
        %v5073 = vpop.f32.mrb[0].mxu0
        %v5074 = vadd.f32 0.0, %v5073
        %v5075 = vpop.f32.mrb[0].mxu0
        %v5076 = vadd.f32 0.0, %v5075
        %v5077 = vpop.f32.mrb[0].mxu0
        %v5078 = vadd.f32 0.0, %v5077
        %5079 = vmatprep.mubr.bf16.mxu0 0
        %5080 = vmatmul.mubr.bf16.gmra.mrb[0].mxu0 %v3356
        %v5081 = vpop.f32.mrb[0].mxu0
        %v5082 = vadd.f32 0.0, %v5081
        %v5083 = vpop.f32.mrb[0].mxu0
        %v5084 = vadd.f32 0.0, %v5083
        %v5085 = vpop.f32.mrb[0].mxu0
        %v5086 = vadd.f32 0.0, %v5085
        %v5087 = vpop.f32.mrb[0].mxu0
        %v5088 = vadd.f32 0.0, %v5087
        %5089 = vmatprep.mubr.bf16.mxu0 0
        %5090 = vmatmul.mubr.bf16.gmra.mrb[0].mxu0 %v3357
        %v5091 = vpop.f32.mrb[0].mxu0
        %v5092 = vadd.f32 0.0, %v5091
        %v5093 = vpop.f32.mrb[0].mxu0
        %v5094 = vadd.f32 0.0, %v5093
        %v5095 = vpop.f32.mrb[0].mxu0
        %v5096 = vadd.f32 0.0, %v5095
        %v5097 = vpop.f32.mrb[0].mxu0
        %v5098 = vadd.f32 0.0, %v5097
        %5099 = vmatprep.mubr.bf16.mxu0 0
        %5100 = vmatmul.mubr.bf16.gmra.mrb[0].mxu0 %v3358
        %v5101 = vpop.f32.mrb[0].mxu0
        %v5102 = vadd.f32 0.0, %v5101
        %v5103 = vpop.f32.mrb[0].mxu0
        %v5104 = vadd.f32 0.0, %v5103
        %v5105 = vpop.f32.mrb[0].mxu0
        %v5106 = vadd.f32 0.0, %v5105
        %v5107 = vpop.f32.mrb[0].mxu0
        %v5108 = vadd.f32 0.0, %v5107
        %5109 = vmatprep.mubr.bf16.mxu0 0
        %5110 = vmatmul.mubr.bf16.gmra.mrb[0].mxu0 %v3359
        %v5111 = vpop.f32.mrb[0].mxu0
        %v5112 = vadd.f32 0.0, %v5111
        %v5113 = vpop.f32.mrb[0].mxu0
        %v5114 = vadd.f32 0.0, %v5113
        %v5115 = vpop.f32.mrb[0].mxu0
        %v5116 = vadd.f32 0.0, %v5115
        %v5117 = vpop.f32.mrb[0].mxu0
        %v5118 = vadd.f32 0.0, %v5117
        %5119 = vmatprep.mubr.bf16.mxu0 0
        %5120 = vmatmul.mubr.bf16.gmra.mrb[0].mxu0 %v3360
        %v5121 = vpop.f32.mrb[0].mxu0
        %v5122 = vadd.f32 0.0, %v5121
        %v5123 = vpop.f32.mrb[0].mxu0
        %v5124 = vadd.f32 0.0, %v5123
        %v5125 = vpop.f32.mrb[0].mxu0
        %v5126 = vadd.f32 0.0, %v5125
        %v5127 = vpop.f32.mrb[0].mxu0
        %v5128 = vadd.f32 0.0, %v5127
        %5129 = vmatprep.mubr.bf16.mxu0 0
        %5130 = vmatmul.mubr.bf16.gmra.mrb[0].mxu0 %v3361
        %v5131 = vpop.f32.mrb[0].mxu0
        %v5132 = vadd.f32 0.0, %v5131
        %v5133 = vpop.f32.mrb[0].mxu0
        %v5134 = vadd.f32 0.0, %v5133
        %v5135 = vpop.f32.mrb[0].mxu0
        %v5136 = vadd.f32 0.0, %v5135
        %v5137 = vpop.f32.mrb[0].mxu0
        %v5138 = vadd.f32 0.0, %v5137
        %5139 = vmatprep.mubr.bf16.mxu0 0
        %5140 = vmatmul.mubr.bf16.gmra.mrb[0].mxu0 %v3362
        %v5141 = vpop.f32.mrb[0].mxu0
        %v5142 = vadd.f32 0.0, %v5141
        %v5143 = vpop.f32.mrb[0].mxu0
        %v5144 = vadd.f32 0.0, %v5143
        %v5145 = vpop.f32.mrb[0].mxu0
        %v5146 = vadd.f32 0.0, %v5145
        %v5147 = vpop.f32.mrb[0].mxu0
        %v5148 = vadd.f32 0.0, %v5147
        %5149 = vmatprep.mubr.bf16.mxu0 0
        %5150 = vmatmul.mubr.bf16.gmra.mrb[0].mxu0 %v3363
        %v5151 = vpop.f32.mrb[0].mxu0
        %v5152 = vadd.f32 0.0, %v5151
        %v5153 = vpop.f32.mrb[0].mxu0
        %v5154 = vadd.f32 0.0, %v5153
        %v5155 = vpop.f32.mrb[0].mxu0
        %v5156 = vadd.f32 0.0, %v5155
        %v5157 = vpop.f32.mrb[0].mxu0
        %v5158 = vadd.f32 0.0, %v5157
        %5159 = vmatprep.mubr.bf16.mxu0 0
        %5160 = vmatmul.mubr.bf16.gmra.mrb[0].mxu0 %v3364
        %v5161 = vpop.f32.mrb[0].mxu0
        %v5162 = vadd.f32 0.0, %v5161
        %v5163 = vpop.f32.mrb[0].mxu0
        %v5164 = vadd.f32 0.0, %v5163
        %v5165 = vpop.f32.mrb[0].mxu0
        %v5166 = vadd.f32 0.0, %v5165
        %v5167 = vpop.f32.mrb[0].mxu0
        %v5168 = vadd.f32 0.0, %v5167
        %5169 = vmatprep.mubr.bf16.mxu0 0
        %5170 = vmatmul.mubr.bf16.gmra.mrb[0].mxu0 %v3365
        %v5171 = vpop.f32.mrb[0].mxu0
        %v5172 = vadd.f32 0.0, %v5171
        %v5173 = vpop.f32.mrb[0].mxu0
        %v5174 = vadd.f32 0.0, %v5173
        %v5175 = vpop.f32.mrb[0].mxu0
        %v5176 = vadd.f32 0.0, %v5175
        %v5177 = vpop.f32.mrb[0].mxu0
        %v5178 = vadd.f32 0.0, %v5177
        %5179 = vmatprep.mubr.bf16.mxu0 0
        %5180 = vmatmul.mubr.bf16.gmra.mrb[0].mxu0 %v3366
        %v5181 = vpop.f32.mrb[0].mxu0
        %v5182 = vadd.f32 0.0, %v5181
        %v5183 = vpop.f32.mrb[0].mxu0
        %v5184 = vadd.f32 0.0, %v5183
        %v5185 = vpop.f32.mrb[0].mxu0
        %v5186 = vadd.f32 0.0, %v5185
        %v5187 = vpop.f32.mrb[0].mxu0
        %v5188 = vadd.f32 0.0, %v5187
        %5189 = vmatprep.mubr.bf16.mxu0 0
        %5190 = vmatmul.mubr.bf16.gmra.mrb[0].mxu0 %v3367
        %v5191 = vpop.f32.mrb[0].mxu0
        %v5192 = vadd.f32 0.0, %v5191
        %v5193 = vpop.f32.mrb[0].mxu0
        %v5194 = vadd.f32 0.0, %v5193
        %v5195 = vpop.f32.mrb[0].mxu0
        %v5196 = vadd.f32 0.0, %v5195
        %v5197 = vpop.f32.mrb[0].mxu0
        %v5198 = vadd.f32 0.0, %v5197
        %5199 = vmatprep.mubr.bf16.mxu0 0
        %5200 = vmatmul.mubr.bf16.gmra.mrb[0].mxu0 %v3368
        %v5201 = vpop.f32.mrb[0].mxu0
        %v5202 = vadd.f32 0.0, %v5201
        %v5203 = vpop.f32.mrb[0].mxu0
        %v5204 = vadd.f32 0.0, %v5203
        %v5205 = vpop.f32.mrb[0].mxu0
        %v5206 = vadd.f32 0.0, %v5205
        %v5207 = vpop.f32.mrb[0].mxu0
        %v5208 = vadd.f32 0.0, %v5207
        %5209 = vmatprep.mubr.bf16.mxu0 0
        %5210 = vmatmul.mubr.bf16.gmra.mrb[0].mxu0 %v3369
        %v5211 = vpop.f32.mrb[0].mxu0
        %v5212 = vadd.f32 0.0, %v5211
        %v5213 = vpop.f32.mrb[0].mxu0
        %v5214 = vadd.f32 0.0, %v5213
        %v5215 = vpop.f32.mrb[0].mxu0
        %v5216 = vadd.f32 0.0, %v5215
        %v5217 = vpop.f32.mrb[0].mxu0
        %v5218 = vadd.f32 0.0, %v5217
        %5219 = vmatprep.mubr.bf16.mxu0 0
        %5220 = vmatmul.mubr.bf16.gmra.mrb[0].mxu0 %v3370
        %v5221 = vpop.f32.mrb[0].mxu0
        %v5222 = vadd.f32 0.0, %v5221
        %v5223 = vpop.f32.mrb[0].mxu0
        %v5224 = vadd.f32 0.0, %v5223
        %v5225 = vpop.f32.mrb[0].mxu0
        %v5226 = vadd.f32 0.0, %v5225
        %v5227 = vpop.f32.mrb[0].mxu0
        %v5228 = vadd.f32 0.0, %v5227
        %5229 = vmatprep.mubr.bf16.mxu0 0
        %5230 = vmatmul.mubr.bf16.gmra.mrb[0].mxu0 %v3371
        %v5231 = vpop.f32.mrb[0].mxu0
        %v5232 = vadd.f32 0.0, %v5231
        %v5233 = vpop.f32.mrb[0].mxu0
        %v5234 = vadd.f32 0.0, %v5233
        %v5235 = vpop.f32.mrb[0].mxu0
        %v5236 = vadd.f32 0.0, %v5235
        %v5237 = vpop.f32.mrb[0].mxu0
        %v5238 = vadd.f32 0.0, %v5237
        %5239 = vmatprep.mubr.bf16.mxu0 0
        %5240 = vmatmul.mubr.bf16.gmra.mrb[0].mxu0 %v3372
        %v5241 = vpop.f32.mrb[0].mxu0
        %v5242 = vadd.f32 0.0, %v5241
        %v5243 = vpop.f32.mrb[0].mxu0
        %v5244 = vadd.f32 0.0, %v5243
        %v5245 = vpop.f32.mrb[0].mxu0
        %v5246 = vadd.f32 0.0, %v5245
        %v5247 = vpop.f32.mrb[0].mxu0
        %v5248 = vadd.f32 0.0, %v5247
        %5249 = vmatprep.mubr.bf16.mxu0 0
        %5250 = vmatmul.mubr.bf16.gmra.mrb[0].mxu0 %v3373
        %v5251 = vpop.f32.mrb[0].mxu0
        %v5252 = vadd.f32 0.0, %v5251
        %v5253 = vpop.f32.mrb[0].mxu0
        %v5254 = vadd.f32 0.0, %v5253
        %v5255 = vpop.f32.mrb[0].mxu0
        %v5256 = vadd.f32 0.0, %v5255
        %v5257 = vpop.f32.mrb[0].mxu0
        %v5258 = vadd.f32 0.0, %v5257
        %5259 = vmatprep.mubr.bf16.mxu0 0
        %5260 = vmatmul.mubr.bf16.gmra.mrb[0].mxu0 %v3374
        %v5261 = vpop.f32.mrb[0].mxu0
        %v5262 = vadd.f32 0.0, %v5261
        %v5263 = vpop.f32.mrb[0].mxu0
        %v5264 = vadd.f32 0.0, %v5263
        %v5265 = vpop.f32.mrb[0].mxu0
        %v5266 = vadd.f32 0.0, %v5265
        %v5267 = vpop.f32.mrb[0].mxu0
        %v5268 = vadd.f32 0.0, %v5267
        %5269 = vmatprep.mubr.bf16.mxu0 0
        %5270 = vmatmul.mubr.bf16.gmra.mrb[0].mxu0 %v3375
        %v5271 = vpop.f32.mrb[0].mxu0
        %v5272 = vadd.f32 0.0, %v5271
        %v5273 = vpop.f32.mrb[0].mxu0
        %v5274 = vadd.f32 0.0, %v5273
        %v5275 = vpop.f32.mrb[0].mxu0
        %v5276 = vadd.f32 0.0, %v5275
        %v5277 = vpop.f32.mrb[0].mxu0
        %v5278 = vadd.f32 0.0, %v5277
        %5279 = vmatprep.mubr.bf16.mxu0 0
        %5280 = vmatmul.mubr.bf16.gmra.mrb[0].mxu0 %v3376
        %v5281 = vpop.f32.mrb[0].mxu0
        %v5282 = vadd.f32 0.0, %v5281
        %v5283 = vpop.f32.mrb[0].mxu0
        %v5284 = vadd.f32 0.0, %v5283
        %v5285 = vpop.f32.mrb[0].mxu0
        %v5286 = vadd.f32 0.0, %v5285
        %v5287 = vpop.f32.mrb[0].mxu0
        %v5288 = vadd.f32 0.0, %v5287
        %5289 = vmatprep.mubr.bf16.mxu0 0
        %5290 = vmatmul.mubr.bf16.gmra.mrb[0].mxu0 %v3377
        %v5291 = vpop.f32.mrb[0].mxu0
        %v5292 = vadd.f32 0.0, %v5291
        %v5293 = vpop.f32.mrb[0].mxu0
        %v5294 = vadd.f32 0.0, %v5293
        %v5295 = vpop.f32.mrb[0].mxu0
        %v5296 = vadd.f32 0.0, %v5295
        %v5297 = vpop.f32.mrb[0].mxu0
        %v5298 = vadd.f32 0.0, %v5297
        %5299 = vdwg.mxu0
        %5300 = vmatprep.subr.bf16.mxu0 0
        %5301 = vmatpush1.bf16.msra.mxu0 %v4901
        %5302 = vmatprep.subr.bf16.mxu0 0
        %5303 = vmatpush1.bf16.msra.mxu0 %v4904
        %5304 = vmatprep.subr.bf16.mxu0 0
        %5305 = vmatpush1.bf16.msra.mxu0 %v4907
        %5306 = vmatprep.subr.bf16.mxu0 0
        %5307 = vmatpush1.bf16.msra.mxu0 %v4910
        %5308 = vmatprep.subr.bf16.mxu0 0
        %5309 = vmatpush1.bf16.msra.mxu0 %v4913
        %5310 = vmatprep.subr.bf16.mxu0 0
        %5311 = vmatpush1.bf16.msra.mxu0 %v4916
        %5312 = vmatprep.subr.bf16.mxu0 0
        %5313 = vmatpush1.bf16.msra.mxu0 %v4919
        %5314 = vmatprep.subr.bf16.mxu0 0
        %5315 = vmatpush1.bf16.msra.mxu0 %v4922
        %5316 = vmatprep.subr.bf16.mxu0 0
        %5317 = vmatpush1.bf16.msra.mxu0 0
        %5318 = vmatprep.subr.bf16.mxu0 0
        %5319 = vmatpush1.bf16.msra.mxu0 0
        %5320 = vmatprep.subr.bf16.mxu0 0
        %5321 = vmatpush1.bf16.msra.mxu0 0
        %5322 = vmatprep.subr.bf16.mxu0 0
        %5323 = vmatpush1.bf16.msra.mxu0 0
        %5324 = vmatprep.subr.bf16.mxu0 0
        %5325 = vmatpush1.bf16.msra.mxu0 0
        %5326 = vmatprep.subr.bf16.mxu0 0
        %5327 = vmatpush1.bf16.msra.mxu0 0
        %5328 = vmatprep.subr.bf16.mxu0 0
        %5329 = vmatpush1.bf16.msra.mxu0 0
        %5330 = vmatprep.subr.bf16.mxu0 0
        %5331 = vmatpush1.bf16.msra.mxu0 0
        %5332 = vmatprep.mubr.bf16.mxu0 0
        %5333 = vmatmul.mubr.bf16.gmra.mrb[0].mxu0 %v3346
        %v5334 = vpop.f32.mrb[0].mxu0
        %v5335 = vadd.f32 0.0, %v5334
        %v5336 = vpop.f32.mrb[0].mxu0
        %v5337 = vpop.f32.mrb[0].mxu0
        %v5338 = vadd.f32 0.0, %v5337
        %v5339 = vpop.f32.mrb[0].mxu0
        %5340 = vmatprep.mubr.bf16.mxu0 0
        %5341 = vmatmul.mubr.bf16.gmra.mrb[0].mxu0 %v3347
        %v5342 = vpop.f32.mrb[0].mxu0
        %v5343 = vadd.f32 0.0, %v5342
        %v5344 = vpop.f32.mrb[0].mxu0
        %v5345 = vpop.f32.mrb[0].mxu0
        %v5346 = vadd.f32 0.0, %v5345
        %v5347 = vpop.f32.mrb[0].mxu0
        %5348 = vmatprep.mubr.bf16.mxu0 0
        %5349 = vmatmul.mubr.bf16.gmra.mrb[0].mxu0 %v3348
        %v5350 = vpop.f32.mrb[0].mxu0
        %v5351 = vadd.f32 0.0, %v5350
        %v5352 = vpop.f32.mrb[0].mxu0
        %v5353 = vpop.f32.mrb[0].mxu0
        %v5354 = vadd.f32 0.0, %v5353
        %v5355 = vpop.f32.mrb[0].mxu0
        %5356 = vmatprep.mubr.bf16.mxu0 0
        %5357 = vmatmul.mubr.bf16.gmra.mrb[0].mxu0 %v3349
        %v5358 = vpop.f32.mrb[0].mxu0
        %v5359 = vadd.f32 0.0, %v5358
        %v5360 = vpop.f32.mrb[0].mxu0
        %v5361 = vpop.f32.mrb[0].mxu0
        %v5362 = vadd.f32 0.0, %v5361
        %v5363 = vpop.f32.mrb[0].mxu0
        %5364 = vmatprep.mubr.bf16.mxu0 0
        %5365 = vmatmul.mubr.bf16.gmra.mrb[0].mxu0 %v3350
        %v5366 = vpop.f32.mrb[0].mxu0
        %v5367 = vadd.f32 0.0, %v5366
        %v5368 = vpop.f32.mrb[0].mxu0
        %v5369 = vpop.f32.mrb[0].mxu0
        %v5370 = vadd.f32 0.0, %v5369
        %v5371 = vpop.f32.mrb[0].mxu0
        %5372 = vmatprep.mubr.bf16.mxu0 0
        %5373 = vmatmul.mubr.bf16.gmra.mrb[0].mxu0 %v3351
        %v5374 = vpop.f32.mrb[0].mxu0
        %v5375 = vadd.f32 0.0, %v5374
        %v5376 = vpop.f32.mrb[0].mxu0
        %v5377 = vpop.f32.mrb[0].mxu0
        %v5378 = vadd.f32 0.0, %v5377
        %v5379 = vpop.f32.mrb[0].mxu0
        %5380 = vmatprep.mubr.bf16.mxu0 0
        %5381 = vmatmul.mubr.bf16.gmra.mrb[0].mxu0 %v3352
        %v5382 = vpop.f32.mrb[0].mxu0
        %v5383 = vadd.f32 0.0, %v5382
        %v5384 = vpop.f32.mrb[0].mxu0
        %v5385 = vpop.f32.mrb[0].mxu0
        %v5386 = vadd.f32 0.0, %v5385
        %v5387 = vpop.f32.mrb[0].mxu0
        %5388 = vmatprep.mubr.bf16.mxu0 0
        %5389 = vmatmul.mubr.bf16.gmra.mrb[0].mxu0 %v3353
        %v5390 = vpop.f32.mrb[0].mxu0
        %v5391 = vadd.f32 0.0, %v5390
        %v5392 = vpop.f32.mrb[0].mxu0
        %v5393 = vpop.f32.mrb[0].mxu0
        %v5394 = vadd.f32 0.0, %v5393
        %v5395 = vpop.f32.mrb[0].mxu0
        %5396 = vmatprep.mubr.bf16.mxu0 0
        %5397 = vmatmul.mubr.bf16.gmra.mrb[0].mxu0 %v3354
        %v5398 = vpop.f32.mrb[0].mxu0
        %v5399 = vadd.f32 0.0, %v5398
        %v5400 = vpop.f32.mrb[0].mxu0
        %v5401 = vpop.f32.mrb[0].mxu0
        %v5402 = vadd.f32 0.0, %v5401
        %v5403 = vpop.f32.mrb[0].mxu0
        %5404 = vmatprep.mubr.bf16.mxu0 0
        %5405 = vmatmul.mubr.bf16.gmra.mrb[0].mxu0 %v3355
        %v5406 = vpop.f32.mrb[0].mxu0
        %v5407 = vadd.f32 0.0, %v5406
        %v5408 = vpop.f32.mrb[0].mxu0
        %v5409 = vpop.f32.mrb[0].mxu0
        %v5410 = vadd.f32 0.0, %v5409
        %v5411 = vpop.f32.mrb[0].mxu0
        %5412 = vmatprep.mubr.bf16.mxu0 0
        %5413 = vmatmul.mubr.bf16.gmra.mrb[0].mxu0 %v3356
        %v5414 = vpop.f32.mrb[0].mxu0
        %v5415 = vadd.f32 0.0, %v5414
        %v5416 = vpop.f32.mrb[0].mxu0
        %v5417 = vpop.f32.mrb[0].mxu0
        %v5418 = vadd.f32 0.0, %v5417
        %v5419 = vpop.f32.mrb[0].mxu0
        %5420 = vmatprep.mubr.bf16.mxu0 0
        %5421 = vmatmul.mubr.bf16.gmra.mrb[0].mxu0 %v3357
        %v5422 = vpop.f32.mrb[0].mxu0
        %v5423 = vadd.f32 0.0, %v5422
        %v5424 = vpop.f32.mrb[0].mxu0
        %v5425 = vpop.f32.mrb[0].mxu0
        %v5426 = vadd.f32 0.0, %v5425
        %v5427 = vpop.f32.mrb[0].mxu0
        %5428 = vmatprep.mubr.bf16.mxu0 0
        %5429 = vmatmul.mubr.bf16.gmra.mrb[0].mxu0 %v3358
        %v5430 = vpop.f32.mrb[0].mxu0
        %v5431 = vadd.f32 0.0, %v5430
        %v5432 = vpop.f32.mrb[0].mxu0
        %v5433 = vpop.f32.mrb[0].mxu0
        %v5434 = vadd.f32 0.0, %v5433
        %v5435 = vpop.f32.mrb[0].mxu0
        %5436 = vmatprep.mubr.bf16.mxu0 0
        %5437 = vmatmul.mubr.bf16.gmra.mrb[0].mxu0 %v3359
        %v5438 = vpop.f32.mrb[0].mxu0
        %v5439 = vadd.f32 0.0, %v5438
        %v5440 = vpop.f32.mrb[0].mxu0
        %v5441 = vpop.f32.mrb[0].mxu0
        %v5442 = vadd.f32 0.0, %v5441
        %v5443 = vpop.f32.mrb[0].mxu0
        %5444 = vmatprep.mubr.bf16.mxu0 0
        %5445 = vmatmul.mubr.bf16.gmra.mrb[0].mxu0 %v3360
        %v5446 = vpop.f32.mrb[0].mxu0
        %v5447 = vadd.f32 0.0, %v5446
        %v5448 = vpop.f32.mrb[0].mxu0
        %v5449 = vpop.f32.mrb[0].mxu0
        %v5450 = vadd.f32 0.0, %v5449
        %v5451 = vpop.f32.mrb[0].mxu0
        %5452 = vmatprep.mubr.bf16.mxu0 0
        %5453 = vmatmul.mubr.bf16.gmra.mrb[0].mxu0 %v3361
        %v5454 = vpop.f32.mrb[0].mxu0
        %v5455 = vadd.f32 0.0, %v5454
        %v5456 = vpop.f32.mrb[0].mxu0
        %v5457 = vpop.f32.mrb[0].mxu0
        %v5458 = vadd.f32 0.0, %v5457
        %v5459 = vpop.f32.mrb[0].mxu0
        %5460 = vmatprep.mubr.bf16.mxu0 0
        %5461 = vmatmul.mubr.bf16.gmra.mrb[0].mxu0 %v3362
        %v5462 = vpop.f32.mrb[0].mxu0
        %v5463 = vadd.f32 0.0, %v5462
        %v5464 = vpop.f32.mrb[0].mxu0
        %v5465 = vpop.f32.mrb[0].mxu0
        %v5466 = vadd.f32 0.0, %v5465
        %v5467 = vpop.f32.mrb[0].mxu0
        %5468 = vmatprep.mubr.bf16.mxu0 0
        %5469 = vmatmul.mubr.bf16.gmra.mrb[0].mxu0 %v3363
        %v5470 = vpop.f32.mrb[0].mxu0
        %v5471 = vadd.f32 0.0, %v5470
        %v5472 = vpop.f32.mrb[0].mxu0
        %v5473 = vpop.f32.mrb[0].mxu0
        %v5474 = vadd.f32 0.0, %v5473
        %v5475 = vpop.f32.mrb[0].mxu0
        %5476 = vmatprep.mubr.bf16.mxu0 0
        %5477 = vmatmul.mubr.bf16.gmra.mrb[0].mxu0 %v3364
        %v5478 = vpop.f32.mrb[0].mxu0
        %v5479 = vadd.f32 0.0, %v5478
        %v5480 = vpop.f32.mrb[0].mxu0
        %v5481 = vpop.f32.mrb[0].mxu0
        %v5482 = vadd.f32 0.0, %v5481
        %v5483 = vpop.f32.mrb[0].mxu0
        %5484 = vmatprep.mubr.bf16.mxu0 0
        %5485 = vmatmul.mubr.bf16.gmra.mrb[0].mxu0 %v3365
        %v5486 = vpop.f32.mrb[0].mxu0
        %v5487 = vadd.f32 0.0, %v5486
        %v5488 = vpop.f32.mrb[0].mxu0
        %v5489 = vpop.f32.mrb[0].mxu0
        %v5490 = vadd.f32 0.0, %v5489
        %v5491 = vpop.f32.mrb[0].mxu0
        %5492 = vmatprep.mubr.bf16.mxu0 0
        %5493 = vmatmul.mubr.bf16.gmra.mrb[0].mxu0 %v3366
        %v5494 = vpop.f32.mrb[0].mxu0
        %v5495 = vadd.f32 0.0, %v5494
        %v5496 = vpop.f32.mrb[0].mxu0
        %v5497 = vpop.f32.mrb[0].mxu0
        %v5498 = vadd.f32 0.0, %v5497
        %v5499 = vpop.f32.mrb[0].mxu0
        %5500 = vmatprep.mubr.bf16.mxu0 0
        %5501 = vmatmul.mubr.bf16.gmra.mrb[0].mxu0 %v3367
        %v5502 = vpop.f32.mrb[0].mxu0
        %v5503 = vadd.f32 0.0, %v5502
        %v5504 = vpop.f32.mrb[0].mxu0
        %v5505 = vpop.f32.mrb[0].mxu0
        %v5506 = vadd.f32 0.0, %v5505
        %v5507 = vpop.f32.mrb[0].mxu0
        %5508 = vmatprep.mubr.bf16.mxu0 0
        %5509 = vmatmul.mubr.bf16.gmra.mrb[0].mxu0 %v3368
        %v5510 = vpop.f32.mrb[0].mxu0
        %v5511 = vadd.f32 0.0, %v5510
        %v5512 = vpop.f32.mrb[0].mxu0
        %v5513 = vpop.f32.mrb[0].mxu0
        %v5514 = vadd.f32 0.0, %v5513
        %v5515 = vpop.f32.mrb[0].mxu0
        %5516 = vmatprep.mubr.bf16.mxu0 0
        %5517 = vmatmul.mubr.bf16.gmra.mrb[0].mxu0 %v3369
        %v5518 = vpop.f32.mrb[0].mxu0
        %v5519 = vadd.f32 0.0, %v5518
        %v5520 = vpop.f32.mrb[0].mxu0
        %v5521 = vpop.f32.mrb[0].mxu0
        %v5522 = vadd.f32 0.0, %v5521
        %v5523 = vpop.f32.mrb[0].mxu0
        %5524 = vmatprep.mubr.bf16.mxu0 0
        %5525 = vmatmul.mubr.bf16.gmra.mrb[0].mxu0 %v3370
        %v5526 = vpop.f32.mrb[0].mxu0
        %v5527 = vadd.f32 0.0, %v5526
        %v5528 = vpop.f32.mrb[0].mxu0
        %v5529 = vpop.f32.mrb[0].mxu0
        %v5530 = vadd.f32 0.0, %v5529
        %v5531 = vpop.f32.mrb[0].mxu0
        %5532 = vmatprep.mubr.bf16.mxu0 0
        %5533 = vmatmul.mubr.bf16.gmra.mrb[0].mxu0 %v3371
        %v5534 = vpop.f32.mrb[0].mxu0
        %v5535 = vadd.f32 0.0, %v5534
        %v5536 = vpop.f32.mrb[0].mxu0
        %v5537 = vpop.f32.mrb[0].mxu0
        %v5538 = vadd.f32 0.0, %v5537
        %v5539 = vpop.f32.mrb[0].mxu0
        %5540 = vmatprep.mubr.bf16.mxu0 0
        %5541 = vmatmul.mubr.bf16.gmra.mrb[0].mxu0 %v3372
        %v5542 = vpop.f32.mrb[0].mxu0
        %v5543 = vadd.f32 0.0, %v5542
        %v5544 = vpop.f32.mrb[0].mxu0
        %v5545 = vpop.f32.mrb[0].mxu0
        %v5546 = vadd.f32 0.0, %v5545
        %v5547 = vpop.f32.mrb[0].mxu0
        %5548 = vmatprep.mubr.bf16.mxu0 0
        %5549 = vmatmul.mubr.bf16.gmra.mrb[0].mxu0 %v3373
        %v5550 = vpop.f32.mrb[0].mxu0
        %v5551 = vadd.f32 0.0, %v5550
        %v5552 = vpop.f32.mrb[0].mxu0
        %v5553 = vpop.f32.mrb[0].mxu0
        %v5554 = vadd.f32 0.0, %v5553
        %v5555 = vpop.f32.mrb[0].mxu0
        %5556 = vmatprep.mubr.bf16.mxu0 0
        %5557 = vmatmul.mubr.bf16.gmra.mrb[0].mxu0 %v3374
        %v5558 = vpop.f32.mrb[0].mxu0
        %v5559 = vadd.f32 0.0, %v5558
        %v5560 = vpop.f32.mrb[0].mxu0
        %v5561 = vpop.f32.mrb[0].mxu0
        %v5562 = vadd.f32 0.0, %v5561
        %v5563 = vpop.f32.mrb[0].mxu0
        %5564 = vmatprep.mubr.bf16.mxu0 0
        %5565 = vmatmul.mubr.bf16.gmra.mrb[0].mxu0 %v3375
        %v5566 = vpop.f32.mrb[0].mxu0
        %v5567 = vadd.f32 0.0, %v5566
        %v5568 = vpop.f32.mrb[0].mxu0
        %v5569 = vpop.f32.mrb[0].mxu0
        %v5570 = vadd.f32 0.0, %v5569
        %v5571 = vpop.f32.mrb[0].mxu0
        %5572 = vmatprep.mubr.bf16.mxu0 0
        %5573 = vmatmul.mubr.bf16.gmra.mrb[0].mxu0 %v3376
        %v5574 = vpop.f32.mrb[0].mxu0
        %v5575 = vadd.f32 0.0, %v5574
        %v5576 = vpop.f32.mrb[0].mxu0
        %v5577 = vpop.f32.mrb[0].mxu0
        %v5578 = vadd.f32 0.0, %v5577
        %v5579 = vpop.f32.mrb[0].mxu0
        %5580 = vmatprep.mubr.bf16.mxu0 0
        %5581 = vmatmul.mubr.bf16.gmra.mrb[0].mxu0 %v3377
        %v5582 = vpop.f32.mrb[0].mxu0
        %v5583 = vadd.f32 0.0, %v5582
        %v5584 = vpop.f32.mrb[0].mxu0
        %v5585 = vpop.f32.mrb[0].mxu0
        %v5586 = vadd.f32 0.0, %v5585
        %v5587 = vpop.f32.mrb[0].mxu0
        %5588 = vdwg.mxu0
        %v5653 = vunpack.c.l.b16 %v4723
        %v5654 = vunpack.c.h.b16 %v4723
        %v5655 = vunpack.c.l.b16 %v4724
        %v5656 = vunpack.c.l.b16 %v4725
        %v5657 = vunpack.c.h.b16 %v4725
        %v5658 = vunpack.c.l.b16 %v4726
        %v5659 = vunpack.c.l.b16 %v4727
        %v5660 = vunpack.c.h.b16 %v4727
        %v5661 = vunpack.c.l.b16 %v4728
        %v5662 = vunpack.c.l.b16 %v4729
        %v5663 = vunpack.c.h.b16 %v4729
        %v5664 = vunpack.c.l.b16 %v4730
        %v5665 = vunpack.c.l.b16 %v4731
        %v5666 = vunpack.c.h.b16 %v4731
        %v5667 = vunpack.c.l.b16 %v4732
        %v5668 = vunpack.c.l.b16 %v4733
        %v5669 = vunpack.c.h.b16 %v4733
        %v5670 = vunpack.c.l.b16 %v4734
        %v5671 = vunpack.c.l.b16 %v4735
        %v5672 = vunpack.c.h.b16 %v4735
        %v5673 = vunpack.c.l.b16 %v4736
        %v5674 = vunpack.c.l.b16 %v4737
        %v5675 = vunpack.c.h.b16 %v4737
        %v5676 = vunpack.c.l.b16 %v4738
        %v5677 = vunpack.c.l.b16 %v4739
        %v5678 = vunpack.c.h.b16 %v4739
        %v5679 = vunpack.c.l.b16 %v4740
        %v5680 = vunpack.c.l.b16 %v4741
        %v5681 = vunpack.c.h.b16 %v4741
        %v5682 = vunpack.c.l.b16 %v4742
        %v5683 = vunpack.c.l.b16 %v4743
        %v5684 = vunpack.c.h.b16 %v4743
        %v5685 = vunpack.c.l.b16 %v4744
        %v5686 = vunpack.c.l.b16 %v4745
        %v5687 = vunpack.c.h.b16 %v4745
        %v5688 = vunpack.c.l.b16 %v4746
        %v5689 = vunpack.c.l.b16 %v4747
        %v5690 = vunpack.c.h.b16 %v4747
        %v5691 = vunpack.c.l.b16 %v4748
        %v5692 = vunpack.c.l.b16 %v4749
        %v5693 = vunpack.c.h.b16 %v4749
        %v5694 = vunpack.c.l.b16 %v4750
        %v5695 = vunpack.c.l.b16 %v4751
        %v5696 = vunpack.c.h.b16 %v4751
        %v5697 = vunpack.c.l.b16 %v4752
        %v5698 = vunpack.c.l.b16 %v4753
        %v5699 = vunpack.c.h.b16 %v4753
        %v5700 = vunpack.c.l.b16 %v4754
        %v5701 = vunpack.c.l.b16 %v4755
        %v5702 = vunpack.c.h.b16 %v4755
        %v5703 = vunpack.c.l.b16 %v4756
        %v5704 = vunpack.c.l.b16 %v4757
        %v5705 = vunpack.c.h.b16 %v4757
        %v5706 = vunpack.c.l.b16 %v4758
        %v5707 = vunpack.c.l.b16 %v4759
        %v5708 = vunpack.c.h.b16 %v4759
        %v5709 = vunpack.c.l.b16 %v4760
        %v5710 = vunpack.c.l.b16 %v4761
        %v5711 = vunpack.c.h.b16 %v4761
        %v5712 = vunpack.c.l.b16 %v4762
        %v5713 = vunpack.c.l.b16 %v4763
        %v5714 = vunpack.c.h.b16 %v4763
        %v5715 = vunpack.c.l.b16 %v4764
        %v5716 = vunpack.c.l.b16 %v4765
        %v5717 = vunpack.c.h.b16 %v4765
        %v5718 = vunpack.c.l.b16 %v4766
        %v5719 = vunpack.c.l.b16 %v4767
        %v5720 = vunpack.c.h.b16 %v4767
        %v5721 = vunpack.c.l.b16 %v4768
        %v5722 = vunpack.c.l.b16 %v4769
        %v5723 = vunpack.c.h.b16 %v4769
        %v5724 = vunpack.c.l.b16 %v4770
        %v5725 = vunpack.c.l.b16 %v4771
        %v5726 = vunpack.c.h.b16 %v4771
        %v5727 = vunpack.c.l.b16 %v4772
        %v5728 = vunpack.c.l.b16 %v4773
        %v5729 = vunpack.c.h.b16 %v4773
        %v5730 = vunpack.c.l.b16 %v4774
        %v5731 = vunpack.c.l.b16 %v4775
        %v5732 = vunpack.c.h.b16 %v4775
        %v5733 = vunpack.c.l.b16 %v4776
        %v5734 = vunpack.c.l.b16 %v4777
        %v5735 = vunpack.c.h.b16 %v4777
        %v5736 = vunpack.c.l.b16 %v4778
        %v5737 = vunpack.c.l.b16 %v4779
        %v5738 = vunpack.c.h.b16 %v4779
        %v5739 = vunpack.c.l.b16 %v4780
        %v5740 = vunpack.c.l.b16 %v4781
        %v5741 = vunpack.c.h.b16 %v4781
        %v5742 = vunpack.c.l.b16 %v4782
        %v5743 = vunpack.c.l.b16 %v4783
        %v5744 = vunpack.c.h.b16 %v4783
        %v5745 = vunpack.c.l.b16 %v4784
        %v5746 = vunpack.c.l.b16 %v4785
        %v5747 = vunpack.c.h.b16 %v4785
        %v5748 = vunpack.c.l.b16 %v4786
        %v5749 = vpack.c.b16 %v5656, %v5653
        %v5750 = vpack.c.b16 %v5657, %v5654
        %v5751 = vpack.c.b16 %v5658, %v5655
        %v5752 = vpack.c.b16 %v5662, %v5659
        %v5753 = vpack.c.b16 %v5663, %v5660
        %v5754 = vpack.c.b16 %v5664, %v5661
        %v5755 = vpack.c.b16 %v5668, %v5665
        %v5756 = vpack.c.b16 %v5669, %v5666
        %v5757 = vpack.c.b16 %v5670, %v5667
        %v5758 = vpack.c.b16 %v5674, %v5671
        %v5759 = vpack.c.b16 %v5675, %v5672
        %v5760 = vpack.c.b16 %v5676, %v5673
        %v5761 = vpack.c.b16 %v5680, %v5677
        %v5762 = vpack.c.b16 %v5681, %v5678
        %v5763 = vpack.c.b16 %v5682, %v5679
        %v5764 = vpack.c.b16 %v5686, %v5683
        %v5765 = vpack.c.b16 %v5687, %v5684
        %v5766 = vpack.c.b16 %v5688, %v5685
        %v5767 = vpack.c.b16 %v5692, %v5689
        %v5768 = vpack.c.b16 %v5693, %v5690
        %v5769 = vpack.c.b16 %v5694, %v5691
        %v5770 = vpack.c.b16 %v5698, %v5695
        %v5771 = vpack.c.b16 %v5699, %v5696
        %v5772 = vpack.c.b16 %v5700, %v5697
        %v5773 = vpack.c.b16 %v5704, %v5701
        %v5774 = vpack.c.b16 %v5705, %v5702
        %v5775 = vpack.c.b16 %v5706, %v5703
        %v5776 = vpack.c.b16 %v5710, %v5707
        %v5777 = vpack.c.b16 %v5711, %v5708
        %v5778 = vpack.c.b16 %v5712, %v5709
        %v5779 = vpack.c.b16 %v5716, %v5713
        %v5780 = vpack.c.b16 %v5717, %v5714
        %v5781 = vpack.c.b16 %v5718, %v5715
        %v5782 = vpack.c.b16 %v5722, %v5719
        %v5783 = vpack.c.b16 %v5723, %v5720
        %v5784 = vpack.c.b16 %v5724, %v5721
        %v5785 = vpack.c.b16 %v5728, %v5725
        %v5786 = vpack.c.b16 %v5729, %v5726
        %v5787 = vpack.c.b16 %v5730, %v5727
        %v5788 = vpack.c.b16 %v5734, %v5731
        %v5789 = vpack.c.b16 %v5735, %v5732
        %v5790 = vpack.c.b16 %v5736, %v5733
        %v5791 = vpack.c.b16 %v5740, %v5737
        %v5792 = vpack.c.b16 %v5741, %v5738
        %v5793 = vpack.c.b16 %v5742, %v5739
        %v5794 = vpack.c.b16 %v5746, %v5743
        %v5795 = vpack.c.b16 %v5747, %v5744
        %v5796 = vpack.c.b16 %v5748, %v5745
        %5845 = vmatprep.subr.bf16.mxu0 %v5750
        %5846 = vmatpush1.bf16.msra.mxu0 %v5749
        %5847 = vmatprep.subr.bf16.mxu0 %v5753
        %5848 = vmatpush1.bf16.msra.mxu0 %v5752
        %5849 = vmatprep.subr.bf16.mxu0 %v5756
        %5850 = vmatpush1.bf16.msra.mxu0 %v5755
        %5851 = vmatprep.subr.bf16.mxu0 %v5759
        %5852 = vmatpush1.bf16.msra.mxu0 %v5758
        %5853 = vmatprep.subr.bf16.mxu0 %v5762
        %5854 = vmatpush1.bf16.msra.mxu0 %v5761
        %5855 = vmatprep.subr.bf16.mxu0 %v5765
        %5856 = vmatpush1.bf16.msra.mxu0 %v5764
        %5857 = vmatprep.subr.bf16.mxu0 %v5768
        %5858 = vmatpush1.bf16.msra.mxu0 %v5767
        %5859 = vmatprep.subr.bf16.mxu0 %v5771
        %5860 = vmatpush1.bf16.msra.mxu0 %v5770
        %5861 = vmatprep.subr.bf16.mxu0 %v5774
        %5862 = vmatpush1.bf16.msra.mxu0 %v5773
        %5863 = vmatprep.subr.bf16.mxu0 %v5777
        %5864 = vmatpush1.bf16.msra.mxu0 %v5776
        %5865 = vmatprep.subr.bf16.mxu0 %v5780
        %5866 = vmatpush1.bf16.msra.mxu0 %v5779
        %5867 = vmatprep.subr.bf16.mxu0 %v5783
        %5868 = vmatpush1.bf16.msra.mxu0 %v5782
        %5869 = vmatprep.subr.bf16.mxu0 %v5786
        %5870 = vmatpush1.bf16.msra.mxu0 %v5785
        %5871 = vmatprep.subr.bf16.mxu0 %v5789
        %5872 = vmatpush1.bf16.msra.mxu0 %v5788
        %5873 = vmatprep.subr.bf16.mxu0 %v5792
        %5874 = vmatpush1.bf16.msra.mxu0 %v5791
        %5875 = vmatprep.subr.bf16.mxu0 %v5795
        %5876 = vmatpush1.bf16.msra.mxu0 %v5794
        %5877 = vmatprep.mubr.bf16.mxu0 %v1427
        %5878 = vmatmul.mubr.bf16.gmra.mrb[0].mxu0 %v1426
        %v5879 = vpop.f32.mrb[0].mxu0
        %v5880 = vadd.f32 %v4982, %v5879
        %v5881 = vpop.f32.mrb[0].mxu0
        %v5882 = vadd.f32 %v4984, %v5881
        %v5883 = vpop.f32.mrb[0].mxu0
        %v5884 = vadd.f32 %v4986, %v5883
        %v5885 = vpop.f32.mrb[0].mxu0
        %v5886 = vadd.f32 %v4988, %v5885
        %5887 = vmatprep.mubr.bf16.mxu0 %v1429
        %5888 = vmatmul.mubr.bf16.gmra.mrb[0].mxu0 %v1428
        %v5889 = vpop.f32.mrb[0].mxu0
        %v5890 = vadd.f32 %v4992, %v5889
        %v5891 = vpop.f32.mrb[0].mxu0
        %v5892 = vadd.f32 %v4994, %v5891
        %v5893 = vpop.f32.mrb[0].mxu0
        %v5894 = vadd.f32 %v4996, %v5893
        %v5895 = vpop.f32.mrb[0].mxu0
        %v5896 = vadd.f32 %v4998, %v5895
        %5897 = vmatprep.mubr.bf16.mxu0 %v1431
        %5898 = vmatmul.mubr.bf16.gmra.mrb[0].mxu0 %v1430
        %v5899 = vpop.f32.mrb[0].mxu0
        %v5900 = vadd.f32 %v5002, %v5899
        %v5901 = vpop.f32.mrb[0].mxu0
        %v5902 = vadd.f32 %v5004, %v5901
        %v5903 = vpop.f32.mrb[0].mxu0
        %v5904 = vadd.f32 %v5006, %v5903
        %v5905 = vpop.f32.mrb[0].mxu0
        %v5906 = vadd.f32 %v5008, %v5905
        %5907 = vmatprep.mubr.bf16.mxu0 %v1433
        %5908 = vmatmul.mubr.bf16.gmra.mrb[0].mxu0 %v1432
        %v5909 = vpop.f32.mrb[0].mxu0
        %v5910 = vadd.f32 %v5012, %v5909
        %v5911 = vpop.f32.mrb[0].mxu0
        %v5912 = vadd.f32 %v5014, %v5911
        %v5913 = vpop.f32.mrb[0].mxu0
        %v5914 = vadd.f32 %v5016, %v5913
        %v5915 = vpop.f32.mrb[0].mxu0
        %v5916 = vadd.f32 %v5018, %v5915
        %5917 = vmatprep.mubr.bf16.mxu0 %v1435
        %5918 = vmatmul.mubr.bf16.gmra.mrb[0].mxu0 %v1434
        %v5919 = vpop.f32.mrb[0].mxu0
        %v5920 = vadd.f32 %v5022, %v5919
        %v5921 = vpop.f32.mrb[0].mxu0
        %v5922 = vadd.f32 %v5024, %v5921
        %v5923 = vpop.f32.mrb[0].mxu0
        %v5924 = vadd.f32 %v5026, %v5923
        %v5925 = vpop.f32.mrb[0].mxu0
        %v5926 = vadd.f32 %v5028, %v5925
        %5927 = vmatprep.mubr.bf16.mxu0 %v1437
        %5928 = vmatmul.mubr.bf16.gmra.mrb[0].mxu0 %v1436
        %v5929 = vpop.f32.mrb[0].mxu0
        %v5930 = vadd.f32 %v5032, %v5929
        %v5931 = vpop.f32.mrb[0].mxu0
        %v5932 = vadd.f32 %v5034, %v5931
        %v5933 = vpop.f32.mrb[0].mxu0
        %v5934 = vadd.f32 %v5036, %v5933
        %v5935 = vpop.f32.mrb[0].mxu0
        %v5936 = vadd.f32 %v5038, %v5935
        %5937 = vmatprep.mubr.bf16.mxu0 %v1439
        %5938 = vmatmul.mubr.bf16.gmra.mrb[0].mxu0 %v1438
        %v5939 = vpop.f32.mrb[0].mxu0
        %v5940 = vadd.f32 %v5042, %v5939
        %v5941 = vpop.f32.mrb[0].mxu0
        %v5942 = vadd.f32 %v5044, %v5941
        %v5943 = vpop.f32.mrb[0].mxu0
        %v5944 = vadd.f32 %v5046, %v5943
        %v5945 = vpop.f32.mrb[0].mxu0
        %v5946 = vadd.f32 %v5048, %v5945
        %5947 = vmatprep.mubr.bf16.mxu0 %v1441
        %5948 = vmatmul.mubr.bf16.gmra.mrb[0].mxu0 %v1440
        %v5949 = vpop.f32.mrb[0].mxu0
        %v5950 = vadd.f32 %v5052, %v5949
        %v5951 = vpop.f32.mrb[0].mxu0
        %v5952 = vadd.f32 %v5054, %v5951
        %v5953 = vpop.f32.mrb[0].mxu0
        %v5954 = vadd.f32 %v5056, %v5953
        %v5955 = vpop.f32.mrb[0].mxu0
        %v5956 = vadd.f32 %v5058, %v5955
        %5957 = vmatprep.mubr.bf16.mxu0 %v1443
        %5958 = vmatmul.mubr.bf16.gmra.mrb[0].mxu0 %v1442
        %v5959 = vpop.f32.mrb[0].mxu0
        %v5960 = vadd.f32 %v5062, %v5959
        %v5961 = vpop.f32.mrb[0].mxu0
        %v5962 = vadd.f32 %v5064, %v5961
        %v5963 = vpop.f32.mrb[0].mxu0
        %v5964 = vadd.f32 %v5066, %v5963
        %v5965 = vpop.f32.mrb[0].mxu0
        %v5966 = vadd.f32 %v5068, %v5965
        %5967 = vmatprep.mubr.bf16.mxu0 %v1445
        %5968 = vmatmul.mubr.bf16.gmra.mrb[0].mxu0 %v1444
        %v5969 = vpop.f32.mrb[0].mxu0
        %v5970 = vadd.f32 %v5072, %v5969
        %v5971 = vpop.f32.mrb[0].mxu0
        %v5972 = vadd.f32 %v5074, %v5971
        %v5973 = vpop.f32.mrb[0].mxu0
        %v5974 = vadd.f32 %v5076, %v5973
        %v5975 = vpop.f32.mrb[0].mxu0
        %v5976 = vadd.f32 %v5078, %v5975
        %5977 = vmatprep.mubr.bf16.mxu0 %v1447
        %5978 = vmatmul.mubr.bf16.gmra.mrb[0].mxu0 %v1446
        %v5979 = vpop.f32.mrb[0].mxu0
        %v5980 = vadd.f32 %v5082, %v5979
        %v5981 = vpop.f32.mrb[0].mxu0
        %v5982 = vadd.f32 %v5084, %v5981
        %v5983 = vpop.f32.mrb[0].mxu0
        %v5984 = vadd.f32 %v5086, %v5983
        %v5985 = vpop.f32.mrb[0].mxu0
        %v5986 = vadd.f32 %v5088, %v5985
        %5987 = vmatprep.mubr.bf16.mxu0 %v1449
        %5988 = vmatmul.mubr.bf16.gmra.mrb[0].mxu0 %v1448
        %v5989 = vpop.f32.mrb[0].mxu0
        %v5990 = vadd.f32 %v5092, %v5989
        %v5991 = vpop.f32.mrb[0].mxu0
        %v5992 = vadd.f32 %v5094, %v5991
        %v5993 = vpop.f32.mrb[0].mxu0
        %v5994 = vadd.f32 %v5096, %v5993
        %v5995 = vpop.f32.mrb[0].mxu0
        %v5996 = vadd.f32 %v5098, %v5995
        %5997 = vmatprep.mubr.bf16.mxu0 %v1451
        %5998 = vmatmul.mubr.bf16.gmra.mrb[0].mxu0 %v1450
        %v5999 = vpop.f32.mrb[0].mxu0
        %v6000 = vadd.f32 %v5102, %v5999
        %v6001 = vpop.f32.mrb[0].mxu0
        %v6002 = vadd.f32 %v5104, %v6001
        %v6003 = vpop.f32.mrb[0].mxu0
        %v6004 = vadd.f32 %v5106, %v6003
        %v6005 = vpop.f32.mrb[0].mxu0
        %v6006 = vadd.f32 %v5108, %v6005
        %6007 = vmatprep.mubr.bf16.mxu0 %v1453
        %6008 = vmatmul.mubr.bf16.gmra.mrb[0].mxu0 %v1452
        %v6009 = vpop.f32.mrb[0].mxu0
        %v6010 = vadd.f32 %v5112, %v6009
        %v6011 = vpop.f32.mrb[0].mxu0
        %v6012 = vadd.f32 %v5114, %v6011
        %v6013 = vpop.f32.mrb[0].mxu0
        %v6014 = vadd.f32 %v5116, %v6013
        %v6015 = vpop.f32.mrb[0].mxu0
        %v6016 = vadd.f32 %v5118, %v6015
        %6017 = vmatprep.mubr.bf16.mxu0 %v1455
        %6018 = vmatmul.mubr.bf16.gmra.mrb[0].mxu0 %v1454
        %v6019 = vpop.f32.mrb[0].mxu0
        %v6020 = vadd.f32 %v5122, %v6019
        %v6021 = vpop.f32.mrb[0].mxu0
        %v6022 = vadd.f32 %v5124, %v6021
        %v6023 = vpop.f32.mrb[0].mxu0
        %v6024 = vadd.f32 %v5126, %v6023
        %v6025 = vpop.f32.mrb[0].mxu0
        %v6026 = vadd.f32 %v5128, %v6025
        %6027 = vmatprep.mubr.bf16.mxu0 %v1457
        %6028 = vmatmul.mubr.bf16.gmra.mrb[0].mxu0 %v1456
        %v6029 = vpop.f32.mrb[0].mxu0
        %v6030 = vadd.f32 %v5132, %v6029
        %v6031 = vpop.f32.mrb[0].mxu0
        %v6032 = vadd.f32 %v5134, %v6031
        %v6033 = vpop.f32.mrb[0].mxu0
        %v6034 = vadd.f32 %v5136, %v6033
        %v6035 = vpop.f32.mrb[0].mxu0
        %v6036 = vadd.f32 %v5138, %v6035
        %6037 = vmatprep.mubr.bf16.mxu0 %v1459
        %6038 = vmatmul.mubr.bf16.gmra.mrb[0].mxu0 %v1458
        %v6039 = vpop.f32.mrb[0].mxu0
        %v6040 = vadd.f32 %v5142, %v6039
        %v6041 = vpop.f32.mrb[0].mxu0
        %v6042 = vadd.f32 %v5144, %v6041
        %v6043 = vpop.f32.mrb[0].mxu0
        %v6044 = vadd.f32 %v5146, %v6043
        %v6045 = vpop.f32.mrb[0].mxu0
        %v6046 = vadd.f32 %v5148, %v6045
        %6047 = vmatprep.mubr.bf16.mxu0 %v1461
        %6048 = vmatmul.mubr.bf16.gmra.mrb[0].mxu0 %v1460
        %v6049 = vpop.f32.mrb[0].mxu0
        %v6050 = vadd.f32 %v5152, %v6049
        %v6051 = vpop.f32.mrb[0].mxu0
        %v6052 = vadd.f32 %v5154, %v6051
        %v6053 = vpop.f32.mrb[0].mxu0
        %v6054 = vadd.f32 %v5156, %v6053
        %v6055 = vpop.f32.mrb[0].mxu0
        %v6056 = vadd.f32 %v5158, %v6055
        %6057 = vmatprep.mubr.bf16.mxu0 %v1463
        %6058 = vmatmul.mubr.bf16.gmra.mrb[0].mxu0 %v1462
        %v6059 = vpop.f32.mrb[0].mxu0
        %v6060 = vadd.f32 %v5162, %v6059
        %v6061 = vpop.f32.mrb[0].mxu0
        %v6062 = vadd.f32 %v5164, %v6061
        %v6063 = vpop.f32.mrb[0].mxu0
        %v6064 = vadd.f32 %v5166, %v6063
        %v6065 = vpop.f32.mrb[0].mxu0
        %v6066 = vadd.f32 %v5168, %v6065
        %6067 = vmatprep.mubr.bf16.mxu0 %v1465
        %6068 = vmatmul.mubr.bf16.gmra.mrb[0].mxu0 %v1464
        %v6069 = vpop.f32.mrb[0].mxu0
        %v6070 = vadd.f32 %v5172, %v6069
        %v6071 = vpop.f32.mrb[0].mxu0
        %v6072 = vadd.f32 %v5174, %v6071
        %v6073 = vpop.f32.mrb[0].mxu0
        %v6074 = vadd.f32 %v5176, %v6073
        %v6075 = vpop.f32.mrb[0].mxu0
        %v6076 = vadd.f32 %v5178, %v6075
        %6077 = vmatprep.mubr.bf16.mxu0 %v1467
        %6078 = vmatmul.mubr.bf16.gmra.mrb[0].mxu0 %v1466
        %v6079 = vpop.f32.mrb[0].mxu0
        %v6080 = vadd.f32 %v5182, %v6079
        %v6081 = vpop.f32.mrb[0].mxu0
        %v6082 = vadd.f32 %v5184, %v6081
        %v6083 = vpop.f32.mrb[0].mxu0
        %v6084 = vadd.f32 %v5186, %v6083
        %v6085 = vpop.f32.mrb[0].mxu0
        %v6086 = vadd.f32 %v5188, %v6085
        %6087 = vmatprep.mubr.bf16.mxu0 %v1469
        %6088 = vmatmul.mubr.bf16.gmra.mrb[0].mxu0 %v1468
        %v6089 = vpop.f32.mrb[0].mxu0
        %v6090 = vadd.f32 %v5192, %v6089
        %v6091 = vpop.f32.mrb[0].mxu0
        %v6092 = vadd.f32 %v5194, %v6091
        %v6093 = vpop.f32.mrb[0].mxu0
        %v6094 = vadd.f32 %v5196, %v6093
        %v6095 = vpop.f32.mrb[0].mxu0
        %v6096 = vadd.f32 %v5198, %v6095
        %6097 = vmatprep.mubr.bf16.mxu0 %v1471
        %6098 = vmatmul.mubr.bf16.gmra.mrb[0].mxu0 %v1470
        %v6099 = vpop.f32.mrb[0].mxu0
        %v6100 = vadd.f32 %v5202, %v6099
        %v6101 = vpop.f32.mrb[0].mxu0
        %v6102 = vadd.f32 %v5204, %v6101
        %v6103 = vpop.f32.mrb[0].mxu0
        %v6104 = vadd.f32 %v5206, %v6103
        %v6105 = vpop.f32.mrb[0].mxu0
        %v6106 = vadd.f32 %v5208, %v6105
        %6107 = vmatprep.mubr.bf16.mxu0 %v1473
        %6108 = vmatmul.mubr.bf16.gmra.mrb[0].mxu0 %v1472
        %v6109 = vpop.f32.mrb[0].mxu0
        %v6110 = vadd.f32 %v5212, %v6109
        %v6111 = vpop.f32.mrb[0].mxu0
        %v6112 = vadd.f32 %v5214, %v6111
        %v6113 = vpop.f32.mrb[0].mxu0
        %v6114 = vadd.f32 %v5216, %v6113
        %v6115 = vpop.f32.mrb[0].mxu0
        %v6116 = vadd.f32 %v5218, %v6115
        %6117 = vmatprep.mubr.bf16.mxu0 %v1475
        %6118 = vmatmul.mubr.bf16.gmra.mrb[0].mxu0 %v1474
        %v6119 = vpop.f32.mrb[0].mxu0
        %v6120 = vadd.f32 %v5222, %v6119
        %v6121 = vpop.f32.mrb[0].mxu0
        %v6122 = vadd.f32 %v5224, %v6121
        %v6123 = vpop.f32.mrb[0].mxu0
        %v6124 = vadd.f32 %v5226, %v6123
        %v6125 = vpop.f32.mrb[0].mxu0
        %v6126 = vadd.f32 %v5228, %v6125
        %6127 = vmatprep.mubr.bf16.mxu0 %v1477
        %6128 = vmatmul.mubr.bf16.gmra.mrb[0].mxu0 %v1476
        %v6129 = vpop.f32.mrb[0].mxu0
        %v6130 = vadd.f32 %v5232, %v6129
        %v6131 = vpop.f32.mrb[0].mxu0
        %v6132 = vadd.f32 %v5234, %v6131
        %v6133 = vpop.f32.mrb[0].mxu0
        %v6134 = vadd.f32 %v5236, %v6133
        %v6135 = vpop.f32.mrb[0].mxu0
        %v6136 = vadd.f32 %v5238, %v6135
        %6137 = vmatprep.mubr.bf16.mxu0 %v1479
        %6138 = vmatmul.mubr.bf16.gmra.mrb[0].mxu0 %v1478
        %v6139 = vpop.f32.mrb[0].mxu0
        %v6140 = vadd.f32 %v5242, %v6139
        %v6141 = vpop.f32.mrb[0].mxu0
        %v6142 = vadd.f32 %v5244, %v6141
        %v6143 = vpop.f32.mrb[0].mxu0
        %v6144 = vadd.f32 %v5246, %v6143
        %v6145 = vpop.f32.mrb[0].mxu0
        %v6146 = vadd.f32 %v5248, %v6145
        %6147 = vmatprep.mubr.bf16.mxu0 %v1481
        %6148 = vmatmul.mubr.bf16.gmra.mrb[0].mxu0 %v1480
        %v6149 = vpop.f32.mrb[0].mxu0
        %v6150 = vadd.f32 %v5252, %v6149
        %v6151 = vpop.f32.mrb[0].mxu0
        %v6152 = vadd.f32 %v5254, %v6151
        %v6153 = vpop.f32.mrb[0].mxu0
        %v6154 = vadd.f32 %v5256, %v6153
        %v6155 = vpop.f32.mrb[0].mxu0
        %v6156 = vadd.f32 %v5258, %v6155
        %6157 = vmatprep.mubr.bf16.mxu0 %v1483
        %6158 = vmatmul.mubr.bf16.gmra.mrb[0].mxu0 %v1482
        %v6159 = vpop.f32.mrb[0].mxu0
        %v6160 = vadd.f32 %v5262, %v6159
        %v6161 = vpop.f32.mrb[0].mxu0
        %v6162 = vadd.f32 %v5264, %v6161
        %v6163 = vpop.f32.mrb[0].mxu0
        %v6164 = vadd.f32 %v5266, %v6163
        %v6165 = vpop.f32.mrb[0].mxu0
        %v6166 = vadd.f32 %v5268, %v6165
        %6167 = vmatprep.mubr.bf16.mxu0 %v1485
        %6168 = vmatmul.mubr.bf16.gmra.mrb[0].mxu0 %v1484
        %v6169 = vpop.f32.mrb[0].mxu0
        %v6170 = vadd.f32 %v5272, %v6169
        %v6171 = vpop.f32.mrb[0].mxu0
        %v6172 = vadd.f32 %v5274, %v6171
        %v6173 = vpop.f32.mrb[0].mxu0
        %v6174 = vadd.f32 %v5276, %v6173
        %v6175 = vpop.f32.mrb[0].mxu0
        %v6176 = vadd.f32 %v5278, %v6175
        %6177 = vmatprep.mubr.bf16.mxu0 %v1487
        %6178 = vmatmul.mubr.bf16.gmra.mrb[0].mxu0 %v1486
        %v6179 = vpop.f32.mrb[0].mxu0
        %v6180 = vadd.f32 %v5282, %v6179
        %v6181 = vpop.f32.mrb[0].mxu0
        %v6182 = vadd.f32 %v5284, %v6181
        %v6183 = vpop.f32.mrb[0].mxu0
        %v6184 = vadd.f32 %v5286, %v6183
        %v6185 = vpop.f32.mrb[0].mxu0
        %v6186 = vadd.f32 %v5288, %v6185
        %6187 = vmatprep.mubr.bf16.mxu0 %v1489
        %6188 = vmatmul.mubr.bf16.gmra.mrb[0].mxu0 %v1488
        %v6189 = vpop.f32.mrb[0].mxu0
        %v6190 = vadd.f32 %v5292, %v6189
        %v6191 = vpop.f32.mrb[0].mxu0
        %v6192 = vadd.f32 %v5294, %v6191
        %v6193 = vpop.f32.mrb[0].mxu0
        %v6194 = vadd.f32 %v5296, %v6193
        %v6195 = vpop.f32.mrb[0].mxu0
        %v6196 = vadd.f32 %v5298, %v6195
        %6197 = vdwg.mxu0
        %6198 = vmatprep.subr.bf16.mxu0 0
        %6199 = vmatpush1.bf16.msra.mxu0 %v5751
        %6200 = vmatprep.subr.bf16.mxu0 0
        %6201 = vmatpush1.bf16.msra.mxu0 %v5754
        %6202 = vmatprep.subr.bf16.mxu0 0
        %6203 = vmatpush1.bf16.msra.mxu0 %v5757
        %6204 = vmatprep.subr.bf16.mxu0 0
        %6205 = vmatpush1.bf16.msra.mxu0 %v5760
        %6206 = vmatprep.subr.bf16.mxu0 0
        %6207 = vmatpush1.bf16.msra.mxu0 %v5763
        %6208 = vmatprep.subr.bf16.mxu0 0
        %6209 = vmatpush1.bf16.msra.mxu0 %v5766
        %6210 = vmatprep.subr.bf16.mxu0 0
        %6211 = vmatpush1.bf16.msra.mxu0 %v5769
        %6212 = vmatprep.subr.bf16.mxu0 0
        %6213 = vmatpush1.bf16.msra.mxu0 %v5772
        %6214 = vmatprep.subr.bf16.mxu0 0
        %6215 = vmatpush1.bf16.msra.mxu0 %v5775
        %6216 = vmatprep.subr.bf16.mxu0 0
        %6217 = vmatpush1.bf16.msra.mxu0 %v5778
        %6218 = vmatprep.subr.bf16.mxu0 0
        %6219 = vmatpush1.bf16.msra.mxu0 %v5781
        %6220 = vmatprep.subr.bf16.mxu0 0
        %6221 = vmatpush1.bf16.msra.mxu0 %v5784
        %6222 = vmatprep.subr.bf16.mxu0 0
        %6223 = vmatpush1.bf16.msra.mxu0 %v5787
        %6224 = vmatprep.subr.bf16.mxu0 0
        %6225 = vmatpush1.bf16.msra.mxu0 %v5790
        %6226 = vmatprep.subr.bf16.mxu0 0
        %6227 = vmatpush1.bf16.msra.mxu0 %v5793
        %6228 = vmatprep.subr.bf16.mxu0 0
        %6229 = vmatpush1.bf16.msra.mxu0 %v5796
        %6230 = vmatprep.mubr.bf16.mxu0 %v1427
        %6231 = vmatmul.mubr.bf16.gmra.mrb[0].mxu0 %v1426
        %v6232 = vpop.f32.mrb[0].mxu0
        %v6233 = vadd.f32 %v5335, %v6232
        %v6234 = vpop.f32.mrb[0].mxu0
        %v6235 = vpop.f32.mrb[0].mxu0
        %v6236 = vadd.f32 %v5338, %v6235
        %v6237 = vpop.f32.mrb[0].mxu0
        %6238 = vmatprep.mubr.bf16.mxu0 %v1429
        %6239 = vmatmul.mubr.bf16.gmra.mrb[0].mxu0 %v1428
        %v6240 = vpop.f32.mrb[0].mxu0
        %v6241 = vadd.f32 %v5343, %v6240
        %v6242 = vpop.f32.mrb[0].mxu0
        %v6243 = vpop.f32.mrb[0].mxu0
        %v6244 = vadd.f32 %v5346, %v6243
        %v6245 = vpop.f32.mrb[0].mxu0
        %6246 = vmatprep.mubr.bf16.mxu0 %v1431
        %6247 = vmatmul.mubr.bf16.gmra.mrb[0].mxu0 %v1430
        %v6248 = vpop.f32.mrb[0].mxu0
        %v6249 = vadd.f32 %v5351, %v6248
        %v6250 = vpop.f32.mrb[0].mxu0
        %v6251 = vpop.f32.mrb[0].mxu0
        %v6252 = vadd.f32 %v5354, %v6251
        %v6253 = vpop.f32.mrb[0].mxu0
        %6254 = vmatprep.mubr.bf16.mxu0 %v1433
        %6255 = vmatmul.mubr.bf16.gmra.mrb[0].mxu0 %v1432
        %v6256 = vpop.f32.mrb[0].mxu0
        %v6257 = vadd.f32 %v5359, %v6256
        %v6258 = vpop.f32.mrb[0].mxu0
        %v6259 = vpop.f32.mrb[0].mxu0
        %v6260 = vadd.f32 %v5362, %v6259
        %v6261 = vpop.f32.mrb[0].mxu0
        %6262 = vmatprep.mubr.bf16.mxu0 %v1435
        %6263 = vmatmul.mubr.bf16.gmra.mrb[0].mxu0 %v1434
        %v6264 = vpop.f32.mrb[0].mxu0
        %v6265 = vadd.f32 %v5367, %v6264
        %v6266 = vpop.f32.mrb[0].mxu0
        %v6267 = vpop.f32.mrb[0].mxu0
        %v6268 = vadd.f32 %v5370, %v6267
        %v6269 = vpop.f32.mrb[0].mxu0
        %6270 = vmatprep.mubr.bf16.mxu0 %v1437
        %6271 = vmatmul.mubr.bf16.gmra.mrb[0].mxu0 %v1436
        %v6272 = vpop.f32.mrb[0].mxu0
        %v6273 = vadd.f32 %v5375, %v6272
        %v6274 = vpop.f32.mrb[0].mxu0
        %v6275 = vpop.f32.mrb[0].mxu0
        %v6276 = vadd.f32 %v5378, %v6275
        %v6277 = vpop.f32.mrb[0].mxu0
        %6278 = vmatprep.mubr.bf16.mxu0 %v1439
        %6279 = vmatmul.mubr.bf16.gmra.mrb[0].mxu0 %v1438
        %v6280 = vpop.f32.mrb[0].mxu0
        %v6281 = vadd.f32 %v5383, %v6280
        %v6282 = vpop.f32.mrb[0].mxu0
        %v6283 = vpop.f32.mrb[0].mxu0
        %v6284 = vadd.f32 %v5386, %v6283
        %v6285 = vpop.f32.mrb[0].mxu0
        %6286 = vmatprep.mubr.bf16.mxu0 %v1441
        %6287 = vmatmul.mubr.bf16.gmra.mrb[0].mxu0 %v1440
        %v6288 = vpop.f32.mrb[0].mxu0
        %v6289 = vadd.f32 %v5391, %v6288
        %v6290 = vpop.f32.mrb[0].mxu0
        %v6291 = vpop.f32.mrb[0].mxu0
        %v6292 = vadd.f32 %v5394, %v6291
        %v6293 = vpop.f32.mrb[0].mxu0
        %6294 = vmatprep.mubr.bf16.mxu0 %v1443
        %6295 = vmatmul.mubr.bf16.gmra.mrb[0].mxu0 %v1442
        %v6296 = vpop.f32.mrb[0].mxu0
        %v6297 = vadd.f32 %v5399, %v6296
        %v6298 = vpop.f32.mrb[0].mxu0
        %v6299 = vpop.f32.mrb[0].mxu0
        %v6300 = vadd.f32 %v5402, %v6299
        %v6301 = vpop.f32.mrb[0].mxu0
        %6302 = vmatprep.mubr.bf16.mxu0 %v1445
        %6303 = vmatmul.mubr.bf16.gmra.mrb[0].mxu0 %v1444
        %v6304 = vpop.f32.mrb[0].mxu0
        %v6305 = vadd.f32 %v5407, %v6304
        %v6306 = vpop.f32.mrb[0].mxu0
        %v6307 = vpop.f32.mrb[0].mxu0
        %v6308 = vadd.f32 %v5410, %v6307
        %v6309 = vpop.f32.mrb[0].mxu0
        %6310 = vmatprep.mubr.bf16.mxu0 %v1447
        %6311 = vmatmul.mubr.bf16.gmra.mrb[0].mxu0 %v1446
        %v6312 = vpop.f32.mrb[0].mxu0
        %v6313 = vadd.f32 %v5415, %v6312
        %v6314 = vpop.f32.mrb[0].mxu0
        %v6315 = vpop.f32.mrb[0].mxu0
        %v6316 = vadd.f32 %v5418, %v6315
        %v6317 = vpop.f32.mrb[0].mxu0
        %6318 = vmatprep.mubr.bf16.mxu0 %v1449
        %6319 = vmatmul.mubr.bf16.gmra.mrb[0].mxu0 %v1448
        %v6320 = vpop.f32.mrb[0].mxu0
        %v6321 = vadd.f32 %v5423, %v6320
        %v6322 = vpop.f32.mrb[0].mxu0
        %v6323 = vpop.f32.mrb[0].mxu0
        %v6324 = vadd.f32 %v5426, %v6323
        %v6325 = vpop.f32.mrb[0].mxu0
        %6326 = vmatprep.mubr.bf16.mxu0 %v1451
        %6327 = vmatmul.mubr.bf16.gmra.mrb[0].mxu0 %v1450
        %v6328 = vpop.f32.mrb[0].mxu0
        %v6329 = vadd.f32 %v5431, %v6328
        %v6330 = vpop.f32.mrb[0].mxu0
        %v6331 = vpop.f32.mrb[0].mxu0
        %v6332 = vadd.f32 %v5434, %v6331
        %v6333 = vpop.f32.mrb[0].mxu0
        %6334 = vmatprep.mubr.bf16.mxu0 %v1453
        %6335 = vmatmul.mubr.bf16.gmra.mrb[0].mxu0 %v1452
        %v6336 = vpop.f32.mrb[0].mxu0
        %v6337 = vadd.f32 %v5439, %v6336
        %v6338 = vpop.f32.mrb[0].mxu0
        %v6339 = vpop.f32.mrb[0].mxu0
        %v6340 = vadd.f32 %v5442, %v6339
        %v6341 = vpop.f32.mrb[0].mxu0
        %6342 = vmatprep.mubr.bf16.mxu0 %v1455
        %6343 = vmatmul.mubr.bf16.gmra.mrb[0].mxu0 %v1454
        %v6344 = vpop.f32.mrb[0].mxu0
        %v6345 = vadd.f32 %v5447, %v6344
        %v6346 = vpop.f32.mrb[0].mxu0
        %v6347 = vpop.f32.mrb[0].mxu0
        %v6348 = vadd.f32 %v5450, %v6347
        %v6349 = vpop.f32.mrb[0].mxu0
        %6350 = vmatprep.mubr.bf16.mxu0 %v1457
        %6351 = vmatmul.mubr.bf16.gmra.mrb[0].mxu0 %v1456
        %v6352 = vpop.f32.mrb[0].mxu0
        %v6353 = vadd.f32 %v5455, %v6352
        %v6354 = vpop.f32.mrb[0].mxu0
        %v6355 = vpop.f32.mrb[0].mxu0
        %v6356 = vadd.f32 %v5458, %v6355
        %v6357 = vpop.f32.mrb[0].mxu0
        %6358 = vmatprep.mubr.bf16.mxu0 %v1459
        %6359 = vmatmul.mubr.bf16.gmra.mrb[0].mxu0 %v1458
        %v6360 = vpop.f32.mrb[0].mxu0
        %v6361 = vadd.f32 %v5463, %v6360
        %v6362 = vpop.f32.mrb[0].mxu0
        %v6363 = vpop.f32.mrb[0].mxu0
        %v6364 = vadd.f32 %v5466, %v6363
        %v6365 = vpop.f32.mrb[0].mxu0
        %6366 = vmatprep.mubr.bf16.mxu0 %v1461
        %6367 = vmatmul.mubr.bf16.gmra.mrb[0].mxu0 %v1460
        %v6368 = vpop.f32.mrb[0].mxu0
        %v6369 = vadd.f32 %v5471, %v6368
        %v6370 = vpop.f32.mrb[0].mxu0
        %v6371 = vpop.f32.mrb[0].mxu0
        %v6372 = vadd.f32 %v5474, %v6371
        %v6373 = vpop.f32.mrb[0].mxu0
        %6374 = vmatprep.mubr.bf16.mxu0 %v1463
        %6375 = vmatmul.mubr.bf16.gmra.mrb[0].mxu0 %v1462
        %v6376 = vpop.f32.mrb[0].mxu0
        %v6377 = vadd.f32 %v5479, %v6376
        %v6378 = vpop.f32.mrb[0].mxu0
        %v6379 = vpop.f32.mrb[0].mxu0
        %v6380 = vadd.f32 %v5482, %v6379
        %v6381 = vpop.f32.mrb[0].mxu0
        %6382 = vmatprep.mubr.bf16.mxu0 %v1465
        %6383 = vmatmul.mubr.bf16.gmra.mrb[0].mxu0 %v1464
        %v6384 = vpop.f32.mrb[0].mxu0
        %v6385 = vadd.f32 %v5487, %v6384
        %v6386 = vpop.f32.mrb[0].mxu0
        %v6387 = vpop.f32.mrb[0].mxu0
        %v6388 = vadd.f32 %v5490, %v6387
        %v6389 = vpop.f32.mrb[0].mxu0
        %6390 = vmatprep.mubr.bf16.mxu0 %v1467
        %6391 = vmatmul.mubr.bf16.gmra.mrb[0].mxu0 %v1466
        %v6392 = vpop.f32.mrb[0].mxu0
        %v6393 = vadd.f32 %v5495, %v6392
        %v6394 = vpop.f32.mrb[0].mxu0
        %v6395 = vpop.f32.mrb[0].mxu0
        %v6396 = vadd.f32 %v5498, %v6395
        %v6397 = vpop.f32.mrb[0].mxu0
        %6398 = vmatprep.mubr.bf16.mxu0 %v1469
        %6399 = vmatmul.mubr.bf16.gmra.mrb[0].mxu0 %v1468
        %v6400 = vpop.f32.mrb[0].mxu0
        %v6401 = vadd.f32 %v5503, %v6400
        %v6402 = vpop.f32.mrb[0].mxu0
        %v6403 = vpop.f32.mrb[0].mxu0
        %v6404 = vadd.f32 %v5506, %v6403
        %v6405 = vpop.f32.mrb[0].mxu0
        %6406 = vmatprep.mubr.bf16.mxu0 %v1471
        %6407 = vmatmul.mubr.bf16.gmra.mrb[0].mxu0 %v1470
        %v6408 = vpop.f32.mrb[0].mxu0
        %v6409 = vadd.f32 %v5511, %v6408
        %v6410 = vpop.f32.mrb[0].mxu0
        %v6411 = vpop.f32.mrb[0].mxu0
        %v6412 = vadd.f32 %v5514, %v6411
        %v6413 = vpop.f32.mrb[0].mxu0
        %6414 = vmatprep.mubr.bf16.mxu0 %v1473
        %6415 = vmatmul.mubr.bf16.gmra.mrb[0].mxu0 %v1472
        %v6416 = vpop.f32.mrb[0].mxu0
        %v6417 = vadd.f32 %v5519, %v6416
        %v6418 = vpop.f32.mrb[0].mxu0
        %v6419 = vpop.f32.mrb[0].mxu0
        %v6420 = vadd.f32 %v5522, %v6419
        %v6421 = vpop.f32.mrb[0].mxu0
        %6422 = vmatprep.mubr.bf16.mxu0 %v1475
        %6423 = vmatmul.mubr.bf16.gmra.mrb[0].mxu0 %v1474
        %v6424 = vpop.f32.mrb[0].mxu0
        %v6425 = vadd.f32 %v5527, %v6424
        %v6426 = vpop.f32.mrb[0].mxu0
        %v6427 = vpop.f32.mrb[0].mxu0
        %v6428 = vadd.f32 %v5530, %v6427
        %v6429 = vpop.f32.mrb[0].mxu0
        %6430 = vmatprep.mubr.bf16.mxu0 %v1477
        %6431 = vmatmul.mubr.bf16.gmra.mrb[0].mxu0 %v1476
        %v6432 = vpop.f32.mrb[0].mxu0
        %v6433 = vadd.f32 %v5535, %v6432
        %v6434 = vpop.f32.mrb[0].mxu0
        %v6435 = vpop.f32.mrb[0].mxu0
        %v6436 = vadd.f32 %v5538, %v6435
        %v6437 = vpop.f32.mrb[0].mxu0
        %6438 = vmatprep.mubr.bf16.mxu0 %v1479
        %6439 = vmatmul.mubr.bf16.gmra.mrb[0].mxu0 %v1478
        %v6440 = vpop.f32.mrb[0].mxu0
        %v6441 = vadd.f32 %v5543, %v6440
        %v6442 = vpop.f32.mrb[0].mxu0
        %v6443 = vpop.f32.mrb[0].mxu0
        %v6444 = vadd.f32 %v5546, %v6443
        %v6445 = vpop.f32.mrb[0].mxu0
        %6446 = vmatprep.mubr.bf16.mxu0 %v1481
        %6447 = vmatmul.mubr.bf16.gmra.mrb[0].mxu0 %v1480
        %v6448 = vpop.f32.mrb[0].mxu0
        %v6449 = vadd.f32 %v5551, %v6448
        %v6450 = vpop.f32.mrb[0].mxu0
        %v6451 = vpop.f32.mrb[0].mxu0
        %v6452 = vadd.f32 %v5554, %v6451
        %v6453 = vpop.f32.mrb[0].mxu0
        %6454 = vmatprep.mubr.bf16.mxu0 %v1483
        %6455 = vmatmul.mubr.bf16.gmra.mrb[0].mxu0 %v1482
        %v6456 = vpop.f32.mrb[0].mxu0
        %v6457 = vadd.f32 %v5559, %v6456
        %v6458 = vpop.f32.mrb[0].mxu0
        %v6459 = vpop.f32.mrb[0].mxu0
        %v6460 = vadd.f32 %v5562, %v6459
        %v6461 = vpop.f32.mrb[0].mxu0
        %6462 = vmatprep.mubr.bf16.mxu0 %v1485
        %6463 = vmatmul.mubr.bf16.gmra.mrb[0].mxu0 %v1484
        %v6464 = vpop.f32.mrb[0].mxu0
        %v6465 = vadd.f32 %v5567, %v6464
        %v6466 = vpop.f32.mrb[0].mxu0
        %v6467 = vpop.f32.mrb[0].mxu0
        %v6468 = vadd.f32 %v5570, %v6467
        %v6469 = vpop.f32.mrb[0].mxu0
        %6470 = vmatprep.mubr.bf16.mxu0 %v1487
        %6471 = vmatmul.mubr.bf16.gmra.mrb[0].mxu0 %v1486
        %v6472 = vpop.f32.mrb[0].mxu0
        %v6473 = vadd.f32 %v5575, %v6472
        %v6474 = vpop.f32.mrb[0].mxu0
        %v6475 = vpop.f32.mrb[0].mxu0
        %v6476 = vadd.f32 %v5578, %v6475
        %v6477 = vpop.f32.mrb[0].mxu0
        %6478 = vmatprep.mubr.bf16.mxu0 %v1489
        %6479 = vmatmul.mubr.bf16.gmra.mrb[0].mxu0 %v1488
        %v6480 = vpop.f32.mrb[0].mxu0
        %v6481 = vadd.f32 %v5583, %v6480
        %v6482 = vpop.f32.mrb[0].mxu0
        %v6483 = vpop.f32.mrb[0].mxu0
        %v6484 = vadd.f32 %v5586, %v6483
        %v6485 = vpop.f32.mrb[0].mxu0
        %6486 = vdwg.mxu0
        %v6487 = vld [vmem:[%s2 + $0x240] sm:$0xff]
        %v6488 = vld [vmem:[%s2 + $0x248] sm:$0xf]
        %v6489 = vld [vmem:[%s2 + $0x24c] sm:$0xff]
        %v6490 = vld [vmem:[%s2 + $0x254] sm:$0xf]
        %v6491 = vld [vmem:[%s2 + $0x258] sm:$0xff]
        %v6492 = vld [vmem:[%s2 + $0x260] sm:$0xf]
        %v6493 = vld [vmem:[%s2 + $0x264] sm:$0xff]
        %v6494 = vld [vmem:[%s2 + $0x26c] sm:$0xf]
        %v6495 = vld [vmem:[%s2 + $0x270] sm:$0xff]
        %v6496 = vld [vmem:[%s2 + $0x278] sm:$0xf]
        %v6497 = vld [vmem:[%s2 + $0x27c] sm:$0xff]
        %v6498 = vld [vmem:[%s2 + $0x284] sm:$0xf]
        %v6499 = vld [vmem:[%s2 + $0x288] sm:$0xff]
        %v6500 = vld [vmem:[%s2 + $0x290] sm:$0xf]
        %v6501 = vld [vmem:[%s2 + $0x294] sm:$0xff]
        %v6502 = vld [vmem:[%s2 + $0x29c] sm:$0xf]
        %v6503 = vld [vmem:[%s2 + $0x2a0] sm:$0xff]
        %v6504 = vld [vmem:[%s2 + $0x2a8] sm:$0xf]
        %v6505 = vld [vmem:[%s2 + $0x2ac] sm:$0xff]
        %v6506 = vld [vmem:[%s2 + $0x2b4] sm:$0xf]
        %v6507 = vld [vmem:[%s2 + $0x2b8] sm:$0xff]
        %v6508 = vld [vmem:[%s2 + $0x2c0] sm:$0xf]
        %v6509 = vld [vmem:[%s2 + $0x2c4] sm:$0xff]
        %v6510 = vld [vmem:[%s2 + $0x2cc] sm:$0xf]
        %v6511 = vld [vmem:[%s2 + $0x2d0] sm:$0xff]
        %v6512 = vld [vmem:[%s2 + $0x2d8] sm:$0xf]
        %v6513 = vld [vmem:[%s2 + $0x2dc] sm:$0xff]
        %v6514 = vld [vmem:[%s2 + $0x2e4] sm:$0xf]
        %v6515 = vld [vmem:[%s2 + $0x2e8] sm:$0xff]
        %v6516 = vld [vmem:[%s2 + $0x2f0] sm:$0xf]
        %v6517 = vld [vmem:[%s2 + $0x2f4] sm:$0xff]
        %v6518 = vld [vmem:[%s2 + $0x2fc] sm:$0xf]
        %v6519 = vld [vmem:[%s2 + $0x300] sm:$0xff]
        %v6520 = vld [vmem:[%s2 + $0x308] sm:$0xf]
        %v6521 = vld [vmem:[%s2 + $0x30c] sm:$0xff]
        %v6522 = vld [vmem:[%s2 + $0x314] sm:$0xf]
        %v6523 = vld [vmem:[%s2 + $0x318] sm:$0xff]
        %v6524 = vld [vmem:[%s2 + $0x320] sm:$0xf]
        %v6525 = vld [vmem:[%s2 + $0x324] sm:$0xff]
        %v6526 = vld [vmem:[%s2 + $0x32c] sm:$0xf]
        %v6527 = vld [vmem:[%s2 + $0x330] sm:$0xff]
        %v6528 = vld [vmem:[%s2 + $0x338] sm:$0xf]
        %v6529 = vld [vmem:[%s2 + $0x33c] sm:$0xff]
        %v6530 = vld [vmem:[%s2 + $0x344] sm:$0xf]
        %v6531 = vld [vmem:[%s2 + $0x348] sm:$0xff]
        %v6532 = vld [vmem:[%s2 + $0x350] sm:$0xf]
        %v6533 = vld [vmem:[%s2 + $0x354] sm:$0xff]
        %v6534 = vld [vmem:[%s2 + $0x35c] sm:$0xf]
        %v6535 = vld [vmem:[%s2 + $0x360] sm:$0xff]
        %v6536 = vld [vmem:[%s2 + $0x368] sm:$0xf]
        %v6537 = vld [vmem:[%s2 + $0x36c] sm:$0xff]
        %v6538 = vld [vmem:[%s2 + $0x374] sm:$0xf]
        %v6539 = vld [vmem:[%s2 + $0x378] sm:$0xff]
        %v6540 = vld [vmem:[%s2 + $0x380] sm:$0xf]
        %v6541 = vld [vmem:[%s2 + $0x384] sm:$0xff]
        %v6542 = vld [vmem:[%s2 + $0x38c] sm:$0xf]
        %v6543 = vld [vmem:[%s2 + $0x390] sm:$0xff]
        %v6544 = vld [vmem:[%s2 + $0x398] sm:$0xf]
        %v6545 = vld [vmem:[%s2 + $0x39c] sm:$0xff]
        %v6546 = vld [vmem:[%s2 + $0x3a4] sm:$0xf]
        %v6547 = vld [vmem:[%s2 + $0x3a8] sm:$0xff]
        %v6548 = vld [vmem:[%s2 + $0x3b0] sm:$0xf]
        %v6549 = vld [vmem:[%s2 + $0x3b4] sm:$0xff]
        %v6550 = vld [vmem:[%s2 + $0x3bc] sm:$0xf]
        %v6551 = vld [vmem:[%s2 + $0x3c0] sm:$0xff]
        %v6552 = vld [vmem:[%s2 + $0x3c8] sm:$0xf]
        %v6553 = vld [vmem:[%s2 + $0x3cc] sm:$0xff]
        %v6554 = vld [vmem:[%s2 + $0x3d4] sm:$0xf]
        %v6555 = vld [vmem:[%s2 + $0x3d8] sm:$0xff]
        %v6556 = vld [vmem:[%s2 + $0x3e0] sm:$0xf]
        %v6557 = vld [vmem:[%s2 + $0x3e4] sm:$0xff]
        %v6558 = vld [vmem:[%s2 + $0x3ec] sm:$0xf]
        %v6559 = vld [vmem:[%s2 + $0x3f0] sm:$0xff]
        %v6560 = vld [vmem:[%s2 + $0x3f8] sm:$0xf]
        %v6561 = vld [vmem:[%s2 + $0x3fc] sm:$0xff]
        %v6562 = vld [vmem:[%s2 + $0x404] sm:$0xf]
        %v6563 = vld [vmem:[%s2 + $0x408] sm:$0xff]
        %v6564 = vld [vmem:[%s2 + $0x410] sm:$0xf]
        %v6565 = vld [vmem:[%s2 + $0x414] sm:$0xff]
        %v6566 = vld [vmem:[%s2 + $0x41c] sm:$0xf]
        %v6567 = vld [vmem:[%s2 + $0x420] sm:$0xff]
        %v6568 = vld [vmem:[%s2 + $0x428] sm:$0xf]
        %v6569 = vld [vmem:[%s2 + $0x42c] sm:$0xff]
        %v6570 = vld [vmem:[%s2 + $0x434] sm:$0xf]
        %v6571 = vld [vmem:[%s2 + $0x438] sm:$0xff]
        %v6572 = vld [vmem:[%s2 + $0x440] sm:$0xf]
        %v6573 = vld [vmem:[%s2 + $0x444] sm:$0xff]
        %v6574 = vld [vmem:[%s2 + $0x44c] sm:$0xf]
        %v6575 = vld [vmem:[%s2 + $0x450] sm:$0xff]
        %v6576 = vld [vmem:[%s2 + $0x458] sm:$0xf]
        %v6577 = vld [vmem:[%s2 + $0x45c] sm:$0xff]
        %v6578 = vld [vmem:[%s2 + $0x464] sm:$0xf]
        %v6579 = vld [vmem:[%s2 + $0x468] sm:$0xff]
        %v6580 = vld [vmem:[%s2 + $0x470] sm:$0xf]
        %v6581 = vld [vmem:[%s2 + $0x474] sm:$0xff]
        %v6582 = vld [vmem:[%s2 + $0x47c] sm:$0xf]
        %v6679 = vunpack.c.l.b16 %v6487
        %v6680 = vunpack.c.h.b16 %v6487
        %v6681 = vunpack.c.l.b16 %v6488
        %v6682 = vunpack.c.l.b16 %v6489
        %v6683 = vunpack.c.h.b16 %v6489
        %v6684 = vunpack.c.l.b16 %v6490
        %v6685 = vunpack.c.l.b16 %v6491
        %v6686 = vunpack.c.h.b16 %v6491
        %v6687 = vunpack.c.l.b16 %v6492
        %v6688 = vunpack.c.l.b16 %v6493
        %v6689 = vunpack.c.h.b16 %v6493
        %v6690 = vunpack.c.l.b16 %v6494
        %v6691 = vunpack.c.l.b16 %v6495
        %v6692 = vunpack.c.h.b16 %v6495
        %v6693 = vunpack.c.l.b16 %v6496
        %v6694 = vunpack.c.l.b16 %v6497
        %v6695 = vunpack.c.h.b16 %v6497
        %v6696 = vunpack.c.l.b16 %v6498
        %v6697 = vunpack.c.l.b16 %v6499
        %v6698 = vunpack.c.h.b16 %v6499
        %v6699 = vunpack.c.l.b16 %v6500
        %v6700 = vunpack.c.l.b16 %v6501
        %v6701 = vunpack.c.h.b16 %v6501
        %v6702 = vunpack.c.l.b16 %v6502
        %v6703 = vunpack.c.l.b16 %v6503
        %v6704 = vunpack.c.h.b16 %v6503
        %v6705 = vunpack.c.l.b16 %v6504
        %v6706 = vunpack.c.l.b16 %v6505
        %v6707 = vunpack.c.h.b16 %v6505
        %v6708 = vunpack.c.l.b16 %v6506
        %v6709 = vunpack.c.l.b16 %v6507
        %v6710 = vunpack.c.h.b16 %v6507
        %v6711 = vunpack.c.l.b16 %v6508
        %v6712 = vunpack.c.l.b16 %v6509
        %v6713 = vunpack.c.h.b16 %v6509
        %v6714 = vunpack.c.l.b16 %v6510
        %v6715 = vunpack.c.l.b16 %v6511
        %v6716 = vunpack.c.h.b16 %v6511
        %v6717 = vunpack.c.l.b16 %v6512
        %v6718 = vunpack.c.l.b16 %v6513
        %v6719 = vunpack.c.h.b16 %v6513
        %v6720 = vunpack.c.l.b16 %v6514
        %v6721 = vunpack.c.l.b16 %v6515
        %v6722 = vunpack.c.h.b16 %v6515
        %v6723 = vunpack.c.l.b16 %v6516
        %v6724 = vunpack.c.l.b16 %v6517
        %v6725 = vunpack.c.h.b16 %v6517
        %v6726 = vunpack.c.l.b16 %v6518
        %v6727 = vunpack.c.l.b16 %v6519
        %v6728 = vunpack.c.h.b16 %v6519
        %v6729 = vunpack.c.l.b16 %v6520
        %v6730 = vunpack.c.l.b16 %v6521
        %v6731 = vunpack.c.h.b16 %v6521
        %v6732 = vunpack.c.l.b16 %v6522
        %v6733 = vunpack.c.l.b16 %v6523
        %v6734 = vunpack.c.h.b16 %v6523
        %v6735 = vunpack.c.l.b16 %v6524
        %v6736 = vunpack.c.l.b16 %v6525
        %v6737 = vunpack.c.h.b16 %v6525
        %v6738 = vunpack.c.l.b16 %v6526
        %v6739 = vunpack.c.l.b16 %v6527
        %v6740 = vunpack.c.h.b16 %v6527
        %v6741 = vunpack.c.l.b16 %v6528
        %v6742 = vunpack.c.l.b16 %v6529
        %v6743 = vunpack.c.h.b16 %v6529
        %v6744 = vunpack.c.l.b16 %v6530
        %v6745 = vunpack.c.l.b16 %v6531
        %v6746 = vunpack.c.h.b16 %v6531
        %v6747 = vunpack.c.l.b16 %v6532
        %v6748 = vunpack.c.l.b16 %v6533
        %v6749 = vunpack.c.h.b16 %v6533
        %v6750 = vunpack.c.l.b16 %v6534
        %v6751 = vunpack.c.l.b16 %v6535
        %v6752 = vunpack.c.h.b16 %v6535
        %v6753 = vunpack.c.l.b16 %v6536
        %v6754 = vunpack.c.l.b16 %v6537
        %v6755 = vunpack.c.h.b16 %v6537
        %v6756 = vunpack.c.l.b16 %v6538
        %v6757 = vunpack.c.l.b16 %v6539
        %v6758 = vunpack.c.h.b16 %v6539
        %v6759 = vunpack.c.l.b16 %v6540
        %v6760 = vunpack.c.l.b16 %v6541
        %v6761 = vunpack.c.h.b16 %v6541
        %v6762 = vunpack.c.l.b16 %v6542
        %v6763 = vunpack.c.l.b16 %v6543
        %v6764 = vunpack.c.h.b16 %v6543
        %v6765 = vunpack.c.l.b16 %v6544
        %v6766 = vunpack.c.l.b16 %v6545
        %v6767 = vunpack.c.h.b16 %v6545
        %v6768 = vunpack.c.l.b16 %v6546
        %v6769 = vunpack.c.l.b16 %v6547
        %v6770 = vunpack.c.h.b16 %v6547
        %v6771 = vunpack.c.l.b16 %v6548
        %v6772 = vunpack.c.l.b16 %v6549
        %v6773 = vunpack.c.h.b16 %v6549
        %v6774 = vunpack.c.l.b16 %v6550
        %v6775 = vunpack.c.l.b16 %v6551
        %v6776 = vunpack.c.h.b16 %v6551
        %v6777 = vunpack.c.l.b16 %v6552
        %v6778 = vunpack.c.l.b16 %v6553
        %v6779 = vunpack.c.h.b16 %v6553
        %v6780 = vunpack.c.l.b16 %v6554
        %v6781 = vunpack.c.l.b16 %v6555
        %v6782 = vunpack.c.h.b16 %v6555
        %v6783 = vunpack.c.l.b16 %v6556
        %v6784 = vunpack.c.l.b16 %v6557
        %v6785 = vunpack.c.h.b16 %v6557
        %v6786 = vunpack.c.l.b16 %v6558
        %v6787 = vunpack.c.l.b16 %v6559
        %v6788 = vunpack.c.h.b16 %v6559
        %v6789 = vunpack.c.l.b16 %v6560
        %v6790 = vunpack.c.l.b16 %v6561
        %v6791 = vunpack.c.h.b16 %v6561
        %v6792 = vunpack.c.l.b16 %v6562
        %v6793 = vunpack.c.l.b16 %v6563
        %v6794 = vunpack.c.h.b16 %v6563
        %v6795 = vunpack.c.l.b16 %v6564
        %v6796 = vunpack.c.l.b16 %v6565
        %v6797 = vunpack.c.h.b16 %v6565
        %v6798 = vunpack.c.l.b16 %v6566
        %v6799 = vunpack.c.l.b16 %v6567
        %v6800 = vunpack.c.h.b16 %v6567
        %v6801 = vunpack.c.l.b16 %v6568
        %v6802 = vunpack.c.l.b16 %v6569
        %v6803 = vunpack.c.h.b16 %v6569
        %v6804 = vunpack.c.l.b16 %v6570
        %v6805 = vunpack.c.l.b16 %v6571
        %v6806 = vunpack.c.h.b16 %v6571
        %v6807 = vunpack.c.l.b16 %v6572
        %v6808 = vunpack.c.l.b16 %v6573
        %v6809 = vunpack.c.h.b16 %v6573
        %v6810 = vunpack.c.l.b16 %v6574
        %v6811 = vunpack.c.l.b16 %v6575
        %v6812 = vunpack.c.h.b16 %v6575
        %v6813 = vunpack.c.l.b16 %v6576
        %v6814 = vunpack.c.l.b16 %v6577
        %v6815 = vunpack.c.h.b16 %v6577
        %v6816 = vunpack.c.l.b16 %v6578
        %v6817 = vunpack.c.l.b16 %v6579
        %v6818 = vunpack.c.h.b16 %v6579
        %v6819 = vunpack.c.l.b16 %v6580
        %v6820 = vunpack.c.l.b16 %v6581
        %v6821 = vunpack.c.h.b16 %v6581
        %v6822 = vunpack.c.l.b16 %v6582
        %v6823 = vpack.c.b16 %v6682, %v6679
        %v6824 = vpack.c.b16 %v6683, %v6680
        %v6825 = vpack.c.b16 %v6684, %v6681
        %v6826 = vpack.c.b16 %v6688, %v6685
        %v6827 = vpack.c.b16 %v6689, %v6686
        %v6828 = vpack.c.b16 %v6690, %v6687
        %v6829 = vpack.c.b16 %v6694, %v6691
        %v6830 = vpack.c.b16 %v6695, %v6692
        %v6831 = vpack.c.b16 %v6696, %v6693
        %v6832 = vpack.c.b16 %v6700, %v6697
        %v6833 = vpack.c.b16 %v6701, %v6698
        %v6834 = vpack.c.b16 %v6702, %v6699
        %v6835 = vpack.c.b16 %v6706, %v6703
        %v6836 = vpack.c.b16 %v6707, %v6704
        %v6837 = vpack.c.b16 %v6708, %v6705
        %v6838 = vpack.c.b16 %v6712, %v6709
        %v6839 = vpack.c.b16 %v6713, %v6710
        %v6840 = vpack.c.b16 %v6714, %v6711
        %v6841 = vpack.c.b16 %v6718, %v6715
        %v6842 = vpack.c.b16 %v6719, %v6716
        %v6843 = vpack.c.b16 %v6720, %v6717
        %v6844 = vpack.c.b16 %v6724, %v6721
        %v6845 = vpack.c.b16 %v6725, %v6722
        %v6846 = vpack.c.b16 %v6726, %v6723
        %v6847 = vpack.c.b16 %v6730, %v6727
        %v6848 = vpack.c.b16 %v6731, %v6728
        %v6849 = vpack.c.b16 %v6732, %v6729
        %v6850 = vpack.c.b16 %v6736, %v6733
        %v6851 = vpack.c.b16 %v6737, %v6734
        %v6852 = vpack.c.b16 %v6738, %v6735
        %v6853 = vpack.c.b16 %v6742, %v6739
        %v6854 = vpack.c.b16 %v6743, %v6740
        %v6855 = vpack.c.b16 %v6744, %v6741
        %v6856 = vpack.c.b16 %v6748, %v6745
        %v6857 = vpack.c.b16 %v6749, %v6746
        %v6858 = vpack.c.b16 %v6750, %v6747
        %v6859 = vpack.c.b16 %v6754, %v6751
        %v6860 = vpack.c.b16 %v6755, %v6752
        %v6861 = vpack.c.b16 %v6756, %v6753
        %v6862 = vpack.c.b16 %v6760, %v6757
        %v6863 = vpack.c.b16 %v6761, %v6758
        %v6864 = vpack.c.b16 %v6762, %v6759
        %v6865 = vpack.c.b16 %v6766, %v6763
        %v6866 = vpack.c.b16 %v6767, %v6764
        %v6867 = vpack.c.b16 %v6768, %v6765
        %v6868 = vpack.c.b16 %v6772, %v6769
        %v6869 = vpack.c.b16 %v6773, %v6770
        %v6870 = vpack.c.b16 %v6774, %v6771
        %v6871 = vpack.c.b16 %v6778, %v6775
        %v6872 = vpack.c.b16 %v6779, %v6776
        %v6873 = vpack.c.b16 %v6780, %v6777
        %v6874 = vpack.c.b16 %v6784, %v6781
        %v6875 = vpack.c.b16 %v6785, %v6782
        %v6876 = vpack.c.b16 %v6786, %v6783
        %v6877 = vpack.c.b16 %v6790, %v6787
        %v6878 = vpack.c.b16 %v6791, %v6788
        %v6879 = vpack.c.b16 %v6792, %v6789
        %v6880 = vpack.c.b16 %v6796, %v6793
        %v6881 = vpack.c.b16 %v6797, %v6794
        %v6882 = vpack.c.b16 %v6798, %v6795
        %v6883 = vpack.c.b16 %v6802, %v6799
        %v6884 = vpack.c.b16 %v6803, %v6800
        %v6885 = vpack.c.b16 %v6804, %v6801
        %v6886 = vpack.c.b16 %v6808, %v6805
        %v6887 = vpack.c.b16 %v6809, %v6806
        %v6888 = vpack.c.b16 %v6810, %v6807
        %v6889 = vpack.c.b16 %v6814, %v6811
        %v6890 = vpack.c.b16 %v6815, %v6812
        %v6891 = vpack.c.b16 %v6816, %v6813
        %v6892 = vpack.c.b16 %v6820, %v6817
        %v6893 = vpack.c.b16 %v6821, %v6818
        %v6894 = vpack.c.b16 %v6822, %v6819
        %6967 = vmatprep.subr.bf16.mxu0 %v6824
        %6968 = vmatpush1.bf16.msra.mxu0 %v6823
        %6969 = vmatprep.subr.bf16.mxu0 %v6827
        %6970 = vmatpush1.bf16.msra.mxu0 %v6826
        %6971 = vmatprep.subr.bf16.mxu0 %v6830
        %6972 = vmatpush1.bf16.msra.mxu0 %v6829
        %6973 = vmatprep.subr.bf16.mxu0 %v6833
        %6974 = vmatpush1.bf16.msra.mxu0 %v6832
        %6975 = vmatprep.subr.bf16.mxu0 %v6836
        %6976 = vmatpush1.bf16.msra.mxu0 %v6835
        %6977 = vmatprep.subr.bf16.mxu0 %v6839
        %6978 = vmatpush1.bf16.msra.mxu0 %v6838
        %6979 = vmatprep.subr.bf16.mxu0 %v6842
        %6980 = vmatpush1.bf16.msra.mxu0 %v6841
        %6981 = vmatprep.subr.bf16.mxu0 %v6845
        %6982 = vmatpush1.bf16.msra.mxu0 %v6844
        %6983 = vmatprep.subr.bf16.mxu0 %v6848
        %6984 = vmatpush1.bf16.msra.mxu0 %v6847
        %6985 = vmatprep.subr.bf16.mxu0 %v6851
        %6986 = vmatpush1.bf16.msra.mxu0 %v6850
        %6987 = vmatprep.subr.bf16.mxu0 %v6854
        %6988 = vmatpush1.bf16.msra.mxu0 %v6853
        %6989 = vmatprep.subr.bf16.mxu0 %v6857
        %6990 = vmatpush1.bf16.msra.mxu0 %v6856
        %6991 = vmatprep.subr.bf16.mxu0 %v6860
        %6992 = vmatpush1.bf16.msra.mxu0 %v6859
        %6993 = vmatprep.subr.bf16.mxu0 %v6863
        %6994 = vmatpush1.bf16.msra.mxu0 %v6862
        %6995 = vmatprep.subr.bf16.mxu0 %v6866
        %6996 = vmatpush1.bf16.msra.mxu0 %v6865
        %6997 = vmatprep.subr.bf16.mxu0 %v6869
        %6998 = vmatpush1.bf16.msra.mxu0 %v6868
        %6999 = vmatprep.mubr.bf16.mxu0 %v4148
        %7000 = vmatmul.mubr.bf16.gmra.mrb[0].mxu0 %v4147
        %v7001 = vpop.f32.mrb[0].mxu0
        %v7002 = vadd.f32 0.0, %v7001
        %v7003 = vpop.f32.mrb[0].mxu0
        %v7004 = vadd.f32 0.0, %v7003
        %v7005 = vpop.f32.mrb[0].mxu0
        %v7006 = vadd.f32 0.0, %v7005
        %v7007 = vpop.f32.mrb[0].mxu0
        %v7008 = vadd.f32 0.0, %v7007
        %7009 = vmatprep.mubr.bf16.mxu0 %v4151
        %7010 = vmatmul.mubr.bf16.gmra.mrb[0].mxu0 %v4150
        %v7011 = vpop.f32.mrb[0].mxu0
        %v7012 = vadd.f32 0.0, %v7011
        %v7013 = vpop.f32.mrb[0].mxu0
        %v7014 = vadd.f32 0.0, %v7013
        %v7015 = vpop.f32.mrb[0].mxu0
        %v7016 = vadd.f32 0.0, %v7015
        %v7017 = vpop.f32.mrb[0].mxu0
        %v7018 = vadd.f32 0.0, %v7017
        %7019 = vmatprep.mubr.bf16.mxu0 %v4154
        %7020 = vmatmul.mubr.bf16.gmra.mrb[0].mxu0 %v4153
        %v7021 = vpop.f32.mrb[0].mxu0
        %v7022 = vadd.f32 0.0, %v7021
        %v7023 = vpop.f32.mrb[0].mxu0
        %v7024 = vadd.f32 0.0, %v7023
        %v7025 = vpop.f32.mrb[0].mxu0
        %v7026 = vadd.f32 0.0, %v7025
        %v7027 = vpop.f32.mrb[0].mxu0
        %v7028 = vadd.f32 0.0, %v7027
        %7029 = vmatprep.mubr.bf16.mxu0 %v4157
        %7030 = vmatmul.mubr.bf16.gmra.mrb[0].mxu0 %v4156
        %v7031 = vpop.f32.mrb[0].mxu0
        %v7032 = vadd.f32 0.0, %v7031
        %v7033 = vpop.f32.mrb[0].mxu0
        %v7034 = vadd.f32 0.0, %v7033
        %v7035 = vpop.f32.mrb[0].mxu0
        %v7036 = vadd.f32 0.0, %v7035
        %v7037 = vpop.f32.mrb[0].mxu0
        %v7038 = vadd.f32 0.0, %v7037
        %7039 = vmatprep.mubr.bf16.mxu0 %v4160
        %7040 = vmatmul.mubr.bf16.gmra.mrb[0].mxu0 %v4159
        %v7041 = vpop.f32.mrb[0].mxu0
        %v7042 = vadd.f32 0.0, %v7041
        %v7043 = vpop.f32.mrb[0].mxu0
        %v7044 = vadd.f32 0.0, %v7043
        %v7045 = vpop.f32.mrb[0].mxu0
        %v7046 = vadd.f32 0.0, %v7045
        %v7047 = vpop.f32.mrb[0].mxu0
        %v7048 = vadd.f32 0.0, %v7047
        %7049 = vmatprep.mubr.bf16.mxu0 %v4163
        %7050 = vmatmul.mubr.bf16.gmra.mrb[0].mxu0 %v4162
        %v7051 = vpop.f32.mrb[0].mxu0
        %v7052 = vadd.f32 0.0, %v7051
        %v7053 = vpop.f32.mrb[0].mxu0
        %v7054 = vadd.f32 0.0, %v7053
        %v7055 = vpop.f32.mrb[0].mxu0
        %v7056 = vadd.f32 0.0, %v7055
        %v7057 = vpop.f32.mrb[0].mxu0
        %v7058 = vadd.f32 0.0, %v7057
        %7059 = vmatprep.mubr.bf16.mxu0 %v4166
        %7060 = vmatmul.mubr.bf16.gmra.mrb[0].mxu0 %v4165
        %v7061 = vpop.f32.mrb[0].mxu0
        %v7062 = vadd.f32 0.0, %v7061
        %v7063 = vpop.f32.mrb[0].mxu0
        %v7064 = vadd.f32 0.0, %v7063
        %v7065 = vpop.f32.mrb[0].mxu0
        %v7066 = vadd.f32 0.0, %v7065
        %v7067 = vpop.f32.mrb[0].mxu0
        %v7068 = vadd.f32 0.0, %v7067
        %7069 = vmatprep.mubr.bf16.mxu0 %v4169
        %7070 = vmatmul.mubr.bf16.gmra.mrb[0].mxu0 %v4168
        %v7071 = vpop.f32.mrb[0].mxu0
        %v7072 = vadd.f32 0.0, %v7071
        %v7073 = vpop.f32.mrb[0].mxu0
        %v7074 = vadd.f32 0.0, %v7073
        %v7075 = vpop.f32.mrb[0].mxu0
        %v7076 = vadd.f32 0.0, %v7075
        %v7077 = vpop.f32.mrb[0].mxu0
        %v7078 = vadd.f32 0.0, %v7077
        %7079 = vmatprep.mubr.bf16.mxu0 %v4172
        %7080 = vmatmul.mubr.bf16.gmra.mrb[0].mxu0 %v4171
        %v7081 = vpop.f32.mrb[0].mxu0
        %v7082 = vadd.f32 0.0, %v7081
        %v7083 = vpop.f32.mrb[0].mxu0
        %v7084 = vadd.f32 0.0, %v7083
        %v7085 = vpop.f32.mrb[0].mxu0
        %v7086 = vadd.f32 0.0, %v7085
        %v7087 = vpop.f32.mrb[0].mxu0
        %v7088 = vadd.f32 0.0, %v7087
        %7089 = vmatprep.mubr.bf16.mxu0 %v4175
        %7090 = vmatmul.mubr.bf16.gmra.mrb[0].mxu0 %v4174
        %v7091 = vpop.f32.mrb[0].mxu0
        %v7092 = vadd.f32 0.0, %v7091
        %v7093 = vpop.f32.mrb[0].mxu0
        %v7094 = vadd.f32 0.0, %v7093
        %v7095 = vpop.f32.mrb[0].mxu0
        %v7096 = vadd.f32 0.0, %v7095
        %v7097 = vpop.f32.mrb[0].mxu0
        %v7098 = vadd.f32 0.0, %v7097
        %7099 = vmatprep.mubr.bf16.mxu0 %v4178
        %7100 = vmatmul.mubr.bf16.gmra.mrb[0].mxu0 %v4177
        %v7101 = vpop.f32.mrb[0].mxu0
        %v7102 = vadd.f32 0.0, %v7101
        %v7103 = vpop.f32.mrb[0].mxu0
        %v7104 = vadd.f32 0.0, %v7103
        %v7105 = vpop.f32.mrb[0].mxu0
        %v7106 = vadd.f32 0.0, %v7105
        %v7107 = vpop.f32.mrb[0].mxu0
        %v7108 = vadd.f32 0.0, %v7107
        %7109 = vmatprep.mubr.bf16.mxu0 %v4181
        %7110 = vmatmul.mubr.bf16.gmra.mrb[0].mxu0 %v4180
        %v7111 = vpop.f32.mrb[0].mxu0
        %v7112 = vadd.f32 0.0, %v7111
        %v7113 = vpop.f32.mrb[0].mxu0
        %v7114 = vadd.f32 0.0, %v7113
        %v7115 = vpop.f32.mrb[0].mxu0
        %v7116 = vadd.f32 0.0, %v7115
        %v7117 = vpop.f32.mrb[0].mxu0
        %v7118 = vadd.f32 0.0, %v7117
        %7119 = vmatprep.mubr.bf16.mxu0 %v4184
        %7120 = vmatmul.mubr.bf16.gmra.mrb[0].mxu0 %v4183
        %v7121 = vpop.f32.mrb[0].mxu0
        %v7122 = vadd.f32 0.0, %v7121
        %v7123 = vpop.f32.mrb[0].mxu0
        %v7124 = vadd.f32 0.0, %v7123
        %v7125 = vpop.f32.mrb[0].mxu0
        %v7126 = vadd.f32 0.0, %v7125
        %v7127 = vpop.f32.mrb[0].mxu0
        %v7128 = vadd.f32 0.0, %v7127
        %7129 = vmatprep.mubr.bf16.mxu0 %v4187
        %7130 = vmatmul.mubr.bf16.gmra.mrb[0].mxu0 %v4186
        %v7131 = vpop.f32.mrb[0].mxu0
        %v7132 = vadd.f32 0.0, %v7131
        %v7133 = vpop.f32.mrb[0].mxu0
        %v7134 = vadd.f32 0.0, %v7133
        %v7135 = vpop.f32.mrb[0].mxu0
        %v7136 = vadd.f32 0.0, %v7135
        %v7137 = vpop.f32.mrb[0].mxu0
        %v7138 = vadd.f32 0.0, %v7137
        %7139 = vmatprep.mubr.bf16.mxu0 %v4190
        %7140 = vmatmul.mubr.bf16.gmra.mrb[0].mxu0 %v4189
        %v7141 = vpop.f32.mrb[0].mxu0
        %v7142 = vadd.f32 0.0, %v7141
        %v7143 = vpop.f32.mrb[0].mxu0
        %v7144 = vadd.f32 0.0, %v7143
        %v7145 = vpop.f32.mrb[0].mxu0
        %v7146 = vadd.f32 0.0, %v7145
        %v7147 = vpop.f32.mrb[0].mxu0
        %v7148 = vadd.f32 0.0, %v7147
        %7149 = vmatprep.mubr.bf16.mxu0 %v4193
        %7150 = vmatmul.mubr.bf16.gmra.mrb[0].mxu0 %v4192
        %v7151 = vpop.f32.mrb[0].mxu0
        %v7152 = vadd.f32 0.0, %v7151
        %v7153 = vpop.f32.mrb[0].mxu0
        %v7154 = vadd.f32 0.0, %v7153
        %v7155 = vpop.f32.mrb[0].mxu0
        %v7156 = vadd.f32 0.0, %v7155
        %v7157 = vpop.f32.mrb[0].mxu0
        %v7158 = vadd.f32 0.0, %v7157
        %7159 = vmatprep.mubr.bf16.mxu0 %v4196
        %7160 = vmatmul.mubr.bf16.gmra.mrb[0].mxu0 %v4195
        %v7161 = vpop.f32.mrb[0].mxu0
        %v7162 = vadd.f32 0.0, %v7161
        %v7163 = vpop.f32.mrb[0].mxu0
        %v7164 = vadd.f32 0.0, %v7163
        %v7165 = vpop.f32.mrb[0].mxu0
        %v7166 = vadd.f32 0.0, %v7165
        %v7167 = vpop.f32.mrb[0].mxu0
        %v7168 = vadd.f32 0.0, %v7167
        %7169 = vmatprep.mubr.bf16.mxu0 %v4199
        %7170 = vmatmul.mubr.bf16.gmra.mrb[0].mxu0 %v4198
        %v7171 = vpop.f32.mrb[0].mxu0
        %v7172 = vadd.f32 0.0, %v7171
        %v7173 = vpop.f32.mrb[0].mxu0
        %v7174 = vadd.f32 0.0, %v7173
        %v7175 = vpop.f32.mrb[0].mxu0
        %v7176 = vadd.f32 0.0, %v7175
        %v7177 = vpop.f32.mrb[0].mxu0
        %v7178 = vadd.f32 0.0, %v7177
        %7179 = vmatprep.mubr.bf16.mxu0 %v4202
        %7180 = vmatmul.mubr.bf16.gmra.mrb[0].mxu0 %v4201
        %v7181 = vpop.f32.mrb[0].mxu0
        %v7182 = vadd.f32 0.0, %v7181
        %v7183 = vpop.f32.mrb[0].mxu0
        %v7184 = vadd.f32 0.0, %v7183
        %v7185 = vpop.f32.mrb[0].mxu0
        %v7186 = vadd.f32 0.0, %v7185
        %v7187 = vpop.f32.mrb[0].mxu0
        %v7188 = vadd.f32 0.0, %v7187
        %7189 = vmatprep.mubr.bf16.mxu0 %v4205
        %7190 = vmatmul.mubr.bf16.gmra.mrb[0].mxu0 %v4204
        %v7191 = vpop.f32.mrb[0].mxu0
        %v7192 = vadd.f32 0.0, %v7191
        %v7193 = vpop.f32.mrb[0].mxu0
        %v7194 = vadd.f32 0.0, %v7193
        %v7195 = vpop.f32.mrb[0].mxu0
        %v7196 = vadd.f32 0.0, %v7195
        %v7197 = vpop.f32.mrb[0].mxu0
        %v7198 = vadd.f32 0.0, %v7197
        %7199 = vmatprep.mubr.bf16.mxu0 %v4208
        %7200 = vmatmul.mubr.bf16.gmra.mrb[0].mxu0 %v4207
        %v7201 = vpop.f32.mrb[0].mxu0
        %v7202 = vadd.f32 0.0, %v7201
        %v7203 = vpop.f32.mrb[0].mxu0
        %v7204 = vadd.f32 0.0, %v7203
        %v7205 = vpop.f32.mrb[0].mxu0
        %v7206 = vadd.f32 0.0, %v7205
        %v7207 = vpop.f32.mrb[0].mxu0
        %v7208 = vadd.f32 0.0, %v7207
        %7209 = vmatprep.mubr.bf16.mxu0 %v4211
        %7210 = vmatmul.mubr.bf16.gmra.mrb[0].mxu0 %v4210
        %v7211 = vpop.f32.mrb[0].mxu0
        %v7212 = vadd.f32 0.0, %v7211
        %v7213 = vpop.f32.mrb[0].mxu0
        %v7214 = vadd.f32 0.0, %v7213
        %v7215 = vpop.f32.mrb[0].mxu0
        %v7216 = vadd.f32 0.0, %v7215
        %v7217 = vpop.f32.mrb[0].mxu0
        %v7218 = vadd.f32 0.0, %v7217
        %7219 = vmatprep.mubr.bf16.mxu0 %v4214
        %7220 = vmatmul.mubr.bf16.gmra.mrb[0].mxu0 %v4213
        %v7221 = vpop.f32.mrb[0].mxu0
        %v7222 = vadd.f32 0.0, %v7221
        %v7223 = vpop.f32.mrb[0].mxu0
        %v7224 = vadd.f32 0.0, %v7223
        %v7225 = vpop.f32.mrb[0].mxu0
        %v7226 = vadd.f32 0.0, %v7225
        %v7227 = vpop.f32.mrb[0].mxu0
        %v7228 = vadd.f32 0.0, %v7227
        %7229 = vmatprep.mubr.bf16.mxu0 %v4217
        %7230 = vmatmul.mubr.bf16.gmra.mrb[0].mxu0 %v4216
        %v7231 = vpop.f32.mrb[0].mxu0
        %v7232 = vadd.f32 0.0, %v7231
        %v7233 = vpop.f32.mrb[0].mxu0
        %v7234 = vadd.f32 0.0, %v7233
        %v7235 = vpop.f32.mrb[0].mxu0
        %v7236 = vadd.f32 0.0, %v7235
        %v7237 = vpop.f32.mrb[0].mxu0
        %v7238 = vadd.f32 0.0, %v7237
        %7239 = vmatprep.mubr.bf16.mxu0 %v4220
        %7240 = vmatmul.mubr.bf16.gmra.mrb[0].mxu0 %v4219
        %v7241 = vpop.f32.mrb[0].mxu0
        %v7242 = vadd.f32 0.0, %v7241
        %v7243 = vpop.f32.mrb[0].mxu0
        %v7244 = vadd.f32 0.0, %v7243
        %v7245 = vpop.f32.mrb[0].mxu0
        %v7246 = vadd.f32 0.0, %v7245
        %v7247 = vpop.f32.mrb[0].mxu0
        %v7248 = vadd.f32 0.0, %v7247
        %7249 = vmatprep.mubr.bf16.mxu0 %v4223
        %7250 = vmatmul.mubr.bf16.gmra.mrb[0].mxu0 %v4222
        %v7251 = vpop.f32.mrb[0].mxu0
        %v7252 = vadd.f32 0.0, %v7251
        %v7253 = vpop.f32.mrb[0].mxu0
        %v7254 = vadd.f32 0.0, %v7253
        %v7255 = vpop.f32.mrb[0].mxu0
        %v7256 = vadd.f32 0.0, %v7255
        %v7257 = vpop.f32.mrb[0].mxu0
        %v7258 = vadd.f32 0.0, %v7257
        %7259 = vmatprep.mubr.bf16.mxu0 %v4226
        %7260 = vmatmul.mubr.bf16.gmra.mrb[0].mxu0 %v4225
        %v7261 = vpop.f32.mrb[0].mxu0
        %v7262 = vadd.f32 0.0, %v7261
        %v7263 = vpop.f32.mrb[0].mxu0
        %v7264 = vadd.f32 0.0, %v7263
        %v7265 = vpop.f32.mrb[0].mxu0
        %v7266 = vadd.f32 0.0, %v7265
        %v7267 = vpop.f32.mrb[0].mxu0
        %v7268 = vadd.f32 0.0, %v7267
        %7269 = vmatprep.mubr.bf16.mxu0 %v4229
        %7270 = vmatmul.mubr.bf16.gmra.mrb[0].mxu0 %v4228
        %v7271 = vpop.f32.mrb[0].mxu0
        %v7272 = vadd.f32 0.0, %v7271
        %v7273 = vpop.f32.mrb[0].mxu0
        %v7274 = vadd.f32 0.0, %v7273
        %v7275 = vpop.f32.mrb[0].mxu0
        %v7276 = vadd.f32 0.0, %v7275
        %v7277 = vpop.f32.mrb[0].mxu0
        %v7278 = vadd.f32 0.0, %v7277
        %7279 = vmatprep.mubr.bf16.mxu0 %v4232
        %7280 = vmatmul.mubr.bf16.gmra.mrb[0].mxu0 %v4231
        %v7281 = vpop.f32.mrb[0].mxu0
        %v7282 = vadd.f32 0.0, %v7281
        %v7283 = vpop.f32.mrb[0].mxu0
        %v7284 = vadd.f32 0.0, %v7283
        %v7285 = vpop.f32.mrb[0].mxu0
        %v7286 = vadd.f32 0.0, %v7285
        %v7287 = vpop.f32.mrb[0].mxu0
        %v7288 = vadd.f32 0.0, %v7287
        %7289 = vmatprep.mubr.bf16.mxu0 %v4235
        %7290 = vmatmul.mubr.bf16.gmra.mrb[0].mxu0 %v4234
        %v7291 = vpop.f32.mrb[0].mxu0
        %v7292 = vadd.f32 0.0, %v7291
        %v7293 = vpop.f32.mrb[0].mxu0
        %v7294 = vadd.f32 0.0, %v7293
        %v7295 = vpop.f32.mrb[0].mxu0
        %v7296 = vadd.f32 0.0, %v7295
        %v7297 = vpop.f32.mrb[0].mxu0
        %v7298 = vadd.f32 0.0, %v7297
        %7299 = vmatprep.mubr.bf16.mxu0 %v4238
        %7300 = vmatmul.mubr.bf16.gmra.mrb[0].mxu0 %v4237
        %v7301 = vpop.f32.mrb[0].mxu0
        %v7302 = vadd.f32 0.0, %v7301
        %v7303 = vpop.f32.mrb[0].mxu0
        %v7304 = vadd.f32 0.0, %v7303
        %v7305 = vpop.f32.mrb[0].mxu0
        %v7306 = vadd.f32 0.0, %v7305
        %v7307 = vpop.f32.mrb[0].mxu0
        %v7308 = vadd.f32 0.0, %v7307
        %7309 = vmatprep.mubr.bf16.mxu0 %v4241
        %7310 = vmatmul.mubr.bf16.gmra.mrb[0].mxu0 %v4240
        %v7311 = vpop.f32.mrb[0].mxu0
        %v7312 = vadd.f32 0.0, %v7311
        %v7313 = vpop.f32.mrb[0].mxu0
        %v7314 = vadd.f32 0.0, %v7313
        %v7315 = vpop.f32.mrb[0].mxu0
        %v7316 = vadd.f32 0.0, %v7315
        %v7317 = vpop.f32.mrb[0].mxu0
        %v7318 = vadd.f32 0.0, %v7317
        %7319 = vdwg.mxu0
        %7320 = vmatprep.subr.bf16.mxu0 %v6872
        %7321 = vmatpush1.bf16.msra.mxu0 %v6871
        %7322 = vmatprep.subr.bf16.mxu0 %v6875
        %7323 = vmatpush1.bf16.msra.mxu0 %v6874
        %7324 = vmatprep.subr.bf16.mxu0 %v6878
        %7325 = vmatpush1.bf16.msra.mxu0 %v6877
        %7326 = vmatprep.subr.bf16.mxu0 %v6881
        %7327 = vmatpush1.bf16.msra.mxu0 %v6880
        %7328 = vmatprep.subr.bf16.mxu0 %v6884
        %7329 = vmatpush1.bf16.msra.mxu0 %v6883
        %7330 = vmatprep.subr.bf16.mxu0 %v6887
        %7331 = vmatpush1.bf16.msra.mxu0 %v6886
        %7332 = vmatprep.subr.bf16.mxu0 %v6890
        %7333 = vmatpush1.bf16.msra.mxu0 %v6889
        %7334 = vmatprep.subr.bf16.mxu0 %v6893
        %7335 = vmatpush1.bf16.msra.mxu0 %v6892
        %7336 = vmatprep.subr.bf16.mxu0 0
        %7337 = vmatpush1.bf16.msra.mxu0 0
        %7338 = vmatprep.subr.bf16.mxu0 0
        %7339 = vmatpush1.bf16.msra.mxu0 0
        %7340 = vmatprep.subr.bf16.mxu0 0
        %7341 = vmatpush1.bf16.msra.mxu0 0
        %7342 = vmatprep.subr.bf16.mxu0 0
        %7343 = vmatpush1.bf16.msra.mxu0 0
        %7344 = vmatprep.subr.bf16.mxu0 0
        %7345 = vmatpush1.bf16.msra.mxu0 0
        %7346 = vmatprep.subr.bf16.mxu0 0
        %7347 = vmatpush1.bf16.msra.mxu0 0
        %7348 = vmatprep.subr.bf16.mxu0 0
        %7349 = vmatpush1.bf16.msra.mxu0 0
        %7350 = vmatprep.subr.bf16.mxu0 0
        %7351 = vmatpush1.bf16.msra.mxu0 0
        %7352 = vmatprep.mubr.bf16.mxu0 0
        %7353 = vmatmul.mubr.bf16.gmra.mrb[0].mxu0 %v4149
        %v7354 = vpop.f32.mrb[0].mxu0
        %v7355 = vadd.f32 %v7002, %v7354
        %v7356 = vpop.f32.mrb[0].mxu0
        %v7357 = vadd.f32 %v7004, %v7356
        %v7358 = vpop.f32.mrb[0].mxu0
        %v7359 = vadd.f32 %v7006, %v7358
        %v7360 = vpop.f32.mrb[0].mxu0
        %v7361 = vadd.f32 %v7008, %v7360
        %7362 = vmatprep.mubr.bf16.mxu0 0
        %7363 = vmatmul.mubr.bf16.gmra.mrb[0].mxu0 %v4152
        %v7364 = vpop.f32.mrb[0].mxu0
        %v7365 = vadd.f32 %v7012, %v7364
        %v7366 = vpop.f32.mrb[0].mxu0
        %v7367 = vadd.f32 %v7014, %v7366
        %v7368 = vpop.f32.mrb[0].mxu0
        %v7369 = vadd.f32 %v7016, %v7368
        %v7370 = vpop.f32.mrb[0].mxu0
        %v7371 = vadd.f32 %v7018, %v7370
        %7372 = vmatprep.mubr.bf16.mxu0 0
        %7373 = vmatmul.mubr.bf16.gmra.mrb[0].mxu0 %v4155
        %v7374 = vpop.f32.mrb[0].mxu0
        %v7375 = vadd.f32 %v7022, %v7374
        %v7376 = vpop.f32.mrb[0].mxu0
        %v7377 = vadd.f32 %v7024, %v7376
        %v7378 = vpop.f32.mrb[0].mxu0
        %v7379 = vadd.f32 %v7026, %v7378
        %v7380 = vpop.f32.mrb[0].mxu0
        %v7381 = vadd.f32 %v7028, %v7380
        %7382 = vmatprep.mubr.bf16.mxu0 0
        %7383 = vmatmul.mubr.bf16.gmra.mrb[0].mxu0 %v4158
        %v7384 = vpop.f32.mrb[0].mxu0
        %v7385 = vadd.f32 %v7032, %v7384
        %v7386 = vpop.f32.mrb[0].mxu0
        %v7387 = vadd.f32 %v7034, %v7386
        %v7388 = vpop.f32.mrb[0].mxu0
        %v7389 = vadd.f32 %v7036, %v7388
        %v7390 = vpop.f32.mrb[0].mxu0
        %v7391 = vadd.f32 %v7038, %v7390
        %7392 = vmatprep.mubr.bf16.mxu0 0
        %7393 = vmatmul.mubr.bf16.gmra.mrb[0].mxu0 %v4161
        %v7394 = vpop.f32.mrb[0].mxu0
        %v7395 = vadd.f32 %v7042, %v7394
        %v7396 = vpop.f32.mrb[0].mxu0
        %v7397 = vadd.f32 %v7044, %v7396
        %v7398 = vpop.f32.mrb[0].mxu0
        %v7399 = vadd.f32 %v7046, %v7398
        %v7400 = vpop.f32.mrb[0].mxu0
        %v7401 = vadd.f32 %v7048, %v7400
        %7402 = vmatprep.mubr.bf16.mxu0 0
        %7403 = vmatmul.mubr.bf16.gmra.mrb[0].mxu0 %v4164
        %v7404 = vpop.f32.mrb[0].mxu0
        %v7405 = vadd.f32 %v7052, %v7404
        %v7406 = vpop.f32.mrb[0].mxu0
        %v7407 = vadd.f32 %v7054, %v7406
        %v7408 = vpop.f32.mrb[0].mxu0
        %v7409 = vadd.f32 %v7056, %v7408
        %v7410 = vpop.f32.mrb[0].mxu0
        %v7411 = vadd.f32 %v7058, %v7410
        %7412 = vmatprep.mubr.bf16.mxu0 0
        %7413 = vmatmul.mubr.bf16.gmra.mrb[0].mxu0 %v4167
        %v7414 = vpop.f32.mrb[0].mxu0
        %v7415 = vadd.f32 %v7062, %v7414
        %v7416 = vpop.f32.mrb[0].mxu0
        %v7417 = vadd.f32 %v7064, %v7416
        %v7418 = vpop.f32.mrb[0].mxu0
        %v7419 = vadd.f32 %v7066, %v7418
        %v7420 = vpop.f32.mrb[0].mxu0
        %v7421 = vadd.f32 %v7068, %v7420
        %7422 = vmatprep.mubr.bf16.mxu0 0
        %7423 = vmatmul.mubr.bf16.gmra.mrb[0].mxu0 %v4170
        %v7424 = vpop.f32.mrb[0].mxu0
        %v7425 = vadd.f32 %v7072, %v7424
        %v7426 = vpop.f32.mrb[0].mxu0
        %v7427 = vadd.f32 %v7074, %v7426
        %v7428 = vpop.f32.mrb[0].mxu0
        %v7429 = vadd.f32 %v7076, %v7428
        %v7430 = vpop.f32.mrb[0].mxu0
        %v7431 = vadd.f32 %v7078, %v7430
        %7432 = vmatprep.mubr.bf16.mxu0 0
        %7433 = vmatmul.mubr.bf16.gmra.mrb[0].mxu0 %v4173
        %v7434 = vpop.f32.mrb[0].mxu0
        %v7435 = vadd.f32 %v7082, %v7434
        %v7436 = vpop.f32.mrb[0].mxu0
        %v7437 = vadd.f32 %v7084, %v7436
        %v7438 = vpop.f32.mrb[0].mxu0
        %v7439 = vadd.f32 %v7086, %v7438
        %v7440 = vpop.f32.mrb[0].mxu0
        %v7441 = vadd.f32 %v7088, %v7440
        %7442 = vmatprep.mubr.bf16.mxu0 0
        %7443 = vmatmul.mubr.bf16.gmra.mrb[0].mxu0 %v4176
        %v7444 = vpop.f32.mrb[0].mxu0
        %v7445 = vadd.f32 %v7092, %v7444
        %v7446 = vpop.f32.mrb[0].mxu0
        %v7447 = vadd.f32 %v7094, %v7446
        %v7448 = vpop.f32.mrb[0].mxu0
        %v7449 = vadd.f32 %v7096, %v7448
        %v7450 = vpop.f32.mrb[0].mxu0
        %v7451 = vadd.f32 %v7098, %v7450
        %7452 = vmatprep.mubr.bf16.mxu0 0
        %7453 = vmatmul.mubr.bf16.gmra.mrb[0].mxu0 %v4179
        %v7454 = vpop.f32.mrb[0].mxu0
        %v7455 = vadd.f32 %v7102, %v7454
        %v7456 = vpop.f32.mrb[0].mxu0
        %v7457 = vadd.f32 %v7104, %v7456
        %v7458 = vpop.f32.mrb[0].mxu0
        %v7459 = vadd.f32 %v7106, %v7458
        %v7460 = vpop.f32.mrb[0].mxu0
        %v7461 = vadd.f32 %v7108, %v7460
        %7462 = vmatprep.mubr.bf16.mxu0 0
        %7463 = vmatmul.mubr.bf16.gmra.mrb[0].mxu0 %v4182
        %v7464 = vpop.f32.mrb[0].mxu0
        %v7465 = vadd.f32 %v7112, %v7464
        %v7466 = vpop.f32.mrb[0].mxu0
        %v7467 = vadd.f32 %v7114, %v7466
        %v7468 = vpop.f32.mrb[0].mxu0
        %v7469 = vadd.f32 %v7116, %v7468
        %v7470 = vpop.f32.mrb[0].mxu0
        %v7471 = vadd.f32 %v7118, %v7470
        %7472 = vmatprep.mubr.bf16.mxu0 0
        %7473 = vmatmul.mubr.bf16.gmra.mrb[0].mxu0 %v4185
        %v7474 = vpop.f32.mrb[0].mxu0
        %v7475 = vadd.f32 %v7122, %v7474
        %v7476 = vpop.f32.mrb[0].mxu0
        %v7477 = vadd.f32 %v7124, %v7476
        %v7478 = vpop.f32.mrb[0].mxu0
        %v7479 = vadd.f32 %v7126, %v7478
        %v7480 = vpop.f32.mrb[0].mxu0
        %v7481 = vadd.f32 %v7128, %v7480
        %7482 = vmatprep.mubr.bf16.mxu0 0
        %7483 = vmatmul.mubr.bf16.gmra.mrb[0].mxu0 %v4188
        %v7484 = vpop.f32.mrb[0].mxu0
        %v7485 = vadd.f32 %v7132, %v7484
        %v7486 = vpop.f32.mrb[0].mxu0
        %v7487 = vadd.f32 %v7134, %v7486
        %v7488 = vpop.f32.mrb[0].mxu0
        %v7489 = vadd.f32 %v7136, %v7488
        %v7490 = vpop.f32.mrb[0].mxu0
        %v7491 = vadd.f32 %v7138, %v7490
        %7492 = vmatprep.mubr.bf16.mxu0 0
        %7493 = vmatmul.mubr.bf16.gmra.mrb[0].mxu0 %v4191
        %v7494 = vpop.f32.mrb[0].mxu0
        %v7495 = vadd.f32 %v7142, %v7494
        %v7496 = vpop.f32.mrb[0].mxu0
        %v7497 = vadd.f32 %v7144, %v7496
        %v7498 = vpop.f32.mrb[0].mxu0
        %v7499 = vadd.f32 %v7146, %v7498
        %v7500 = vpop.f32.mrb[0].mxu0
        %v7501 = vadd.f32 %v7148, %v7500
        %7502 = vmatprep.mubr.bf16.mxu0 0
        %7503 = vmatmul.mubr.bf16.gmra.mrb[0].mxu0 %v4194
        %v7504 = vpop.f32.mrb[0].mxu0
        %v7505 = vadd.f32 %v7152, %v7504
        %v7506 = vpop.f32.mrb[0].mxu0
        %v7507 = vadd.f32 %v7154, %v7506
        %v7508 = vpop.f32.mrb[0].mxu0
        %v7509 = vadd.f32 %v7156, %v7508
        %v7510 = vpop.f32.mrb[0].mxu0
        %v7511 = vadd.f32 %v7158, %v7510
        %7512 = vmatprep.mubr.bf16.mxu0 0
        %7513 = vmatmul.mubr.bf16.gmra.mrb[0].mxu0 %v4197
        %v7514 = vpop.f32.mrb[0].mxu0
        %v7515 = vadd.f32 %v7162, %v7514
        %v7516 = vpop.f32.mrb[0].mxu0
        %v7517 = vadd.f32 %v7164, %v7516
        %v7518 = vpop.f32.mrb[0].mxu0
        %v7519 = vadd.f32 %v7166, %v7518
        %v7520 = vpop.f32.mrb[0].mxu0
        %v7521 = vadd.f32 %v7168, %v7520
        %7522 = vmatprep.mubr.bf16.mxu0 0
        %7523 = vmatmul.mubr.bf16.gmra.mrb[0].mxu0 %v4200
        %v7524 = vpop.f32.mrb[0].mxu0
        %v7525 = vadd.f32 %v7172, %v7524
        %v7526 = vpop.f32.mrb[0].mxu0
        %v7527 = vadd.f32 %v7174, %v7526
        %v7528 = vpop.f32.mrb[0].mxu0
        %v7529 = vadd.f32 %v7176, %v7528
        %v7530 = vpop.f32.mrb[0].mxu0
        %v7531 = vadd.f32 %v7178, %v7530
        %7532 = vmatprep.mubr.bf16.mxu0 0
        %7533 = vmatmul.mubr.bf16.gmra.mrb[0].mxu0 %v4203
        %v7534 = vpop.f32.mrb[0].mxu0
        %v7535 = vadd.f32 %v7182, %v7534
        %v7536 = vpop.f32.mrb[0].mxu0
        %v7537 = vadd.f32 %v7184, %v7536
        %v7538 = vpop.f32.mrb[0].mxu0
        %v7539 = vadd.f32 %v7186, %v7538
        %v7540 = vpop.f32.mrb[0].mxu0
        %v7541 = vadd.f32 %v7188, %v7540
        %7542 = vmatprep.mubr.bf16.mxu0 0
        %7543 = vmatmul.mubr.bf16.gmra.mrb[0].mxu0 %v4206
        %v7544 = vpop.f32.mrb[0].mxu0
        %v7545 = vadd.f32 %v7192, %v7544
        %v7546 = vpop.f32.mrb[0].mxu0
        %v7547 = vadd.f32 %v7194, %v7546
        %v7548 = vpop.f32.mrb[0].mxu0
        %v7549 = vadd.f32 %v7196, %v7548
        %v7550 = vpop.f32.mrb[0].mxu0
        %v7551 = vadd.f32 %v7198, %v7550
        %7552 = vmatprep.mubr.bf16.mxu0 0
        %7553 = vmatmul.mubr.bf16.gmra.mrb[0].mxu0 %v4209
        %v7554 = vpop.f32.mrb[0].mxu0
        %v7555 = vadd.f32 %v7202, %v7554
        %v7556 = vpop.f32.mrb[0].mxu0
        %v7557 = vadd.f32 %v7204, %v7556
        %v7558 = vpop.f32.mrb[0].mxu0
        %v7559 = vadd.f32 %v7206, %v7558
        %v7560 = vpop.f32.mrb[0].mxu0
        %v7561 = vadd.f32 %v7208, %v7560
        %7562 = vmatprep.mubr.bf16.mxu0 0
        %7563 = vmatmul.mubr.bf16.gmra.mrb[0].mxu0 %v4212
        %v7564 = vpop.f32.mrb[0].mxu0
        %v7565 = vadd.f32 %v7212, %v7564
        %v7566 = vpop.f32.mrb[0].mxu0
        %v7567 = vadd.f32 %v7214, %v7566
        %v7568 = vpop.f32.mrb[0].mxu0
        %v7569 = vadd.f32 %v7216, %v7568
        %v7570 = vpop.f32.mrb[0].mxu0
        %v7571 = vadd.f32 %v7218, %v7570
        %7572 = vmatprep.mubr.bf16.mxu0 0
        %7573 = vmatmul.mubr.bf16.gmra.mrb[0].mxu0 %v4215
        %v7574 = vpop.f32.mrb[0].mxu0
        %v7575 = vadd.f32 %v7222, %v7574
        %v7576 = vpop.f32.mrb[0].mxu0
        %v7577 = vadd.f32 %v7224, %v7576
        %v7578 = vpop.f32.mrb[0].mxu0
        %v7579 = vadd.f32 %v7226, %v7578
        %v7580 = vpop.f32.mrb[0].mxu0
        %v7581 = vadd.f32 %v7228, %v7580
        %7582 = vmatprep.mubr.bf16.mxu0 0
        %7583 = vmatmul.mubr.bf16.gmra.mrb[0].mxu0 %v4218
        %v7584 = vpop.f32.mrb[0].mxu0
        %v7585 = vadd.f32 %v7232, %v7584
        %v7586 = vpop.f32.mrb[0].mxu0
        %v7587 = vadd.f32 %v7234, %v7586
        %v7588 = vpop.f32.mrb[0].mxu0
        %v7589 = vadd.f32 %v7236, %v7588
        %v7590 = vpop.f32.mrb[0].mxu0
        %v7591 = vadd.f32 %v7238, %v7590
        %7592 = vmatprep.mubr.bf16.mxu0 0
        %7593 = vmatmul.mubr.bf16.gmra.mrb[0].mxu0 %v4221
        %v7594 = vpop.f32.mrb[0].mxu0
        %v7595 = vadd.f32 %v7242, %v7594
        %v7596 = vpop.f32.mrb[0].mxu0
        %v7597 = vadd.f32 %v7244, %v7596
        %v7598 = vpop.f32.mrb[0].mxu0
        %v7599 = vadd.f32 %v7246, %v7598
        %v7600 = vpop.f32.mrb[0].mxu0
        %v7601 = vadd.f32 %v7248, %v7600
        %7602 = vmatprep.mubr.bf16.mxu0 0
        %7603 = vmatmul.mubr.bf16.gmra.mrb[0].mxu0 %v4224
        %v7604 = vpop.f32.mrb[0].mxu0
        %v7605 = vadd.f32 %v7252, %v7604
        %v7606 = vpop.f32.mrb[0].mxu0
        %v7607 = vadd.f32 %v7254, %v7606
        %v7608 = vpop.f32.mrb[0].mxu0
        %v7609 = vadd.f32 %v7256, %v7608
        %v7610 = vpop.f32.mrb[0].mxu0
        %v7611 = vadd.f32 %v7258, %v7610
        %7612 = vmatprep.mubr.bf16.mxu0 0
        %7613 = vmatmul.mubr.bf16.gmra.mrb[0].mxu0 %v4227
        %v7614 = vpop.f32.mrb[0].mxu0
        %v7615 = vadd.f32 %v7262, %v7614
        %v7616 = vpop.f32.mrb[0].mxu0
        %v7617 = vadd.f32 %v7264, %v7616
        %v7618 = vpop.f32.mrb[0].mxu0
        %v7619 = vadd.f32 %v7266, %v7618
        %v7620 = vpop.f32.mrb[0].mxu0
        %v7621 = vadd.f32 %v7268, %v7620
        %7622 = vmatprep.mubr.bf16.mxu0 0
        %7623 = vmatmul.mubr.bf16.gmra.mrb[0].mxu0 %v4230
        %v7624 = vpop.f32.mrb[0].mxu0
        %v7625 = vadd.f32 %v7272, %v7624
        %v7626 = vpop.f32.mrb[0].mxu0
        %v7627 = vadd.f32 %v7274, %v7626
        %v7628 = vpop.f32.mrb[0].mxu0
        %v7629 = vadd.f32 %v7276, %v7628
        %v7630 = vpop.f32.mrb[0].mxu0
        %v7631 = vadd.f32 %v7278, %v7630
        %7632 = vmatprep.mubr.bf16.mxu0 0
        %7633 = vmatmul.mubr.bf16.gmra.mrb[0].mxu0 %v4233
        %v7634 = vpop.f32.mrb[0].mxu0
        %v7635 = vadd.f32 %v7282, %v7634
        %v7636 = vpop.f32.mrb[0].mxu0
        %v7637 = vadd.f32 %v7284, %v7636
        %v7638 = vpop.f32.mrb[0].mxu0
        %v7639 = vadd.f32 %v7286, %v7638
        %v7640 = vpop.f32.mrb[0].mxu0
        %v7641 = vadd.f32 %v7288, %v7640
        %7642 = vmatprep.mubr.bf16.mxu0 0
        %7643 = vmatmul.mubr.bf16.gmra.mrb[0].mxu0 %v4236
        %v7644 = vpop.f32.mrb[0].mxu0
        %v7645 = vadd.f32 %v7292, %v7644
        %v7646 = vpop.f32.mrb[0].mxu0
        %v7647 = vadd.f32 %v7294, %v7646
        %v7648 = vpop.f32.mrb[0].mxu0
        %v7649 = vadd.f32 %v7296, %v7648
        %v7650 = vpop.f32.mrb[0].mxu0
        %v7651 = vadd.f32 %v7298, %v7650
        %7652 = vmatprep.mubr.bf16.mxu0 0
        %7653 = vmatmul.mubr.bf16.gmra.mrb[0].mxu0 %v4239
        %v7654 = vpop.f32.mrb[0].mxu0
        %v7655 = vadd.f32 %v7302, %v7654
        %v7656 = vpop.f32.mrb[0].mxu0
        %v7657 = vadd.f32 %v7304, %v7656
        %v7658 = vpop.f32.mrb[0].mxu0
        %v7659 = vadd.f32 %v7306, %v7658
        %v7660 = vpop.f32.mrb[0].mxu0
        %v7661 = vadd.f32 %v7308, %v7660
        %7662 = vmatprep.mubr.bf16.mxu0 0
        %7663 = vmatmul.mubr.bf16.gmra.mrb[0].mxu0 %v4242
        %v7664 = vpop.f32.mrb[0].mxu0
        %v7665 = vadd.f32 %v7312, %v7664
        %v7666 = vpop.f32.mrb[0].mxu0
        %v7667 = vadd.f32 %v7314, %v7666
        %v7668 = vpop.f32.mrb[0].mxu0
        %v7669 = vadd.f32 %v7316, %v7668
        %v7670 = vpop.f32.mrb[0].mxu0
        %v7671 = vadd.f32 %v7318, %v7670
        %7672 = vdwg.mxu0
        %7673 = vmatprep.subr.bf16.mxu0 0
        %7674 = vmatpush1.bf16.msra.mxu0 %v6825
        %7675 = vmatprep.subr.bf16.mxu0 0
        %7676 = vmatpush1.bf16.msra.mxu0 %v6828
        %7677 = vmatprep.subr.bf16.mxu0 0
        %7678 = vmatpush1.bf16.msra.mxu0 %v6831
        %7679 = vmatprep.subr.bf16.mxu0 0
        %7680 = vmatpush1.bf16.msra.mxu0 %v6834
        %7681 = vmatprep.subr.bf16.mxu0 0
        %7682 = vmatpush1.bf16.msra.mxu0 %v6837
        %7683 = vmatprep.subr.bf16.mxu0 0
        %7684 = vmatpush1.bf16.msra.mxu0 %v6840
        %7685 = vmatprep.subr.bf16.mxu0 0
        %7686 = vmatpush1.bf16.msra.mxu0 %v6843
        %7687 = vmatprep.subr.bf16.mxu0 0
        %7688 = vmatpush1.bf16.msra.mxu0 %v6846
        %7689 = vmatprep.subr.bf16.mxu0 0
        %7690 = vmatpush1.bf16.msra.mxu0 %v6849
        %7691 = vmatprep.subr.bf16.mxu0 0
        %7692 = vmatpush1.bf16.msra.mxu0 %v6852
        %7693 = vmatprep.subr.bf16.mxu0 0
        %7694 = vmatpush1.bf16.msra.mxu0 %v6855
        %7695 = vmatprep.subr.bf16.mxu0 0
        %7696 = vmatpush1.bf16.msra.mxu0 %v6858
        %7697 = vmatprep.subr.bf16.mxu0 0
        %7698 = vmatpush1.bf16.msra.mxu0 %v6861
        %7699 = vmatprep.subr.bf16.mxu0 0
        %7700 = vmatpush1.bf16.msra.mxu0 %v6864
        %7701 = vmatprep.subr.bf16.mxu0 0
        %7702 = vmatpush1.bf16.msra.mxu0 %v6867
        %7703 = vmatprep.subr.bf16.mxu0 0
        %7704 = vmatpush1.bf16.msra.mxu0 %v6870
        %7705 = vmatprep.mubr.bf16.mxu0 %v4148
        %7706 = vmatmul.mubr.bf16.gmra.mrb[0].mxu0 %v4147
        %v7707 = vpop.f32.mrb[0].mxu0
        %v7708 = vadd.f32 0.0, %v7707
        %v7709 = vpop.f32.mrb[0].mxu0
        %v7710 = vpop.f32.mrb[0].mxu0
        %v7711 = vadd.f32 0.0, %v7710
        %v7712 = vpop.f32.mrb[0].mxu0
        %7713 = vmatprep.mubr.bf16.mxu0 %v4151
        %7714 = vmatmul.mubr.bf16.gmra.mrb[0].mxu0 %v4150
        %v7715 = vpop.f32.mrb[0].mxu0
        %v7716 = vadd.f32 0.0, %v7715
        %v7717 = vpop.f32.mrb[0].mxu0
        %v7718 = vpop.f32.mrb[0].mxu0
        %v7719 = vadd.f32 0.0, %v7718
        %v7720 = vpop.f32.mrb[0].mxu0
        %7721 = vmatprep.mubr.bf16.mxu0 %v4154
        %7722 = vmatmul.mubr.bf16.gmra.mrb[0].mxu0 %v4153
        %v7723 = vpop.f32.mrb[0].mxu0
        %v7724 = vadd.f32 0.0, %v7723
        %v7725 = vpop.f32.mrb[0].mxu0
        %v7726 = vpop.f32.mrb[0].mxu0
        %v7727 = vadd.f32 0.0, %v7726
        %v7728 = vpop.f32.mrb[0].mxu0
        %7729 = vmatprep.mubr.bf16.mxu0 %v4157
        %7730 = vmatmul.mubr.bf16.gmra.mrb[0].mxu0 %v4156
        %v7731 = vpop.f32.mrb[0].mxu0
        %v7732 = vadd.f32 0.0, %v7731
        %v7733 = vpop.f32.mrb[0].mxu0
        %v7734 = vpop.f32.mrb[0].mxu0
        %v7735 = vadd.f32 0.0, %v7734
        %v7736 = vpop.f32.mrb[0].mxu0
        %7737 = vmatprep.mubr.bf16.mxu0 %v4160
        %7738 = vmatmul.mubr.bf16.gmra.mrb[0].mxu0 %v4159
        %v7739 = vpop.f32.mrb[0].mxu0
        %v7740 = vadd.f32 0.0, %v7739
        %v7741 = vpop.f32.mrb[0].mxu0
        %v7742 = vpop.f32.mrb[0].mxu0
        %v7743 = vadd.f32 0.0, %v7742
        %v7744 = vpop.f32.mrb[0].mxu0
        %7745 = vmatprep.mubr.bf16.mxu0 %v4163
        %7746 = vmatmul.mubr.bf16.gmra.mrb[0].mxu0 %v4162
        %v7747 = vpop.f32.mrb[0].mxu0
        %v7748 = vadd.f32 0.0, %v7747
        %v7749 = vpop.f32.mrb[0].mxu0
        %v7750 = vpop.f32.mrb[0].mxu0
        %v7751 = vadd.f32 0.0, %v7750
        %v7752 = vpop.f32.mrb[0].mxu0
        %7753 = vmatprep.mubr.bf16.mxu0 %v4166
        %7754 = vmatmul.mubr.bf16.gmra.mrb[0].mxu0 %v4165
        %v7755 = vpop.f32.mrb[0].mxu0
        %v7756 = vadd.f32 0.0, %v7755
        %v7757 = vpop.f32.mrb[0].mxu0
        %v7758 = vpop.f32.mrb[0].mxu0
        %v7759 = vadd.f32 0.0, %v7758
        %v7760 = vpop.f32.mrb[0].mxu0
        %7761 = vmatprep.mubr.bf16.mxu0 %v4169
        %7762 = vmatmul.mubr.bf16.gmra.mrb[0].mxu0 %v4168
        %v7763 = vpop.f32.mrb[0].mxu0
        %v7764 = vadd.f32 0.0, %v7763
        %v7765 = vpop.f32.mrb[0].mxu0
        %v7766 = vpop.f32.mrb[0].mxu0
        %v7767 = vadd.f32 0.0, %v7766
        %v7768 = vpop.f32.mrb[0].mxu0
        %7769 = vmatprep.mubr.bf16.mxu0 %v4172
        %7770 = vmatmul.mubr.bf16.gmra.mrb[0].mxu0 %v4171
        %v7771 = vpop.f32.mrb[0].mxu0
        %v7772 = vadd.f32 0.0, %v7771
        %v7773 = vpop.f32.mrb[0].mxu0
        %v7774 = vpop.f32.mrb[0].mxu0
        %v7775 = vadd.f32 0.0, %v7774
        %v7776 = vpop.f32.mrb[0].mxu0
        %7777 = vmatprep.mubr.bf16.mxu0 %v4175
        %7778 = vmatmul.mubr.bf16.gmra.mrb[0].mxu0 %v4174
        %v7779 = vpop.f32.mrb[0].mxu0
        %v7780 = vadd.f32 0.0, %v7779
        %v7781 = vpop.f32.mrb[0].mxu0
        %v7782 = vpop.f32.mrb[0].mxu0
        %v7783 = vadd.f32 0.0, %v7782
        %v7784 = vpop.f32.mrb[0].mxu0
        %7785 = vmatprep.mubr.bf16.mxu0 %v4178
        %7786 = vmatmul.mubr.bf16.gmra.mrb[0].mxu0 %v4177
        %v7787 = vpop.f32.mrb[0].mxu0
        %v7788 = vadd.f32 0.0, %v7787
        %v7789 = vpop.f32.mrb[0].mxu0
        %v7790 = vpop.f32.mrb[0].mxu0
        %v7791 = vadd.f32 0.0, %v7790
        %v7792 = vpop.f32.mrb[0].mxu0
        %7793 = vmatprep.mubr.bf16.mxu0 %v4181
        %7794 = vmatmul.mubr.bf16.gmra.mrb[0].mxu0 %v4180
        %v7795 = vpop.f32.mrb[0].mxu0
        %v7796 = vadd.f32 0.0, %v7795
        %v7797 = vpop.f32.mrb[0].mxu0
        %v7798 = vpop.f32.mrb[0].mxu0
        %v7799 = vadd.f32 0.0, %v7798
        %v7800 = vpop.f32.mrb[0].mxu0
        %7801 = vmatprep.mubr.bf16.mxu0 %v4184
        %7802 = vmatmul.mubr.bf16.gmra.mrb[0].mxu0 %v4183
        %v7803 = vpop.f32.mrb[0].mxu0
        %v7804 = vadd.f32 0.0, %v7803
        %v7805 = vpop.f32.mrb[0].mxu0
        %v7806 = vpop.f32.mrb[0].mxu0
        %v7807 = vadd.f32 0.0, %v7806
        %v7808 = vpop.f32.mrb[0].mxu0
        %7809 = vmatprep.mubr.bf16.mxu0 %v4187
        %7810 = vmatmul.mubr.bf16.gmra.mrb[0].mxu0 %v4186
        %v7811 = vpop.f32.mrb[0].mxu0
        %v7812 = vadd.f32 0.0, %v7811
        %v7813 = vpop.f32.mrb[0].mxu0
        %v7814 = vpop.f32.mrb[0].mxu0
        %v7815 = vadd.f32 0.0, %v7814
        %v7816 = vpop.f32.mrb[0].mxu0
        %7817 = vmatprep.mubr.bf16.mxu0 %v4190
        %7818 = vmatmul.mubr.bf16.gmra.mrb[0].mxu0 %v4189
        %v7819 = vpop.f32.mrb[0].mxu0
        %v7820 = vadd.f32 0.0, %v7819
        %v7821 = vpop.f32.mrb[0].mxu0
        %v7822 = vpop.f32.mrb[0].mxu0
        %v7823 = vadd.f32 0.0, %v7822
        %v7824 = vpop.f32.mrb[0].mxu0
        %7825 = vmatprep.mubr.bf16.mxu0 %v4193
        %7826 = vmatmul.mubr.bf16.gmra.mrb[0].mxu0 %v4192
        %v7827 = vpop.f32.mrb[0].mxu0
        %v7828 = vadd.f32 0.0, %v7827
        %v7829 = vpop.f32.mrb[0].mxu0
        %v7830 = vpop.f32.mrb[0].mxu0
        %v7831 = vadd.f32 0.0, %v7830
        %v7832 = vpop.f32.mrb[0].mxu0
        %7833 = vmatprep.mubr.bf16.mxu0 %v4196
        %7834 = vmatmul.mubr.bf16.gmra.mrb[0].mxu0 %v4195
        %v7835 = vpop.f32.mrb[0].mxu0
        %v7836 = vadd.f32 0.0, %v7835
        %v7837 = vpop.f32.mrb[0].mxu0
        %v7838 = vpop.f32.mrb[0].mxu0
        %v7839 = vadd.f32 0.0, %v7838
        %v7840 = vpop.f32.mrb[0].mxu0
        %7841 = vmatprep.mubr.bf16.mxu0 %v4199
        %7842 = vmatmul.mubr.bf16.gmra.mrb[0].mxu0 %v4198
        %v7843 = vpop.f32.mrb[0].mxu0
        %v7844 = vadd.f32 0.0, %v7843
        %v7845 = vpop.f32.mrb[0].mxu0
        %v7846 = vpop.f32.mrb[0].mxu0
        %v7847 = vadd.f32 0.0, %v7846
        %v7848 = vpop.f32.mrb[0].mxu0
        %7849 = vmatprep.mubr.bf16.mxu0 %v4202
        %7850 = vmatmul.mubr.bf16.gmra.mrb[0].mxu0 %v4201
        %v7851 = vpop.f32.mrb[0].mxu0
        %v7852 = vadd.f32 0.0, %v7851
        %v7853 = vpop.f32.mrb[0].mxu0
        %v7854 = vpop.f32.mrb[0].mxu0
        %v7855 = vadd.f32 0.0, %v7854
        %v7856 = vpop.f32.mrb[0].mxu0
        %7857 = vmatprep.mubr.bf16.mxu0 %v4205
        %7858 = vmatmul.mubr.bf16.gmra.mrb[0].mxu0 %v4204
        %v7859 = vpop.f32.mrb[0].mxu0
        %v7860 = vadd.f32 0.0, %v7859
        %v7861 = vpop.f32.mrb[0].mxu0
        %v7862 = vpop.f32.mrb[0].mxu0
        %v7863 = vadd.f32 0.0, %v7862
        %v7864 = vpop.f32.mrb[0].mxu0
        %7865 = vmatprep.mubr.bf16.mxu0 %v4208
        %7866 = vmatmul.mubr.bf16.gmra.mrb[0].mxu0 %v4207
        %v7867 = vpop.f32.mrb[0].mxu0
        %v7868 = vadd.f32 0.0, %v7867
        %v7869 = vpop.f32.mrb[0].mxu0
        %v7870 = vpop.f32.mrb[0].mxu0
        %v7871 = vadd.f32 0.0, %v7870
        %v7872 = vpop.f32.mrb[0].mxu0
        %7873 = vmatprep.mubr.bf16.mxu0 %v4211
        %7874 = vmatmul.mubr.bf16.gmra.mrb[0].mxu0 %v4210
        %v7875 = vpop.f32.mrb[0].mxu0
        %v7876 = vadd.f32 0.0, %v7875
        %v7877 = vpop.f32.mrb[0].mxu0
        %v7878 = vpop.f32.mrb[0].mxu0
        %v7879 = vadd.f32 0.0, %v7878
        %v7880 = vpop.f32.mrb[0].mxu0
        %7881 = vmatprep.mubr.bf16.mxu0 %v4214
        %7882 = vmatmul.mubr.bf16.gmra.mrb[0].mxu0 %v4213
        %v7883 = vpop.f32.mrb[0].mxu0
        %v7884 = vadd.f32 0.0, %v7883
        %v7885 = vpop.f32.mrb[0].mxu0
        %v7886 = vpop.f32.mrb[0].mxu0
        %v7887 = vadd.f32 0.0, %v7886
        %v7888 = vpop.f32.mrb[0].mxu0
        %7889 = vmatprep.mubr.bf16.mxu0 %v4217
        %7890 = vmatmul.mubr.bf16.gmra.mrb[0].mxu0 %v4216
        %v7891 = vpop.f32.mrb[0].mxu0
        %v7892 = vadd.f32 0.0, %v7891
        %v7893 = vpop.f32.mrb[0].mxu0
        %v7894 = vpop.f32.mrb[0].mxu0
        %v7895 = vadd.f32 0.0, %v7894
        %v7896 = vpop.f32.mrb[0].mxu0
        %7897 = vmatprep.mubr.bf16.mxu0 %v4220
        %7898 = vmatmul.mubr.bf16.gmra.mrb[0].mxu0 %v4219
        %v7899 = vpop.f32.mrb[0].mxu0
        %v7900 = vadd.f32 0.0, %v7899
        %v7901 = vpop.f32.mrb[0].mxu0
        %v7902 = vpop.f32.mrb[0].mxu0
        %v7903 = vadd.f32 0.0, %v7902
        %v7904 = vpop.f32.mrb[0].mxu0
        %7905 = vmatprep.mubr.bf16.mxu0 %v4223
        %7906 = vmatmul.mubr.bf16.gmra.mrb[0].mxu0 %v4222
        %v7907 = vpop.f32.mrb[0].mxu0
        %v7908 = vadd.f32 0.0, %v7907
        %v7909 = vpop.f32.mrb[0].mxu0
        %v7910 = vpop.f32.mrb[0].mxu0
        %v7911 = vadd.f32 0.0, %v7910
        %v7912 = vpop.f32.mrb[0].mxu0
        %7913 = vmatprep.mubr.bf16.mxu0 %v4226
        %7914 = vmatmul.mubr.bf16.gmra.mrb[0].mxu0 %v4225
        %v7915 = vpop.f32.mrb[0].mxu0
        %v7916 = vadd.f32 0.0, %v7915
        %v7917 = vpop.f32.mrb[0].mxu0
        %v7918 = vpop.f32.mrb[0].mxu0
        %v7919 = vadd.f32 0.0, %v7918
        %v7920 = vpop.f32.mrb[0].mxu0
        %7921 = vmatprep.mubr.bf16.mxu0 %v4229
        %7922 = vmatmul.mubr.bf16.gmra.mrb[0].mxu0 %v4228
        %v7923 = vpop.f32.mrb[0].mxu0
        %v7924 = vadd.f32 0.0, %v7923
        %v7925 = vpop.f32.mrb[0].mxu0
        %v7926 = vpop.f32.mrb[0].mxu0
        %v7927 = vadd.f32 0.0, %v7926
        %v7928 = vpop.f32.mrb[0].mxu0
        %7929 = vmatprep.mubr.bf16.mxu0 %v4232
        %7930 = vmatmul.mubr.bf16.gmra.mrb[0].mxu0 %v4231
        %v7931 = vpop.f32.mrb[0].mxu0
        %v7932 = vadd.f32 0.0, %v7931
        %v7933 = vpop.f32.mrb[0].mxu0
        %v7934 = vpop.f32.mrb[0].mxu0
        %v7935 = vadd.f32 0.0, %v7934
        %v7936 = vpop.f32.mrb[0].mxu0
        %7937 = vmatprep.mubr.bf16.mxu0 %v4235
        %7938 = vmatmul.mubr.bf16.gmra.mrb[0].mxu0 %v4234
        %v7939 = vpop.f32.mrb[0].mxu0
        %v7940 = vadd.f32 0.0, %v7939
        %v7941 = vpop.f32.mrb[0].mxu0
        %v7942 = vpop.f32.mrb[0].mxu0
        %v7943 = vadd.f32 0.0, %v7942
        %v7944 = vpop.f32.mrb[0].mxu0
        %7945 = vmatprep.mubr.bf16.mxu0 %v4238
        %7946 = vmatmul.mubr.bf16.gmra.mrb[0].mxu0 %v4237
        %v7947 = vpop.f32.mrb[0].mxu0
        %v7948 = vadd.f32 0.0, %v7947
        %v7949 = vpop.f32.mrb[0].mxu0
        %v7950 = vpop.f32.mrb[0].mxu0
        %v7951 = vadd.f32 0.0, %v7950
        %v7952 = vpop.f32.mrb[0].mxu0
        %7953 = vmatprep.mubr.bf16.mxu0 %v4241
        %7954 = vmatmul.mubr.bf16.gmra.mrb[0].mxu0 %v4240
        %v7955 = vpop.f32.mrb[0].mxu0
        %v7956 = vadd.f32 0.0, %v7955
        %v7957 = vpop.f32.mrb[0].mxu0
        %v7958 = vpop.f32.mrb[0].mxu0
        %v7959 = vadd.f32 0.0, %v7958
        %v7960 = vpop.f32.mrb[0].mxu0
        %7961 = vdwg.mxu0
        %7962 = vmatprep.subr.bf16.mxu0 0
        %7963 = vmatpush1.bf16.msra.mxu0 %v6873
        %7964 = vmatprep.subr.bf16.mxu0 0
        %7965 = vmatpush1.bf16.msra.mxu0 %v6876
        %7966 = vmatprep.subr.bf16.mxu0 0
        %7967 = vmatpush1.bf16.msra.mxu0 %v6879
        %7968 = vmatprep.subr.bf16.mxu0 0
        %7969 = vmatpush1.bf16.msra.mxu0 %v6882
        %7970 = vmatprep.subr.bf16.mxu0 0
        %7971 = vmatpush1.bf16.msra.mxu0 %v6885
        %7972 = vmatprep.subr.bf16.mxu0 0
        %7973 = vmatpush1.bf16.msra.mxu0 %v6888
        %7974 = vmatprep.subr.bf16.mxu0 0
        %7975 = vmatpush1.bf16.msra.mxu0 %v6891
        %7976 = vmatprep.subr.bf16.mxu0 0
        %7977 = vmatpush1.bf16.msra.mxu0 %v6894
        %7978 = vmatprep.subr.bf16.mxu0 0
        %7979 = vmatpush1.bf16.msra.mxu0 0
        %7980 = vmatprep.subr.bf16.mxu0 0
        %7981 = vmatpush1.bf16.msra.mxu0 0
        %7982 = vmatprep.subr.bf16.mxu0 0
        %7983 = vmatpush1.bf16.msra.mxu0 0
        %7984 = vmatprep.subr.bf16.mxu0 0
        %7985 = vmatpush1.bf16.msra.mxu0 0
        %7986 = vmatprep.subr.bf16.mxu0 0
        %7987 = vmatpush1.bf16.msra.mxu0 0
        %7988 = vmatprep.subr.bf16.mxu0 0
        %7989 = vmatpush1.bf16.msra.mxu0 0
        %7990 = vmatprep.subr.bf16.mxu0 0
        %7991 = vmatpush1.bf16.msra.mxu0 0
        %7992 = vmatprep.subr.bf16.mxu0 0
        %7993 = vmatpush1.bf16.msra.mxu0 0
        %7994 = vmatprep.mubr.bf16.mxu0 0
        %7995 = vmatmul.mubr.bf16.gmra.mrb[0].mxu0 %v4149
        %v7996 = vpop.f32.mrb[0].mxu0
        %v7997 = vadd.f32 %v7708, %v7996
        %v7998 = vpop.f32.mrb[0].mxu0
        %v7999 = vpop.f32.mrb[0].mxu0
        %v8000 = vadd.f32 %v7711, %v7999
        %v8001 = vpop.f32.mrb[0].mxu0
        %8002 = vmatprep.mubr.bf16.mxu0 0
        %8003 = vmatmul.mubr.bf16.gmra.mrb[0].mxu0 %v4152
        %v8004 = vpop.f32.mrb[0].mxu0
        %v8005 = vadd.f32 %v7716, %v8004
        %v8006 = vpop.f32.mrb[0].mxu0
        %v8007 = vpop.f32.mrb[0].mxu0
        %v8008 = vadd.f32 %v7719, %v8007
        %v8009 = vpop.f32.mrb[0].mxu0
        %8010 = vmatprep.mubr.bf16.mxu0 0
        %8011 = vmatmul.mubr.bf16.gmra.mrb[0].mxu0 %v4155
        %v8012 = vpop.f32.mrb[0].mxu0
        %v8013 = vadd.f32 %v7724, %v8012
        %v8014 = vpop.f32.mrb[0].mxu0
        %v8015 = vpop.f32.mrb[0].mxu0
        %v8016 = vadd.f32 %v7727, %v8015
        %v8017 = vpop.f32.mrb[0].mxu0
        %8018 = vmatprep.mubr.bf16.mxu0 0
        %8019 = vmatmul.mubr.bf16.gmra.mrb[0].mxu0 %v4158
        %v8020 = vpop.f32.mrb[0].mxu0
        %v8021 = vadd.f32 %v7732, %v8020
        %v8022 = vpop.f32.mrb[0].mxu0
        %v8023 = vpop.f32.mrb[0].mxu0
        %v8024 = vadd.f32 %v7735, %v8023
        %v8025 = vpop.f32.mrb[0].mxu0
        %8026 = vmatprep.mubr.bf16.mxu0 0
        %8027 = vmatmul.mubr.bf16.gmra.mrb[0].mxu0 %v4161
        %v8028 = vpop.f32.mrb[0].mxu0
        %v8029 = vadd.f32 %v7740, %v8028
        %v8030 = vpop.f32.mrb[0].mxu0
        %v8031 = vpop.f32.mrb[0].mxu0
        %v8032 = vadd.f32 %v7743, %v8031
        %v8033 = vpop.f32.mrb[0].mxu0
        %8034 = vmatprep.mubr.bf16.mxu0 0
        %8035 = vmatmul.mubr.bf16.gmra.mrb[0].mxu0 %v4164
        %v8036 = vpop.f32.mrb[0].mxu0
        %v8037 = vadd.f32 %v7748, %v8036
        %v8038 = vpop.f32.mrb[0].mxu0
        %v8039 = vpop.f32.mrb[0].mxu0
        %v8040 = vadd.f32 %v7751, %v8039
        %v8041 = vpop.f32.mrb[0].mxu0
        %8042 = vmatprep.mubr.bf16.mxu0 0
        %8043 = vmatmul.mubr.bf16.gmra.mrb[0].mxu0 %v4167
        %v8044 = vpop.f32.mrb[0].mxu0
        %v8045 = vadd.f32 %v7756, %v8044
        %v8046 = vpop.f32.mrb[0].mxu0
        %v8047 = vpop.f32.mrb[0].mxu0
        %v8048 = vadd.f32 %v7759, %v8047
        %v8049 = vpop.f32.mrb[0].mxu0
        %8050 = vmatprep.mubr.bf16.mxu0 0
        %8051 = vmatmul.mubr.bf16.gmra.mrb[0].mxu0 %v4170
        %v8052 = vpop.f32.mrb[0].mxu0
        %v8053 = vadd.f32 %v7764, %v8052
        %v8054 = vpop.f32.mrb[0].mxu0
        %v8055 = vpop.f32.mrb[0].mxu0
        %v8056 = vadd.f32 %v7767, %v8055
        %v8057 = vpop.f32.mrb[0].mxu0
        %8058 = vmatprep.mubr.bf16.mxu0 0
        %8059 = vmatmul.mubr.bf16.gmra.mrb[0].mxu0 %v4173
        %v8060 = vpop.f32.mrb[0].mxu0
        %v8061 = vadd.f32 %v7772, %v8060
        %v8062 = vpop.f32.mrb[0].mxu0
        %v8063 = vpop.f32.mrb[0].mxu0
        %v8064 = vadd.f32 %v7775, %v8063
        %v8065 = vpop.f32.mrb[0].mxu0
        %8066 = vmatprep.mubr.bf16.mxu0 0
        %8067 = vmatmul.mubr.bf16.gmra.mrb[0].mxu0 %v4176
        %v8068 = vpop.f32.mrb[0].mxu0
        %v8069 = vadd.f32 %v7780, %v8068
        %v8070 = vpop.f32.mrb[0].mxu0
        %v8071 = vpop.f32.mrb[0].mxu0
        %v8072 = vadd.f32 %v7783, %v8071
        %v8073 = vpop.f32.mrb[0].mxu0
        %8074 = vmatprep.mubr.bf16.mxu0 0
        %8075 = vmatmul.mubr.bf16.gmra.mrb[0].mxu0 %v4179
        %v8076 = vpop.f32.mrb[0].mxu0
        %v8077 = vadd.f32 %v7788, %v8076
        %v8078 = vpop.f32.mrb[0].mxu0
        %v8079 = vpop.f32.mrb[0].mxu0
        %v8080 = vadd.f32 %v7791, %v8079
        %v8081 = vpop.f32.mrb[0].mxu0
        %8082 = vmatprep.mubr.bf16.mxu0 0
        %8083 = vmatmul.mubr.bf16.gmra.mrb[0].mxu0 %v4182
        %v8084 = vpop.f32.mrb[0].mxu0
        %v8085 = vadd.f32 %v7796, %v8084
        %v8086 = vpop.f32.mrb[0].mxu0
        %v8087 = vpop.f32.mrb[0].mxu0
        %v8088 = vadd.f32 %v7799, %v8087
        %v8089 = vpop.f32.mrb[0].mxu0
        %8090 = vmatprep.mubr.bf16.mxu0 0
        %8091 = vmatmul.mubr.bf16.gmra.mrb[0].mxu0 %v4185
        %v8092 = vpop.f32.mrb[0].mxu0
        %v8093 = vadd.f32 %v7804, %v8092
        %v8094 = vpop.f32.mrb[0].mxu0
        %v8095 = vpop.f32.mrb[0].mxu0
        %v8096 = vadd.f32 %v7807, %v8095
        %v8097 = vpop.f32.mrb[0].mxu0
        %8098 = vmatprep.mubr.bf16.mxu0 0
        %8099 = vmatmul.mubr.bf16.gmra.mrb[0].mxu0 %v4188
        %v8100 = vpop.f32.mrb[0].mxu0
        %v8101 = vadd.f32 %v7812, %v8100
        %v8102 = vpop.f32.mrb[0].mxu0
        %v8103 = vpop.f32.mrb[0].mxu0
        %v8104 = vadd.f32 %v7815, %v8103
        %v8105 = vpop.f32.mrb[0].mxu0
        %8106 = vmatprep.mubr.bf16.mxu0 0
        %8107 = vmatmul.mubr.bf16.gmra.mrb[0].mxu0 %v4191
        %v8108 = vpop.f32.mrb[0].mxu0
        %v8109 = vadd.f32 %v7820, %v8108
        %v8110 = vpop.f32.mrb[0].mxu0
        %v8111 = vpop.f32.mrb[0].mxu0
        %v8112 = vadd.f32 %v7823, %v8111
        %v8113 = vpop.f32.mrb[0].mxu0
        %8114 = vmatprep.mubr.bf16.mxu0 0
        %8115 = vmatmul.mubr.bf16.gmra.mrb[0].mxu0 %v4194
        %v8116 = vpop.f32.mrb[0].mxu0
        %v8117 = vadd.f32 %v7828, %v8116
        %v8118 = vpop.f32.mrb[0].mxu0
        %v8119 = vpop.f32.mrb[0].mxu0
        %v8120 = vadd.f32 %v7831, %v8119
        %v8121 = vpop.f32.mrb[0].mxu0
        %8122 = vmatprep.mubr.bf16.mxu0 0
        %8123 = vmatmul.mubr.bf16.gmra.mrb[0].mxu0 %v4197
        %v8124 = vpop.f32.mrb[0].mxu0
        %v8125 = vadd.f32 %v7836, %v8124
        %v8126 = vpop.f32.mrb[0].mxu0
        %v8127 = vpop.f32.mrb[0].mxu0
        %v8128 = vadd.f32 %v7839, %v8127
        %v8129 = vpop.f32.mrb[0].mxu0
        %8130 = vmatprep.mubr.bf16.mxu0 0
        %8131 = vmatmul.mubr.bf16.gmra.mrb[0].mxu0 %v4200
        %v8132 = vpop.f32.mrb[0].mxu0
        %v8133 = vadd.f32 %v7844, %v8132
        %v8134 = vpop.f32.mrb[0].mxu0
        %v8135 = vpop.f32.mrb[0].mxu0
        %v8136 = vadd.f32 %v7847, %v8135
        %v8137 = vpop.f32.mrb[0].mxu0
        %8138 = vmatprep.mubr.bf16.mxu0 0
        %8139 = vmatmul.mubr.bf16.gmra.mrb[0].mxu0 %v4203
        %v8140 = vpop.f32.mrb[0].mxu0
        %v8141 = vadd.f32 %v7852, %v8140
        %v8142 = vpop.f32.mrb[0].mxu0
        %v8143 = vpop.f32.mrb[0].mxu0
        %v8144 = vadd.f32 %v7855, %v8143
        %v8145 = vpop.f32.mrb[0].mxu0
        %8146 = vmatprep.mubr.bf16.mxu0 0
        %8147 = vmatmul.mubr.bf16.gmra.mrb[0].mxu0 %v4206
        %v8148 = vpop.f32.mrb[0].mxu0
        %v8149 = vadd.f32 %v7860, %v8148
        %v8150 = vpop.f32.mrb[0].mxu0
        %v8151 = vpop.f32.mrb[0].mxu0
        %v8152 = vadd.f32 %v7863, %v8151
        %v8153 = vpop.f32.mrb[0].mxu0
        %8154 = vmatprep.mubr.bf16.mxu0 0
        %8155 = vmatmul.mubr.bf16.gmra.mrb[0].mxu0 %v4209
        %v8156 = vpop.f32.mrb[0].mxu0
        %v8157 = vadd.f32 %v7868, %v8156
        %v8158 = vpop.f32.mrb[0].mxu0
        %v8159 = vpop.f32.mrb[0].mxu0
        %v8160 = vadd.f32 %v7871, %v8159
        %v8161 = vpop.f32.mrb[0].mxu0
        %8162 = vmatprep.mubr.bf16.mxu0 0
        %8163 = vmatmul.mubr.bf16.gmra.mrb[0].mxu0 %v4212
        %v8164 = vpop.f32.mrb[0].mxu0
        %v8165 = vadd.f32 %v7876, %v8164
        %v8166 = vpop.f32.mrb[0].mxu0
        %v8167 = vpop.f32.mrb[0].mxu0
        %v8168 = vadd.f32 %v7879, %v8167
        %v8169 = vpop.f32.mrb[0].mxu0
        %8170 = vmatprep.mubr.bf16.mxu0 0
        %8171 = vmatmul.mubr.bf16.gmra.mrb[0].mxu0 %v4215
        %v8172 = vpop.f32.mrb[0].mxu0
        %v8173 = vadd.f32 %v7884, %v8172
        %v8174 = vpop.f32.mrb[0].mxu0
        %v8175 = vpop.f32.mrb[0].mxu0
        %v8176 = vadd.f32 %v7887, %v8175
        %v8177 = vpop.f32.mrb[0].mxu0
        %8178 = vmatprep.mubr.bf16.mxu0 0
        %8179 = vmatmul.mubr.bf16.gmra.mrb[0].mxu0 %v4218
        %v8180 = vpop.f32.mrb[0].mxu0
        %v8181 = vadd.f32 %v7892, %v8180
        %v8182 = vpop.f32.mrb[0].mxu0
        %v8183 = vpop.f32.mrb[0].mxu0
        %v8184 = vadd.f32 %v7895, %v8183
        %v8185 = vpop.f32.mrb[0].mxu0
        %8186 = vmatprep.mubr.bf16.mxu0 0
        %8187 = vmatmul.mubr.bf16.gmra.mrb[0].mxu0 %v4221
        %v8188 = vpop.f32.mrb[0].mxu0
        %v8189 = vadd.f32 %v7900, %v8188
        %v8190 = vpop.f32.mrb[0].mxu0
        %v8191 = vpop.f32.mrb[0].mxu0
        %v8192 = vadd.f32 %v7903, %v8191
        %v8193 = vpop.f32.mrb[0].mxu0
        %8194 = vmatprep.mubr.bf16.mxu0 0
        %8195 = vmatmul.mubr.bf16.gmra.mrb[0].mxu0 %v4224
        %v8196 = vpop.f32.mrb[0].mxu0
        %v8197 = vadd.f32 %v7908, %v8196
        %v8198 = vpop.f32.mrb[0].mxu0
        %v8199 = vpop.f32.mrb[0].mxu0
        %v8200 = vadd.f32 %v7911, %v8199
        %v8201 = vpop.f32.mrb[0].mxu0
        %8202 = vmatprep.mubr.bf16.mxu0 0
        %8203 = vmatmul.mubr.bf16.gmra.mrb[0].mxu0 %v4227
        %v8204 = vpop.f32.mrb[0].mxu0
        %v8205 = vadd.f32 %v7916, %v8204
        %v8206 = vpop.f32.mrb[0].mxu0
        %v8207 = vpop.f32.mrb[0].mxu0
        %v8208 = vadd.f32 %v7919, %v8207
        %v8209 = vpop.f32.mrb[0].mxu0
        %8210 = vmatprep.mubr.bf16.mxu0 0
        %8211 = vmatmul.mubr.bf16.gmra.mrb[0].mxu0 %v4230
        %v8212 = vpop.f32.mrb[0].mxu0
        %v8213 = vadd.f32 %v7924, %v8212
        %v8214 = vpop.f32.mrb[0].mxu0
        %v8215 = vpop.f32.mrb[0].mxu0
        %v8216 = vadd.f32 %v7927, %v8215
        %v8217 = vpop.f32.mrb[0].mxu0
        %8218 = vmatprep.mubr.bf16.mxu0 0
        %8219 = vmatmul.mubr.bf16.gmra.mrb[0].mxu0 %v4233
        %v8220 = vpop.f32.mrb[0].mxu0
        %v8221 = vadd.f32 %v7932, %v8220
        %v8222 = vpop.f32.mrb[0].mxu0
        %v8223 = vpop.f32.mrb[0].mxu0
        %v8224 = vadd.f32 %v7935, %v8223
        %v8225 = vpop.f32.mrb[0].mxu0
        %8226 = vmatprep.mubr.bf16.mxu0 0
        %8227 = vmatmul.mubr.bf16.gmra.mrb[0].mxu0 %v4236
        %v8228 = vpop.f32.mrb[0].mxu0
        %v8229 = vadd.f32 %v7940, %v8228
        %v8230 = vpop.f32.mrb[0].mxu0
        %v8231 = vpop.f32.mrb[0].mxu0
        %v8232 = vadd.f32 %v7943, %v8231
        %v8233 = vpop.f32.mrb[0].mxu0
        %8234 = vmatprep.mubr.bf16.mxu0 0
        %8235 = vmatmul.mubr.bf16.gmra.mrb[0].mxu0 %v4239
        %v8236 = vpop.f32.mrb[0].mxu0
        %v8237 = vadd.f32 %v7948, %v8236
        %v8238 = vpop.f32.mrb[0].mxu0
        %v8239 = vpop.f32.mrb[0].mxu0
        %v8240 = vadd.f32 %v7951, %v8239
        %v8241 = vpop.f32.mrb[0].mxu0
        %8242 = vmatprep.mubr.bf16.mxu0 0
        %8243 = vmatmul.mubr.bf16.gmra.mrb[0].mxu0 %v4242
        %v8244 = vpop.f32.mrb[0].mxu0
        %v8245 = vadd.f32 %v7956, %v8244
        %v8246 = vpop.f32.mrb[0].mxu0
        %v8247 = vpop.f32.mrb[0].mxu0
        %v8248 = vadd.f32 %v7959, %v8247
        %v8249 = vpop.f32.mrb[0].mxu0
        %8250 = vdwg.mxu0
        %v8251 = vadd.f32 %v5880, %v7355
        %v8252 = vadd.f32 %v5882, %v7357
        %v8253 = vadd.f32 %v6233, %v7997
        %v8254 = vadd.f32 %v5884, %v7359
        %v8255 = vadd.f32 %v5886, %v7361
        %v8256 = vadd.f32 %v6236, %v8000
        %v8257 = vadd.f32 %v5890, %v7365
        %v8258 = vadd.f32 %v5892, %v7367
        %v8259 = vadd.f32 %v6241, %v8005
        %v8260 = vadd.f32 %v5894, %v7369
        %v8261 = vadd.f32 %v5896, %v7371
        %v8262 = vadd.f32 %v6244, %v8008
        %v8263 = vadd.f32 %v5900, %v7375
        %v8264 = vadd.f32 %v5902, %v7377
        %v8265 = vadd.f32 %v6249, %v8013
        %v8266 = vadd.f32 %v5904, %v7379
        %v8267 = vadd.f32 %v5906, %v7381
        %v8268 = vadd.f32 %v6252, %v8016
        %v8269 = vadd.f32 %v5910, %v7385
        %v8270 = vadd.f32 %v5912, %v7387
        %v8271 = vadd.f32 %v6257, %v8021
        %v8272 = vadd.f32 %v5914, %v7389
        %v8273 = vadd.f32 %v5916, %v7391
        %v8274 = vadd.f32 %v6260, %v8024
        %v8275 = vadd.f32 %v5920, %v7395
        %v8276 = vadd.f32 %v5922, %v7397
        %v8277 = vadd.f32 %v6265, %v8029
        %v8278 = vadd.f32 %v5924, %v7399
        %v8279 = vadd.f32 %v5926, %v7401
        %v8280 = vadd.f32 %v6268, %v8032
        %v8281 = vadd.f32 %v5930, %v7405
        %v8282 = vadd.f32 %v5932, %v7407
        %v8283 = vadd.f32 %v6273, %v8037
        %v8284 = vadd.f32 %v5934, %v7409
        %v8285 = vadd.f32 %v5936, %v7411
        %v8286 = vadd.f32 %v6276, %v8040
        %v8287 = vadd.f32 %v5940, %v7415
        %v8288 = vadd.f32 %v5942, %v7417
        %v8289 = vadd.f32 %v6281, %v8045
        %v8290 = vadd.f32 %v5944, %v7419
        %v8291 = vadd.f32 %v5946, %v7421
        %v8292 = vadd.f32 %v6284, %v8048
        %v8293 = vadd.f32 %v5950, %v7425
        %v8294 = vadd.f32 %v5952, %v7427
        %v8295 = vadd.f32 %v6289, %v8053
        %v8296 = vadd.f32 %v5954, %v7429
        %v8297 = vadd.f32 %v5956, %v7431
        %v8298 = vadd.f32 %v6292, %v8056
        %v8299 = vadd.f32 %v5960, %v7435
        %v8300 = vadd.f32 %v5962, %v7437
        %v8301 = vadd.f32 %v6297, %v8061
        %v8302 = vadd.f32 %v5964, %v7439
        %v8303 = vadd.f32 %v5966, %v7441
        %v8304 = vadd.f32 %v6300, %v8064
        %v8305 = vadd.f32 %v5970, %v7445
        %v8306 = vadd.f32 %v5972, %v7447
        %v8307 = vadd.f32 %v6305, %v8069
        %v8308 = vadd.f32 %v5974, %v7449
        %v8309 = vadd.f32 %v5976, %v7451
        %v8310 = vadd.f32 %v6308, %v8072
        %v8311 = vadd.f32 %v5980, %v7455
        %v8312 = vadd.f32 %v5982, %v7457
        %v8313 = vadd.f32 %v6313, %v8077
        %v8314 = vadd.f32 %v5984, %v7459
        %v8315 = vadd.f32 %v5986, %v7461
        %v8316 = vadd.f32 %v6316, %v8080
        %v8317 = vadd.f32 %v5990, %v7465
        %v8318 = vadd.f32 %v5992, %v7467
        %v8319 = vadd.f32 %v6321, %v8085
        %v8320 = vadd.f32 %v5994, %v7469
        %v8321 = vadd.f32 %v5996, %v7471
        %v8322 = vadd.f32 %v6324, %v8088
        %v8323 = vadd.f32 %v6000, %v7475
        %v8324 = vadd.f32 %v6002, %v7477
        %v8325 = vadd.f32 %v6329, %v8093
        %v8326 = vadd.f32 %v6004, %v7479
        %v8327 = vadd.f32 %v6006, %v7481
        %v8328 = vadd.f32 %v6332, %v8096
        %v8329 = vadd.f32 %v6010, %v7485
        %v8330 = vadd.f32 %v6012, %v7487
        %v8331 = vadd.f32 %v6337, %v8101
        %v8332 = vadd.f32 %v6014, %v7489
        %v8333 = vadd.f32 %v6016, %v7491
        %v8334 = vadd.f32 %v6340, %v8104
        %v8335 = vadd.f32 %v6020, %v7495
        %v8336 = vadd.f32 %v6022, %v7497
        %v8337 = vadd.f32 %v6345, %v8109
        %v8338 = vadd.f32 %v6024, %v7499
        %v8339 = vadd.f32 %v6026, %v7501
        %v8340 = vadd.f32 %v6348, %v8112
        %v8341 = vadd.f32 %v6030, %v7505
        %v8342 = vadd.f32 %v6032, %v7507
        %v8343 = vadd.f32 %v6353, %v8117
        %v8344 = vadd.f32 %v6034, %v7509
        %v8345 = vadd.f32 %v6036, %v7511
        %v8346 = vadd.f32 %v6356, %v8120
        %v8347 = vadd.f32 %v6040, %v7515
        %v8348 = vadd.f32 %v6042, %v7517
        %v8349 = vadd.f32 %v6361, %v8125
        %v8350 = vadd.f32 %v6044, %v7519
        %v8351 = vadd.f32 %v6046, %v7521
        %v8352 = vadd.f32 %v6364, %v8128
        %v8353 = vadd.f32 %v6050, %v7525
        %v8354 = vadd.f32 %v6052, %v7527
        %v8355 = vadd.f32 %v6369, %v8133
        %v8356 = vadd.f32 %v6054, %v7529
        %v8357 = vadd.f32 %v6056, %v7531
        %v8358 = vadd.f32 %v6372, %v8136
        %v8359 = vadd.f32 %v6060, %v7535
        %v8360 = vadd.f32 %v6062, %v7537
        %v8361 = vadd.f32 %v6377, %v8141
        %v8362 = vadd.f32 %v6064, %v7539
        %v8363 = vadd.f32 %v6066, %v7541
        %v8364 = vadd.f32 %v6380, %v8144
        %v8365 = vadd.f32 %v6070, %v7545
        %v8366 = vadd.f32 %v6072, %v7547
        %v8367 = vadd.f32 %v6385, %v8149
        %v8368 = vadd.f32 %v6074, %v7549
        %v8369 = vadd.f32 %v6076, %v7551
        %v8370 = vadd.f32 %v6388, %v8152
        %v8371 = vadd.f32 %v6080, %v7555
        %v8372 = vadd.f32 %v6082, %v7557
        %v8373 = vadd.f32 %v6393, %v8157
        %v8374 = vadd.f32 %v6084, %v7559
        %v8375 = vadd.f32 %v6086, %v7561
        %v8376 = vadd.f32 %v6396, %v8160
        %v8377 = vadd.f32 %v6090, %v7565
        %v8378 = vadd.f32 %v6092, %v7567
        %v8379 = vadd.f32 %v6401, %v8165
        %v8380 = vadd.f32 %v6094, %v7569
        %v8381 = vadd.f32 %v6096, %v7571
        %v8382 = vadd.f32 %v6404, %v8168
        %v8383 = vadd.f32 %v6100, %v7575
        %v8384 = vadd.f32 %v6102, %v7577
        %v8385 = vadd.f32 %v6409, %v8173
        %v8386 = vadd.f32 %v6104, %v7579
        %v8387 = vadd.f32 %v6106, %v7581
        %v8388 = vadd.f32 %v6412, %v8176
        %v8389 = vadd.f32 %v6110, %v7585
        %v8390 = vadd.f32 %v6112, %v7587
        %v8391 = vadd.f32 %v6417, %v8181
        %v8392 = vadd.f32 %v6114, %v7589
        %v8393 = vadd.f32 %v6116, %v7591
        %v8394 = vadd.f32 %v6420, %v8184
        %v8395 = vadd.f32 %v6120, %v7595
        %v8396 = vadd.f32 %v6122, %v7597
        %v8397 = vadd.f32 %v6425, %v8189
        %v8398 = vadd.f32 %v6124, %v7599
        %v8399 = vadd.f32 %v6126, %v7601
        %v8400 = vadd.f32 %v6428, %v8192
        %v8401 = vadd.f32 %v6130, %v7605
        %v8402 = vadd.f32 %v6132, %v7607
        %v8403 = vadd.f32 %v6433, %v8197
        %v8404 = vadd.f32 %v6134, %v7609
        %v8405 = vadd.f32 %v6136, %v7611
        %v8406 = vadd.f32 %v6436, %v8200
        %v8407 = vadd.f32 %v6140, %v7615
        %v8408 = vadd.f32 %v6142, %v7617
        %v8409 = vadd.f32 %v6441, %v8205
        %v8410 = vadd.f32 %v6144, %v7619
        %v8411 = vadd.f32 %v6146, %v7621
        %v8412 = vadd.f32 %v6444, %v8208
        %v8413 = vadd.f32 %v6150, %v7625
        %v8414 = vadd.f32 %v6152, %v7627
        %v8415 = vadd.f32 %v6449, %v8213
        %v8416 = vadd.f32 %v6154, %v7629
        %v8417 = vadd.f32 %v6156, %v7631
        %v8418 = vadd.f32 %v6452, %v8216
        %v8419 = vadd.f32 %v6160, %v7635
        %v8420 = vadd.f32 %v6162, %v7637
        %v8421 = vadd.f32 %v6457, %v8221
        %v8422 = vadd.f32 %v6164, %v7639
        %v8423 = vadd.f32 %v6166, %v7641
        %v8424 = vadd.f32 %v6460, %v8224
        %v8425 = vadd.f32 %v6170, %v7645
        %v8426 = vadd.f32 %v6172, %v7647
        %v8427 = vadd.f32 %v6465, %v8229
        %v8428 = vadd.f32 %v6174, %v7649
        %v8429 = vadd.f32 %v6176, %v7651
        %v8430 = vadd.f32 %v6468, %v8232
        %v8431 = vadd.f32 %v6180, %v7655
        %v8432 = vadd.f32 %v6182, %v7657
        %v8433 = vadd.f32 %v6473, %v8237
        %v8434 = vadd.f32 %v6184, %v7659
        %v8435 = vadd.f32 %v6186, %v7661
        %v8436 = vadd.f32 %v6476, %v8240
        %v8437 = vadd.f32 %v6190, %v7665
        %v8438 = vadd.f32 %v6192, %v7667
        %v8439 = vadd.f32 %v6481, %v8245
        %v8440 = vadd.f32 %v6194, %v7669
        %v8441 = vadd.f32 %v6196, %v7671
        %v8442 = vadd.f32 %v6484, %v8248
        %v8443 = vadd.f32 %v8251, %v8252
        %v8444 = vadd.f32 %v8254, %v8255
        %v8445 = vadd.f32 %v8257, %v8258
        %v8446 = vadd.f32 %v8260, %v8261
        %v8447 = vadd.f32 %v8263, %v8264
        %v8448 = vadd.f32 %v8266, %v8267
        %v8449 = vadd.f32 %v8269, %v8270
        %v8450 = vadd.f32 %v8272, %v8273
        %v8451 = vadd.f32 %v8275, %v8276
        %v8452 = vadd.f32 %v8278, %v8279
        %v8453 = vadd.f32 %v8281, %v8282
        %v8454 = vadd.f32 %v8284, %v8285
        %v8455 = vadd.f32 %v8287, %v8288
        %v8456 = vadd.f32 %v8290, %v8291
        %v8457 = vadd.f32 %v8293, %v8294
        %v8458 = vadd.f32 %v8296, %v8297
        %v8459 = vadd.f32 %v8299, %v8300
        %v8460 = vadd.f32 %v8302, %v8303
        %v8461 = vadd.f32 %v8305, %v8306
        %v8462 = vadd.f32 %v8308, %v8309
        %v8463 = vadd.f32 %v8311, %v8312
        %v8464 = vadd.f32 %v8314, %v8315
        %v8465 = vadd.f32 %v8317, %v8318
        %v8466 = vadd.f32 %v8320, %v8321
        %v8467 = vadd.f32 %v8323, %v8324
        %v8468 = vadd.f32 %v8326, %v8327
        %v8469 = vadd.f32 %v8329, %v8330
        %v8470 = vadd.f32 %v8332, %v8333
        %v8471 = vadd.f32 %v8335, %v8336
        %v8472 = vadd.f32 %v8338, %v8339
        %v8473 = vadd.f32 %v8341, %v8342
        %v8474 = vadd.f32 %v8344, %v8345
        %v8475 = vadd.f32 %v8347, %v8348
        %v8476 = vadd.f32 %v8350, %v8351
        %v8477 = vadd.f32 %v8353, %v8354
        %v8478 = vadd.f32 %v8356, %v8357
        %v8479 = vadd.f32 %v8359, %v8360
        %v8480 = vadd.f32 %v8362, %v8363
        %v8481 = vadd.f32 %v8365, %v8366
        %v8482 = vadd.f32 %v8368, %v8369
        %v8483 = vadd.f32 %v8371, %v8372
        %v8484 = vadd.f32 %v8374, %v8375
        %v8485 = vadd.f32 %v8377, %v8378
        %v8486 = vadd.f32 %v8380, %v8381
        %v8487 = vadd.f32 %v8383, %v8384
        %v8488 = vadd.f32 %v8386, %v8387
        %v8489 = vadd.f32 %v8389, %v8390
        %v8490 = vadd.f32 %v8392, %v8393
        %v8491 = vadd.f32 %v8395, %v8396
        %v8492 = vadd.f32 %v8398, %v8399
        %v8493 = vadd.f32 %v8401, %v8402
        %v8494 = vadd.f32 %v8404, %v8405
        %v8495 = vadd.f32 %v8407, %v8408
        %v8496 = vadd.f32 %v8410, %v8411
        %v8497 = vadd.f32 %v8413, %v8414
        %v8498 = vadd.f32 %v8416, %v8417
        %v8499 = vadd.f32 %v8419, %v8420
        %v8500 = vadd.f32 %v8422, %v8423
        %v8501 = vadd.f32 %v8425, %v8426
        %v8502 = vadd.f32 %v8428, %v8429
        %v8503 = vadd.f32 %v8431, %v8432
        %v8504 = vadd.f32 %v8434, %v8435
        %v8505 = vadd.f32 %v8437, %v8438
        %v8506 = vadd.f32 %v8440, %v8441
        %v8507 = vadd.f32 %v8443, %v8253
        %v8508 = vadd.f32 %v8444, %v8256
        %v8509 = vadd.f32 %v8445, %v8259
        %v8510 = vadd.f32 %v8446, %v8262
        %v8511 = vadd.f32 %v8447, %v8265
        %v8512 = vadd.f32 %v8448, %v8268
        %v8513 = vadd.f32 %v8449, %v8271
        %v8514 = vadd.f32 %v8450, %v8274
        %v8515 = vadd.f32 %v8451, %v8277
        %v8516 = vadd.f32 %v8452, %v8280
        %v8517 = vadd.f32 %v8453, %v8283
        %v8518 = vadd.f32 %v8454, %v8286
        %v8519 = vadd.f32 %v8455, %v8289
        %v8520 = vadd.f32 %v8456, %v8292
        %v8521 = vadd.f32 %v8457, %v8295
        %v8522 = vadd.f32 %v8458, %v8298
        %v8523 = vadd.f32 %v8459, %v8301
        %v8524 = vadd.f32 %v8460, %v8304
        %v8525 = vadd.f32 %v8461, %v8307
        %v8526 = vadd.f32 %v8462, %v8310
        %v8527 = vadd.f32 %v8463, %v8313
        %v8528 = vadd.f32 %v8464, %v8316
        %v8529 = vadd.f32 %v8465, %v8319
        %v8530 = vadd.f32 %v8466, %v8322
        %v8531 = vadd.f32 %v8467, %v8325
        %v8532 = vadd.f32 %v8468, %v8328
        %v8533 = vadd.f32 %v8469, %v8331
        %v8534 = vadd.f32 %v8470, %v8334
        %v8535 = vadd.f32 %v8471, %v8337
        %v8536 = vadd.f32 %v8472, %v8340
        %v8537 = vadd.f32 %v8473, %v8343
        %v8538 = vadd.f32 %v8474, %v8346
        %v8539 = vadd.f32 %v8475, %v8349
        %v8540 = vadd.f32 %v8476, %v8352
        %v8541 = vadd.f32 %v8477, %v8355
        %v8542 = vadd.f32 %v8478, %v8358
        %v8543 = vadd.f32 %v8479, %v8361
        %v8544 = vadd.f32 %v8480, %v8364
        %v8545 = vadd.f32 %v8481, %v8367
        %v8546 = vadd.f32 %v8482, %v8370
        %v8547 = vadd.f32 %v8483, %v8373
        %v8548 = vadd.f32 %v8484, %v8376
        %v8549 = vadd.f32 %v8485, %v8379
        %v8550 = vadd.f32 %v8486, %v8382
        %v8551 = vadd.f32 %v8487, %v8385
        %v8552 = vadd.f32 %v8488, %v8388
        %v8553 = vadd.f32 %v8489, %v8391
        %v8554 = vadd.f32 %v8490, %v8394
        %v8555 = vadd.f32 %v8491, %v8397
        %v8556 = vadd.f32 %v8492, %v8400
        %v8557 = vadd.f32 %v8493, %v8403
        %v8558 = vadd.f32 %v8494, %v8406
        %v8559 = vadd.f32 %v8495, %v8409
        %v8560 = vadd.f32 %v8496, %v8412
        %v8561 = vadd.f32 %v8497, %v8415
        %v8562 = vadd.f32 %v8498, %v8418
        %v8563 = vadd.f32 %v8499, %v8421
        %v8564 = vadd.f32 %v8500, %v8424
        %v8565 = vadd.f32 %v8501, %v8427
        %v8566 = vadd.f32 %v8502, %v8430
        %v8567 = vadd.f32 %v8503, %v8433
        %v8568 = vadd.f32 %v8504, %v8436
        %v8569 = vadd.f32 %v8505, %v8439
        %v8570 = vadd.f32 %v8506, %v8442
        %8571 = vst [vmem:[%s262] sm:$0xff] %v8507
        %8572 = vst [vmem:[%s262 + $0x8] sm:$0xff] %v8508
        %8573 = vst [vmem:[%s262 + $0x10] sm:$0xff] %v8509
        %8574 = vst [vmem:[%s262 + $0x18] sm:$0xff] %v8510
        %8575 = vst [vmem:[%s262 + $0x20] sm:$0xff] %v8511
        %8576 = vst [vmem:[%s262 + $0x28] sm:$0xff] %v8512
        %8577 = vst [vmem:[%s262 + $0x30] sm:$0xff] %v8513
        %8578 = vst [vmem:[%s262 + $0x38] sm:$0xff] %v8514
        %8579 = vst [vmem:[%s262 + $0x40] sm:$0xff] %v8515
        %8580 = vst [vmem:[%s262 + $0x48] sm:$0xff] %v8516
        %8581 = vst [vmem:[%s262 + $0x50] sm:$0xff] %v8517
        %8582 = vst [vmem:[%s262 + $0x58] sm:$0xff] %v8518
        %8583 = vst [vmem:[%s262 + $0x60] sm:$0xff] %v8519
        %8584 = vst [vmem:[%s262 + $0x68] sm:$0xff] %v8520
        %8585 = vst [vmem:[%s262 + $0x70] sm:$0xff] %v8521
        %8586 = vst [vmem:[%s262 + $0x78] sm:$0xff] %v8522
        %8587 = vst [vmem:[%s262 + $0x80] sm:$0xff] %v8523
        %8588 = vst [vmem:[%s262 + $0x88] sm:$0xff] %v8524
        %8589 = vst [vmem:[%s262 + $0x90] sm:$0xff] %v8525
        %8590 = vst [vmem:[%s262 + $0x98] sm:$0xff] %v8526
        %8591 = vst [vmem:[%s262 + $0xa0] sm:$0xff] %v8527
        %8592 = vst [vmem:[%s262 + $0xa8] sm:$0xff] %v8528
        %8593 = vst [vmem:[%s262 + $0xb0] sm:$0xff] %v8529
        %8594 = vst [vmem:[%s262 + $0xb8] sm:$0xff] %v8530
        %8595 = vst [vmem:[%s262 + $0xc0] sm:$0xff] %v8531
        %8596 = vst [vmem:[%s262 + $0xc8] sm:$0xff] %v8532
        %8597 = vst [vmem:[%s262 + $0xd0] sm:$0xff] %v8533
        %8598 = vst [vmem:[%s262 + $0xd8] sm:$0xff] %v8534
        %8599 = vst [vmem:[%s262 + $0xe0] sm:$0xff] %v8535
        %8600 = vst [vmem:[%s262 + $0xe8] sm:$0xff] %v8536
        %8601 = vst [vmem:[%s262 + $0xf0] sm:$0xff] %v8537
        %8602 = vst [vmem:[%s262 + $0xf8] sm:$0xff] %v8538
        %8603 = vst [vmem:[%s262 + $0x100] sm:$0xff] %v8539
        %8604 = vst [vmem:[%s262 + $0x108] sm:$0xff] %v8540
        %8605 = vst [vmem:[%s262 + $0x110] sm:$0xff] %v8541
        %8606 = vst [vmem:[%s262 + $0x118] sm:$0xff] %v8542
        %8607 = vst [vmem:[%s262 + $0x120] sm:$0xff] %v8543
        %8608 = vst [vmem:[%s262 + $0x128] sm:$0xff] %v8544
        %8609 = vst [vmem:[%s262 + $0x130] sm:$0xff] %v8545
        %8610 = vst [vmem:[%s262 + $0x138] sm:$0xff] %v8546
        %8611 = vst [vmem:[%s262 + $0x140] sm:$0xff] %v8547
        %8612 = vst [vmem:[%s262 + $0x148] sm:$0xff] %v8548
        %8613 = vst [vmem:[%s262 + $0x150] sm:$0xff] %v8549
        %8614 = vst [vmem:[%s262 + $0x158] sm:$0xff] %v8550
        %8615 = vst [vmem:[%s262 + $0x160] sm:$0xff] %v8551
        %8616 = vst [vmem:[%s262 + $0x168] sm:$0xff] %v8552
        %8617 = vst [vmem:[%s262 + $0x170] sm:$0xff] %v8553
        %8618 = vst [vmem:[%s262 + $0x178] sm:$0xff] %v8554
        %8619 = vst [vmem:[%s262 + $0x180] sm:$0xff] %v8555
        %8620 = vst [vmem:[%s262 + $0x188] sm:$0xff] %v8556
        %8621 = vst [vmem:[%s262 + $0x190] sm:$0xff] %v8557
        %8622 = vst [vmem:[%s262 + $0x198] sm:$0xff] %v8558
        %8623 = vst [vmem:[%s262 + $0x1a0] sm:$0xff] %v8559
        %8624 = vst [vmem:[%s262 + $0x1a8] sm:$0xff] %v8560
        %8625 = vst [vmem:[%s262 + $0x1b0] sm:$0xff] %v8561
        %8626 = vst [vmem:[%s262 + $0x1b8] sm:$0xff] %v8562
        %8627 = vst [vmem:[%s262 + $0x1c0] sm:$0xff] %v8563
        %8628 = vst [vmem:[%s262 + $0x1c8] sm:$0xff] %v8564
        %8629 = vst [vmem:[%s262 + $0x1d0] sm:$0xff] %v8565
        %8630 = vst [vmem:[%s262 + $0x1d8] sm:$0xff] %v8566
        %8631 = vst [vmem:[%s262 + $0x1e0] sm:$0xff] %v8567
        %8632 = vst [vmem:[%s262 + $0x1e8] sm:$0xff] %v8568
        %8633 = vst [vmem:[%s262 + $0x1f0] sm:$0xff] %v8569
        %8634 = vst [vmem:[%s262 + $0x1f8] sm:$0xff] %v8570
        %v8635 = vld [vmem:[%s2 + $0x480] sm:$0xff]
        %v8636 = vld [vmem:[%s2 + $0x488] sm:$0xf]
        %v8637 = vld [vmem:[%s2 + $0x48c] sm:$0xff]
        %v8638 = vld [vmem:[%s2 + $0x494] sm:$0xf]
        %v8639 = vld [vmem:[%s2 + $0x498] sm:$0xff]
        %v8640 = vld [vmem:[%s2 + $0x4a0] sm:$0xf]
        %v8641 = vld [vmem:[%s2 + $0x4a4] sm:$0xff]
        %v8642 = vld [vmem:[%s2 + $0x4ac] sm:$0xf]
        %v8643 = vld [vmem:[%s2 + $0x4b0] sm:$0xff]
        %v8644 = vld [vmem:[%s2 + $0x4b8] sm:$0xf]
        %v8645 = vld [vmem:[%s2 + $0x4bc] sm:$0xff]
        %v8646 = vld [vmem:[%s2 + $0x4c4] sm:$0xf]
        %v8647 = vld [vmem:[%s2 + $0x4c8] sm:$0xff]
        %v8648 = vld [vmem:[%s2 + $0x4d0] sm:$0xf]
        %v8649 = vld [vmem:[%s2 + $0x4d4] sm:$0xff]
        %v8650 = vld [vmem:[%s2 + $0x4dc] sm:$0xf]
        %v8651 = vld [vmem:[%s2 + $0x4e0] sm:$0xff]
        %v8652 = vld [vmem:[%s2 + $0x4e8] sm:$0xf]
        %v8653 = vld [vmem:[%s2 + $0x4ec] sm:$0xff]
        %v8654 = vld [vmem:[%s2 + $0x4f4] sm:$0xf]
        %v8655 = vld [vmem:[%s2 + $0x4f8] sm:$0xff]
        %v8656 = vld [vmem:[%s2 + $0x500] sm:$0xf]
        %v8657 = vld [vmem:[%s2 + $0x504] sm:$0xff]
        %v8658 = vld [vmem:[%s2 + $0x50c] sm:$0xf]
        %v8659 = vld [vmem:[%s2 + $0x510] sm:$0xff]
        %v8660 = vld [vmem:[%s2 + $0x518] sm:$0xf]
        %v8661 = vld [vmem:[%s2 + $0x51c] sm:$0xff]
        %v8662 = vld [vmem:[%s2 + $0x524] sm:$0xf]
        %v8663 = vld [vmem:[%s2 + $0x528] sm:$0xff]
        %v8664 = vld [vmem:[%s2 + $0x530] sm:$0xf]
        %v8665 = vld [vmem:[%s2 + $0x534] sm:$0xff]
        %v8666 = vld [vmem:[%s2 + $0x53c] sm:$0xf]
        %v8699 = vunpack.c.l.b16 %v8635
        %v8700 = vunpack.c.h.b16 %v8635
        %v8701 = vunpack.c.l.b16 %v8636
        %v8702 = vunpack.c.l.b16 %v8637
        %v8703 = vunpack.c.h.b16 %v8637
        %v8704 = vunpack.c.l.b16 %v8638
        %v8705 = vunpack.c.l.b16 %v8639
        %v8706 = vunpack.c.h.b16 %v8639
        %v8707 = vunpack.c.l.b16 %v8640
        %v8708 = vunpack.c.l.b16 %v8641
        %v8709 = vunpack.c.h.b16 %v8641
        %v8710 = vunpack.c.l.b16 %v8642
        %v8711 = vunpack.c.l.b16 %v8643
        %v8712 = vunpack.c.h.b16 %v8643
        %v8713 = vunpack.c.l.b16 %v8644
        %v8714 = vunpack.c.l.b16 %v8645
        %v8715 = vunpack.c.h.b16 %v8645
        %v8716 = vunpack.c.l.b16 %v8646
        %v8717 = vunpack.c.l.b16 %v8647
        %v8718 = vunpack.c.h.b16 %v8647
        %v8719 = vunpack.c.l.b16 %v8648
        %v8720 = vunpack.c.l.b16 %v8649
        %v8721 = vunpack.c.h.b16 %v8649
        %v8722 = vunpack.c.l.b16 %v8650
        %v8723 = vunpack.c.l.b16 %v8651
        %v8724 = vunpack.c.h.b16 %v8651
        %v8725 = vunpack.c.l.b16 %v8652
        %v8726 = vunpack.c.l.b16 %v8653
        %v8727 = vunpack.c.h.b16 %v8653
        %v8728 = vunpack.c.l.b16 %v8654
        %v8729 = vunpack.c.l.b16 %v8655
        %v8730 = vunpack.c.h.b16 %v8655
        %v8731 = vunpack.c.l.b16 %v8656
        %v8732 = vunpack.c.l.b16 %v8657
        %v8733 = vunpack.c.h.b16 %v8657
        %v8734 = vunpack.c.l.b16 %v8658
        %v8735 = vunpack.c.l.b16 %v8659
        %v8736 = vunpack.c.h.b16 %v8659
        %v8737 = vunpack.c.l.b16 %v8660
        %v8738 = vunpack.c.l.b16 %v8661
        %v8739 = vunpack.c.h.b16 %v8661
        %v8740 = vunpack.c.l.b16 %v8662
        %v8741 = vunpack.c.l.b16 %v8663
        %v8742 = vunpack.c.h.b16 %v8663
        %v8743 = vunpack.c.l.b16 %v8664
        %v8744 = vunpack.c.l.b16 %v8665
        %v8745 = vunpack.c.h.b16 %v8665
        %v8746 = vunpack.c.l.b16 %v8666
        %v8747 = vpack.c.b16 %v8702, %v8699
        %v8748 = vpack.c.b16 %v8703, %v8700
        %v8749 = vpack.c.b16 %v8704, %v8701
        %v8750 = vpack.c.b16 %v8708, %v8705
        %v8751 = vpack.c.b16 %v8709, %v8706
        %v8752 = vpack.c.b16 %v8710, %v8707
        %v8753 = vpack.c.b16 %v8714, %v8711
        %v8754 = vpack.c.b16 %v8715, %v8712
        %v8755 = vpack.c.b16 %v8716, %v8713
        %v8756 = vpack.c.b16 %v8720, %v8717
        %v8757 = vpack.c.b16 %v8721, %v8718
        %v8758 = vpack.c.b16 %v8722, %v8719
        %v8759 = vpack.c.b16 %v8726, %v8723
        %v8760 = vpack.c.b16 %v8727, %v8724
        %v8761 = vpack.c.b16 %v8728, %v8725
        %v8762 = vpack.c.b16 %v8732, %v8729
        %v8763 = vpack.c.b16 %v8733, %v8730
        %v8764 = vpack.c.b16 %v8734, %v8731
        %v8765 = vpack.c.b16 %v8738, %v8735
        %v8766 = vpack.c.b16 %v8739, %v8736
        %v8767 = vpack.c.b16 %v8740, %v8737
        %v8768 = vpack.c.b16 %v8744, %v8741
        %v8769 = vpack.c.b16 %v8745, %v8742
        %v8770 = vpack.c.b16 %v8746, %v8743
        %8795 = vmatprep.subr.bf16.mxu0 %v8748
        %8796 = vmatpush1.bf16.msra.mxu0 %v8747
        %8797 = vmatprep.subr.bf16.mxu0 %v8751
        %8798 = vmatpush1.bf16.msra.mxu0 %v8750
        %8799 = vmatprep.subr.bf16.mxu0 %v8754
        %8800 = vmatpush1.bf16.msra.mxu0 %v8753
        %8801 = vmatprep.subr.bf16.mxu0 %v8757
        %8802 = vmatpush1.bf16.msra.mxu0 %v8756
        %8803 = vmatprep.subr.bf16.mxu0 %v8760
        %8804 = vmatpush1.bf16.msra.mxu0 %v8759
        %8805 = vmatprep.subr.bf16.mxu0 %v8763
        %8806 = vmatpush1.bf16.msra.mxu0 %v8762
        %8807 = vmatprep.subr.bf16.mxu0 %v8766
        %8808 = vmatpush1.bf16.msra.mxu0 %v8765
        %8809 = vmatprep.subr.bf16.mxu0 %v8769
        %8810 = vmatpush1.bf16.msra.mxu0 %v8768
        %8811 = vmatprep.subr.bf16.mxu0 0
        %8812 = vmatpush1.bf16.msra.mxu0 0
        %8813 = vmatprep.subr.bf16.mxu0 0
        %8814 = vmatpush1.bf16.msra.mxu0 0
        %8815 = vmatprep.subr.bf16.mxu0 0
        %8816 = vmatpush1.bf16.msra.mxu0 0
        %8817 = vmatprep.subr.bf16.mxu0 0
        %8818 = vmatpush1.bf16.msra.mxu0 0
        %8819 = vmatprep.subr.bf16.mxu0 0
        %8820 = vmatpush1.bf16.msra.mxu0 0
        %8821 = vmatprep.subr.bf16.mxu0 0
        %8822 = vmatpush1.bf16.msra.mxu0 0
        %8823 = vmatprep.subr.bf16.mxu0 0
        %8824 = vmatpush1.bf16.msra.mxu0 0
        %8825 = vmatprep.subr.bf16.mxu0 0
        %8826 = vmatpush1.bf16.msra.mxu0 0
        %8827 = vmatprep.mubr.bf16.mxu0 0
        %8828 = vmatmul.mubr.bf16.gmra.mrb[0].mxu0 %v4691
        %v8829 = vpop.f32.mrb[0].mxu0
        %v8830 = vadd.f32 0.0, %v8829
        %v8831 = vpop.f32.mrb[0].mxu0
        %v8832 = vadd.f32 0.0, %v8831
        %v8833 = vpop.f32.mrb[0].mxu0
        %v8834 = vadd.f32 0.0, %v8833
        %v8835 = vpop.f32.mrb[0].mxu0
        %v8836 = vadd.f32 0.0, %v8835
        %8837 = vmatprep.mubr.bf16.mxu0 0
        %8838 = vmatmul.mubr.bf16.gmra.mrb[0].mxu0 %v4692
        %v8839 = vpop.f32.mrb[0].mxu0
        %v8840 = vadd.f32 0.0, %v8839
        %v8841 = vpop.f32.mrb[0].mxu0
        %v8842 = vadd.f32 0.0, %v8841
        %v8843 = vpop.f32.mrb[0].mxu0
        %v8844 = vadd.f32 0.0, %v8843
        %v8845 = vpop.f32.mrb[0].mxu0
        %v8846 = vadd.f32 0.0, %v8845
        %8847 = vmatprep.mubr.bf16.mxu0 0
        %8848 = vmatmul.mubr.bf16.gmra.mrb[0].mxu0 %v4693
        %v8849 = vpop.f32.mrb[0].mxu0
        %v8850 = vadd.f32 0.0, %v8849
        %v8851 = vpop.f32.mrb[0].mxu0
        %v8852 = vadd.f32 0.0, %v8851
        %v8853 = vpop.f32.mrb[0].mxu0
        %v8854 = vadd.f32 0.0, %v8853
        %v8855 = vpop.f32.mrb[0].mxu0
        %v8856 = vadd.f32 0.0, %v8855
        %8857 = vmatprep.mubr.bf16.mxu0 0
        %8858 = vmatmul.mubr.bf16.gmra.mrb[0].mxu0 %v4694
        %v8859 = vpop.f32.mrb[0].mxu0
        %v8860 = vadd.f32 0.0, %v8859
        %v8861 = vpop.f32.mrb[0].mxu0
        %v8862 = vadd.f32 0.0, %v8861
        %v8863 = vpop.f32.mrb[0].mxu0
        %v8864 = vadd.f32 0.0, %v8863
        %v8865 = vpop.f32.mrb[0].mxu0
        %v8866 = vadd.f32 0.0, %v8865
        %8867 = vmatprep.mubr.bf16.mxu0 0
        %8868 = vmatmul.mubr.bf16.gmra.mrb[0].mxu0 %v4695
        %v8869 = vpop.f32.mrb[0].mxu0
        %v8870 = vadd.f32 0.0, %v8869
        %v8871 = vpop.f32.mrb[0].mxu0
        %v8872 = vadd.f32 0.0, %v8871
        %v8873 = vpop.f32.mrb[0].mxu0
        %v8874 = vadd.f32 0.0, %v8873
        %v8875 = vpop.f32.mrb[0].mxu0
        %v8876 = vadd.f32 0.0, %v8875
        %8877 = vmatprep.mubr.bf16.mxu0 0
        %8878 = vmatmul.mubr.bf16.gmra.mrb[0].mxu0 %v4696
        %v8879 = vpop.f32.mrb[0].mxu0
        %v8880 = vadd.f32 0.0, %v8879
        %v8881 = vpop.f32.mrb[0].mxu0
        %v8882 = vadd.f32 0.0, %v8881
        %v8883 = vpop.f32.mrb[0].mxu0
        %v8884 = vadd.f32 0.0, %v8883
        %v8885 = vpop.f32.mrb[0].mxu0
        %v8886 = vadd.f32 0.0, %v8885
        %8887 = vmatprep.mubr.bf16.mxu0 0
        %8888 = vmatmul.mubr.bf16.gmra.mrb[0].mxu0 %v4697
        %v8889 = vpop.f32.mrb[0].mxu0
        %v8890 = vadd.f32 0.0, %v8889
        %v8891 = vpop.f32.mrb[0].mxu0
        %v8892 = vadd.f32 0.0, %v8891
        %v8893 = vpop.f32.mrb[0].mxu0
        %v8894 = vadd.f32 0.0, %v8893
        %v8895 = vpop.f32.mrb[0].mxu0
        %v8896 = vadd.f32 0.0, %v8895
        %8897 = vmatprep.mubr.bf16.mxu0 0
        %8898 = vmatmul.mubr.bf16.gmra.mrb[0].mxu0 %v4698
        %v8899 = vpop.f32.mrb[0].mxu0
        %v8900 = vadd.f32 0.0, %v8899
        %v8901 = vpop.f32.mrb[0].mxu0
        %v8902 = vadd.f32 0.0, %v8901
        %v8903 = vpop.f32.mrb[0].mxu0
        %v8904 = vadd.f32 0.0, %v8903
        %v8905 = vpop.f32.mrb[0].mxu0
        %v8906 = vadd.f32 0.0, %v8905
        %8907 = vmatprep.mubr.bf16.mxu0 0
        %8908 = vmatmul.mubr.bf16.gmra.mrb[0].mxu0 %v4699
        %v8909 = vpop.f32.mrb[0].mxu0
        %v8910 = vadd.f32 0.0, %v8909
        %v8911 = vpop.f32.mrb[0].mxu0
        %v8912 = vadd.f32 0.0, %v8911
        %v8913 = vpop.f32.mrb[0].mxu0
        %v8914 = vadd.f32 0.0, %v8913
        %v8915 = vpop.f32.mrb[0].mxu0
        %v8916 = vadd.f32 0.0, %v8915
        %8917 = vmatprep.mubr.bf16.mxu0 0
        %8918 = vmatmul.mubr.bf16.gmra.mrb[0].mxu0 %v4700
        %v8919 = vpop.f32.mrb[0].mxu0
        %v8920 = vadd.f32 0.0, %v8919
        %v8921 = vpop.f32.mrb[0].mxu0
        %v8922 = vadd.f32 0.0, %v8921
        %v8923 = vpop.f32.mrb[0].mxu0
        %v8924 = vadd.f32 0.0, %v8923
        %v8925 = vpop.f32.mrb[0].mxu0
        %v8926 = vadd.f32 0.0, %v8925
        %8927 = vmatprep.mubr.bf16.mxu0 0
        %8928 = vmatmul.mubr.bf16.gmra.mrb[0].mxu0 %v4701
        %v8929 = vpop.f32.mrb[0].mxu0
        %v8930 = vadd.f32 0.0, %v8929
        %v8931 = vpop.f32.mrb[0].mxu0
        %v8932 = vadd.f32 0.0, %v8931
        %v8933 = vpop.f32.mrb[0].mxu0
        %v8934 = vadd.f32 0.0, %v8933
        %v8935 = vpop.f32.mrb[0].mxu0
        %v8936 = vadd.f32 0.0, %v8935
        %8937 = vmatprep.mubr.bf16.mxu0 0
        %8938 = vmatmul.mubr.bf16.gmra.mrb[0].mxu0 %v4702
        %v8939 = vpop.f32.mrb[0].mxu0
        %v8940 = vadd.f32 0.0, %v8939
        %v8941 = vpop.f32.mrb[0].mxu0
        %v8942 = vadd.f32 0.0, %v8941
        %v8943 = vpop.f32.mrb[0].mxu0
        %v8944 = vadd.f32 0.0, %v8943
        %v8945 = vpop.f32.mrb[0].mxu0
        %v8946 = vadd.f32 0.0, %v8945
        %8947 = vmatprep.mubr.bf16.mxu0 0
        %8948 = vmatmul.mubr.bf16.gmra.mrb[0].mxu0 %v4703
        %v8949 = vpop.f32.mrb[0].mxu0
        %v8950 = vadd.f32 0.0, %v8949
        %v8951 = vpop.f32.mrb[0].mxu0
        %v8952 = vadd.f32 0.0, %v8951
        %v8953 = vpop.f32.mrb[0].mxu0
        %v8954 = vadd.f32 0.0, %v8953
        %v8955 = vpop.f32.mrb[0].mxu0
        %v8956 = vadd.f32 0.0, %v8955
        %8957 = vmatprep.mubr.bf16.mxu0 0
        %8958 = vmatmul.mubr.bf16.gmra.mrb[0].mxu0 %v4704
        %v8959 = vpop.f32.mrb[0].mxu0
        %v8960 = vadd.f32 0.0, %v8959
        %v8961 = vpop.f32.mrb[0].mxu0
        %v8962 = vadd.f32 0.0, %v8961
        %v8963 = vpop.f32.mrb[0].mxu0
        %v8964 = vadd.f32 0.0, %v8963
        %v8965 = vpop.f32.mrb[0].mxu0
        %v8966 = vadd.f32 0.0, %v8965
        %8967 = vmatprep.mubr.bf16.mxu0 0
        %8968 = vmatmul.mubr.bf16.gmra.mrb[0].mxu0 %v4705
        %v8969 = vpop.f32.mrb[0].mxu0
        %v8970 = vadd.f32 0.0, %v8969
        %v8971 = vpop.f32.mrb[0].mxu0
        %v8972 = vadd.f32 0.0, %v8971
        %v8973 = vpop.f32.mrb[0].mxu0
        %v8974 = vadd.f32 0.0, %v8973
        %v8975 = vpop.f32.mrb[0].mxu0
        %v8976 = vadd.f32 0.0, %v8975
        %8977 = vmatprep.mubr.bf16.mxu0 0
        %8978 = vmatmul.mubr.bf16.gmra.mrb[0].mxu0 %v4706
        %v8979 = vpop.f32.mrb[0].mxu0
        %v8980 = vadd.f32 0.0, %v8979
        %v8981 = vpop.f32.mrb[0].mxu0
        %v8982 = vadd.f32 0.0, %v8981
        %v8983 = vpop.f32.mrb[0].mxu0
        %v8984 = vadd.f32 0.0, %v8983
        %v8985 = vpop.f32.mrb[0].mxu0
        %v8986 = vadd.f32 0.0, %v8985
        %8987 = vmatprep.mubr.bf16.mxu0 0
        %8988 = vmatmul.mubr.bf16.gmra.mrb[0].mxu0 %v4707
        %v8989 = vpop.f32.mrb[0].mxu0
        %v8990 = vadd.f32 0.0, %v8989
        %v8991 = vpop.f32.mrb[0].mxu0
        %v8992 = vadd.f32 0.0, %v8991
        %v8993 = vpop.f32.mrb[0].mxu0
        %v8994 = vadd.f32 0.0, %v8993
        %v8995 = vpop.f32.mrb[0].mxu0
        %v8996 = vadd.f32 0.0, %v8995
        %8997 = vmatprep.mubr.bf16.mxu0 0
        %8998 = vmatmul.mubr.bf16.gmra.mrb[0].mxu0 %v4708
        %v8999 = vpop.f32.mrb[0].mxu0
        %v9000 = vadd.f32 0.0, %v8999
        %v9001 = vpop.f32.mrb[0].mxu0
        %v9002 = vadd.f32 0.0, %v9001
        %v9003 = vpop.f32.mrb[0].mxu0
        %v9004 = vadd.f32 0.0, %v9003
        %v9005 = vpop.f32.mrb[0].mxu0
        %v9006 = vadd.f32 0.0, %v9005
        %9007 = vmatprep.mubr.bf16.mxu0 0
        %9008 = vmatmul.mubr.bf16.gmra.mrb[0].mxu0 %v4709
        %v9009 = vpop.f32.mrb[0].mxu0
        %v9010 = vadd.f32 0.0, %v9009
        %v9011 = vpop.f32.mrb[0].mxu0
        %v9012 = vadd.f32 0.0, %v9011
        %v9013 = vpop.f32.mrb[0].mxu0
        %v9014 = vadd.f32 0.0, %v9013
        %v9015 = vpop.f32.mrb[0].mxu0
        %v9016 = vadd.f32 0.0, %v9015
        %9017 = vmatprep.mubr.bf16.mxu0 0
        %9018 = vmatmul.mubr.bf16.gmra.mrb[0].mxu0 %v4710
        %v9019 = vpop.f32.mrb[0].mxu0
        %v9020 = vadd.f32 0.0, %v9019
        %v9021 = vpop.f32.mrb[0].mxu0
        %v9022 = vadd.f32 0.0, %v9021
        %v9023 = vpop.f32.mrb[0].mxu0
        %v9024 = vadd.f32 0.0, %v9023
        %v9025 = vpop.f32.mrb[0].mxu0
        %v9026 = vadd.f32 0.0, %v9025
        %9027 = vmatprep.mubr.bf16.mxu0 0
        %9028 = vmatmul.mubr.bf16.gmra.mrb[0].mxu0 %v4711
        %v9029 = vpop.f32.mrb[0].mxu0
        %v9030 = vadd.f32 0.0, %v9029
        %v9031 = vpop.f32.mrb[0].mxu0
        %v9032 = vadd.f32 0.0, %v9031
        %v9033 = vpop.f32.mrb[0].mxu0
        %v9034 = vadd.f32 0.0, %v9033
        %v9035 = vpop.f32.mrb[0].mxu0
        %v9036 = vadd.f32 0.0, %v9035
        %9037 = vmatprep.mubr.bf16.mxu0 0
        %9038 = vmatmul.mubr.bf16.gmra.mrb[0].mxu0 %v4712
        %v9039 = vpop.f32.mrb[0].mxu0
        %v9040 = vadd.f32 0.0, %v9039
        %v9041 = vpop.f32.mrb[0].mxu0
        %v9042 = vadd.f32 0.0, %v9041
        %v9043 = vpop.f32.mrb[0].mxu0
        %v9044 = vadd.f32 0.0, %v9043
        %v9045 = vpop.f32.mrb[0].mxu0
        %v9046 = vadd.f32 0.0, %v9045
        %9047 = vmatprep.mubr.bf16.mxu0 0
        %9048 = vmatmul.mubr.bf16.gmra.mrb[0].mxu0 %v4713
        %v9049 = vpop.f32.mrb[0].mxu0
        %v9050 = vadd.f32 0.0, %v9049
        %v9051 = vpop.f32.mrb[0].mxu0
        %v9052 = vadd.f32 0.0, %v9051
        %v9053 = vpop.f32.mrb[0].mxu0
        %v9054 = vadd.f32 0.0, %v9053
        %v9055 = vpop.f32.mrb[0].mxu0
        %v9056 = vadd.f32 0.0, %v9055
        %9057 = vmatprep.mubr.bf16.mxu0 0
        %9058 = vmatmul.mubr.bf16.gmra.mrb[0].mxu0 %v4714
        %v9059 = vpop.f32.mrb[0].mxu0
        %v9060 = vadd.f32 0.0, %v9059
        %v9061 = vpop.f32.mrb[0].mxu0
        %v9062 = vadd.f32 0.0, %v9061
        %v9063 = vpop.f32.mrb[0].mxu0
        %v9064 = vadd.f32 0.0, %v9063
        %v9065 = vpop.f32.mrb[0].mxu0
        %v9066 = vadd.f32 0.0, %v9065
        %9067 = vmatprep.mubr.bf16.mxu0 0
        %9068 = vmatmul.mubr.bf16.gmra.mrb[0].mxu0 %v4715
        %v9069 = vpop.f32.mrb[0].mxu0
        %v9070 = vadd.f32 0.0, %v9069
        %v9071 = vpop.f32.mrb[0].mxu0
        %v9072 = vadd.f32 0.0, %v9071
        %v9073 = vpop.f32.mrb[0].mxu0
        %v9074 = vadd.f32 0.0, %v9073
        %v9075 = vpop.f32.mrb[0].mxu0
        %v9076 = vadd.f32 0.0, %v9075
        %9077 = vmatprep.mubr.bf16.mxu0 0
        %9078 = vmatmul.mubr.bf16.gmra.mrb[0].mxu0 %v4716
        %v9079 = vpop.f32.mrb[0].mxu0
        %v9080 = vadd.f32 0.0, %v9079
        %v9081 = vpop.f32.mrb[0].mxu0
        %v9082 = vadd.f32 0.0, %v9081
        %v9083 = vpop.f32.mrb[0].mxu0
        %v9084 = vadd.f32 0.0, %v9083
        %v9085 = vpop.f32.mrb[0].mxu0
        %v9086 = vadd.f32 0.0, %v9085
        %9087 = vmatprep.mubr.bf16.mxu0 0
        %9088 = vmatmul.mubr.bf16.gmra.mrb[0].mxu0 %v4717
        %v9089 = vpop.f32.mrb[0].mxu0
        %v9090 = vadd.f32 0.0, %v9089
        %v9091 = vpop.f32.mrb[0].mxu0
        %v9092 = vadd.f32 0.0, %v9091
        %v9093 = vpop.f32.mrb[0].mxu0
        %v9094 = vadd.f32 0.0, %v9093
        %v9095 = vpop.f32.mrb[0].mxu0
        %v9096 = vadd.f32 0.0, %v9095
        %9097 = vmatprep.mubr.bf16.mxu0 0
        %9098 = vmatmul.mubr.bf16.gmra.mrb[0].mxu0 %v4718
        %v9099 = vpop.f32.mrb[0].mxu0
        %v9100 = vadd.f32 0.0, %v9099
        %v9101 = vpop.f32.mrb[0].mxu0
        %v9102 = vadd.f32 0.0, %v9101
        %v9103 = vpop.f32.mrb[0].mxu0
        %v9104 = vadd.f32 0.0, %v9103
        %v9105 = vpop.f32.mrb[0].mxu0
        %v9106 = vadd.f32 0.0, %v9105
        %9107 = vmatprep.mubr.bf16.mxu0 0
        %9108 = vmatmul.mubr.bf16.gmra.mrb[0].mxu0 %v4719
        %v9109 = vpop.f32.mrb[0].mxu0
        %v9110 = vadd.f32 0.0, %v9109
        %v9111 = vpop.f32.mrb[0].mxu0
        %v9112 = vadd.f32 0.0, %v9111
        %v9113 = vpop.f32.mrb[0].mxu0
        %v9114 = vadd.f32 0.0, %v9113
        %v9115 = vpop.f32.mrb[0].mxu0
        %v9116 = vadd.f32 0.0, %v9115
        %9117 = vmatprep.mubr.bf16.mxu0 0
        %9118 = vmatmul.mubr.bf16.gmra.mrb[0].mxu0 %v4720
        %v9119 = vpop.f32.mrb[0].mxu0
        %v9120 = vadd.f32 0.0, %v9119
        %v9121 = vpop.f32.mrb[0].mxu0
        %v9122 = vadd.f32 0.0, %v9121
        %v9123 = vpop.f32.mrb[0].mxu0
        %v9124 = vadd.f32 0.0, %v9123
        %v9125 = vpop.f32.mrb[0].mxu0
        %v9126 = vadd.f32 0.0, %v9125
        %9127 = vmatprep.mubr.bf16.mxu0 0
        %9128 = vmatmul.mubr.bf16.gmra.mrb[0].mxu0 %v4721
        %v9129 = vpop.f32.mrb[0].mxu0
        %v9130 = vadd.f32 0.0, %v9129
        %v9131 = vpop.f32.mrb[0].mxu0
        %v9132 = vadd.f32 0.0, %v9131
        %v9133 = vpop.f32.mrb[0].mxu0
        %v9134 = vadd.f32 0.0, %v9133
        %v9135 = vpop.f32.mrb[0].mxu0
        %v9136 = vadd.f32 0.0, %v9135
        %9137 = vmatprep.mubr.bf16.mxu0 0
        %9138 = vmatmul.mubr.bf16.gmra.mrb[0].mxu0 %v4722
        %v9139 = vpop.f32.mrb[0].mxu0
        %v9140 = vadd.f32 0.0, %v9139
        %v9141 = vpop.f32.mrb[0].mxu0
        %v9142 = vadd.f32 0.0, %v9141
        %v9143 = vpop.f32.mrb[0].mxu0
        %v9144 = vadd.f32 0.0, %v9143
        %v9145 = vpop.f32.mrb[0].mxu0
        %v9146 = vadd.f32 0.0, %v9145
        %9147 = vdwg.mxu0
        %9148 = vmatprep.subr.bf16.mxu0 0
        %9149 = vmatpush1.bf16.msra.mxu0 %v8749
        %9150 = vmatprep.subr.bf16.mxu0 0
        %9151 = vmatpush1.bf16.msra.mxu0 %v8752
        %9152 = vmatprep.subr.bf16.mxu0 0
        %9153 = vmatpush1.bf16.msra.mxu0 %v8755
        %9154 = vmatprep.subr.bf16.mxu0 0
        %9155 = vmatpush1.bf16.msra.mxu0 %v8758
        %9156 = vmatprep.subr.bf16.mxu0 0
        %9157 = vmatpush1.bf16.msra.mxu0 %v8761
        %9158 = vmatprep.subr.bf16.mxu0 0
        %9159 = vmatpush1.bf16.msra.mxu0 %v8764
        %9160 = vmatprep.subr.bf16.mxu0 0
        %9161 = vmatpush1.bf16.msra.mxu0 %v8767
        %9162 = vmatprep.subr.bf16.mxu0 0
        %9163 = vmatpush1.bf16.msra.mxu0 %v8770
        %9164 = vmatprep.subr.bf16.mxu0 0
        %9165 = vmatpush1.bf16.msra.mxu0 0
        %9166 = vmatprep.subr.bf16.mxu0 0
        %9167 = vmatpush1.bf16.msra.mxu0 0
        %9168 = vmatprep.subr.bf16.mxu0 0
        %9169 = vmatpush1.bf16.msra.mxu0 0
        %9170 = vmatprep.subr.bf16.mxu0 0
        %9171 = vmatpush1.bf16.msra.mxu0 0
        %9172 = vmatprep.subr.bf16.mxu0 0
        %9173 = vmatpush1.bf16.msra.mxu0 0
        %9174 = vmatprep.subr.bf16.mxu0 0
        %9175 = vmatpush1.bf16.msra.mxu0 0
        %9176 = vmatprep.subr.bf16.mxu0 0
        %9177 = vmatpush1.bf16.msra.mxu0 0
        %9178 = vmatprep.subr.bf16.mxu0 0
        %9179 = vmatpush1.bf16.msra.mxu0 0
        %9180 = vmatprep.mubr.bf16.mxu0 0
        %9181 = vmatmul.mubr.bf16.gmra.mrb[0].mxu0 %v4691
        %v9182 = vpop.f32.mrb[0].mxu0
        %v9183 = vadd.f32 0.0, %v9182
        %v9184 = vpop.f32.mrb[0].mxu0
        %v9185 = vpop.f32.mrb[0].mxu0
        %v9186 = vadd.f32 0.0, %v9185
        %v9187 = vpop.f32.mrb[0].mxu0
        %9188 = vmatprep.mubr.bf16.mxu0 0
        %9189 = vmatmul.mubr.bf16.gmra.mrb[0].mxu0 %v4692
        %v9190 = vpop.f32.mrb[0].mxu0
        %v9191 = vadd.f32 0.0, %v9190
        %v9192 = vpop.f32.mrb[0].mxu0
        %v9193 = vpop.f32.mrb[0].mxu0
        %v9194 = vadd.f32 0.0, %v9193
        %v9195 = vpop.f32.mrb[0].mxu0
        %9196 = vmatprep.mubr.bf16.mxu0 0
        %9197 = vmatmul.mubr.bf16.gmra.mrb[0].mxu0 %v4693
        %v9198 = vpop.f32.mrb[0].mxu0
        %v9199 = vadd.f32 0.0, %v9198
        %v9200 = vpop.f32.mrb[0].mxu0
        %v9201 = vpop.f32.mrb[0].mxu0
        %v9202 = vadd.f32 0.0, %v9201
        %v9203 = vpop.f32.mrb[0].mxu0
        %9204 = vmatprep.mubr.bf16.mxu0 0
        %9205 = vmatmul.mubr.bf16.gmra.mrb[0].mxu0 %v4694
        %v9206 = vpop.f32.mrb[0].mxu0
        %v9207 = vadd.f32 0.0, %v9206
        %v9208 = vpop.f32.mrb[0].mxu0
        %v9209 = vpop.f32.mrb[0].mxu0
        %v9210 = vadd.f32 0.0, %v9209
        %v9211 = vpop.f32.mrb[0].mxu0
        %9212 = vmatprep.mubr.bf16.mxu0 0
        %9213 = vmatmul.mubr.bf16.gmra.mrb[0].mxu0 %v4695
        %v9214 = vpop.f32.mrb[0].mxu0
        %v9215 = vadd.f32 0.0, %v9214
        %v9216 = vpop.f32.mrb[0].mxu0
        %v9217 = vpop.f32.mrb[0].mxu0
        %v9218 = vadd.f32 0.0, %v9217
        %v9219 = vpop.f32.mrb[0].mxu0
        %9220 = vmatprep.mubr.bf16.mxu0 0
        %9221 = vmatmul.mubr.bf16.gmra.mrb[0].mxu0 %v4696
        %v9222 = vpop.f32.mrb[0].mxu0
        %v9223 = vadd.f32 0.0, %v9222
        %v9224 = vpop.f32.mrb[0].mxu0
        %v9225 = vpop.f32.mrb[0].mxu0
        %v9226 = vadd.f32 0.0, %v9225
        %v9227 = vpop.f32.mrb[0].mxu0
        %9228 = vmatprep.mubr.bf16.mxu0 0
        %9229 = vmatmul.mubr.bf16.gmra.mrb[0].mxu0 %v4697
        %v9230 = vpop.f32.mrb[0].mxu0
        %v9231 = vadd.f32 0.0, %v9230
        %v9232 = vpop.f32.mrb[0].mxu0
        %v9233 = vpop.f32.mrb[0].mxu0
        %v9234 = vadd.f32 0.0, %v9233
        %v9235 = vpop.f32.mrb[0].mxu0
        %9236 = vmatprep.mubr.bf16.mxu0 0
        %9237 = vmatmul.mubr.bf16.gmra.mrb[0].mxu0 %v4698
        %v9238 = vpop.f32.mrb[0].mxu0
        %v9239 = vadd.f32 0.0, %v9238
        %v9240 = vpop.f32.mrb[0].mxu0
        %v9241 = vpop.f32.mrb[0].mxu0
        %v9242 = vadd.f32 0.0, %v9241
        %v9243 = vpop.f32.mrb[0].mxu0
        %9244 = vmatprep.mubr.bf16.mxu0 0
        %9245 = vmatmul.mubr.bf16.gmra.mrb[0].mxu0 %v4699
        %v9246 = vpop.f32.mrb[0].mxu0
        %v9247 = vadd.f32 0.0, %v9246
        %v9248 = vpop.f32.mrb[0].mxu0
        %v9249 = vpop.f32.mrb[0].mxu0
        %v9250 = vadd.f32 0.0, %v9249
        %v9251 = vpop.f32.mrb[0].mxu0
        %9252 = vmatprep.mubr.bf16.mxu0 0
        %9253 = vmatmul.mubr.bf16.gmra.mrb[0].mxu0 %v4700
        %v9254 = vpop.f32.mrb[0].mxu0
        %v9255 = vadd.f32 0.0, %v9254
        %v9256 = vpop.f32.mrb[0].mxu0
        %v9257 = vpop.f32.mrb[0].mxu0
        %v9258 = vadd.f32 0.0, %v9257
        %v9259 = vpop.f32.mrb[0].mxu0
        %9260 = vmatprep.mubr.bf16.mxu0 0
        %9261 = vmatmul.mubr.bf16.gmra.mrb[0].mxu0 %v4701
        %v9262 = vpop.f32.mrb[0].mxu0
        %v9263 = vadd.f32 0.0, %v9262
        %v9264 = vpop.f32.mrb[0].mxu0
        %v9265 = vpop.f32.mrb[0].mxu0
        %v9266 = vadd.f32 0.0, %v9265
        %v9267 = vpop.f32.mrb[0].mxu0
        %9268 = vmatprep.mubr.bf16.mxu0 0
        %9269 = vmatmul.mubr.bf16.gmra.mrb[0].mxu0 %v4702
        %v9270 = vpop.f32.mrb[0].mxu0
        %v9271 = vadd.f32 0.0, %v9270
        %v9272 = vpop.f32.mrb[0].mxu0
        %v9273 = vpop.f32.mrb[0].mxu0
        %v9274 = vadd.f32 0.0, %v9273
        %v9275 = vpop.f32.mrb[0].mxu0
        %9276 = vmatprep.mubr.bf16.mxu0 0
        %9277 = vmatmul.mubr.bf16.gmra.mrb[0].mxu0 %v4703
        %v9278 = vpop.f32.mrb[0].mxu0
        %v9279 = vadd.f32 0.0, %v9278
        %v9280 = vpop.f32.mrb[0].mxu0
        %v9281 = vpop.f32.mrb[0].mxu0
        %v9282 = vadd.f32 0.0, %v9281
        %v9283 = vpop.f32.mrb[0].mxu0
        %9284 = vmatprep.mubr.bf16.mxu0 0
        %9285 = vmatmul.mubr.bf16.gmra.mrb[0].mxu0 %v4704
        %v9286 = vpop.f32.mrb[0].mxu0
        %v9287 = vadd.f32 0.0, %v9286
        %v9288 = vpop.f32.mrb[0].mxu0
        %v9289 = vpop.f32.mrb[0].mxu0
        %v9290 = vadd.f32 0.0, %v9289
        %v9291 = vpop.f32.mrb[0].mxu0
        %9292 = vmatprep.mubr.bf16.mxu0 0
        %9293 = vmatmul.mubr.bf16.gmra.mrb[0].mxu0 %v4705
        %v9294 = vpop.f32.mrb[0].mxu0
        %v9295 = vadd.f32 0.0, %v9294
        %v9296 = vpop.f32.mrb[0].mxu0
        %v9297 = vpop.f32.mrb[0].mxu0
        %v9298 = vadd.f32 0.0, %v9297
        %v9299 = vpop.f32.mrb[0].mxu0
        %9300 = vmatprep.mubr.bf16.mxu0 0
        %9301 = vmatmul.mubr.bf16.gmra.mrb[0].mxu0 %v4706
        %v9302 = vpop.f32.mrb[0].mxu0
        %v9303 = vadd.f32 0.0, %v9302
        %v9304 = vpop.f32.mrb[0].mxu0
        %v9305 = vpop.f32.mrb[0].mxu0
        %v9306 = vadd.f32 0.0, %v9305
        %v9307 = vpop.f32.mrb[0].mxu0
        %9308 = vmatprep.mubr.bf16.mxu0 0
        %9309 = vmatmul.mubr.bf16.gmra.mrb[0].mxu0 %v4707
        %v9310 = vpop.f32.mrb[0].mxu0
        %v9311 = vadd.f32 0.0, %v9310
        %v9312 = vpop.f32.mrb[0].mxu0
        %v9313 = vpop.f32.mrb[0].mxu0
        %v9314 = vadd.f32 0.0, %v9313
        %v9315 = vpop.f32.mrb[0].mxu0
        %9316 = vmatprep.mubr.bf16.mxu0 0
        %9317 = vmatmul.mubr.bf16.gmra.mrb[0].mxu0 %v4708
        %v9318 = vpop.f32.mrb[0].mxu0
        %v9319 = vadd.f32 0.0, %v9318
        %v9320 = vpop.f32.mrb[0].mxu0
        %v9321 = vpop.f32.mrb[0].mxu0
        %v9322 = vadd.f32 0.0, %v9321
        %v9323 = vpop.f32.mrb[0].mxu0
        %9324 = vmatprep.mubr.bf16.mxu0 0
        %9325 = vmatmul.mubr.bf16.gmra.mrb[0].mxu0 %v4709
        %v9326 = vpop.f32.mrb[0].mxu0
        %v9327 = vadd.f32 0.0, %v9326
        %v9328 = vpop.f32.mrb[0].mxu0
        %v9329 = vpop.f32.mrb[0].mxu0
        %v9330 = vadd.f32 0.0, %v9329
        %v9331 = vpop.f32.mrb[0].mxu0
        %9332 = vmatprep.mubr.bf16.mxu0 0
        %9333 = vmatmul.mubr.bf16.gmra.mrb[0].mxu0 %v4710
        %v9334 = vpop.f32.mrb[0].mxu0
        %v9335 = vadd.f32 0.0, %v9334
        %v9336 = vpop.f32.mrb[0].mxu0
        %v9337 = vpop.f32.mrb[0].mxu0
        %v9338 = vadd.f32 0.0, %v9337
        %v9339 = vpop.f32.mrb[0].mxu0
        %9340 = vmatprep.mubr.bf16.mxu0 0
        %9341 = vmatmul.mubr.bf16.gmra.mrb[0].mxu0 %v4711
        %v9342 = vpop.f32.mrb[0].mxu0
        %v9343 = vadd.f32 0.0, %v9342
        %v9344 = vpop.f32.mrb[0].mxu0
        %v9345 = vpop.f32.mrb[0].mxu0
        %v9346 = vadd.f32 0.0, %v9345
        %v9347 = vpop.f32.mrb[0].mxu0
        %9348 = vmatprep.mubr.bf16.mxu0 0
        %9349 = vmatmul.mubr.bf16.gmra.mrb[0].mxu0 %v4712
        %v9350 = vpop.f32.mrb[0].mxu0
        %v9351 = vadd.f32 0.0, %v9350
        %v9352 = vpop.f32.mrb[0].mxu0
        %v9353 = vpop.f32.mrb[0].mxu0
        %v9354 = vadd.f32 0.0, %v9353
        %v9355 = vpop.f32.mrb[0].mxu0
        %9356 = vmatprep.mubr.bf16.mxu0 0
        %9357 = vmatmul.mubr.bf16.gmra.mrb[0].mxu0 %v4713
        %v9358 = vpop.f32.mrb[0].mxu0
        %v9359 = vadd.f32 0.0, %v9358
        %v9360 = vpop.f32.mrb[0].mxu0
        %v9361 = vpop.f32.mrb[0].mxu0
        %v9362 = vadd.f32 0.0, %v9361
        %v9363 = vpop.f32.mrb[0].mxu0
        %9364 = vmatprep.mubr.bf16.mxu0 0
        %9365 = vmatmul.mubr.bf16.gmra.mrb[0].mxu0 %v4714
        %v9366 = vpop.f32.mrb[0].mxu0
        %v9367 = vadd.f32 0.0, %v9366
        %v9368 = vpop.f32.mrb[0].mxu0
        %v9369 = vpop.f32.mrb[0].mxu0
        %v9370 = vadd.f32 0.0, %v9369
        %v9371 = vpop.f32.mrb[0].mxu0
        %9372 = vmatprep.mubr.bf16.mxu0 0
        %9373 = vmatmul.mubr.bf16.gmra.mrb[0].mxu0 %v4715
        %v9374 = vpop.f32.mrb[0].mxu0
        %v9375 = vadd.f32 0.0, %v9374
        %v9376 = vpop.f32.mrb[0].mxu0
        %v9377 = vpop.f32.mrb[0].mxu0
        %v9378 = vadd.f32 0.0, %v9377
        %v9379 = vpop.f32.mrb[0].mxu0
        %9380 = vmatprep.mubr.bf16.mxu0 0
        %9381 = vmatmul.mubr.bf16.gmra.mrb[0].mxu0 %v4716
        %v9382 = vpop.f32.mrb[0].mxu0
        %v9383 = vadd.f32 0.0, %v9382
        %v9384 = vpop.f32.mrb[0].mxu0
        %v9385 = vpop.f32.mrb[0].mxu0
        %v9386 = vadd.f32 0.0, %v9385
        %v9387 = vpop.f32.mrb[0].mxu0
        %9388 = vmatprep.mubr.bf16.mxu0 0
        %9389 = vmatmul.mubr.bf16.gmra.mrb[0].mxu0 %v4717
        %v9390 = vpop.f32.mrb[0].mxu0
        %v9391 = vadd.f32 0.0, %v9390
        %v9392 = vpop.f32.mrb[0].mxu0
        %v9393 = vpop.f32.mrb[0].mxu0
        %v9394 = vadd.f32 0.0, %v9393
        %v9395 = vpop.f32.mrb[0].mxu0
        %9396 = vmatprep.mubr.bf16.mxu0 0
        %9397 = vmatmul.mubr.bf16.gmra.mrb[0].mxu0 %v4718
        %v9398 = vpop.f32.mrb[0].mxu0
        %v9399 = vadd.f32 0.0, %v9398
        %v9400 = vpop.f32.mrb[0].mxu0
        %v9401 = vpop.f32.mrb[0].mxu0
        %v9402 = vadd.f32 0.0, %v9401
        %v9403 = vpop.f32.mrb[0].mxu0
        %9404 = vmatprep.mubr.bf16.mxu0 0
        %9405 = vmatmul.mubr.bf16.gmra.mrb[0].mxu0 %v4719
        %v9406 = vpop.f32.mrb[0].mxu0
        %v9407 = vadd.f32 0.0, %v9406
        %v9408 = vpop.f32.mrb[0].mxu0
        %v9409 = vpop.f32.mrb[0].mxu0
        %v9410 = vadd.f32 0.0, %v9409
        %v9411 = vpop.f32.mrb[0].mxu0
        %9412 = vmatprep.mubr.bf16.mxu0 0
        %9413 = vmatmul.mubr.bf16.gmra.mrb[0].mxu0 %v4720
        %v9414 = vpop.f32.mrb[0].mxu0
        %v9415 = vadd.f32 0.0, %v9414
        %v9416 = vpop.f32.mrb[0].mxu0
        %v9417 = vpop.f32.mrb[0].mxu0
        %v9418 = vadd.f32 0.0, %v9417
        %v9419 = vpop.f32.mrb[0].mxu0
        %9420 = vmatprep.mubr.bf16.mxu0 0
        %9421 = vmatmul.mubr.bf16.gmra.mrb[0].mxu0 %v4721
        %v9422 = vpop.f32.mrb[0].mxu0
        %v9423 = vadd.f32 0.0, %v9422
        %v9424 = vpop.f32.mrb[0].mxu0
        %v9425 = vpop.f32.mrb[0].mxu0
        %v9426 = vadd.f32 0.0, %v9425
        %v9427 = vpop.f32.mrb[0].mxu0
        %9428 = vmatprep.mubr.bf16.mxu0 0
        %9429 = vmatmul.mubr.bf16.gmra.mrb[0].mxu0 %v4722
        %v9430 = vpop.f32.mrb[0].mxu0
        %v9431 = vadd.f32 0.0, %v9430
        %v9432 = vpop.f32.mrb[0].mxu0
        %v9433 = vpop.f32.mrb[0].mxu0
        %v9434 = vadd.f32 0.0, %v9433
        %v9435 = vpop.f32.mrb[0].mxu0
        %9436 = vdwg.mxu0
        %v9437 = vadd.f32 %v8830, %v8832
        %v9438 = vadd.f32 %v8834, %v8836
        %v9439 = vadd.f32 %v8840, %v8842
        %v9440 = vadd.f32 %v8844, %v8846
        %v9441 = vadd.f32 %v8850, %v8852
        %v9442 = vadd.f32 %v8854, %v8856
        %v9443 = vadd.f32 %v8860, %v8862
        %v9444 = vadd.f32 %v8864, %v8866
        %v9445 = vadd.f32 %v8870, %v8872
        %v9446 = vadd.f32 %v8874, %v8876
        %v9447 = vadd.f32 %v8880, %v8882
        %v9448 = vadd.f32 %v8884, %v8886
        %v9449 = vadd.f32 %v8890, %v8892
        %v9450 = vadd.f32 %v8894, %v8896
        %v9451 = vadd.f32 %v8900, %v8902
        %v9452 = vadd.f32 %v8904, %v8906
        %v9453 = vadd.f32 %v8910, %v8912
        %v9454 = vadd.f32 %v8914, %v8916
        %v9455 = vadd.f32 %v8920, %v8922
        %v9456 = vadd.f32 %v8924, %v8926
        %v9457 = vadd.f32 %v8930, %v8932
        %v9458 = vadd.f32 %v8934, %v8936
        %v9459 = vadd.f32 %v8940, %v8942
        %v9460 = vadd.f32 %v8944, %v8946
        %v9461 = vadd.f32 %v8950, %v8952
        %v9462 = vadd.f32 %v8954, %v8956
        %v9463 = vadd.f32 %v8960, %v8962
        %v9464 = vadd.f32 %v8964, %v8966
        %v9465 = vadd.f32 %v8970, %v8972
        %v9466 = vadd.f32 %v8974, %v8976
        %v9467 = vadd.f32 %v8980, %v8982
        %v9468 = vadd.f32 %v8984, %v8986
        %v9469 = vadd.f32 %v8990, %v8992
        %v9470 = vadd.f32 %v8994, %v8996
        %v9471 = vadd.f32 %v9000, %v9002
        %v9472 = vadd.f32 %v9004, %v9006
        %v9473 = vadd.f32 %v9010, %v9012
        %v9474 = vadd.f32 %v9014, %v9016
        %v9475 = vadd.f32 %v9020, %v9022
        %v9476 = vadd.f32 %v9024, %v9026
        %v9477 = vadd.f32 %v9030, %v9032
        %v9478 = vadd.f32 %v9034, %v9036
        %v9479 = vadd.f32 %v9040, %v9042
        %v9480 = vadd.f32 %v9044, %v9046
        %v9481 = vadd.f32 %v9050, %v9052
        %v9482 = vadd.f32 %v9054, %v9056
        %v9483 = vadd.f32 %v9060, %v9062
        %v9484 = vadd.f32 %v9064, %v9066
        %v9485 = vadd.f32 %v9070, %v9072
        %v9486 = vadd.f32 %v9074, %v9076
        %v9487 = vadd.f32 %v9080, %v9082
        %v9488 = vadd.f32 %v9084, %v9086
        %v9489 = vadd.f32 %v9090, %v9092
        %v9490 = vadd.f32 %v9094, %v9096
        %v9491 = vadd.f32 %v9100, %v9102
        %v9492 = vadd.f32 %v9104, %v9106
        %v9493 = vadd.f32 %v9110, %v9112
        %v9494 = vadd.f32 %v9114, %v9116
        %v9495 = vadd.f32 %v9120, %v9122
        %v9496 = vadd.f32 %v9124, %v9126
        %v9497 = vadd.f32 %v9130, %v9132
        %v9498 = vadd.f32 %v9134, %v9136
        %v9499 = vadd.f32 %v9140, %v9142
        %v9500 = vadd.f32 %v9144, %v9146
        %v9501 = vadd.f32 %v9437, %v9183
        %v9502 = vadd.f32 %v9438, %v9186
        %v9503 = vadd.f32 %v9439, %v9191
        %v9504 = vadd.f32 %v9440, %v9194
        %v9505 = vadd.f32 %v9441, %v9199
        %v9506 = vadd.f32 %v9442, %v9202
        %v9507 = vadd.f32 %v9443, %v9207
        %v9508 = vadd.f32 %v9444, %v9210
        %v9509 = vadd.f32 %v9445, %v9215
        %v9510 = vadd.f32 %v9446, %v9218
        %v9511 = vadd.f32 %v9447, %v9223
        %v9512 = vadd.f32 %v9448, %v9226
        %v9513 = vadd.f32 %v9449, %v9231
        %v9514 = vadd.f32 %v9450, %v9234
        %v9515 = vadd.f32 %v9451, %v9239
        %v9516 = vadd.f32 %v9452, %v9242
        %v9517 = vadd.f32 %v9453, %v9247
        %v9518 = vadd.f32 %v9454, %v9250
        %v9519 = vadd.f32 %v9455, %v9255
        %v9520 = vadd.f32 %v9456, %v9258
        %v9521 = vadd.f32 %v9457, %v9263
        %v9522 = vadd.f32 %v9458, %v9266
        %v9523 = vadd.f32 %v9459, %v9271
        %v9524 = vadd.f32 %v9460, %v9274
        %v9525 = vadd.f32 %v9461, %v9279
        %v9526 = vadd.f32 %v9462, %v9282
        %v9527 = vadd.f32 %v9463, %v9287
        %v9528 = vadd.f32 %v9464, %v9290
        %v9529 = vadd.f32 %v9465, %v9295
        %v9530 = vadd.f32 %v9466, %v9298
        %v9531 = vadd.f32 %v9467, %v9303
        %v9532 = vadd.f32 %v9468, %v9306
        %v9533 = vadd.f32 %v9469, %v9311
        %v9534 = vadd.f32 %v9470, %v9314
        %v9535 = vadd.f32 %v9471, %v9319
        %v9536 = vadd.f32 %v9472, %v9322
        %v9537 = vadd.f32 %v9473, %v9327
        %v9538 = vadd.f32 %v9474, %v9330
        %v9539 = vadd.f32 %v9475, %v9335
        %v9540 = vadd.f32 %v9476, %v9338
        %v9541 = vadd.f32 %v9477, %v9343
        %v9542 = vadd.f32 %v9478, %v9346
        %v9543 = vadd.f32 %v9479, %v9351
        %v9544 = vadd.f32 %v9480, %v9354
        %v9545 = vadd.f32 %v9481, %v9359
        %v9546 = vadd.f32 %v9482, %v9362
        %v9547 = vadd.f32 %v9483, %v9367
        %v9548 = vadd.f32 %v9484, %v9370
        %v9549 = vadd.f32 %v9485, %v9375
        %v9550 = vadd.f32 %v9486, %v9378
        %v9551 = vadd.f32 %v9487, %v9383
        %v9552 = vadd.f32 %v9488, %v9386
        %v9553 = vadd.f32 %v9489, %v9391
        %v9554 = vadd.f32 %v9490, %v9394
        %v9555 = vadd.f32 %v9491, %v9399
        %v9556 = vadd.f32 %v9492, %v9402
        %v9557 = vadd.f32 %v9493, %v9407
        %v9558 = vadd.f32 %v9494, %v9410
        %v9559 = vadd.f32 %v9495, %v9415
        %v9560 = vadd.f32 %v9496, %v9418
        %v9561 = vadd.f32 %v9497, %v9423
        %v9562 = vadd.f32 %v9498, %v9426
        %v9563 = vadd.f32 %v9499, %v9431
        %v9564 = vadd.f32 %v9500, %v9434
        %9565 = vst [vmem:[%s243] sm:$0xff] %v9501
        %9566 = vst [vmem:[%s243 + $0x8] sm:$0xff] %v9502
        %9567 = vst [vmem:[%s243 + $0x10] sm:$0xff] %v9503
        %9568 = vst [vmem:[%s243 + $0x18] sm:$0xff] %v9504
        %9569 = vst [vmem:[%s243 + $0x20] sm:$0xff] %v9505
        %9570 = vst [vmem:[%s243 + $0x28] sm:$0xff] %v9506
        %9571 = vst [vmem:[%s243 + $0x30] sm:$0xff] %v9507
        %9572 = vst [vmem:[%s243 + $0x38] sm:$0xff] %v9508
        %9573 = vst [vmem:[%s243 + $0x40] sm:$0xff] %v9509
        %9574 = vst [vmem:[%s243 + $0x48] sm:$0xff] %v9510
        %9575 = vst [vmem:[%s243 + $0x50] sm:$0xff] %v9511
        %9576 = vst [vmem:[%s243 + $0x58] sm:$0xff] %v9512
        %9577 = vst [vmem:[%s243 + $0x60] sm:$0xff] %v9513
        %9578 = vst [vmem:[%s243 + $0x68] sm:$0xff] %v9514
        %9579 = vst [vmem:[%s243 + $0x70] sm:$0xff] %v9515
        %9580 = vst [vmem:[%s243 + $0x78] sm:$0xff] %v9516
        %9581 = vst [vmem:[%s243 + $0x80] sm:$0xff] %v9517
        %9582 = vst [vmem:[%s243 + $0x88] sm:$0xff] %v9518
        %9583 = vst [vmem:[%s243 + $0x90] sm:$0xff] %v9519
        %9584 = vst [vmem:[%s243 + $0x98] sm:$0xff] %v9520
        %9585 = vst [vmem:[%s243 + $0xa0] sm:$0xff] %v9521
        %9586 = vst [vmem:[%s243 + $0xa8] sm:$0xff] %v9522
        %9587 = vst [vmem:[%s243 + $0xb0] sm:$0xff] %v9523
        %9588 = vst [vmem:[%s243 + $0xb8] sm:$0xff] %v9524
        %9589 = vst [vmem:[%s243 + $0xc0] sm:$0xff] %v9525
        %9590 = vst [vmem:[%s243 + $0xc8] sm:$0xff] %v9526
        %9591 = vst [vmem:[%s243 + $0xd0] sm:$0xff] %v9527
        %9592 = vst [vmem:[%s243 + $0xd8] sm:$0xff] %v9528
        %9593 = vst [vmem:[%s243 + $0xe0] sm:$0xff] %v9529
        %9594 = vst [vmem:[%s243 + $0xe8] sm:$0xff] %v9530
        %9595 = vst [vmem:[%s243 + $0xf0] sm:$0xff] %v9531
        %9596 = vst [vmem:[%s243 + $0xf8] sm:$0xff] %v9532
        %9597 = vst [vmem:[%s243 + $0x100] sm:$0xff] %v9533
        %9598 = vst [vmem:[%s243 + $0x108] sm:$0xff] %v9534
        %9599 = vst [vmem:[%s243 + $0x110] sm:$0xff] %v9535
        %9600 = vst [vmem:[%s243 + $0x118] sm:$0xff] %v9536
        %9601 = vst [vmem:[%s243 + $0x120] sm:$0xff] %v9537
        %9602 = vst [vmem:[%s243 + $0x128] sm:$0xff] %v9538
        %9603 = vst [vmem:[%s243 + $0x130] sm:$0xff] %v9539
        %9604 = vst [vmem:[%s243 + $0x138] sm:$0xff] %v9540
        %9605 = vst [vmem:[%s243 + $0x140] sm:$0xff] %v9541
        %9606 = vst [vmem:[%s243 + $0x148] sm:$0xff] %v9542
        %9607 = vst [vmem:[%s243 + $0x150] sm:$0xff] %v9543
        %9608 = vst [vmem:[%s243 + $0x158] sm:$0xff] %v9544
        %9609 = vst [vmem:[%s243 + $0x160] sm:$0xff] %v9545
        %9610 = vst [vmem:[%s243 + $0x168] sm:$0xff] %v9546
        %9611 = vst [vmem:[%s243 + $0x170] sm:$0xff] %v9547
        %9612 = vst [vmem:[%s243 + $0x178] sm:$0xff] %v9548
        %9613 = vst [vmem:[%s243 + $0x180] sm:$0xff] %v9549
        %9614 = vst [vmem:[%s243 + $0x188] sm:$0xff] %v9550
        %9615 = vst [vmem:[%s243 + $0x190] sm:$0xff] %v9551
        %9616 = vst [vmem:[%s243 + $0x198] sm:$0xff] %v9552
        %9617 = vst [vmem:[%s243 + $0x1a0] sm:$0xff] %v9553
        %9618 = vst [vmem:[%s243 + $0x1a8] sm:$0xff] %v9554
        %9619 = vst [vmem:[%s243 + $0x1b0] sm:$0xff] %v9555
        %9620 = vst [vmem:[%s243 + $0x1b8] sm:$0xff] %v9556
        %9621 = vst [vmem:[%s243 + $0x1c0] sm:$0xff] %v9557
        %9622 = vst [vmem:[%s243 + $0x1c8] sm:$0xff] %v9558
        %9623 = vst [vmem:[%s243 + $0x1d0] sm:$0xff] %v9559
        %9624 = vst [vmem:[%s243 + $0x1d8] sm:$0xff] %v9560
        %9625 = vst [vmem:[%s243 + $0x1e0] sm:$0xff] %v9561
        %9626 = vst [vmem:[%s243 + $0x1e8] sm:$0xff] %v9562
        %9627 = vst [vmem:[%s243 + $0x1f0] sm:$0xff] %v9563
        %9628 = vst [vmem:[%s243 + $0x1f8] sm:$0xff] %v9564
        %s9629 = smul.u32 64, %s25
        %p9630 = scmp.lt.s32.totalorder %s24, 1
        %s9631 = scalar_select %p9630, %s24, 1
        %p9632 = scmp.lt.s32.totalorder %s9629, 63
        %s9633 = scalar_select %p9632, %s9629, 63
        %s9634 = smul.addr %s9631, 64
        %s9635 = sadd.s32 %s9633, %s9634
        %s9636 = smul.addr %s9635, 8
        %s9637 = scalar_lea.vmem %s3, %s9636
        %s9638 = sand.u32 %s140, 1
        %s9639 = scalar_lea.sflag [#allocation3], %s9638
        %s9640 = sand.u32 %s140, 1
        %s9641 = smul.addr %s9640, 512
        %s9642 = scalar_lea.vmem [#allocation5], %s9641
        // Predicated region
        $region37: #{psm_seq_embedding.1} parent=31 // pred_check
          %p9643 = pneg %p122
        $region38: #{psm_seq_embedding.1} parent=31 // pred_check_branch
          %9645 = sbr.rel (%p9643) target = $region40
        $region39: #{psm_seq_embedding.1} parent=31 // pred_region
          %s9646 = smul.u32 64, %s25
        $region40: #{psm_seq_embedding.1} parent=31 // pred_fallthru
          _
        // Predicated region
        $region41: #{psm_seq_embedding.1} parent=31 // pred_check
          %p9647 = pneg %p150
        $region42: #{psm_seq_embedding.1} parent=31 // pred_check_branch
          %9649 = sbr.rel (%p9647) target = $region44
        $region43: #{psm_seq_embedding.1} parent=31 // pred_region
          %s9650 = smul.u32 64, %s25
          %s9652 = ssub.s32 8192, 8192
          %9653 = vsyncadd %s9639, %s9652
          %s9654 = smul.addr %s24, 64
          %s9655 = sadd.s32 %s9650, %s9654
          %s9656 = smul.addr %s9655, 128
          %s9657 = scalar_lea.hbm %s4, %s9656
          %s9658 = sshll.u32 %s9642, 4
          %s9659 = int_to_ptr.vmem [resolvable:$true] %s9658
          %9664 = dma.vmem_to_hbm [thread:$0]  %s9659, 8192, %s9657, %s9639, 128, 128, 8
        $region44: #{psm_seq_embedding.1} parent=31 // pred_fallthru
          _
      $region32: #{psm_seq_embedding.1} parent=5 // pred_fallthru
        _
      %p9665 = scmp.le.s32.totalorder 2, %s15
      // Predicated region
      $region45: #{psm_seq_embedding.1} parent=5 // pred_check
        %p9666 = pneg %p9665
      $region46: #{psm_seq_embedding.1} parent=5 // pred_check_branch
        %9668 = sbr.rel (%p9666) target = $region48
      $region47: #{psm_seq_embedding.1} parent=5 // pred_region
        %s9669 = ssub.s32 %s15, 2
        // Predicated region
        $region49: #{psm_seq_embedding.1} parent=47 // pred_check
          %p9670 = pneg %p128
        $region50: #{psm_seq_embedding.1} parent=47 // pred_check_branch
          %9672 = sbr.rel (%p9670) target = $region52
        $region51: #{psm_seq_embedding.1} parent=47 // pred_region
          %s9673 = smul.u32 64, %s27
          %p9674 = scmp.lt.s32.totalorder %s26, 1
          %s9675 = scalar_select %p9674, %s26, 1
          %p9676 = scmp.lt.s32.totalorder %s9673, 63
          %s9677 = scalar_select %p9676, %s9673, 63
          %s9678 = smul.addr %s9675, 64
          %s9679 = sadd.s32 %s9677, %s9678
          %s9680 = smul.addr %s9679, 8
          %s9681 = scalar_lea.vmem %s3, %s9680
        $region52: #{psm_seq_embedding.1} parent=47 // pred_fallthru
          _
        // Predicated region
        $region53: #{psm_seq_embedding.1} parent=47 // pred_check
          %p9682 = pneg %p156
        $region54: #{psm_seq_embedding.1} parent=47 // pred_check_branch
          %9684 = sbr.rel (%p9682) target = $region56
        $region55: #{psm_seq_embedding.1} parent=47 // pred_region
          %s9685 = sand.u32 %s141, 1
          %s9686 = scalar_lea.sflag [#allocation3], %s9685
          %s9687 = sand.u32 %s141, 1
          %s9688 = smul.addr %s9687, 512
          %s9689 = scalar_lea.vmem [#allocation5], %s9688
          %9690 = dma.done %s9686, 8192
        $region56: #{psm_seq_embedding.1} parent=47 // pred_fallthru
          _
      $region48: #{psm_seq_embedding.1} parent=5 // pred_fallthru
        _
    $region6: #{psm_seq_embedding.1} parent=1 // loop_footer
      %s19 = sadd.s32 1, %s15
    $region7: #{psm_seq_embedding.1} parent=1 // loop_footer_branch
      %14 = sbr.rel target = $region3
    $region8: #{psm_seq_embedding.1} parent=1 // loop_exit
      _
    %9691 = vsyncpa [#allocation3], 1
    %s9692 = scalar_lea.sflag [#allocation3], 1
    %9693 = vsyncpa %s9692, 1
    %9694 = vsyncpa [#allocation4], 1
    %s9695 = scalar_lea.sflag [#allocation4], 1
    %9696 = vsyncpa %s9695, 1

</llo_original>
